<compile_context>
chip_gen: v5e
topology: v5e:2x2
jax: 0.10.0
libtpu: 0.0.40
codegen_flags: <defaults>
</compile_context>

<pallas_src>
import functools

import jax
import jax.numpy as jnp
import numpy as np
from jax.experimental import pallas as pl
from jax.experimental.pallas import tpu as pltpu

# ---------------- configuration (small, consistent with the module) ---------
N = 2                      # batch
MAIN_C = 8                 # main_channels
AUX_C = 4                  # aux_channels
CC = MAIN_C + AUX_C        # combined channels (= in/out planes of attention)
HEADS = 3                  # num_heads / groups
GP = CC // HEADS           # group_planes
GPH = GP // 2              # half group planes (q / k width)
NQ = HEADS * GPH           # total number of q (= k) channels
K = 16                     # kernel_size == spatial H == W
H = W = K
RK = K * K                 # lane width (whole image, lane = h*K + w)
EPS = 1e-5

# 8-sublane aligned padded channel layouts
CCP = 16                   # activations: CC real channels + 4 zero pad rows
QKVP = 32                  # qkv rows: q 0..5 | pad | k 8..13 | pad | v 16..27 | pad
Q_OFF, K_OFF, V_OFF = 0, 8, 16

_HI = jax.lax.Precision.HIGHEST


# ---------------------------- kernel helpers ---------------------------------
def _sdot(data, const_bf16, data_on_left=True):
    """Matmul of f32 data against an exact-in-bf16 0/1 constant.

    The data operand is split into hi + lo bf16 terms (~16 mantissa bits kept)
    and two native bf16 MXU passes are accumulated in f32.
    """
    f32 = jnp.float32
    hi = data.astype(jnp.bfloat16)
    lo = (data - hi.astype(f32)).astype(jnp.bfloat16)
    if data_on_left:
        return (jnp.dot(hi, const_bf16, preferred_element_type=f32)
                + jnp.dot(lo, const_bf16, preferred_element_type=f32))
    return (jnp.dot(const_bf16, hi, preferred_element_type=f32)
            + jnp.dot(const_bf16, lo, preferred_element_type=f32))


def _axial_pass(x, B, wq_ref, qb_ref, emb_ref, diag_ref, bsum_ref, ob_ref,
                ss_ref, sb_ref, expand, sel):
    """One axial attention for B batch elements stacked on the sublane axis.

    x: (B*CCP, RK) f32, lane = h*K + w for every pass (no lane re-ordering:
    the per-pass diag / bsum / embedding constants encode which lane coordinate
    is the attended axis).
    """
    f32 = jnp.float32
    bsum = bsum_ref[...]                                    # (RK, RK) bf16 0/1

    # qkv 1x1 conv; bn_qkv scale and the bn_output "sv" scale are folded into
    # the (reordered, padded, block-diagonal over batch) weight rows.
    qkv = jnp.dot(wq_ref[...], x, preferred_element_type=f32,
                  precision=_HI) + qb_ref[...]              # (B*QKVP, RK)

    # Spread every q channel over the attended axis (all batches/channels at
    # once): copy rows with the expand matmul, mask with diag, row-sum with bsum.
    nq_rows = B * NQ * K
    q_bcast = _sdot(qkv, expand, data_on_left=False)        # (B*NQ*K, RK)
    qspread = _sdot(q_bcast * diag_ref[pl.ds(0, nq_rows), :], bsum)

    # Per (batch, group) similarity logits + exp on compact (K, RK) maps.
    exps = []
    for b in range(B):
        for g in range(HEADS):
            qk = qr = kr = None
            for c in range(GPH):
                r0 = b * NQ * K + (g * GPH + c) * K
                qsp = qspread[r0:r0 + K]                    # (K, RK)
                kidx = b * QKVP + K_OFF + g * GPH + c
                krow = qkv[kidx:kidx + 1]                   # (1, RK)
                t_qk = qsp * krow
                t_qr = qsp * emb_ref[c]
                t_kr = krow * emb_ref[GPH + c]
                qk = t_qk if qk is None else qk + t_qk
                qr = t_qr if qr is None else qr + t_qr
                kr = t_kr if kr is None else kr + t_kr
            logits = (ss_ref[0, g] * qk + ss_ref[1, g] * qr
                      + ss_ref[2, g] * kr + sb_ref[g])
            # per-sublane max (>= every per-row max: softmax unchanged, exp safe
            # at these scales; a per-row max would need a segmented reduction).
            m = jnp.max(logits, axis=-1, keepdims=True)
            exps.append(jnp.exp(logits - m))

    e_all = jnp.concatenate(exps, axis=0)                   # (B*HEADS*K, RK)
    den = _sdot(e_all, bsum)                                # per-row denominators
    inv = pl.reciprocal(den, approx=False)

    # sv / sve for all output channels; bn_output scales are already folded
    # into the v rows (sv) and the v-embedding constant (sve).
    rows = []
    for b in range(B):
        for g in range(HEADS):
            i0 = (b * HEADS + g) * K
            sim = exps[b * HEADS + g] * inv[i0:i0 + K]      # (K, RK)
            for c in range(GP):
                cg = g * GP + c
                vidx = b * QKVP + V_OFF + cg
                vrow = qkv[vidx:vidx + 1]                   # (1, RK)
                rows.append(sim * (vrow + emb_ref[2 * GPH + cg]))
    m_all = jnp.concatenate(rows, axis=0)                   # (B*CC*K, RK)
    spread = _sdot(m_all, bsum)
    out = _sdot(spread * diag_ref[...], sel, data_on_left=False)  # (B*CCP, RK)
    return out + ob_ref[...]


def _fusion_kernel(x_ref,
                   wq1_ref, qb1_ref, emb1_ref, diag1_ref, bsum1_ref, ob1_ref,
                   wq2_ref, qb2_ref, emb2_ref, diag2_ref, bsum2_ref, ob2_ref,
                   expand_ref, sel_ref, cw_ref, cb_ref,
                   ss1_ref, sb1_ref, ss2_ref, sb2_ref,
                   o_ref, *, batch_block):
    """Axial-H, axial-W, residual and 1x1 conv for `batch_block` batch elems."""
    f32 = jnp.float32
    x = x_ref[...]                                          # (B*CCP, RK)
    cw = cw_ref[...]
    expand = expand_ref[...]
    sel = sel_ref[...]

    # Hoisted epilogue prologue: conv1x1 on the residual input is independent
    # of both attention passes -> issue it first (free MXU work in the bubbles).
    base = jnp.dot(cw, x, preferred_element_type=f32, precision=_HI) + cb_ref[...]

    # pass 1: rows = h, attend over w  (width=True in torch)
    y1 = _axial_pass(x, batch_block, wq1_ref, qb1_ref, emb1_ref, diag1_ref,
                     bsum1_ref, ob1_ref, ss1_ref, sb1_ref, expand, sel)
    # pass 2: rows = w, attend over h  (width=False), same lane layout (no perm)
    y2 = _axial_pass(y1, batch_block, wq2_ref, qb2_ref, emb2_ref, diag2_ref,
                     bsum2_ref, ob2_ref, ss2_ref, sb2_ref, expand, sel)

    # conv1x1(y2 + x) + b  ==  conv1x1(y2) + base
    o_ref[...] = jnp.dot(cw, y2, preferred_element_type=f32,
                         precision=_HI) + base
    # TODO(synk): batch_norm + FFN branch of the torch module is dead code
    # (its result is overwritten by `output = self.conv1x1(attention_out)`),
    # so it is intentionally not computed.


def _const_spec(a):
    ndim = a.ndim

    def index_map(s):
        return (0,) * ndim

    return pl.BlockSpec(a.shape, index_map)


def _fusion_pallas(x, p, B, n_batch):
    """x: (n_batch*CCP, RK) -> (n_batch*MAIN_C, RK)."""
    p1, p2 = p['p1'], p['p2']
    vmem_args = [p1['wq'], p1['qb'], p1['emb'], p1['diag'], p1['bsum'], p1['ob'],
                 p2['wq'], p2['qb'], p2['emb'], p2['diag'], p2['bsum'], p2['ob'],
                 p['expand'], p['sel'], p['cw'], p['cb']]
    smem_args = [p1['ss'], p1['sb'], p2['ss'], p2['sb']]
    smem_spec = pl.BlockSpec(memory_space=pltpu.MemorySpace.SMEM)

    in_specs = ([pl.BlockSpec((B * CCP, RK), lambda s: (s, 0))]
                + [_const_spec(a) for a in vmem_args]
                + [smem_spec] * len(smem_args))

    kernel = functools.partial(_fusion_kernel, batch_block=B)
    return pl.pallas_call(
        kernel,
        out_shape=jax.ShapeDtypeStruct((n_batch * MAIN_C, RK), jnp.float32),
        grid=(n_batch // B,),
        in_specs=in_specs,
        out_specs=pl.BlockSpec((B * MAIN_C, RK), lambda s: (s, 0)),
        compiler_params=pltpu.CompilerParams(
            dimension_semantics=("parallel",)),
    )(x, *vmem_args, *smem_args)


# ------------------------- parameters (deterministic) -----------------------
def init_bn(key, c):
    k1, k2, k3, k4 = jax.random.split(key, 4)
    gamma = 1.0 + 0.1 * jax.random.normal(k1, (c,), jnp.float32)
    beta = 0.1 * jax.random.normal(k2, (c,), jnp.float32)
    mean = 0.1 * jax.random.normal(k3, (c,), jnp.float32)
    var = 1.0 + 0.1 * jax.random.uniform(k4, (c,), jnp.float32)
    scale = gamma / jnp.sqrt(var + EPS)
    bias = beta - mean * scale
    return scale, bias


def init_axial(key):
    k1, k2, k3, k4, k5 = jax.random.split(key, 5)
    w_qkv = jax.random.normal(k1, (2 * CC, CC), jnp.float32) * np.sqrt(1.0 / CC)
    relative = jax.random.normal(k2, (2 * GP, 2 * K - 1), jnp.float32) * np.sqrt(1.0 / GP)
    qkv_s, qkv_b = init_bn(k3, 2 * CC)
    sim_s, sim_b = init_bn(k4, 3 * HEADS)
    out_s, out_b = init_bn(k5, 2 * CC)
    return dict(w_qkv=w_qkv, relative=relative,
                bn_qkv_scale=qkv_s, bn_qkv_bias=qkv_b,
                bn_sim_scale=sim_s, bn_sim_bias=sim_b,
                bn_out_scale=out_s, bn_out_bias=out_b)


def _block_diag(m, B):
    r, c = m.shape
    out = np.zeros((B * r, B * c), m.dtype)
    for b in range(B):
        out[b * r:(b + 1) * r, b * c:(b + 1) * c] = m
    return out


def build_pass_params(rp, B, second_pass):
    """Fold BNs, reorder/pad qkv rows, build per-pass structural constants."""
    f = lambda a: np.asarray(a, np.float32)
    w = f(rp['w_qkv'])
    qs, qb = f(rp['bn_qkv_scale']), f(rp['bn_qkv_bias'])
    out_s, out_b = f(rp['bn_out_scale']), f(rp['bn_out_bias'])
    sim_s, sim_b = f(rp['bn_sim_scale']), f(rp['bn_sim_bias'])
    rel = f(rp['relative'])
    osv, osve = out_s[0::2], out_s[1::2]
    ob = out_b[0::2] + out_b[1::2]

    # reordered + padded qkv weight / bias, with bn_qkv (and bn_output sv scale
    # for the v rows) folded into the weight rows.
    w_new = np.zeros((QKVP, CCP), np.float32)
    b_new = np.zeros((QKVP, 1), np.float32)
    for g in range(HEADS):
        for c in range(GPH):
            o = g * 2 * GP + c                               # q
            w_new[Q_OFF + g * GPH + c, :CC] = qs[o] * w[o]
            b_new[Q_OFF + g * GPH + c, 0] = qb[o]
            o = g * 2 * GP + GPH + c                         # k
            w_new[K_OFF + g * GPH + c, :CC] = qs[o] * w[o]
            b_new[K_OFF + g * GPH + c, 0] = qb[o]
        for c in range(GP):                                  # v (fold osv)
            o = g * 2 * GP + 2 * GPH + c
            cg = g * GP + c
            w_new[V_OFF + cg, :CC] = osv[cg] * qs[o] * w[o]
            b_new[V_OFF + cg, 0] = osv[cg] * qb[o]

    # relative embeddings -> (2GP, K, K), then spread along the lane axis.
    idx = np.arange(K)
    rel_idx = idx[:, None] - idx[None, :] + K - 1
    allemb = rel[:, rel_idx.reshape(-1)].reshape(2 * GP, K, K)
    qe, ke, ve = allemb[:GPH], allemb[GPH:2 * GPH], allemb[2 * GPH:]
    if second_pass:            # attended axis = h = lane // K
        spread_lane = lambda E: np.repeat(E, K, axis=2)
    else:                      # attended axis = w = lane % K
        spread_lane = lambda E: np.tile(E, (1, 1, K))
    qe_t = spread_lane(qe)                                    # (GPH, K, RK)
    ket_t = spread_lane(np.swapaxes(ke, 1, 2))                # (GPH, K, RK)
    ve_t = np.tile(spread_lane(ve), (HEADS, 1, 1)) * osve[:, None, None]
    emb = np.concatenate([qe_t, ket_t, ve_t], axis=0)         # (16, K, RK)

    ob_col = np.zeros((B * CCP, 1), np.float32)
    for b in range(B):
        ob_col[b * CCP:b * CCP + CC, 0] = ob

    # per-pass structural 0/1 constants (no perm matmul needed between passes)
    lane = np.arange(RK)
    blk, pos = lane // K, lane % K
    key_of_lane = blk if second_pass else pos    # attended-axis coordinate
    row_of_lane = pos if second_pass else blk    # independent-row coordinate
    rows = np.arange(B * CC * K)
    diag = (key_of_lane[None, :] == (rows % K)[:, None]).astype(np.float32)
    bsum = (row_of_lane[:, None] == row_of_lane[None, :]).astype(np.float32)

    return dict(
        wq=jnp.asarray(_block_diag(w_new, B)),
        qb=jnp.asarray(np.tile(b_new, (B, 1))),
        emb=jnp.asarray(emb),
        diag=jnp.asarray(diag),
        bsum=jnp.asarray(bsum, jnp.bfloat16),
        ob=jnp.asarray(ob_col),
        ss=jnp.asarray(sim_s.reshape(3, HEADS)),
        sb=jnp.asarray(sim_b.reshape(3, HEADS).sum(axis=0)),
    )


def build_shared_params(raw, B):
    cw = np.zeros((MAIN_C, CCP), np.float32)
    cw[:, :CC] = np.asarray(raw['conv_w'], np.float32)
    cb = np.asarray(raw['conv_b'], np.float32).reshape(MAIN_C, 1)

    expand = np.zeros((B * NQ * K, B * QKVP), np.float32)
    for b in range(B):
        for ch in range(NQ):
            expand[b * NQ * K + ch * K: b * NQ * K + (ch + 1) * K,
                   b * QKVP + Q_OFF + ch] = 1.0
    sel = np.zeros((B * CCP, B * CC * K), np.float32)
    for b in range(B):
        for cg in range(CC):
            sel[b * CCP + cg,
                b * CC * K + cg * K: b * CC * K + (cg + 1) * K] = 1.0

    return dict(expand=jnp.asarray(expand, jnp.bfloat16),
                sel=jnp.asarray(sel, jnp.bfloat16),
                cw=jnp.asarray(_block_diag(cw, B)),
                cb=jnp.asarray(np.tile(cb, (B, 1))))


def build_params(raw, B):
    params = dict(
        p1=build_pass_params(raw['att_h'], B, second_pass=False),
        p2=build_pass_params(raw['att_w'], B, second_pass=True),
    )
    params.update(build_shared_params(raw, B))
    return params


def _choose_batch_block():
    """Single-TensorCore chips (v5e/v6e): stack batch into M.  Else grid-parallel."""
    try:
        kind = jax.devices()[0].device_kind.lower()
    except Exception:
        return 1
    if ('lite' in kind) or ('v5e' in kind) or ('v6e' in kind):
        return N
    return 1


def make_fusion_fn(raw, batch_block):
    assert N % batch_block == 0
    params = build_params(raw, batch_block)

    @jax.jit
    def fwd(feature_main, feature_aux):
        combined = jnp.concatenate([feature_main, feature_aux], axis=1)  # NCHW
        n, c, h, w = combined.shape
        xp = jnp.pad(combined, ((0, 0), (0, CCP - CC), (0, 0), (0, 0)))
        x = xp.reshape(n * CCP, h * w)                    # lane = h*W + w
        out = _fusion_pallas(x, params, batch_block, n)   # (n*MAIN_C, RK)
        return out.reshape(n, MAIN_C, h, w)

    return fwd


# ------------------------- pure-JAX reference (check) -----------------------
def relative_embeddings(relative):
    idx = jnp.arange(K)
    rel_idx = idx[:, None] - idx[None, :] + K - 1
    flat = rel_idx.reshape(-1)
    all_emb = relative[:, flat].reshape(2 * GP, K, K)
    return all_emb[:GPH], all_emb[GPH:2 * GPH], all_emb[2 * GPH:]


def axial_ref(x, p, width):
    if width:
        x = jnp.transpose(x, (0, 2, 1, 3))
    else:
        x = jnp.transpose(x, (0, 3, 1, 2))
    n, wd, c, h = x.shape
    x = x.reshape(n * wd, c, h)
    qkv = jnp.einsum('oc,bch->boh', p['w_qkv'], x, precision='highest')
    qkv = qkv * p['bn_qkv_scale'][None, :, None] + p['bn_qkv_bias'][None, :, None]
    qkv = qkv.reshape(n * wd, HEADS, 2 * GP, h)
    q = qkv[:, :, :GPH]
    k_ = qkv[:, :, GPH:2 * GPH]
    v = qkv[:, :, 2 * GPH:]
    qe, ke, ve = relative_embeddings(p['relative'])
    qr = jnp.einsum('bgci,cij->bgij', q, qe, precision='highest')
    kr = jnp.swapaxes(jnp.einsum('bgci,cij->bgij', k_, ke, precision='highest'), 2, 3)
    qk = jnp.einsum('bgci,bgcj->bgij', q, k_, precision='highest')
    stacked = jnp.concatenate([qk, qr, kr], axis=1)
    stacked = (stacked * p['bn_sim_scale'][None, :, None, None]
               + p['bn_sim_bias'][None, :, None, None])
    stacked = stacked.reshape(n * wd, 3, HEADS, h, h).sum(axis=1)
    sim = jax.nn.softmax(stacked, axis=3)
    sv = jnp.einsum('bgij,bgcj->bgci', sim, v, precision='highest')
    sve = jnp.einsum('bgij,cij->bgci', sim, ve, precision='highest')
    so = jnp.concatenate([sv, sve], axis=-1).reshape(n * wd, 2 * CC, h)
    so = so * p['bn_out_scale'][None, :, None] + p['bn_out_bias'][None, :, None]
    out = so.reshape(n, wd, CC, 2, h).sum(axis=-2)
    if width:
        return jnp.transpose(out, (0, 2, 1, 3))
    return jnp.transpose(out, (0, 2, 3, 1))


def fusion_ref(fm, fa, raw):
    combined = jnp.concatenate([fm, fa], axis=1)
    att = axial_ref(combined, raw['att_h'], width=True)
    att = axial_ref(att, raw['att_w'], width=False)
    att = att + combined
    return (jnp.einsum('oc,nchw->nohw', raw['conv_w'], att, precision='highest')
            + raw['conv_b'][None, :, None, None])


# ----------------------------------- main ------------------------------------
if __name__ == "__main__":
    root = jax.random.PRNGKey(0)
    k_main, k_aux, k_h, k_w, k_cw, k_cb = jax.random.split(root, 6)

    feature_main = jax.random.normal(k_main, (N, MAIN_C, H, W), jnp.float32)
    feature_aux = jax.random.normal(k_aux, (N, AUX_C, H, W), jnp.float32)

    raw = dict(
        att_h=init_axial(k_h),
        att_w=init_axial(k_w),
        conv_w=jax.random.normal(k_cw, (MAIN_C, CC), jnp.float32) * np.sqrt(1.0 / CC),
        conv_b=0.1 * jax.random.normal(k_cb, (MAIN_C,), jnp.float32),
    )

    ref = jax.block_until_ready(fusion_ref(feature_main, feature_aux, raw))
    chosen = _choose_batch_block()

    # Validate both batch-blocking variants (B=1: parallel grid for multi-core
    # chips; B=N: batch stacked into M for single-core v5e/v6e).
    for bb in sorted({1, N}):
        fwd = make_fusion_fn(raw, bb)
        out = jax.block_until_ready(fwd(feature_main, feature_aux))
        assert out.shape == (N, MAIN_C, H, W)
        err = float(np.max(np.abs(np.asarray(out) - np.asarray(ref))))
        if err > 5e-3:
            raise AssertionError(
                f"Pallas result mismatch (batch_block={bb}), max abs err = {err}")

    # run once more with the device-selected configuration
    fwd = make_fusion_fn(raw, chosen)
    out = jax.block_until_ready(fwd(feature_main, feature_aux))
    assert out.shape == (N, MAIN_C, H, W)

    print("KERNEL_OK")
</pallas_src>

<mosaic_0001>
module attributes {stable_mosaic.version = 11 : i64} {
  func.func @_fusion_kernel(%arg0: i32, %arg1: memref<16x256xf32, #tpu.memory_space<vmem>>, %arg2: memref<32x16xf32, #tpu.memory_space<vmem>>, %arg3: memref<32x1xf32, #tpu.memory_space<vmem>>, %arg4: memref<16x16x256xf32, #tpu.memory_space<vmem>>, %arg5: memref<192x256xf32, #tpu.memory_space<vmem>>, %arg6: memref<256x256xbf16, #tpu.memory_space<vmem>>, %arg7: memref<16x1xf32, #tpu.memory_space<vmem>>, %arg8: memref<32x16xf32, #tpu.memory_space<vmem>>, %arg9: memref<32x1xf32, #tpu.memory_space<vmem>>, %arg10: memref<16x16x256xf32, #tpu.memory_space<vmem>>, %arg11: memref<192x256xf32, #tpu.memory_space<vmem>>, %arg12: memref<256x256xbf16, #tpu.memory_space<vmem>>, %arg13: memref<16x1xf32, #tpu.memory_space<vmem>>, %arg14: memref<96x32xbf16, #tpu.memory_space<vmem>>, %arg15: memref<16x192xbf16, #tpu.memory_space<vmem>>, %arg16: memref<8x16xf32, #tpu.memory_space<vmem>>, %arg17: memref<8x1xf32, #tpu.memory_space<vmem>>, %arg18: memref<3x3xf32, #tpu.memory_space<smem>>, %arg19: memref<3xf32, #tpu.memory_space<smem>>, %arg20: memref<3x3xf32, #tpu.memory_space<smem>>, %arg21: memref<3xf32, #tpu.memory_space<smem>>, %arg22: memref<8x256xf32, #tpu.memory_space<vmem>>) attributes {dimension_semantics = [#tpu.dimension_semantics<parallel>], iteration_bounds = array<i64: 2>, scalar_prefetch = 0 : i64, scratch_operands = 0 : i64, tpu.core_type = #tpu.core_type<tc>, window_params = [{transform_indices = @transform_0, window_bounds = array<i64: 16, 256>}, {pipeline_mode = #tpu.pipeline_mode<synchronous>, transform_indices = @transform_1, window_bounds = array<i64: 32, 16>}, {pipeline_mode = #tpu.pipeline_mode<synchronous>, transform_indices = @transform_2, window_bounds = array<i64: 32, 1>}, {pipeline_mode = #tpu.pipeline_mode<synchronous>, transform_indices = @transform_3, window_bounds = array<i64: 16, 16, 256>}, {pipeline_mode = #tpu.pipeline_mode<synchronous>, transform_indices = @transform_4, window_bounds = array<i64: 192, 256>}, {pipeline_mode = #tpu.pipeline_mode<synchronous>, transform_indices = @transform_5, window_bounds = array<i64: 256, 256>}, {pipeline_mode = #tpu.pipeline_mode<synchronous>, transform_indices = @transform_6, window_bounds = array<i64: 16, 1>}, {pipeline_mode = #tpu.pipeline_mode<synchronous>, transform_indices = @transform_7, window_bounds = array<i64: 32, 16>}, {pipeline_mode = #tpu.pipeline_mode<synchronous>, transform_indices = @transform_8, window_bounds = array<i64: 32, 1>}, {pipeline_mode = #tpu.pipeline_mode<synchronous>, transform_indices = @transform_9, window_bounds = array<i64: 16, 16, 256>}, {pipeline_mode = #tpu.pipeline_mode<synchronous>, transform_indices = @transform_10, window_bounds = array<i64: 192, 256>}, {pipeline_mode = #tpu.pipeline_mode<synchronous>, transform_indices = @transform_11, window_bounds = array<i64: 256, 256>}, {pipeline_mode = #tpu.pipeline_mode<synchronous>, transform_indices = @transform_12, window_bounds = array<i64: 16, 1>}, {pipeline_mode = #tpu.pipeline_mode<synchronous>, transform_indices = @transform_13, window_bounds = array<i64: 96, 32>}, {pipeline_mode = #tpu.pipeline_mode<synchronous>, transform_indices = @transform_14, window_bounds = array<i64: 16, 192>}, {pipeline_mode = #tpu.pipeline_mode<synchronous>, transform_indices = @transform_15, window_bounds = array<i64: 8, 16>}, {pipeline_mode = #tpu.pipeline_mode<synchronous>, transform_indices = @transform_16, window_bounds = array<i64: 8, 1>}, {transform_indices = @transform_17, window_bounds = array<i64: 3, 3>}, {transform_indices = @transform_18, window_bounds = array<i64: 3>}, {transform_indices = @transform_19, window_bounds = array<i64: 3, 3>}, {transform_indices = @transform_20, window_bounds = array<i64: 3>}, {transform_indices = @transform_21, window_bounds = array<i64: 8, 256>}]} {
    %c0 = arith.constant 0 : index
    %c0_0 = arith.constant 0 : index
    %0 = vector.load %arg1[%c0, %c0_0] : memref<16x256xf32, #tpu.memory_space<vmem>>, vector<16x256xf32>
    %c0_1 = arith.constant 0 : index
    %c0_2 = arith.constant 0 : index
    %1 = vector.load %arg16[%c0_1, %c0_2] : memref<8x16xf32, #tpu.memory_space<vmem>>, vector<8x16xf32>
    %c0_3 = arith.constant 0 : index
    %c0_4 = arith.constant 0 : index
    %2 = vector.load %arg14[%c0_3, %c0_4] : memref<96x32xbf16, #tpu.memory_space<vmem>>, vector<96x32xbf16>
    %c0_5 = arith.constant 0 : index
    %c0_6 = arith.constant 0 : index
    %3 = vector.load %arg15[%c0_5, %c0_6] : memref<16x192xbf16, #tpu.memory_space<vmem>>, vector<16x192xbf16>
    %cst = arith.constant dense<0.000000e+00> : vector<8x256xf32>
    %4 = tpu.matmul %1, %0, %cst {dimension_numbers = #tpu.dot_dimension_numbers<[1], [0], [0], [1], [0, 0, 1, 1], [], []>, precision = #tpu.contract_precision<fp32>} : vector<8x16xf32>, vector<16x256xf32>, vector<8x256xf32> -> vector<8x256xf32>
    %c0_7 = arith.constant 0 : index
    %c0_8 = arith.constant 0 : index
    %5 = vector.load %arg17[%c0_7, %c0_8] : memref<8x1xf32, #tpu.memory_space<vmem>>, vector<8x1xf32>
    %6 = vector.broadcast %5 : vector<8x1xf32> to vector<8x256xf32>
    %7 = arith.addf %4, %6 : vector<8x256xf32>
    %c0_9 = arith.constant 0 : index
    %c0_10 = arith.constant 0 : index
    %8 = vector.load %arg6[%c0_9, %c0_10] : memref<256x256xbf16, #tpu.memory_space<vmem>>, vector<256x256xbf16>
    %c0_11 = arith.constant 0 : index
    %c0_12 = arith.constant 0 : index
    %9 = vector.load %arg2[%c0_11, %c0_12] : memref<32x16xf32, #tpu.memory_space<vmem>>, vector<32x16xf32>
    %cst_13 = arith.constant dense<0.000000e+00> : vector<32x256xf32>
    %10 = tpu.matmul %9, %0, %cst_13 {dimension_numbers = #tpu.dot_dimension_numbers<[1], [0], [0], [1], [0, 0, 1, 1], [], []>, precision = #tpu.contract_precision<fp32>} : vector<32x16xf32>, vector<16x256xf32>, vector<32x256xf32> -> vector<32x256xf32>
    %c0_14 = arith.constant 0 : index
    %c0_15 = arith.constant 0 : index
    %11 = vector.load %arg3[%c0_14, %c0_15] : memref<32x1xf32, #tpu.memory_space<vmem>>, vector<32x1xf32>
    %12 = vector.broadcast %11 : vector<32x1xf32> to vector<32x256xf32>
    %13 = arith.addf %10, %12 : vector<32x256xf32>
    %14 = arith.truncf %13 : vector<32x256xf32> to vector<32x256xbf16>
    %15 = arith.extf %14 : vector<32x256xbf16> to vector<32x256xf32>
    %16 = arith.subf %13, %15 : vector<32x256xf32>
    %17 = arith.truncf %16 : vector<32x256xf32> to vector<32x256xbf16>
    %cst_16 = arith.constant dense<0.000000e+00> : vector<96x256xf32>
    %18 = tpu.matmul %2, %14, %cst_16 {dimension_numbers = #tpu.dot_dimension_numbers<[1], [0], [0], [1], [0, 0, 1, 1], [], []>} : vector<96x32xbf16>, vector<32x256xbf16>, vector<96x256xf32> -> vector<96x256xf32>
    %cst_17 = arith.constant dense<0.000000e+00> : vector<96x256xf32>
    %19 = tpu.matmul %2, %17, %cst_17 {dimension_numbers = #tpu.dot_dimension_numbers<[1], [0], [0], [1], [0, 0, 1, 1], [], []>} : vector<96x32xbf16>, vector<32x256xbf16>, vector<96x256xf32> -> vector<96x256xf32>
    %20 = arith.addf %18, %19 : vector<96x256xf32>
    %c0_18 = arith.constant 0 : index
    %c0_19 = arith.constant 0 : index
    %21 = vector.load %arg5[%c0_18, %c0_19] : memref<192x256xf32, #tpu.memory_space<vmem>>, vector<96x256xf32>
    %22 = arith.mulf %20, %21 : vector<96x256xf32>
    %23 = arith.truncf %22 : vector<96x256xf32> to vector<96x256xbf16>
    %24 = arith.extf %23 : vector<96x256xbf16> to vector<96x256xf32>
    %25 = arith.subf %22, %24 : vector<96x256xf32>
    %26 = arith.truncf %25 : vector<96x256xf32> to vector<96x256xbf16>
    %cst_20 = arith.constant dense<0.000000e+00> : vector<96x256xf32>
    %27 = tpu.matmul %23, %8, %cst_20 {dimension_numbers = #tpu.dot_dimension_numbers<[1], [0], [0], [1], [0, 0, 1, 1], [], []>} : vector<96x256xbf16>, vector<256x256xbf16>, vector<96x256xf32> -> vector<96x256xf32>
    %cst_21 = arith.constant dense<0.000000e+00> : vector<96x256xf32>
    %28 = tpu.matmul %26, %8, %cst_21 {dimension_numbers = #tpu.dot_dimension_numbers<[1], [0], [0], [1], [0, 0, 1, 1], [], []>} : vector<96x256xbf16>, vector<256x256xbf16>, vector<96x256xf32> -> vector<96x256xf32>
    %29 = arith.addf %27, %28 : vector<96x256xf32>
    %30 = vector.extract_strided_slice %29 {offsets = [0, 0], sizes = [16, 256], strides = [1, 1]} : vector<96x256xf32> to vector<16x256xf32>
    %31 = vector.extract_strided_slice %13 {offsets = [8, 0], sizes = [1, 256], strides = [1, 1]} : vector<32x256xf32> to vector<1x256xf32>
    %32 = vector.broadcast %31 : vector<1x256xf32> to vector<16x256xf32>
    %33 = arith.mulf %30, %32 : vector<16x256xf32>
    %c0_22 = arith.constant 0 : index
    %c0_23 = arith.constant 0 : index
    %c0_24 = arith.constant 0 : index
    %34 = vector.load %arg4[%c0_22, %c0_23, %c0_24] : memref<16x16x256xf32, #tpu.memory_space<vmem>>, vector<1x16x256xf32>
    %35 = vector.shape_cast %34 : vector<1x16x256xf32> to vector<16x256xf32>
    %36 = arith.mulf %30, %35 : vector<16x256xf32>
    %c2 = arith.constant 2 : index
    %c0_25 = arith.constant 0 : index
    %c0_26 = arith.constant 0 : index
    %37 = vector.load %arg4[%c2, %c0_25, %c0_26] : memref<16x16x256xf32, #tpu.memory_space<vmem>>, vector<1x16x256xf32>
    %38 = vector.shape_cast %37 : vector<1x16x256xf32> to vector<16x256xf32>
    %39 = vector.broadcast %31 : vector<1x256xf32> to vector<16x256xf32>
    %40 = arith.mulf %39, %38 : vector<16x256xf32>
    %41 = vector.extract_strided_slice %29 {offsets = [16, 0], sizes = [16, 256], strides = [1, 1]} : vector<96x256xf32> to vector<16x256xf32>
    %42 = vector.extract_strided_slice %13 {offsets = [9, 0], sizes = [1, 256], strides = [1, 1]} : vector<32x256xf32> to vector<1x256xf32>
    %43 = vector.broadcast %42 : vector<1x256xf32> to vector<16x256xf32>
    %44 = arith.mulf %41, %43 : vector<16x256xf32>
    %c1 = arith.constant 1 : index
    %c0_27 = arith.constant 0 : index
    %c0_28 = arith.constant 0 : index
    %45 = vector.load %arg4[%c1, %c0_27, %c0_28] : memref<16x16x256xf32, #tpu.memory_space<vmem>>, vector<1x16x256xf32>
    %46 = vector.shape_cast %45 : vector<1x16x256xf32> to vector<16x256xf32>
    %47 = arith.mulf %41, %46 : vector<16x256xf32>
    %c3 = arith.constant 3 : index
    %c0_29 = arith.constant 0 : index
    %c0_30 = arith.constant 0 : index
    %48 = vector.load %arg4[%c3, %c0_29, %c0_30] : memref<16x16x256xf32, #tpu.memory_space<vmem>>, vector<1x16x256xf32>
    %49 = vector.shape_cast %48 : vector<1x16x256xf32> to vector<16x256xf32>
    %50 = vector.broadcast %42 : vector<1x256xf32> to vector<16x256xf32>
    %51 = arith.mulf %50, %49 : vector<16x256xf32>
    %52 = arith.addf %33, %44 : vector<16x256xf32>
    %53 = arith.addf %36, %47 : vector<16x256xf32>
    %54 = arith.addf %40, %51 : vector<16x256xf32>
    %c0_31 = arith.constant 0 : index
    %c0_32 = arith.constant 0 : index
    %55 = memref.load %arg18[%c0_31, %c0_32] : memref<3x3xf32, #tpu.memory_space<smem>>
    %56 = vector.broadcast %55 : f32 to vector<16x256xf32>
    %57 = arith.mulf %56, %52 : vector<16x256xf32>
    %c1_33 = arith.constant 1 : index
    %c0_34 = arith.constant 0 : index
    %58 = memref.load %arg18[%c1_33, %c0_34] : memref<3x3xf32, #tpu.memory_space<smem>>
    %59 = vector.broadcast %58 : f32 to vector<16x256xf32>
    %60 = arith.mulf %59, %53 : vector<16x256xf32>
    %61 = arith.addf %57, %60 : vector<16x256xf32>
    %c2_35 = arith.constant 2 : index
    %c0_36 = arith.constant 0 : index
    %62 = memref.load %arg18[%c2_35, %c0_36] : memref<3x3xf32, #tpu.memory_space<smem>>
    %63 = vector.broadcast %62 : f32 to vector<16x256xf32>
    %64 = arith.mulf %63, %54 : vector<16x256xf32>
    %65 = arith.addf %61, %64 : vector<16x256xf32>
    %c0_37 = arith.constant 0 : index
    %66 = memref.load %arg19[%c0_37] : memref<3xf32, #tpu.memory_space<smem>>
    %67 = vector.broadcast %66 : f32 to vector<16x256xf32>
    %68 = arith.addf %65, %67 : vector<16x256xf32>
    %cst_38 = arith.constant dense<0xFF800000> : vector<16xf32>
    %69 = vector.multi_reduction <maximumf>, %68, %cst_38 [1] : vector<16x256xf32> to vector<16xf32>
    %70 = vector.shape_cast %69 : vector<16xf32> to vector<16x1xf32>
    %71 = vector.broadcast %70 : vector<16x1xf32> to vector<16x256xf32>
    %72 = arith.subf %68, %71 : vector<16x256xf32>
    %73 = math.exp %72 : vector<16x256xf32>
    %74 = vector.extract_strided_slice %29 {offsets = [32, 0], sizes = [16, 256], strides = [1, 1]} : vector<96x256xf32> to vector<16x256xf32>
    %75 = vector.extract_strided_slice %13 {offsets = [10, 0], sizes = [1, 256], strides = [1, 1]} : vector<32x256xf32> to vector<1x256xf32>
    %76 = vector.broadcast %75 : vector<1x256xf32> to vector<16x256xf32>
    %77 = arith.mulf %74, %76 : vector<16x256xf32>
    %c0_39 = arith.constant 0 : index
    %c0_40 = arith.constant 0 : index
    %c0_41 = arith.constant 0 : index
    %78 = vector.load %arg4[%c0_39, %c0_40, %c0_41] : memref<16x16x256xf32, #tpu.memory_space<vmem>>, vector<1x16x256xf32>
    %79 = vector.shape_cast %78 : vector<1x16x256xf32> to vector<16x256xf32>
    %80 = arith.mulf %74, %79 : vector<16x256xf32>
    %c2_42 = arith.constant 2 : index
    %c0_43 = arith.constant 0 : index
    %c0_44 = arith.constant 0 : index
    %81 = vector.load %arg4[%c2_42, %c0_43, %c0_44] : memref<16x16x256xf32, #tpu.memory_space<vmem>>, vector<1x16x256xf32>
    %82 = vector.shape_cast %81 : vector<1x16x256xf32> to vector<16x256xf32>
    %83 = vector.broadcast %75 : vector<1x256xf32> to vector<16x256xf32>
    %84 = arith.mulf %83, %82 : vector<16x256xf32>
    %85 = vector.extract_strided_slice %29 {offsets = [48, 0], sizes = [16, 256], strides = [1, 1]} : vector<96x256xf32> to vector<16x256xf32>
    %86 = vector.extract_strided_slice %13 {offsets = [11, 0], sizes = [1, 256], strides = [1, 1]} : vector<32x256xf32> to vector<1x256xf32>
    %87 = vector.broadcast %86 : vector<1x256xf32> to vector<16x256xf32>
    %88 = arith.mulf %85, %87 : vector<16x256xf32>
    %c1_45 = arith.constant 1 : index
    %c0_46 = arith.constant 0 : index
    %c0_47 = arith.constant 0 : index
    %89 = vector.load %arg4[%c1_45, %c0_46, %c0_47] : memref<16x16x256xf32, #tpu.memory_space<vmem>>, vector<1x16x256xf32>
    %90 = vector.shape_cast %89 : vector<1x16x256xf32> to vector<16x256xf32>
    %91 = arith.mulf %85, %90 : vector<16x256xf32>
    %c3_48 = arith.constant 3 : index
    %c0_49 = arith.constant 0 : index
    %c0_50 = arith.constant 0 : index
    %92 = vector.load %arg4[%c3_48, %c0_49, %c0_50] : memref<16x16x256xf32, #tpu.memory_space<vmem>>, vector<1x16x256xf32>
    %93 = vector.shape_cast %92 : vector<1x16x256xf32> to vector<16x256xf32>
    %94 = vector.broadcast %86 : vector<1x256xf32> to vector<16x256xf32>
    %95 = arith.mulf %94, %93 : vector<16x256xf32>
    %96 = arith.addf %77, %88 : vector<16x256xf32>
    %97 = arith.addf %80, %91 : vector<16x256xf32>
    %98 = arith.addf %84, %95 : vector<16x256xf32>
    %c0_51 = arith.constant 0 : index
    %c1_52 = arith.constant 1 : index
    %99 = memref.load %arg18[%c0_51, %c1_52] : memref<3x3xf32, #tpu.memory_space<smem>>
    %100 = vector.broadcast %99 : f32 to vector<16x256xf32>
    %101 = arith.mulf %100, %96 : vector<16x256xf32>
    %c1_53 = arith.constant 1 : index
    %c1_54 = arith.constant 1 : index
    %102 = memref.load %arg18[%c1_53, %c1_54] : memref<3x3xf32, #tpu.memory_space<smem>>
    %103 = vector.broadcast %102 : f32 to vector<16x256xf32>
    %104 = arith.mulf %103, %97 : vector<16x256xf32>
    %105 = arith.addf %101, %104 : vector<16x256xf32>
    %c2_55 = arith.constant 2 : index
    %c1_56 = arith.constant 1 : index
    %106 = memref.load %arg18[%c2_55, %c1_56] : memref<3x3xf32, #tpu.memory_space<smem>>
    %107 = vector.broadcast %106 : f32 to vector<16x256xf32>
    %108 = arith.mulf %107, %98 : vector<16x256xf32>
    %109 = arith.addf %105, %108 : vector<16x256xf32>
    %c1_57 = arith.constant 1 : index
    %110 = memref.load %arg19[%c1_57] : memref<3xf32, #tpu.memory_space<smem>>
    %111 = vector.broadcast %110 : f32 to vector<16x256xf32>
    %112 = arith.addf %109, %111 : vector<16x256xf32>
    %cst_58 = arith.constant dense<0xFF800000> : vector<16xf32>
    %113 = vector.multi_reduction <maximumf>, %112, %cst_58 [1] : vector<16x256xf32> to vector<16xf32>
    %114 = vector.shape_cast %113 : vector<16xf32> to vector<16x1xf32>
    %115 = vector.broadcast %114 : vector<16x1xf32> to vector<16x256xf32>
    %116 = arith.subf %112, %115 : vector<16x256xf32>
    %117 = math.exp %116 : vector<16x256xf32>
    %118 = vector.extract_strided_slice %29 {offsets = [64, 0], sizes = [16, 256], strides = [1, 1]} : vector<96x256xf32> to vector<16x256xf32>
    %119 = vector.extract_strided_slice %13 {offsets = [12, 0], sizes = [1, 256], strides = [1, 1]} : vector<32x256xf32> to vector<1x256xf32>
    %120 = vector.broadcast %119 : vector<1x256xf32> to vector<16x256xf32>
    %121 = arith.mulf %118, %120 : vector<16x256xf32>
    %c0_59 = arith.constant 0 : index
    %c0_60 = arith.constant 0 : index
    %c0_61 = arith.constant 0 : index
    %122 = vector.load %arg4[%c0_59, %c0_60, %c0_61] : memref<16x16x256xf32, #tpu.memory_space<vmem>>, vector<1x16x256xf32>
    %123 = vector.shape_cast %122 : vector<1x16x256xf32> to vector<16x256xf32>
    %124 = arith.mulf %118, %123 : vector<16x256xf32>
    %c2_62 = arith.constant 2 : index
    %c0_63 = arith.constant 0 : index
    %c0_64 = arith.constant 0 : index
    %125 = vector.load %arg4[%c2_62, %c0_63, %c0_64] : memref<16x16x256xf32, #tpu.memory_space<vmem>>, vector<1x16x256xf32>
    %126 = vector.shape_cast %125 : vector<1x16x256xf32> to vector<16x256xf32>
    %127 = vector.broadcast %119 : vector<1x256xf32> to vector<16x256xf32>
    %128 = arith.mulf %127, %126 : vector<16x256xf32>
    %129 = vector.extract_strided_slice %29 {offsets = [80, 0], sizes = [16, 256], strides = [1, 1]} : vector<96x256xf32> to vector<16x256xf32>
    %130 = vector.extract_strided_slice %13 {offsets = [13, 0], sizes = [1, 256], strides = [1, 1]} : vector<32x256xf32> to vector<1x256xf32>
    %131 = vector.broadcast %130 : vector<1x256xf32> to vector<16x256xf32>
    %132 = arith.mulf %129, %131 : vector<16x256xf32>
    %c1_65 = arith.constant 1 : index
    %c0_66 = arith.constant 0 : index
    %c0_67 = arith.constant 0 : index
    %133 = vector.load %arg4[%c1_65, %c0_66, %c0_67] : memref<16x16x256xf32, #tpu.memory_space<vmem>>, vector<1x16x256xf32>
    %134 = vector.shape_cast %133 : vector<1x16x256xf32> to vector<16x256xf32>
    %135 = arith.mulf %129, %134 : vector<16x256xf32>
    %c3_68 = arith.constant 3 : index
    %c0_69 = arith.constant 0 : index
    %c0_70 = arith.constant 0 : index
    %136 = vector.load %arg4[%c3_68, %c0_69, %c0_70] : memref<16x16x256xf32, #tpu.memory_space<vmem>>, vector<1x16x256xf32>
    %137 = vector.shape_cast %136 : vector<1x16x256xf32> to vector<16x256xf32>
    %138 = vector.broadcast %130 : vector<1x256xf32> to vector<16x256xf32>
    %139 = arith.mulf %138, %137 : vector<16x256xf32>
    %140 = arith.addf %121, %132 : vector<16x256xf32>
    %141 = arith.addf %124, %135 : vector<16x256xf32>
    %142 = arith.addf %128, %139 : vector<16x256xf32>
    %c0_71 = arith.constant 0 : index
    %c2_72 = arith.constant 2 : index
    %143 = memref.load %arg18[%c0_71, %c2_72] : memref<3x3xf32, #tpu.memory_space<smem>>
    %144 = vector.broadcast %143 : f32 to vector<16x256xf32>
    %145 = arith.mulf %144, %140 : vector<16x256xf32>
    %c1_73 = arith.constant 1 : index
    %c2_74 = arith.constant 2 : index
    %146 = memref.load %arg18[%c1_73, %c2_74] : memref<3x3xf32, #tpu.memory_space<smem>>
    %147 = vector.broadcast %146 : f32 to vector<16x256xf32>
    %148 = arith.mulf %147, %141 : vector<16x256xf32>
    %149 = arith.addf %145, %148 : vector<16x256xf32>
    %c2_75 = arith.constant 2 : index
    %c2_76 = arith.constant 2 : index
    %150 = memref.load %arg18[%c2_75, %c2_76] : memref<3x3xf32, #tpu.memory_space<smem>>
    %151 = vector.broadcast %150 : f32 to vector<16x256xf32>
    %152 = arith.mulf %151, %142 : vector<16x256xf32>
    %153 = arith.addf %149, %152 : vector<16x256xf32>
    %c2_77 = arith.constant 2 : index
    %154 = memref.load %arg19[%c2_77] : memref<3xf32, #tpu.memory_space<smem>>
    %155 = vector.broadcast %154 : f32 to vector<16x256xf32>
    %156 = arith.addf %153, %155 : vector<16x256xf32>
    %cst_78 = arith.constant dense<0xFF800000> : vector<16xf32>
    %157 = vector.multi_reduction <maximumf>, %156, %cst_78 [1] : vector<16x256xf32> to vector<16xf32>
    %158 = vector.shape_cast %157 : vector<16xf32> to vector<16x1xf32>
    %159 = vector.broadcast %158 : vector<16x1xf32> to vector<16x256xf32>
    %160 = arith.subf %156, %159 : vector<16x256xf32>
    %161 = math.exp %160 : vector<16x256xf32>
    %162 = tpu.concatenate %73, %117, %161 in 0 : vector<16x256xf32>, vector<16x256xf32>, vector<16x256xf32> -> vector<48x256xf32>
    %163 = arith.truncf %162 : vector<48x256xf32> to vector<48x256xbf16>
    %164 = arith.extf %163 : vector<48x256xbf16> to vector<48x256xf32>
    %165 = arith.subf %162, %164 : vector<48x256xf32>
    %166 = arith.truncf %165 : vector<48x256xf32> to vector<48x256xbf16>
    %cst_79 = arith.constant dense<0.000000e+00> : vector<48x256xf32>
    %167 = tpu.matmul %163, %8, %cst_79 {dimension_numbers = #tpu.dot_dimension_numbers<[1], [0], [0], [1], [0, 0, 1, 1], [], []>} : vector<48x256xbf16>, vector<256x256xbf16>, vector<48x256xf32> -> vector<48x256xf32>
    %cst_80 = arith.constant dense<0.000000e+00> : vector<48x256xf32>
    %168 = tpu.matmul %166, %8, %cst_80 {dimension_numbers = #tpu.dot_dimension_numbers<[1], [0], [0], [1], [0, 0, 1, 1], [], []>} : vector<48x256xbf16>, vector<256x256xbf16>, vector<48x256xf32> -> vector<48x256xf32>
    %169 = arith.addf %167, %168 : vector<48x256xf32>
    %170 = tpu.reciprocal %169 : vector<48x256xf32> -> vector<48x256xf32>
    %171 = vector.extract_strided_slice %170 {offsets = [0, 0], sizes = [16, 256], strides = [1, 1]} : vector<48x256xf32> to vector<16x256xf32>
    %172 = arith.mulf %73, %171 : vector<16x256xf32>
    %173 = vector.extract_strided_slice %13 {offsets = [16, 0], sizes = [1, 256], strides = [1, 1]} : vector<32x256xf32> to vector<1x256xf32>
    %c4 = arith.constant 4 : index
    %c0_81 = arith.constant 0 : index
    %c0_82 = arith.constant 0 : index
    %174 = vector.load %arg4[%c4, %c0_81, %c0_82] : memref<16x16x256xf32, #tpu.memory_space<vmem>>, vector<1x16x256xf32>
    %175 = vector.shape_cast %174 : vector<1x16x256xf32> to vector<16x256xf32>
    %176 = vector.broadcast %173 : vector<1x256xf32> to vector<16x256xf32>
    %177 = arith.addf %176, %175 : vector<16x256xf32>
    %178 = arith.mulf %172, %177 : vector<16x256xf32>
    %179 = vector.extract_strided_slice %13 {offsets = [17, 0], sizes = [1, 256], strides = [1, 1]} : vector<32x256xf32> to vector<1x256xf32>
    %c5 = arith.constant 5 : index
    %c0_83 = arith.constant 0 : index
    %c0_84 = arith.constant 0 : index
    %180 = vector.load %arg4[%c5, %c0_83, %c0_84] : memref<16x16x256xf32, #tpu.memory_space<vmem>>, vector<1x16x256xf32>
    %181 = vector.shape_cast %180 : vector<1x16x256xf32> to vector<16x256xf32>
    %182 = vector.broadcast %179 : vector<1x256xf32> to vector<16x256xf32>
    %183 = arith.addf %182, %181 : vector<16x256xf32>
    %184 = arith.mulf %172, %183 : vector<16x256xf32>
    %185 = vector.extract_strided_slice %13 {offsets = [18, 0], sizes = [1, 256], strides = [1, 1]} : vector<32x256xf32> to vector<1x256xf32>
    %c6 = arith.constant 6 : index
    %c0_85 = arith.constant 0 : index
    %c0_86 = arith.constant 0 : index
    %186 = vector.load %arg4[%c6, %c0_85, %c0_86] : memref<16x16x256xf32, #tpu.memory_space<vmem>>, vector<1x16x256xf32>
    %187 = vector.shape_cast %186 : vector<1x16x256xf32> to vector<16x256xf32>
    %188 = vector.broadcast %185 : vector<1x256xf32> to vector<16x256xf32>
    %189 = arith.addf %188, %187 : vector<16x256xf32>
    %190 = arith.mulf %172, %189 : vector<16x256xf32>
    %191 = vector.extract_strided_slice %13 {offsets = [19, 0], sizes = [1, 256], strides = [1, 1]} : vector<32x256xf32> to vector<1x256xf32>
    %c7 = arith.constant 7 : index
    %c0_87 = arith.constant 0 : index
    %c0_88 = arith.constant 0 : index
    %192 = vector.load %arg4[%c7, %c0_87, %c0_88] : memref<16x16x256xf32, #tpu.memory_space<vmem>>, vector<1x16x256xf32>
    %193 = vector.shape_cast %192 : vector<1x16x256xf32> to vector<16x256xf32>
    %194 = vector.broadcast %191 : vector<1x256xf32> to vector<16x256xf32>
    %195 = arith.addf %194, %193 : vector<16x256xf32>
    %196 = arith.mulf %172, %195 : vector<16x256xf32>
    %197 = vector.extract_strided_slice %170 {offsets = [16, 0], sizes = [16, 256], strides = [1, 1]} : vector<48x256xf32> to vector<16x256xf32>
    %198 = arith.mulf %117, %197 : vector<16x256xf32>
    %199 = vector.extract_strided_slice %13 {offsets = [20, 0], sizes = [1, 256], strides = [1, 1]} : vector<32x256xf32> to vector<1x256xf32>
    %c8 = arith.constant 8 : index
    %c0_89 = arith.constant 0 : index
    %c0_90 = arith.constant 0 : index
    %200 = vector.load %arg4[%c8, %c0_89, %c0_90] : memref<16x16x256xf32, #tpu.memory_space<vmem>>, vector<1x16x256xf32>
    %201 = vector.shape_cast %200 : vector<1x16x256xf32> to vector<16x256xf32>
    %202 = vector.broadcast %199 : vector<1x256xf32> to vector<16x256xf32>
    %203 = arith.addf %202, %201 : vector<16x256xf32>
    %204 = arith.mulf %198, %203 : vector<16x256xf32>
    %205 = vector.extract_strided_slice %13 {offsets = [21, 0], sizes = [1, 256], strides = [1, 1]} : vector<32x256xf32> to vector<1x256xf32>
    %c9 = arith.constant 9 : index
    %c0_91 = arith.constant 0 : index
    %c0_92 = arith.constant 0 : index
    %206 = vector.load %arg4[%c9, %c0_91, %c0_92] : memref<16x16x256xf32, #tpu.memory_space<vmem>>, vector<1x16x256xf32>
    %207 = vector.shape_cast %206 : vector<1x16x256xf32> to vector<16x256xf32>
    %208 = vector.broadcast %205 : vector<1x256xf32> to vector<16x256xf32>
    %209 = arith.addf %208, %207 : vector<16x256xf32>
    %210 = arith.mulf %198, %209 : vector<16x256xf32>
    %211 = vector.extract_strided_slice %13 {offsets = [22, 0], sizes = [1, 256], strides = [1, 1]} : vector<32x256xf32> to vector<1x256xf32>
    %c10 = arith.constant 10 : index
    %c0_93 = arith.constant 0 : index
    %c0_94 = arith.constant 0 : index
    %212 = vector.load %arg4[%c10, %c0_93, %c0_94] : memref<16x16x256xf32, #tpu.memory_space<vmem>>, vector<1x16x256xf32>
    %213 = vector.shape_cast %212 : vector<1x16x256xf32> to vector<16x256xf32>
    %214 = vector.broadcast %211 : vector<1x256xf32> to vector<16x256xf32>
    %215 = arith.addf %214, %213 : vector<16x256xf32>
    %216 = arith.mulf %198, %215 : vector<16x256xf32>
    %217 = vector.extract_strided_slice %13 {offsets = [23, 0], sizes = [1, 256], strides = [1, 1]} : vector<32x256xf32> to vector<1x256xf32>
    %c11 = arith.constant 11 : index
    %c0_95 = arith.constant 0 : index
    %c0_96 = arith.constant 0 : index
    %218 = vector.load %arg4[%c11, %c0_95, %c0_96] : memref<16x16x256xf32, #tpu.memory_space<vmem>>, vector<1x16x256xf32>
    %219 = vector.shape_cast %218 : vector<1x16x256xf32> to vector<16x256xf32>
    %220 = vector.broadcast %217 : vector<1x256xf32> to vector<16x256xf32>
    %221 = arith.addf %220, %219 : vector<16x256xf32>
    %222 = arith.mulf %198, %221 : vector<16x256xf32>
    %223 = vector.extract_strided_slice %170 {offsets = [32, 0], sizes = [16, 256], strides = [1, 1]} : vector<48x256xf32> to vector<16x256xf32>
    %224 = arith.mulf %161, %223 : vector<16x256xf32>
    %225 = vector.extract_strided_slice %13 {offsets = [24, 0], sizes = [1, 256], strides = [1, 1]} : vector<32x256xf32> to vector<1x256xf32>
    %c12 = arith.constant 12 : index
    %c0_97 = arith.constant 0 : index
    %c0_98 = arith.constant 0 : index
    %226 = vector.load %arg4[%c12, %c0_97, %c0_98] : memref<16x16x256xf32, #tpu.memory_space<vmem>>, vector<1x16x256xf32>
    %227 = vector.shape_cast %226 : vector<1x16x256xf32> to vector<16x256xf32>
    %228 = vector.broadcast %225 : vector<1x256xf32> to vector<16x256xf32>
    %229 = arith.addf %228, %227 : vector<16x256xf32>
    %230 = arith.mulf %224, %229 : vector<16x256xf32>
    %231 = vector.extract_strided_slice %13 {offsets = [25, 0], sizes = [1, 256], strides = [1, 1]} : vector<32x256xf32> to vector<1x256xf32>
    %c13 = arith.constant 13 : index
    %c0_99 = arith.constant 0 : index
    %c0_100 = arith.constant 0 : index
    %232 = vector.load %arg4[%c13, %c0_99, %c0_100] : memref<16x16x256xf32, #tpu.memory_space<vmem>>, vector<1x16x256xf32>
    %233 = vector.shape_cast %232 : vector<1x16x256xf32> to vector<16x256xf32>
    %234 = vector.broadcast %231 : vector<1x256xf32> to vector<16x256xf32>
    %235 = arith.addf %234, %233 : vector<16x256xf32>
    %236 = arith.mulf %224, %235 : vector<16x256xf32>
    %237 = vector.extract_strided_slice %13 {offsets = [26, 0], sizes = [1, 256], strides = [1, 1]} : vector<32x256xf32> to vector<1x256xf32>
    %c14 = arith.constant 14 : index
    %c0_101 = arith.constant 0 : index
    %c0_102 = arith.constant 0 : index
    %238 = vector.load %arg4[%c14, %c0_101, %c0_102] : memref<16x16x256xf32, #tpu.memory_space<vmem>>, vector<1x16x256xf32>
    %239 = vector.shape_cast %238 : vector<1x16x256xf32> to vector<16x256xf32>
    %240 = vector.broadcast %237 : vector<1x256xf32> to vector<16x256xf32>
    %241 = arith.addf %240, %239 : vector<16x256xf32>
    %242 = arith.mulf %224, %241 : vector<16x256xf32>
    %243 = vector.extract_strided_slice %13 {offsets = [27, 0], sizes = [1, 256], strides = [1, 1]} : vector<32x256xf32> to vector<1x256xf32>
    %c15 = arith.constant 15 : index
    %c0_103 = arith.constant 0 : index
    %c0_104 = arith.constant 0 : index
    %244 = vector.load %arg4[%c15, %c0_103, %c0_104] : memref<16x16x256xf32, #tpu.memory_space<vmem>>, vector<1x16x256xf32>
    %245 = vector.shape_cast %244 : vector<1x16x256xf32> to vector<16x256xf32>
    %246 = vector.broadcast %243 : vector<1x256xf32> to vector<16x256xf32>
    %247 = arith.addf %246, %245 : vector<16x256xf32>
    %248 = arith.mulf %224, %247 : vector<16x256xf32>
    %249 = tpu.concatenate %178, %184, %190, %196, %204, %210, %216, %222, %230, %236, %242, %248 in 0 : vector<16x256xf32>, vector<16x256xf32>, vector<16x256xf32>, vector<16x256xf32>, vector<16x256xf32>, vector<16x256xf32>, vector<16x256xf32>, vector<16x256xf32>, vector<16x256xf32>, vector<16x256xf32>, vector<16x256xf32>, vector<16x256xf32> -> vector<192x256xf32>
    %250 = arith.truncf %249 : vector<192x256xf32> to vector<192x256xbf16>
    %251 = arith.extf %250 : vector<192x256xbf16> to vector<192x256xf32>
    %252 = arith.subf %249, %251 : vector<192x256xf32>
    %253 = arith.truncf %252 : vector<192x256xf32> to vector<192x256xbf16>
    %cst_105 = arith.constant dense<0.000000e+00> : vector<192x256xf32>
    %254 = tpu.matmul %250, %8, %cst_105 {dimension_numbers = #tpu.dot_dimension_numbers<[1], [0], [0], [1], [0, 0, 1, 1], [], []>} : vector<192x256xbf16>, vector<256x256xbf16>, vector<192x256xf32> -> vector<192x256xf32>
    %cst_106 = arith.constant dense<0.000000e+00> : vector<192x256xf32>
    %255 = tpu.matmul %253, %8, %cst_106 {dimension_numbers = #tpu.dot_dimension_numbers<[1], [0], [0], [1], [0, 0, 1, 1], [], []>} : vector<192x256xbf16>, vector<256x256xbf16>, vector<192x256xf32> -> vector<192x256xf32>
    %256 = arith.addf %254, %255 : vector<192x256xf32>
    %c0_107 = arith.constant 0 : index
    %c0_108 = arith.constant 0 : index
    %257 = vector.load %arg5[%c0_107, %c0_108] : memref<192x256xf32, #tpu.memory_space<vmem>>, vector<192x256xf32>
    %258 = arith.mulf %256, %257 : vector<192x256xf32>
    %259 = arith.truncf %258 : vector<192x256xf32> to vector<192x256xbf16>
    %260 = arith.extf %259 : vector<192x256xbf16> to vector<192x256xf32>
    %261 = arith.subf %258, %260 : vector<192x256xf32>
    %262 = arith.truncf %261 : vector<192x256xf32> to vector<192x256xbf16>
    %cst_109 = arith.constant dense<0.000000e+00> : vector<16x256xf32>
    %263 = tpu.matmul %3, %259, %cst_109 {dimension_numbers = #tpu.dot_dimension_numbers<[1], [0], [0], [1], [0, 0, 1, 1], [], []>} : vector<16x192xbf16>, vector<192x256xbf16>, vector<16x256xf32> -> vector<16x256xf32>
    %cst_110 = arith.constant dense<0.000000e+00> : vector<16x256xf32>
    %264 = tpu.matmul %3, %262, %cst_110 {dimension_numbers = #tpu.dot_dimension_numbers<[1], [0], [0], [1], [0, 0, 1, 1], [], []>} : vector<16x192xbf16>, vector<192x256xbf16>, vector<16x256xf32> -> vector<16x256xf32>
    %265 = arith.addf %263, %264 : vector<16x256xf32>
    %c0_111 = arith.constant 0 : index
    %c0_112 = arith.constant 0 : index
    %266 = vector.load %arg7[%c0_111, %c0_112] : memref<16x1xf32, #tpu.memory_space<vmem>>, vector<16x1xf32>
    %267 = vector.broadcast %266 : vector<16x1xf32> to vector<16x256xf32>
    %268 = arith.addf %265, %267 : vector<16x256xf32>
    %c0_113 = arith.constant 0 : index
    %c0_114 = arith.constant 0 : index
    %269 = vector.load %arg12[%c0_113, %c0_114] : memref<256x256xbf16, #tpu.memory_space<vmem>>, vector<256x256xbf16>
    %c0_115 = arith.constant 0 : index
    %c0_116 = arith.constant 0 : index
    %270 = vector.load %arg8[%c0_115, %c0_116] : memref<32x16xf32, #tpu.memory_space<vmem>>, vector<32x16xf32>
    %cst_117 = arith.constant dense<0.000000e+00> : vector<32x256xf32>
    %271 = tpu.matmul %270, %268, %cst_117 {dimension_numbers = #tpu.dot_dimension_numbers<[1], [0], [0], [1], [0, 0, 1, 1], [], []>, precision = #tpu.contract_precision<fp32>} : vector<32x16xf32>, vector<16x256xf32>, vector<32x256xf32> -> vector<32x256xf32>
    %c0_118 = arith.constant 0 : index
    %c0_119 = arith.constant 0 : index
    %272 = vector.load %arg9[%c0_118, %c0_119] : memref<32x1xf32, #tpu.memory_space<vmem>>, vector<32x1xf32>
    %273 = vector.broadcast %272 : vector<32x1xf32> to vector<32x256xf32>
    %274 = arith.addf %271, %273 : vector<32x256xf32>
    %275 = arith.truncf %274 : vector<32x256xf32> to vector<32x256xbf16>
    %276 = arith.extf %275 : vector<32x256xbf16> to vector<32x256xf32>
    %277 = arith.subf %274, %276 : vector<32x256xf32>
    %278 = arith.truncf %277 : vector<32x256xf32> to vector<32x256xbf16>
    %cst_120 = arith.constant dense<0.000000e+00> : vector<96x256xf32>
    %279 = tpu.matmul %2, %275, %cst_120 {dimension_numbers = #tpu.dot_dimension_numbers<[1], [0], [0], [1], [0, 0, 1, 1], [], []>} : vector<96x32xbf16>, vector<32x256xbf16>, vector<96x256xf32> -> vector<96x256xf32>
    %cst_121 = arith.constant dense<0.000000e+00> : vector<96x256xf32>
    %280 = tpu.matmul %2, %278, %cst_121 {dimension_numbers = #tpu.dot_dimension_numbers<[1], [0], [0], [1], [0, 0, 1, 1], [], []>} : vector<96x32xbf16>, vector<32x256xbf16>, vector<96x256xf32> -> vector<96x256xf32>
    %281 = arith.addf %279, %280 : vector<96x256xf32>
    %c0_122 = arith.constant 0 : index
    %c0_123 = arith.constant 0 : index
    %282 = vector.load %arg11[%c0_122, %c0_123] : memref<192x256xf32, #tpu.memory_space<vmem>>, vector<96x256xf32>
    %283 = arith.mulf %281, %282 : vector<96x256xf32>
    %284 = arith.truncf %283 : vector<96x256xf32> to vector<96x256xbf16>
    %285 = arith.extf %284 : vector<96x256xbf16> to vector<96x256xf32>
    %286 = arith.subf %283, %285 : vector<96x256xf32>
    %287 = arith.truncf %286 : vector<96x256xf32> to vector<96x256xbf16>
    %cst_124 = arith.constant dense<0.000000e+00> : vector<96x256xf32>
    %288 = tpu.matmul %284, %269, %cst_124 {dimension_numbers = #tpu.dot_dimension_numbers<[1], [0], [0], [1], [0, 0, 1, 1], [], []>} : vector<96x256xbf16>, vector<256x256xbf16>, vector<96x256xf32> -> vector<96x256xf32>
    %cst_125 = arith.constant dense<0.000000e+00> : vector<96x256xf32>
    %289 = tpu.matmul %287, %269, %cst_125 {dimension_numbers = #tpu.dot_dimension_numbers<[1], [0], [0], [1], [0, 0, 1, 1], [], []>} : vector<96x256xbf16>, vector<256x256xbf16>, vector<96x256xf32> -> vector<96x256xf32>
    %290 = arith.addf %288, %289 : vector<96x256xf32>
    %291 = vector.extract_strided_slice %290 {offsets = [0, 0], sizes = [16, 256], strides = [1, 1]} : vector<96x256xf32> to vector<16x256xf32>
    %292 = vector.extract_strided_slice %274 {offsets = [8, 0], sizes = [1, 256], strides = [1, 1]} : vector<32x256xf32> to vector<1x256xf32>
    %293 = vector.broadcast %292 : vector<1x256xf32> to vector<16x256xf32>
    %294 = arith.mulf %291, %293 : vector<16x256xf32>
    %c0_126 = arith.constant 0 : index
    %c0_127 = arith.constant 0 : index
    %c0_128 = arith.constant 0 : index
    %295 = vector.load %arg10[%c0_126, %c0_127, %c0_128] : memref<16x16x256xf32, #tpu.memory_space<vmem>>, vector<1x16x256xf32>
    %296 = vector.shape_cast %295 : vector<1x16x256xf32> to vector<16x256xf32>
    %297 = arith.mulf %291, %296 : vector<16x256xf32>
    %c2_129 = arith.constant 2 : index
    %c0_130 = arith.constant 0 : index
    %c0_131 = arith.constant 0 : index
    %298 = vector.load %arg10[%c2_129, %c0_130, %c0_131] : memref<16x16x256xf32, #tpu.memory_space<vmem>>, vector<1x16x256xf32>
    %299 = vector.shape_cast %298 : vector<1x16x256xf32> to vector<16x256xf32>
    %300 = vector.broadcast %292 : vector<1x256xf32> to vector<16x256xf32>
    %301 = arith.mulf %300, %299 : vector<16x256xf32>
    %302 = vector.extract_strided_slice %290 {offsets = [16, 0], sizes = [16, 256], strides = [1, 1]} : vector<96x256xf32> to vector<16x256xf32>
    %303 = vector.extract_strided_slice %274 {offsets = [9, 0], sizes = [1, 256], strides = [1, 1]} : vector<32x256xf32> to vector<1x256xf32>
    %304 = vector.broadcast %303 : vector<1x256xf32> to vector<16x256xf32>
    %305 = arith.mulf %302, %304 : vector<16x256xf32>
    %c1_132 = arith.constant 1 : index
    %c0_133 = arith.constant 0 : index
    %c0_134 = arith.constant 0 : index
    %306 = vector.load %arg10[%c1_132, %c0_133, %c0_134] : memref<16x16x256xf32, #tpu.memory_space<vmem>>, vector<1x16x256xf32>
    %307 = vector.shape_cast %306 : vector<1x16x256xf32> to vector<16x256xf32>
    %308 = arith.mulf %302, %307 : vector<16x256xf32>
    %c3_135 = arith.constant 3 : index
    %c0_136 = arith.constant 0 : index
    %c0_137 = arith.constant 0 : index
    %309 = vector.load %arg10[%c3_135, %c0_136, %c0_137] : memref<16x16x256xf32, #tpu.memory_space<vmem>>, vector<1x16x256xf32>
    %310 = vector.shape_cast %309 : vector<1x16x256xf32> to vector<16x256xf32>
    %311 = vector.broadcast %303 : vector<1x256xf32> to vector<16x256xf32>
    %312 = arith.mulf %311, %310 : vector<16x256xf32>
    %313 = arith.addf %294, %305 : vector<16x256xf32>
    %314 = arith.addf %297, %308 : vector<16x256xf32>
    %315 = arith.addf %301, %312 : vector<16x256xf32>
    %c0_138 = arith.constant 0 : index
    %c0_139 = arith.constant 0 : index
    %316 = memref.load %arg20[%c0_138, %c0_139] : memref<3x3xf32, #tpu.memory_space<smem>>
    %317 = vector.broadcast %316 : f32 to vector<16x256xf32>
    %318 = arith.mulf %317, %313 : vector<16x256xf32>
    %c1_140 = arith.constant 1 : index
    %c0_141 = arith.constant 0 : index
    %319 = memref.load %arg20[%c1_140, %c0_141] : memref<3x3xf32, #tpu.memory_space<smem>>
    %320 = vector.broadcast %319 : f32 to vector<16x256xf32>
    %321 = arith.mulf %320, %314 : vector<16x256xf32>
    %322 = arith.addf %318, %321 : vector<16x256xf32>
    %c2_142 = arith.constant 2 : index
    %c0_143 = arith.constant 0 : index
    %323 = memref.load %arg20[%c2_142, %c0_143] : memref<3x3xf32, #tpu.memory_space<smem>>
    %324 = vector.broadcast %323 : f32 to vector<16x256xf32>
    %325 = arith.mulf %324, %315 : vector<16x256xf32>
    %326 = arith.addf %322, %325 : vector<16x256xf32>
    %c0_144 = arith.constant 0 : index
    %327 = memref.load %arg21[%c0_144] : memref<3xf32, #tpu.memory_space<smem>>
    %328 = vector.broadcast %327 : f32 to vector<16x256xf32>
    %329 = arith.addf %326, %328 : vector<16x256xf32>
    %cst_145 = arith.constant dense<0xFF800000> : vector<16xf32>
    %330 = vector.multi_reduction <maximumf>, %329, %cst_145 [1] : vector<16x256xf32> to vector<16xf32>
    %331 = vector.shape_cast %330 : vector<16xf32> to vector<16x1xf32>
    %332 = vector.broadcast %331 : vector<16x1xf32> to vector<16x256xf32>
    %333 = arith.subf %329, %332 : vector<16x256xf32>
    %334 = math.exp %333 : vector<16x256xf32>
    %335 = vector.extract_strided_slice %290 {offsets = [32, 0], sizes = [16, 256], strides = [1, 1]} : vector<96x256xf32> to vector<16x256xf32>
    %336 = vector.extract_strided_slice %274 {offsets = [10, 0], sizes = [1, 256], strides = [1, 1]} : vector<32x256xf32> to vector<1x256xf32>
    %337 = vector.broadcast %336 : vector<1x256xf32> to vector<16x256xf32>
    %338 = arith.mulf %335, %337 : vector<16x256xf32>
    %c0_146 = arith.constant 0 : index
    %c0_147 = arith.constant 0 : index
    %c0_148 = arith.constant 0 : index
    %339 = vector.load %arg10[%c0_146, %c0_147, %c0_148] : memref<16x16x256xf32, #tpu.memory_space<vmem>>, vector<1x16x256xf32>
    %340 = vector.shape_cast %339 : vector<1x16x256xf32> to vector<16x256xf32>
    %341 = arith.mulf %335, %340 : vector<16x256xf32>
    %c2_149 = arith.constant 2 : index
    %c0_150 = arith.constant 0 : index
    %c0_151 = arith.constant 0 : index
    %342 = vector.load %arg10[%c2_149, %c0_150, %c0_151] : memref<16x16x256xf32, #tpu.memory_space<vmem>>, vector<1x16x256xf32>
    %343 = vector.shape_cast %342 : vector<1x16x256xf32> to vector<16x256xf32>
    %344 = vector.broadcast %336 : vector<1x256xf32> to vector<16x256xf32>
    %345 = arith.mulf %344, %343 : vector<16x256xf32>
    %346 = vector.extract_strided_slice %290 {offsets = [48, 0], sizes = [16, 256], strides = [1, 1]} : vector<96x256xf32> to vector<16x256xf32>
    %347 = vector.extract_strided_slice %274 {offsets = [11, 0], sizes = [1, 256], strides = [1, 1]} : vector<32x256xf32> to vector<1x256xf32>
    %348 = vector.broadcast %347 : vector<1x256xf32> to vector<16x256xf32>
    %349 = arith.mulf %346, %348 : vector<16x256xf32>
    %c1_152 = arith.constant 1 : index
    %c0_153 = arith.constant 0 : index
    %c0_154 = arith.constant 0 : index
    %350 = vector.load %arg10[%c1_152, %c0_153, %c0_154] : memref<16x16x256xf32, #tpu.memory_space<vmem>>, vector<1x16x256xf32>
    %351 = vector.shape_cast %350 : vector<1x16x256xf32> to vector<16x256xf32>
    %352 = arith.mulf %346, %351 : vector<16x256xf32>
    %c3_155 = arith.constant 3 : index
    %c0_156 = arith.constant 0 : index
    %c0_157 = arith.constant 0 : index
    %353 = vector.load %arg10[%c3_155, %c0_156, %c0_157] : memref<16x16x256xf32, #tpu.memory_space<vmem>>, vector<1x16x256xf32>
    %354 = vector.shape_cast %353 : vector<1x16x256xf32> to vector<16x256xf32>
    %355 = vector.broadcast %347 : vector<1x256xf32> to vector<16x256xf32>
    %356 = arith.mulf %355, %354 : vector<16x256xf32>
    %357 = arith.addf %338, %349 : vector<16x256xf32>
    %358 = arith.addf %341, %352 : vector<16x256xf32>
    %359 = arith.addf %345, %356 : vector<16x256xf32>
    %c0_158 = arith.constant 0 : index
    %c1_159 = arith.constant 1 : index
    %360 = memref.load %arg20[%c0_158, %c1_159] : memref<3x3xf32, #tpu.memory_space<smem>>
    %361 = vector.broadcast %360 : f32 to vector<16x256xf32>
    %362 = arith.mulf %361, %357 : vector<16x256xf32>
    %c1_160 = arith.constant 1 : index
    %c1_161 = arith.constant 1 : index
    %363 = memref.load %arg20[%c1_160, %c1_161] : memref<3x3xf32, #tpu.memory_space<smem>>
    %364 = vector.broadcast %363 : f32 to vector<16x256xf32>
    %365 = arith.mulf %364, %358 : vector<16x256xf32>
    %366 = arith.addf %362, %365 : vector<16x256xf32>
    %c2_162 = arith.constant 2 : index
    %c1_163 = arith.constant 1 : index
    %367 = memref.load %arg20[%c2_162, %c1_163] : memref<3x3xf32, #tpu.memory_space<smem>>
    %368 = vector.broadcast %367 : f32 to vector<16x256xf32>
    %369 = arith.mulf %368, %359 : vector<16x256xf32>
    %370 = arith.addf %366, %369 : vector<16x256xf32>
    %c1_164 = arith.constant 1 : index
    %371 = memref.load %arg21[%c1_164] : memref<3xf32, #tpu.memory_space<smem>>
    %372 = vector.broadcast %371 : f32 to vector<16x256xf32>
    %373 = arith.addf %370, %372 : vector<16x256xf32>
    %cst_165 = arith.constant dense<0xFF800000> : vector<16xf32>
    %374 = vector.multi_reduction <maximumf>, %373, %cst_165 [1] : vector<16x256xf32> to vector<16xf32>
    %375 = vector.shape_cast %374 : vector<16xf32> to vector<16x1xf32>
    %376 = vector.broadcast %375 : vector<16x1xf32> to vector<16x256xf32>
    %377 = arith.subf %373, %376 : vector<16x256xf32>
    %378 = math.exp %377 : vector<16x256xf32>
    %379 = vector.extract_strided_slice %290 {offsets = [64, 0], sizes = [16, 256], strides = [1, 1]} : vector<96x256xf32> to vector<16x256xf32>
    %380 = vector.extract_strided_slice %274 {offsets = [12, 0], sizes = [1, 256], strides = [1, 1]} : vector<32x256xf32> to vector<1x256xf32>
    %381 = vector.broadcast %380 : vector<1x256xf32> to vector<16x256xf32>
    %382 = arith.mulf %379, %381 : vector<16x256xf32>
    %c0_166 = arith.constant 0 : index
    %c0_167 = arith.constant 0 : index
    %c0_168 = arith.constant 0 : index
    %383 = vector.load %arg10[%c0_166, %c0_167, %c0_168] : memref<16x16x256xf32, #tpu.memory_space<vmem>>, vector<1x16x256xf32>
    %384 = vector.shape_cast %383 : vector<1x16x256xf32> to vector<16x256xf32>
    %385 = arith.mulf %379, %384 : vector<16x256xf32>
    %c2_169 = arith.constant 2 : index
    %c0_170 = arith.constant 0 : index
    %c0_171 = arith.constant 0 : index
    %386 = vector.load %arg10[%c2_169, %c0_170, %c0_171] : memref<16x16x256xf32, #tpu.memory_space<vmem>>, vector<1x16x256xf32>
    %387 = vector.shape_cast %386 : vector<1x16x256xf32> to vector<16x256xf32>
    %388 = vector.broadcast %380 : vector<1x256xf32> to vector<16x256xf32>
    %389 = arith.mulf %388, %387 : vector<16x256xf32>
    %390 = vector.extract_strided_slice %290 {offsets = [80, 0], sizes = [16, 256], strides = [1, 1]} : vector<96x256xf32> to vector<16x256xf32>
    %391 = vector.extract_strided_slice %274 {offsets = [13, 0], sizes = [1, 256], strides = [1, 1]} : vector<32x256xf32> to vector<1x256xf32>
    %392 = vector.broadcast %391 : vector<1x256xf32> to vector<16x256xf32>
    %393 = arith.mulf %390, %392 : vector<16x256xf32>
    %c1_172 = arith.constant 1 : index
    %c0_173 = arith.constant 0 : index
    %c0_174 = arith.constant 0 : index
    %394 = vector.load %arg10[%c1_172, %c0_173, %c0_174] : memref<16x16x256xf32, #tpu.memory_space<vmem>>, vector<1x16x256xf32>
    %395 = vector.shape_cast %394 : vector<1x16x256xf32> to vector<16x256xf32>
    %396 = arith.mulf %390, %395 : vector<16x256xf32>
    %c3_175 = arith.constant 3 : index
    %c0_176 = arith.constant 0 : index
    %c0_177 = arith.constant 0 : index
    %397 = vector.load %arg10[%c3_175, %c0_176, %c0_177] : memref<16x16x256xf32, #tpu.memory_space<vmem>>, vector<1x16x256xf32>
    %398 = vector.shape_cast %397 : vector<1x16x256xf32> to vector<16x256xf32>
    %399 = vector.broadcast %391 : vector<1x256xf32> to vector<16x256xf32>
    %400 = arith.mulf %399, %398 : vector<16x256xf32>
    %401 = arith.addf %382, %393 : vector<16x256xf32>
    %402 = arith.addf %385, %396 : vector<16x256xf32>
    %403 = arith.addf %389, %400 : vector<16x256xf32>
    %c0_178 = arith.constant 0 : index
    %c2_179 = arith.constant 2 : index
    %404 = memref.load %arg20[%c0_178, %c2_179] : memref<3x3xf32, #tpu.memory_space<smem>>
    %405 = vector.broadcast %404 : f32 to vector<16x256xf32>
    %406 = arith.mulf %405, %401 : vector<16x256xf32>
    %c1_180 = arith.constant 1 : index
    %c2_181 = arith.constant 2 : index
    %407 = memref.load %arg20[%c1_180, %c2_181] : memref<3x3xf32, #tpu.memory_space<smem>>
    %408 = vector.broadcast %407 : f32 to vector<16x256xf32>
    %409 = arith.mulf %408, %402 : vector<16x256xf32>
    %410 = arith.addf %406, %409 : vector<16x256xf32>
    %c2_182 = arith.constant 2 : index
    %c2_183 = arith.constant 2 : index
    %411 = memref.load %arg20[%c2_182, %c2_183] : memref<3x3xf32, #tpu.memory_space<smem>>
    %412 = vector.broadcast %411 : f32 to vector<16x256xf32>
    %413 = arith.mulf %412, %403 : vector<16x256xf32>
    %414 = arith.addf %410, %413 : vector<16x256xf32>
    %c2_184 = arith.constant 2 : index
    %415 = memref.load %arg21[%c2_184] : memref<3xf32, #tpu.memory_space<smem>>
    %416 = vector.broadcast %415 : f32 to vector<16x256xf32>
    %417 = arith.addf %414, %416 : vector<16x256xf32>
    %cst_185 = arith.constant dense<0xFF800000> : vector<16xf32>
    %418 = vector.multi_reduction <maximumf>, %417, %cst_185 [1] : vector<16x256xf32> to vector<16xf32>
    %419 = vector.shape_cast %418 : vector<16xf32> to vector<16x1xf32>
    %420 = vector.broadcast %419 : vector<16x1xf32> to vector<16x256xf32>
    %421 = arith.subf %417, %420 : vector<16x256xf32>
    %422 = math.exp %421 : vector<16x256xf32>
    %423 = tpu.concatenate %334, %378, %422 in 0 : vector<16x256xf32>, vector<16x256xf32>, vector<16x256xf32> -> vector<48x256xf32>
    %424 = arith.truncf %423 : vector<48x256xf32> to vector<48x256xbf16>
    %425 = arith.extf %424 : vector<48x256xbf16> to vector<48x256xf32>
    %426 = arith.subf %423, %425 : vector<48x256xf32>
    %427 = arith.truncf %426 : vector<48x256xf32> to vector<48x256xbf16>
    %cst_186 = arith.constant dense<0.000000e+00> : vector<48x256xf32>
    %428 = tpu.matmul %424, %269, %cst_186 {dimension_numbers = #tpu.dot_dimension_numbers<[1], [0], [0], [1], [0, 0, 1, 1], [], []>} : vector<48x256xbf16>, vector<256x256xbf16>, vector<48x256xf32> -> vector<48x256xf32>
    %cst_187 = arith.constant dense<0.000000e+00> : vector<48x256xf32>
    %429 = tpu.matmul %427, %269, %cst_187 {dimension_numbers = #tpu.dot_dimension_numbers<[1], [0], [0], [1], [0, 0, 1, 1], [], []>} : vector<48x256xbf16>, vector<256x256xbf16>, vector<48x256xf32> -> vector<48x256xf32>
    %430 = arith.addf %428, %429 : vector<48x256xf32>
    %431 = tpu.reciprocal %430 : vector<48x256xf32> -> vector<48x256xf32>
    %432 = vector.extract_strided_slice %431 {offsets = [0, 0], sizes = [16, 256], strides = [1, 1]} : vector<48x256xf32> to vector<16x256xf32>
    %433 = arith.mulf %334, %432 : vector<16x256xf32>
    %434 = vector.extract_strided_slice %274 {offsets = [16, 0], sizes = [1, 256], strides = [1, 1]} : vector<32x256xf32> to vector<1x256xf32>
    %c4_188 = arith.constant 4 : index
    %c0_189 = arith.constant 0 : index
    %c0_190 = arith.constant 0 : index
    %435 = vector.load %arg10[%c4_188, %c0_189, %c0_190] : memref<16x16x256xf32, #tpu.memory_space<vmem>>, vector<1x16x256xf32>
    %436 = vector.shape_cast %435 : vector<1x16x256xf32> to vector<16x256xf32>
    %437 = vector.broadcast %434 : vector<1x256xf32> to vector<16x256xf32>
    %438 = arith.addf %437, %436 : vector<16x256xf32>
    %439 = arith.mulf %433, %438 : vector<16x256xf32>
    %440 = vector.extract_strided_slice %274 {offsets = [17, 0], sizes = [1, 256], strides = [1, 1]} : vector<32x256xf32> to vector<1x256xf32>
    %c5_191 = arith.constant 5 : index
    %c0_192 = arith.constant 0 : index
    %c0_193 = arith.constant 0 : index
    %441 = vector.load %arg10[%c5_191, %c0_192, %c0_193] : memref<16x16x256xf32, #tpu.memory_space<vmem>>, vector<1x16x256xf32>
    %442 = vector.shape_cast %441 : vector<1x16x256xf32> to vector<16x256xf32>
    %443 = vector.broadcast %440 : vector<1x256xf32> to vector<16x256xf32>
    %444 = arith.addf %443, %442 : vector<16x256xf32>
    %445 = arith.mulf %433, %444 : vector<16x256xf32>
    %446 = vector.extract_strided_slice %274 {offsets = [18, 0], sizes = [1, 256], strides = [1, 1]} : vector<32x256xf32> to vector<1x256xf32>
    %c6_194 = arith.constant 6 : index
    %c0_195 = arith.constant 0 : index
    %c0_196 = arith.constant 0 : index
    %447 = vector.load %arg10[%c6_194, %c0_195, %c0_196] : memref<16x16x256xf32, #tpu.memory_space<vmem>>, vector<1x16x256xf32>
    %448 = vector.shape_cast %447 : vector<1x16x256xf32> to vector<16x256xf32>
    %449 = vector.broadcast %446 : vector<1x256xf32> to vector<16x256xf32>
    %450 = arith.addf %449, %448 : vector<16x256xf32>
    %451 = arith.mulf %433, %450 : vector<16x256xf32>
    %452 = vector.extract_strided_slice %274 {offsets = [19, 0], sizes = [1, 256], strides = [1, 1]} : vector<32x256xf32> to vector<1x256xf32>
    %c7_197 = arith.constant 7 : index
    %c0_198 = arith.constant 0 : index
    %c0_199 = arith.constant 0 : index
    %453 = vector.load %arg10[%c7_197, %c0_198, %c0_199] : memref<16x16x256xf32, #tpu.memory_space<vmem>>, vector<1x16x256xf32>
    %454 = vector.shape_cast %453 : vector<1x16x256xf32> to vector<16x256xf32>
    %455 = vector.broadcast %452 : vector<1x256xf32> to vector<16x256xf32>
    %456 = arith.addf %455, %454 : vector<16x256xf32>
    %457 = arith.mulf %433, %456 : vector<16x256xf32>
    %458 = vector.extract_strided_slice %431 {offsets = [16, 0], sizes = [16, 256], strides = [1, 1]} : vector<48x256xf32> to vector<16x256xf32>
    %459 = arith.mulf %378, %458 : vector<16x256xf32>
    %460 = vector.extract_strided_slice %274 {offsets = [20, 0], sizes = [1, 256], strides = [1, 1]} : vector<32x256xf32> to vector<1x256xf32>
    %c8_200 = arith.constant 8 : index
    %c0_201 = arith.constant 0 : index
    %c0_202 = arith.constant 0 : index
    %461 = vector.load %arg10[%c8_200, %c0_201, %c0_202] : memref<16x16x256xf32, #tpu.memory_space<vmem>>, vector<1x16x256xf32>
    %462 = vector.shape_cast %461 : vector<1x16x256xf32> to vector<16x256xf32>
    %463 = vector.broadcast %460 : vector<1x256xf32> to vector<16x256xf32>
    %464 = arith.addf %463, %462 : vector<16x256xf32>
    %465 = arith.mulf %459, %464 : vector<16x256xf32>
    %466 = vector.extract_strided_slice %274 {offsets = [21, 0], sizes = [1, 256], strides = [1, 1]} : vector<32x256xf32> to vector<1x256xf32>
    %c9_203 = arith.constant 9 : index
    %c0_204 = arith.constant 0 : index
    %c0_205 = arith.constant 0 : index
    %467 = vector.load %arg10[%c9_203, %c0_204, %c0_205] : memref<16x16x256xf32, #tpu.memory_space<vmem>>, vector<1x16x256xf32>
    %468 = vector.shape_cast %467 : vector<1x16x256xf32> to vector<16x256xf32>
    %469 = vector.broadcast %466 : vector<1x256xf32> to vector<16x256xf32>
    %470 = arith.addf %469, %468 : vector<16x256xf32>
    %471 = arith.mulf %459, %470 : vector<16x256xf32>
    %472 = vector.extract_strided_slice %274 {offsets = [22, 0], sizes = [1, 256], strides = [1, 1]} : vector<32x256xf32> to vector<1x256xf32>
    %c10_206 = arith.constant 10 : index
    %c0_207 = arith.constant 0 : index
    %c0_208 = arith.constant 0 : index
    %473 = vector.load %arg10[%c10_206, %c0_207, %c0_208] : memref<16x16x256xf32, #tpu.memory_space<vmem>>, vector<1x16x256xf32>
    %474 = vector.shape_cast %473 : vector<1x16x256xf32> to vector<16x256xf32>
    %475 = vector.broadcast %472 : vector<1x256xf32> to vector<16x256xf32>
    %476 = arith.addf %475, %474 : vector<16x256xf32>
    %477 = arith.mulf %459, %476 : vector<16x256xf32>
    %478 = vector.extract_strided_slice %274 {offsets = [23, 0], sizes = [1, 256], strides = [1, 1]} : vector<32x256xf32> to vector<1x256xf32>
    %c11_209 = arith.constant 11 : index
    %c0_210 = arith.constant 0 : index
    %c0_211 = arith.constant 0 : index
    %479 = vector.load %arg10[%c11_209, %c0_210, %c0_211] : memref<16x16x256xf32, #tpu.memory_space<vmem>>, vector<1x16x256xf32>
    %480 = vector.shape_cast %479 : vector<1x16x256xf32> to vector<16x256xf32>
    %481 = vector.broadcast %478 : vector<1x256xf32> to vector<16x256xf32>
    %482 = arith.addf %481, %480 : vector<16x256xf32>
    %483 = arith.mulf %459, %482 : vector<16x256xf32>
    %484 = vector.extract_strided_slice %431 {offsets = [32, 0], sizes = [16, 256], strides = [1, 1]} : vector<48x256xf32> to vector<16x256xf32>
    %485 = arith.mulf %422, %484 : vector<16x256xf32>
    %486 = vector.extract_strided_slice %274 {offsets = [24, 0], sizes = [1, 256], strides = [1, 1]} : vector<32x256xf32> to vector<1x256xf32>
    %c12_212 = arith.constant 12 : index
    %c0_213 = arith.constant 0 : index
    %c0_214 = arith.constant 0 : index
    %487 = vector.load %arg10[%c12_212, %c0_213, %c0_214] : memref<16x16x256xf32, #tpu.memory_space<vmem>>, vector<1x16x256xf32>
    %488 = vector.shape_cast %487 : vector<1x16x256xf32> to vector<16x256xf32>
    %489 = vector.broadcast %486 : vector<1x256xf32> to vector<16x256xf32>
    %490 = arith.addf %489, %488 : vector<16x256xf32>
    %491 = arith.mulf %485, %490 : vector<16x256xf32>
    %492 = vector.extract_strided_slice %274 {offsets = [25, 0], sizes = [1, 256], strides = [1, 1]} : vector<32x256xf32> to vector<1x256xf32>
    %c13_215 = arith.constant 13 : index
    %c0_216 = arith.constant 0 : index
    %c0_217 = arith.constant 0 : index
    %493 = vector.load %arg10[%c13_215, %c0_216, %c0_217] : memref<16x16x256xf32, #tpu.memory_space<vmem>>, vector<1x16x256xf32>
    %494 = vector.shape_cast %493 : vector<1x16x256xf32> to vector<16x256xf32>
    %495 = vector.broadcast %492 : vector<1x256xf32> to vector<16x256xf32>
    %496 = arith.addf %495, %494 : vector<16x256xf32>
    %497 = arith.mulf %485, %496 : vector<16x256xf32>
    %498 = vector.extract_strided_slice %274 {offsets = [26, 0], sizes = [1, 256], strides = [1, 1]} : vector<32x256xf32> to vector<1x256xf32>
    %c14_218 = arith.constant 14 : index
    %c0_219 = arith.constant 0 : index
    %c0_220 = arith.constant 0 : index
    %499 = vector.load %arg10[%c14_218, %c0_219, %c0_220] : memref<16x16x256xf32, #tpu.memory_space<vmem>>, vector<1x16x256xf32>
    %500 = vector.shape_cast %499 : vector<1x16x256xf32> to vector<16x256xf32>
    %501 = vector.broadcast %498 : vector<1x256xf32> to vector<16x256xf32>
    %502 = arith.addf %501, %500 : vector<16x256xf32>
    %503 = arith.mulf %485, %502 : vector<16x256xf32>
    %504 = vector.extract_strided_slice %274 {offsets = [27, 0], sizes = [1, 256], strides = [1, 1]} : vector<32x256xf32> to vector<1x256xf32>
    %c15_221 = arith.constant 15 : index
    %c0_222 = arith.constant 0 : index
    %c0_223 = arith.constant 0 : index
    %505 = vector.load %arg10[%c15_221, %c0_222, %c0_223] : memref<16x16x256xf32, #tpu.memory_space<vmem>>, vector<1x16x256xf32>
    %506 = vector.shape_cast %505 : vector<1x16x256xf32> to vector<16x256xf32>
    %507 = vector.broadcast %504 : vector<1x256xf32> to vector<16x256xf32>
    %508 = arith.addf %507, %506 : vector<16x256xf32>
    %509 = arith.mulf %485, %508 : vector<16x256xf32>
    %510 = tpu.concatenate %439, %445, %451, %457, %465, %471, %477, %483, %491, %497, %503, %509 in 0 : vector<16x256xf32>, vector<16x256xf32>, vector<16x256xf32>, vector<16x256xf32>, vector<16x256xf32>, vector<16x256xf32>, vector<16x256xf32>, vector<16x256xf32>, vector<16x256xf32>, vector<16x256xf32>, vector<16x256xf32>, vector<16x256xf32> -> vector<192x256xf32>
    %511 = arith.truncf %510 : vector<192x256xf32> to vector<192x256xbf16>
    %512 = arith.extf %511 : vector<192x256xbf16> to vector<192x256xf32>
    %513 = arith.subf %510, %512 : vector<192x256xf32>
    %514 = arith.truncf %513 : vector<192x256xf32> to vector<192x256xbf16>
    %cst_224 = arith.constant dense<0.000000e+00> : vector<192x256xf32>
    %515 = tpu.matmul %511, %269, %cst_224 {dimension_numbers = #tpu.dot_dimension_numbers<[1], [0], [0], [1], [0, 0, 1, 1], [], []>} : vector<192x256xbf16>, vector<256x256xbf16>, vector<192x256xf32> -> vector<192x256xf32>
    %cst_225 = arith.constant dense<0.000000e+00> : vector<192x256xf32>
    %516 = tpu.matmul %514, %269, %cst_225 {dimension_numbers = #tpu.dot_dimension_numbers<[1], [0], [0], [1], [0, 0, 1, 1], [], []>} : vector<192x256xbf16>, vector<256x256xbf16>, vector<192x256xf32> -> vector<192x256xf32>
    %517 = arith.addf %515, %516 : vector<192x256xf32>
    %c0_226 = arith.constant 0 : index
    %c0_227 = arith.constant 0 : index
    %518 = vector.load %arg11[%c0_226, %c0_227] : memref<192x256xf32, #tpu.memory_space<vmem>>, vector<192x256xf32>
    %519 = arith.mulf %517, %518 : vector<192x256xf32>
    %520 = arith.truncf %519 : vector<192x256xf32> to vector<192x256xbf16>
    %521 = arith.extf %520 : vector<192x256xbf16> to vector<192x256xf32>
    %522 = arith.subf %519, %521 : vector<192x256xf32>
    %523 = arith.truncf %522 : vector<192x256xf32> to vector<192x256xbf16>
    %cst_228 = arith.constant dense<0.000000e+00> : vector<16x256xf32>
    %524 = tpu.matmul %3, %520, %cst_228 {dimension_numbers = #tpu.dot_dimension_numbers<[1], [0], [0], [1], [0, 0, 1, 1], [], []>} : vector<16x192xbf16>, vector<192x256xbf16>, vector<16x256xf32> -> vector<16x256xf32>
    %cst_229 = arith.constant dense<0.000000e+00> : vector<16x256xf32>
    %525 = tpu.matmul %3, %523, %cst_229 {dimension_numbers = #tpu.dot_dimension_numbers<[1], [0], [0], [1], [0, 0, 1, 1], [], []>} : vector<16x192xbf16>, vector<192x256xbf16>, vector<16x256xf32> -> vector<16x256xf32>
    %526 = arith.addf %524, %525 : vector<16x256xf32>
    %c0_230 = arith.constant 0 : index
    %c0_231 = arith.constant 0 : index
    %527 = vector.load %arg13[%c0_230, %c0_231] : memref<16x1xf32, #tpu.memory_space<vmem>>, vector<16x1xf32>
    %528 = vector.broadcast %527 : vector<16x1xf32> to vector<16x256xf32>
    %529 = arith.addf %526, %528 : vector<16x256xf32>
    %cst_232 = arith.constant dense<0.000000e+00> : vector<8x256xf32>
    %530 = tpu.matmul %1, %529, %cst_232 {dimension_numbers = #tpu.dot_dimension_numbers<[1], [0], [0], [1], [0, 0, 1, 1], [], []>, precision = #tpu.contract_precision<fp32>} : vector<8x16xf32>, vector<16x256xf32>, vector<8x256xf32> -> vector<8x256xf32>
    %531 = arith.addf %530, %7 : vector<8x256xf32>
    %c0_233 = arith.constant 0 : index
    %c0_234 = arith.constant 0 : index
    %532 = vector.load %arg22[%c0_233, %c0_234] : memref<8x256xf32, #tpu.memory_space<vmem>>, vector<8x256xf32>
    tpu.vector_store %arg22[%c0_233, %c0_234], %531 {strides = array<i32>} : memref<8x256xf32, #tpu.memory_space<vmem>>, vector<8x256xf32>,
    return
  }
  func.func @transform_0(%arg0: i32) -> (i32, i32) {
    %c0_i32 = arith.constant 0 : i32
    %c0_i32_0 = arith.constant 0 : i32
    return %arg0, %c0_i32 : i32, i32
  }
  func.func @transform_1(%arg0: i32) -> (i32, i32) {
    %c0_i32 = arith.constant 0 : i32
    %c0_i32_0 = arith.constant 0 : i32
    %c0_i32_1 = arith.constant 0 : i32
    return %c0_i32, %c0_i32_0 : i32, i32
  }
  func.func @transform_2(%arg0: i32) -> (i32, i32) {
    %c0_i32 = arith.constant 0 : i32
    %c0_i32_0 = arith.constant 0 : i32
    %c0_i32_1 = arith.constant 0 : i32
    return %c0_i32, %c0_i32_0 : i32, i32
  }
  func.func @transform_3(%arg0: i32) -> (i32, i32, i32) {
    %c0_i32 = arith.constant 0 : i32
    %c0_i32_0 = arith.constant 0 : i32
    %c0_i32_1 = arith.constant 0 : i32
    %c0_i32_2 = arith.constant 0 : i32
    return %c0_i32, %c0_i32_0, %c0_i32_1 : i32, i32, i32
  }
  func.func @transform_4(%arg0: i32) -> (i32, i32) {
    %c0_i32 = arith.constant 0 : i32
    %c0_i32_0 = arith.constant 0 : i32
    %c0_i32_1 = arith.constant 0 : i32
    return %c0_i32, %c0_i32_0 : i32, i32
  }
  func.func @transform_5(%arg0: i32) -> (i32, i32) {
    %c0_i32 = arith.constant 0 : i32
    %c0_i32_0 = arith.constant 0 : i32
    %c0_i32_1 = arith.constant 0 : i32
    return %c0_i32, %c0_i32_0 : i32, i32
  }
  func.func @transform_6(%arg0: i32) -> (i32, i32) {
    %c0_i32 = arith.constant 0 : i32
    %c0_i32_0 = arith.constant 0 : i32
    %c0_i32_1 = arith.constant 0 : i32
    return %c0_i32, %c0_i32_0 : i32, i32
  }
  func.func @transform_7(%arg0: i32) -> (i32, i32) {
    %c0_i32 = arith.constant 0 : i32
    %c0_i32_0 = arith.constant 0 : i32
    %c0_i32_1 = arith.constant 0 : i32
    return %c0_i32, %c0_i32_0 : i32, i32
  }
  func.func @transform_8(%arg0: i32) -> (i32, i32) {
    %c0_i32 = arith.constant 0 : i32
    %c0_i32_0 = arith.constant 0 : i32
    %c0_i32_1 = arith.constant 0 : i32
    return %c0_i32, %c0_i32_0 : i32, i32
  }
  func.func @transform_9(%arg0: i32) -> (i32, i32, i32) {
    %c0_i32 = arith.constant 0 : i32
    %c0_i32_0 = arith.constant 0 : i32
    %c0_i32_1 = arith.constant 0 : i32
    %c0_i32_2 = arith.constant 0 : i32
    return %c0_i32, %c0_i32_0, %c0_i32_1 : i32, i32, i32
  }
  func.func @transform_10(%arg0: i32) -> (i32, i32) {
    %c0_i32 = arith.constant 0 : i32
    %c0_i32_0 = arith.constant 0 : i32
    %c0_i32_1 = arith.constant 0 : i32
    return %c0_i32, %c0_i32_0 : i32, i32
  }
  func.func @transform_11(%arg0: i32) -> (i32, i32) {
    %c0_i32 = arith.constant 0 : i32
    %c0_i32_0 = arith.constant 0 : i32
    %c0_i32_1 = arith.constant 0 : i32
    return %c0_i32, %c0_i32_0 : i32, i32
  }
  func.func @transform_12(%arg0: i32) -> (i32, i32) {
    %c0_i32 = arith.constant 0 : i32
    %c0_i32_0 = arith.constant 0 : i32
    %c0_i32_1 = arith.constant 0 : i32
    return %c0_i32, %c0_i32_0 : i32, i32
  }
  func.func @transform_13(%arg0: i32) -> (i32, i32) {
    %c0_i32 = arith.constant 0 : i32
    %c0_i32_0 = arith.constant 0 : i32
    %c0_i32_1 = arith.constant 0 : i32
    return %c0_i32, %c0_i32_0 : i32, i32
  }
  func.func @transform_14(%arg0: i32) -> (i32, i32) {
    %c0_i32 = arith.constant 0 : i32
    %c0_i32_0 = arith.constant 0 : i32
    %c0_i32_1 = arith.constant 0 : i32
    return %c0_i32, %c0_i32_0 : i32, i32
  }
  func.func @transform_15(%arg0: i32) -> (i32, i32) {
    %c0_i32 = arith.constant 0 : i32
    %c0_i32_0 = arith.constant 0 : i32
    %c0_i32_1 = arith.constant 0 : i32
    return %c0_i32, %c0_i32_0 : i32, i32
  }
  func.func @transform_16(%arg0: i32) -> (i32, i32) {
    %c0_i32 = arith.constant 0 : i32
    %c0_i32_0 = arith.constant 0 : i32
    %c0_i32_1 = arith.constant 0 : i32
    return %c0_i32, %c0_i32_0 : i32, i32
  }
  func.func @transform_17(%arg0: i32) -> (i32, i32) {
    %c0_i32 = arith.constant 0 : i32
    %c0_i32_0 = arith.constant 0 : i32
    %c0_i32_1 = arith.constant 0 : i32
    return %c0_i32, %c0_i32_0 : i32, i32
  }
  func.func @transform_18(%arg0: i32) -> i32 {
    %c0_i32 = arith.constant 0 : i32
    %c0_i32_0 = arith.constant 0 : i32
    return %c0_i32 : i32
  }
  func.func @transform_19(%arg0: i32) -> (i32, i32) {
    %c0_i32 = arith.constant 0 : i32
    %c0_i32_0 = arith.constant 0 : i32
    %c0_i32_1 = arith.constant 0 : i32
    return %c0_i32, %c0_i32_0 : i32, i32
  }
  func.func @transform_20(%arg0: i32) -> i32 {
    %c0_i32 = arith.constant 0 : i32
    %c0_i32_0 = arith.constant 0 : i32
    return %c0_i32 : i32
  }
  func.func @transform_21(%arg0: i32) -> (i32, i32) {
    %c0_i32 = arith.constant 0 : i32
    %c0_i32_0 = arith.constant 0 : i32
    return %arg0, %c0_i32 : i32, i32
  }
}

</mosaic_0001>

<llo_original>
// kernel: fwd.1
$region0: #{fwd.1}
  #allocation0 [shape = 'u32[]', space=smem, size = 0x4, offset = 0x4, fixed_abs, tag = 'smem constant byte address 0x4 - core index']
  #allocation1 [shape = 'u32[72,128]{1,0:T(1,128)}', space=vmem, size = 0x9000, scoped, tag = 'internal scratch']
  %s0 = inlined_call_operand.vmem [shape: f32[32,256], index: 0, kind: input, shape index: {}]
  %s1 = inlined_call_operand.hbm [shape: f32[32,16], index: 1, kind: input, shape index: {}]
  %s2 = inlined_call_operand.hbm [shape: f32[32,1], index: 2, kind: input, shape index: {}]
  %s3 = inlined_call_operand.vmem [shape: f32[16,16,256], index: 3, kind: input, shape index: {}]
  %s4 = inlined_call_operand.hbm [shape: f32[192,256], index: 4, kind: input, shape index: {}]
  %s5 = inlined_call_operand.hbm [shape: bf16[256,256], index: 5, kind: input, shape index: {}]
  %s6 = inlined_call_operand.hbm [shape: f32[16,1], index: 6, kind: input, shape index: {}]
  %s7 = inlined_call_operand.hbm [shape: f32[32,16], index: 7, kind: input, shape index: {}]
  %s8 = inlined_call_operand.hbm [shape: f32[32,1], index: 8, kind: input, shape index: {}]
  %s9 = inlined_call_operand.vmem [shape: f32[16,16,256], index: 9, kind: input, shape index: {}]
  %s10 = inlined_call_operand.vmem [shape: f32[192,256], index: 10, kind: input, shape index: {}]
  %s11 = inlined_call_operand.hbm [shape: bf16[256,256], index: 11, kind: input, shape index: {}]
  %s12 = inlined_call_operand.hbm [shape: f32[16,1], index: 12, kind: input, shape index: {}]
  %s13 = inlined_call_operand.vmem [shape: bf16[96,32], index: 13, kind: input, shape index: {}]
  %s14 = inlined_call_operand.vmem [shape: bf16[16,192], index: 14, kind: input, shape index: {}]
  %s15 = inlined_call_operand.hbm [shape: f32[8,16], index: 15, kind: input, shape index: {}]
  %s16 = inlined_call_operand.vmem [shape: f32[8,1], index: 16, kind: input, shape index: {}]
  %s17 = inlined_call_operand.hbm [shape: f32[3,3], index: 17, kind: input, shape index: {}]
  %s18 = inlined_call_operand.vmem [shape: f32[3], index: 18, kind: input, shape index: {}]
  %s19 = inlined_call_operand.vmem [shape: f32[3,3], index: 19, kind: input, shape index: {}]
  %s20 = inlined_call_operand.vmem [shape: f32[3], index: 20, kind: input, shape index: {}]
  %s21 = inlined_call_operand.vmem [shape: f32[16,256], index: 21, kind: output, shape index: {}]
  %s22 = sld [smem:[#allocation0]]
  $region173: #{fwd.1} parent=0
    _
  %s24 = ssub.s32 1, %s22
  %s25 = scalar_select 0, %s24, %s22
  $region1: #{fwd.1} parent=0
    #allocation2 [shape = 'u8[16384]{0}', space=vmem, size = 0x4000, scoped, tag = 'input window, operand 1, single buffered']
    #allocation3 [shape = 's32[2]{0}', space=sflag, size = 0x8, scoped, tag = 'scoped memory for fwd.1']
    #allocation4 [shape = 's32[2]{0}', space=sflag, size = 0x8, scoped, tag = 'scoped memory for fwd.1']
    #allocation5 [shape = 's32[2]{0}', space=sflag, size = 0x8, scoped, tag = 'scoped memory for fwd.1']
    #allocation6 [shape = 'u8[16384]{0}', space=vmem, size = 0x4000, scoped, tag = 'input window, operand 2, single buffered']
    #allocation7 [shape = 's32[1]{0}', space=sflag, size = 0x4, scoped, tag = 'scoped memory for fwd.1']
    #allocation8 [shape = 'u8[196608]{0}', space=vmem, size = 0x30000, scoped, tag = 'input window, operand 4, single buffered']
    #allocation9 [shape = 'u8[131072]{0}', space=vmem, size = 0x20000, scoped, tag = 'input window, operand 5, single buffered']
    #allocation10 [shape = 's32[1]{0}', space=sflag, size = 0x4, scoped, tag = 'scoped memory for fwd.1']
    #allocation11 [shape = 'u8[8192]{0}', space=vmem, size = 0x2000, scoped, tag = 'input window, operand 6, single buffered']
    #allocation12 [shape = 'u8[16384]{0}', space=vmem, size = 0x4000, scoped, tag = 'input window, operand 7, single buffered']
    #allocation13 [shape = 's32[1]{0}', space=sflag, size = 0x4, scoped, tag = 'scoped memory for fwd.1']
    #allocation14 [shape = 'u8[16384]{0}', space=vmem, size = 0x4000, scoped, tag = 'input window, operand 8, single buffered']
    #allocation15 [shape = 'u8[131072]{0}', space=vmem, size = 0x20000, scoped, tag = 'input window, operand 11, single buffered']
    #allocation16 [shape = 's32[1]{0}', space=sflag, size = 0x4, scoped, tag = 'scoped memory for fwd.1']
    #allocation17 [shape = 'u8[8192]{0}', space=vmem, size = 0x2000, scoped, tag = 'input window, operand 12, single buffered']
    #allocation18 [shape = 'u8[4096]{0}', space=vmem, size = 0x1000, scoped, tag = 'input window, operand 15, single buffered']
    #allocation19 [shape = 's32[1]{0}', space=sflag, size = 0x4, scoped, tag = 'scoped memory for fwd.1']
    #allocation20 [shape = 'u8[2048]{0}', space=smem, size = 0x800, scoped, tag = 'input window, operand 17, single buffered']
    #allocation21 [shape = 'u8[512]{0}', space=smem, size = 0x200, scoped, tag = 'input window, operand 18, single buffered']
    #allocation22 [shape = 'u8[2048]{0}', space=smem, size = 0x800, scoped, tag = 'input window, operand 19, single buffered']
    #allocation23 [shape = 's32[1]{0}', space=sflag, size = 0x4, scoped, tag = 'scoped memory for fwd.1']
    #allocation24 [shape = 'u8[512]{0}', space=smem, size = 0x200, scoped, tag = 'input window, operand 20, single buffered']
    %26 = vsyncpa [#allocation3], 0
    %27 = vsyncpa [#allocation7], 0
    %28 = vsyncpa [#allocation10], 0
    %29 = vsyncpa [#allocation13], 0
    %30 = vsyncpa [#allocation16], 0
    %31 = vsyncpa [#allocation19], 0
    %32 = vsyncpa [#allocation4], 0
    %33 = vsyncpa [#allocation5], 0
    %34 = vsyncpa [#allocation23], 0
    loop: start=0, step=1, limit=4
    $region2: #{fwd.1} parent=1 // loop_pre_header
      _
    $region3: #{fwd.1} parent=1 // loop_header
      %s36 = sphi 0, %s40
      %p37 = scmp.ge.s32.totalorder %s36, 4
      %s46 = sphi 0, %s48
      %s49 = sphi 0, %s46
      %s50 = sphi 0, %s49
      %s66 = sphi 0, %s50
      %s70 = sphi 0, %s70
      %s72 = sphi 0, %s70
      %s73 = sphi 0, %s72
      %s87 = sphi 0, %s73
      %s91 = sphi 0, %s91
      %s93 = sphi 0, %s91
      %s94 = sphi 0, %s93
      %s108 = sphi 0, %s94
      %s112 = sphi 0, %s112
      %s114 = sphi 0, %s112
      %s115 = sphi 0, %s114
      %s129 = sphi 0, %s115
      %s133 = sphi 0, %s133
      %s135 = sphi 0, %s133
      %s136 = sphi 0, %s135
      %s150 = sphi 0, %s136
      %s154 = sphi 0, %s154
      %s156 = sphi 0, %s154
      %s157 = sphi 0, %s156
      %s171 = sphi 0, %s157
      %s175 = sphi 0, %s175
      %s177 = sphi 0, %s175
      %s178 = sphi 0, %s177
      %s192 = sphi 0, %s178
      %s196 = sphi 0, %s196
      %s198 = sphi 0, %s196
      %s199 = sphi 0, %s198
      %s213 = sphi 0, %s199
      %s217 = sphi 0, %s217
      %s219 = sphi 0, %s217
      %s220 = sphi 0, %s219
      %s234 = sphi 0, %s220
      %s238 = sphi 0, %s238
      %s240 = sphi 0, %s238
      %s241 = sphi 0, %s240
      %s255 = sphi 0, %s241
      %s259 = sphi 0, %s259
      %s261 = sphi 0, %s259
      %s262 = sphi 0, %s261
      %s276 = sphi 0, %s262
      %s280 = sphi 0, %s280
      %s282 = sphi 0, %s280
      %s283 = sphi 0, %s282
      %s297 = sphi 0, %s283
      %s301 = sphi 0, %s301
      %s303 = sphi 0, %s301
      %s304 = sphi 0, %s303
      %s318 = sphi 0, %s304
      %s322 = sphi 0, %s322
      %s324 = sphi 0, %s322
      %s325 = sphi 0, %s324
      %s339 = sphi 0, %s325
      %s343 = sphi 0, %s343
      %s345 = sphi 0, %s343
      %s346 = sphi 0, %s345
      %s360 = sphi 0, %s346
      %s364 = sphi 0, %s364
      %s366 = sphi 0, %s364
      %s367 = sphi 0, %s366
      %s381 = sphi 0, %s367
      %s385 = sphi 0, %s385
      %s387 = sphi 0, %s385
      %s388 = sphi 0, %s387
      %s402 = sphi 0, %s388
      %s406 = sphi 0, %s406
      %s408 = sphi 0, %s406
      %s409 = sphi 0, %s408
      %s423 = sphi 0, %s409
      %s427 = sphi 0, %s427
      %s429 = sphi 0, %s427
      %s430 = sphi 0, %s429
      %s444 = sphi 0, %s430
      %s448 = sphi 0, %s448
      %s450 = sphi 0, %s448
      %s451 = sphi 0, %s450
      %s465 = sphi 0, %s451
      %s469 = sphi 0, %s469
      %s471 = sphi 0, %s469
      %s472 = sphi 0, %s471
      %s486 = sphi 0, %s472
      %s492 = sphi 0, %s494
      %s495 = sphi 0, %s492
      %s496 = sphi 0, %s495
      %s512 = sphi 0, %s496
    $region4: #{fwd.1} parent=1 // loop_header_branch
      %39 = sbr.rel (%p37) target = $region8
    $region5: #{fwd.1} parent=1 // loop_body
      %s41 = ssub.s32 %s36, 1
      %s42 = ssub.s32 %s36, 2
      %s43 = sadd.s32 %s36, 1
      %s44 = ssub.s32 %s36, %s43
      %p45 = scmp.eq.s32.totalorder %s44, 0
      %s47 = sadd.s32 %s46, 1
      %s48 = scalar_select %p45, %s46, %s47
      %p51 = pneg %p45
      %p52 = scmp.eq.s32.totalorder %s36, 1
      %p53 = por %p51, %p52
      %p54 = scmp.ne.s32.totalorder %s46, %s49
      %p55 = scmp.eq.s32.totalorder %s36, 0
      %p56 = por %p54, %p55
      %p57 = scmp.ne.s32.totalorder %s46, %s49
      %p58 = scmp.eq.s32.totalorder %s41, 1
      %p59 = por %p57, %p58
      %p60 = scmp.ne.s32.totalorder %s49, %s50
      %p61 = scmp.eq.s32.totalorder %s41, 0
      %p62 = por %p60, %p61
      %p63 = scmp.ne.s32.totalorder %s49, %s50
      %p64 = scmp.eq.s32.totalorder %s42, 1
      %p65 = por %p63, %p64
      %p67 = scmp.ne.s32.totalorder %s50, %s66
      %p68 = scmp.eq.s32.totalorder %s42, 0
      %p69 = por %p67, %p68
      %s71 = sadd.s32 %s70, 1
      %p74 = scmp.eq.s32.totalorder %s36, 1
      %p75 = scmp.ne.s32.totalorder %s70, %s72
      %p76 = scmp.eq.s32.totalorder %s36, 0
      %p77 = por %p75, %p76
      %p78 = scmp.ne.s32.totalorder %s70, %s72
      %p79 = scmp.eq.s32.totalorder %s41, 1
      %p80 = por %p78, %p79
      %p81 = scmp.ne.s32.totalorder %s72, %s73
      %p82 = scmp.eq.s32.totalorder %s41, 0
      %p83 = por %p81, %p82
      %p84 = scmp.ne.s32.totalorder %s72, %s73
      %p85 = scmp.eq.s32.totalorder %s42, 1
      %p86 = por %p84, %p85
      %p88 = scmp.ne.s32.totalorder %s73, %s87
      %p89 = scmp.eq.s32.totalorder %s42, 0
      %p90 = por %p88, %p89
      %s92 = sadd.s32 %s91, 1
      %p95 = scmp.eq.s32.totalorder %s36, 1
      %p96 = scmp.ne.s32.totalorder %s91, %s93
      %p97 = scmp.eq.s32.totalorder %s36, 0
      %p98 = por %p96, %p97
      %p99 = scmp.ne.s32.totalorder %s91, %s93
      %p100 = scmp.eq.s32.totalorder %s41, 1
      %p101 = por %p99, %p100
      %p102 = scmp.ne.s32.totalorder %s93, %s94
      %p103 = scmp.eq.s32.totalorder %s41, 0
      %p104 = por %p102, %p103
      %p105 = scmp.ne.s32.totalorder %s93, %s94
      %p106 = scmp.eq.s32.totalorder %s42, 1
      %p107 = por %p105, %p106
      %p109 = scmp.ne.s32.totalorder %s94, %s108
      %p110 = scmp.eq.s32.totalorder %s42, 0
      %p111 = por %p109, %p110
      %s113 = sadd.s32 %s112, 1
      %p116 = scmp.eq.s32.totalorder %s36, 1
      %p117 = scmp.ne.s32.totalorder %s112, %s114
      %p118 = scmp.eq.s32.totalorder %s36, 0
      %p119 = por %p117, %p118
      %p120 = scmp.ne.s32.totalorder %s112, %s114
      %p121 = scmp.eq.s32.totalorder %s41, 1
      %p122 = por %p120, %p121
      %p123 = scmp.ne.s32.totalorder %s114, %s115
      %p124 = scmp.eq.s32.totalorder %s41, 0
      %p125 = por %p123, %p124
      %p126 = scmp.ne.s32.totalorder %s114, %s115
      %p127 = scmp.eq.s32.totalorder %s42, 1
      %p128 = por %p126, %p127
      %p130 = scmp.ne.s32.totalorder %s115, %s129
      %p131 = scmp.eq.s32.totalorder %s42, 0
      %p132 = por %p130, %p131
      %s134 = sadd.s32 %s133, 1
      %p137 = scmp.eq.s32.totalorder %s36, 1
      %p138 = scmp.ne.s32.totalorder %s133, %s135
      %p139 = scmp.eq.s32.totalorder %s36, 0
      %p140 = por %p138, %p139
      %p141 = scmp.ne.s32.totalorder %s133, %s135
      %p142 = scmp.eq.s32.totalorder %s41, 1
      %p143 = por %p141, %p142
      %p144 = scmp.ne.s32.totalorder %s135, %s136
      %p145 = scmp.eq.s32.totalorder %s41, 0
      %p146 = por %p144, %p145
      %p147 = scmp.ne.s32.totalorder %s135, %s136
      %p148 = scmp.eq.s32.totalorder %s42, 1
      %p149 = por %p147, %p148
      %p151 = scmp.ne.s32.totalorder %s136, %s150
      %p152 = scmp.eq.s32.totalorder %s42, 0
      %p153 = por %p151, %p152
      %s155 = sadd.s32 %s154, 1
      %p158 = scmp.eq.s32.totalorder %s36, 1
      %p159 = scmp.ne.s32.totalorder %s154, %s156
      %p160 = scmp.eq.s32.totalorder %s36, 0
      %p161 = por %p159, %p160
      %p162 = scmp.ne.s32.totalorder %s154, %s156
      %p163 = scmp.eq.s32.totalorder %s41, 1
      %p164 = por %p162, %p163
      %p165 = scmp.ne.s32.totalorder %s156, %s157
      %p166 = scmp.eq.s32.totalorder %s41, 0
      %p167 = por %p165, %p166
      %p168 = scmp.ne.s32.totalorder %s156, %s157
      %p169 = scmp.eq.s32.totalorder %s42, 1
      %p170 = por %p168, %p169
      %p172 = scmp.ne.s32.totalorder %s157, %s171
      %p173 = scmp.eq.s32.totalorder %s42, 0
      %p174 = por %p172, %p173
      %s176 = sadd.s32 %s175, 1
      %p179 = scmp.eq.s32.totalorder %s36, 1
      %p180 = scmp.ne.s32.totalorder %s175, %s177
      %p181 = scmp.eq.s32.totalorder %s36, 0
      %p182 = por %p180, %p181
      %p183 = scmp.ne.s32.totalorder %s175, %s177
      %p184 = scmp.eq.s32.totalorder %s41, 1
      %p185 = por %p183, %p184
      %p186 = scmp.ne.s32.totalorder %s177, %s178
      %p187 = scmp.eq.s32.totalorder %s41, 0
      %p188 = por %p186, %p187
      %p189 = scmp.ne.s32.totalorder %s177, %s178
      %p190 = scmp.eq.s32.totalorder %s42, 1
      %p191 = por %p189, %p190
      %p193 = scmp.ne.s32.totalorder %s178, %s192
      %p194 = scmp.eq.s32.totalorder %s42, 0
      %p195 = por %p193, %p194
      %s197 = sadd.s32 %s196, 1
      %p200 = scmp.eq.s32.totalorder %s36, 1
      %p201 = scmp.ne.s32.totalorder %s196, %s198
      %p202 = scmp.eq.s32.totalorder %s36, 0
      %p203 = por %p201, %p202
      %p204 = scmp.ne.s32.totalorder %s196, %s198
      %p205 = scmp.eq.s32.totalorder %s41, 1
      %p206 = por %p204, %p205
      %p207 = scmp.ne.s32.totalorder %s198, %s199
      %p208 = scmp.eq.s32.totalorder %s41, 0
      %p209 = por %p207, %p208
      %p210 = scmp.ne.s32.totalorder %s198, %s199
      %p211 = scmp.eq.s32.totalorder %s42, 1
      %p212 = por %p210, %p211
      %p214 = scmp.ne.s32.totalorder %s199, %s213
      %p215 = scmp.eq.s32.totalorder %s42, 0
      %p216 = por %p214, %p215
      %s218 = sadd.s32 %s217, 1
      %p221 = scmp.eq.s32.totalorder %s36, 1
      %p222 = scmp.ne.s32.totalorder %s217, %s219
      %p223 = scmp.eq.s32.totalorder %s36, 0
      %p224 = por %p222, %p223
      %p225 = scmp.ne.s32.totalorder %s217, %s219
      %p226 = scmp.eq.s32.totalorder %s41, 1
      %p227 = por %p225, %p226
      %p228 = scmp.ne.s32.totalorder %s219, %s220
      %p229 = scmp.eq.s32.totalorder %s41, 0
      %p230 = por %p228, %p229
      %p231 = scmp.ne.s32.totalorder %s219, %s220
      %p232 = scmp.eq.s32.totalorder %s42, 1
      %p233 = por %p231, %p232
      %p235 = scmp.ne.s32.totalorder %s220, %s234
      %p236 = scmp.eq.s32.totalorder %s42, 0
      %p237 = por %p235, %p236
      %s239 = sadd.s32 %s238, 1
      %p242 = scmp.eq.s32.totalorder %s36, 1
      %p243 = scmp.ne.s32.totalorder %s238, %s240
      %p244 = scmp.eq.s32.totalorder %s36, 0
      %p245 = por %p243, %p244
      %p246 = scmp.ne.s32.totalorder %s238, %s240
      %p247 = scmp.eq.s32.totalorder %s41, 1
      %p248 = por %p246, %p247
      %p249 = scmp.ne.s32.totalorder %s240, %s241
      %p250 = scmp.eq.s32.totalorder %s41, 0
      %p251 = por %p249, %p250
      %p252 = scmp.ne.s32.totalorder %s240, %s241
      %p253 = scmp.eq.s32.totalorder %s42, 1
      %p254 = por %p252, %p253
      %p256 = scmp.ne.s32.totalorder %s241, %s255
      %p257 = scmp.eq.s32.totalorder %s42, 0
      %p258 = por %p256, %p257
      %s260 = sadd.s32 %s259, 1
      %p263 = scmp.eq.s32.totalorder %s36, 1
      %p264 = scmp.ne.s32.totalorder %s259, %s261
      %p265 = scmp.eq.s32.totalorder %s36, 0
      %p266 = por %p264, %p265
      %p267 = scmp.ne.s32.totalorder %s259, %s261
      %p268 = scmp.eq.s32.totalorder %s41, 1
      %p269 = por %p267, %p268
      %p270 = scmp.ne.s32.totalorder %s261, %s262
      %p271 = scmp.eq.s32.totalorder %s41, 0
      %p272 = por %p270, %p271
      %p273 = scmp.ne.s32.totalorder %s261, %s262
      %p274 = scmp.eq.s32.totalorder %s42, 1
      %p275 = por %p273, %p274
      %p277 = scmp.ne.s32.totalorder %s262, %s276
      %p278 = scmp.eq.s32.totalorder %s42, 0
      %p279 = por %p277, %p278
      %s281 = sadd.s32 %s280, 1
      %p284 = scmp.eq.s32.totalorder %s36, 1
      %p285 = scmp.ne.s32.totalorder %s280, %s282
      %p286 = scmp.eq.s32.totalorder %s36, 0
      %p287 = por %p285, %p286
      %p288 = scmp.ne.s32.totalorder %s280, %s282
      %p289 = scmp.eq.s32.totalorder %s41, 1
      %p290 = por %p288, %p289
      %p291 = scmp.ne.s32.totalorder %s282, %s283
      %p292 = scmp.eq.s32.totalorder %s41, 0
      %p293 = por %p291, %p292
      %p294 = scmp.ne.s32.totalorder %s282, %s283
      %p295 = scmp.eq.s32.totalorder %s42, 1
      %p296 = por %p294, %p295
      %p298 = scmp.ne.s32.totalorder %s283, %s297
      %p299 = scmp.eq.s32.totalorder %s42, 0
      %p300 = por %p298, %p299
      %s302 = sadd.s32 %s301, 1
      %p305 = scmp.eq.s32.totalorder %s36, 1
      %p306 = scmp.ne.s32.totalorder %s301, %s303
      %p307 = scmp.eq.s32.totalorder %s36, 0
      %p308 = por %p306, %p307
      %p309 = scmp.ne.s32.totalorder %s301, %s303
      %p310 = scmp.eq.s32.totalorder %s41, 1
      %p311 = por %p309, %p310
      %p312 = scmp.ne.s32.totalorder %s303, %s304
      %p313 = scmp.eq.s32.totalorder %s41, 0
      %p314 = por %p312, %p313
      %p315 = scmp.ne.s32.totalorder %s303, %s304
      %p316 = scmp.eq.s32.totalorder %s42, 1
      %p317 = por %p315, %p316
      %p319 = scmp.ne.s32.totalorder %s304, %s318
      %p320 = scmp.eq.s32.totalorder %s42, 0
      %p321 = por %p319, %p320
      %s323 = sadd.s32 %s322, 1
      %p326 = scmp.eq.s32.totalorder %s36, 1
      %p327 = scmp.ne.s32.totalorder %s322, %s324
      %p328 = scmp.eq.s32.totalorder %s36, 0
      %p329 = por %p327, %p328
      %p330 = scmp.ne.s32.totalorder %s322, %s324
      %p331 = scmp.eq.s32.totalorder %s41, 1
      %p332 = por %p330, %p331
      %p333 = scmp.ne.s32.totalorder %s324, %s325
      %p334 = scmp.eq.s32.totalorder %s41, 0
      %p335 = por %p333, %p334
      %p336 = scmp.ne.s32.totalorder %s324, %s325
      %p337 = scmp.eq.s32.totalorder %s42, 1
      %p338 = por %p336, %p337
      %p340 = scmp.ne.s32.totalorder %s325, %s339
      %p341 = scmp.eq.s32.totalorder %s42, 0
      %p342 = por %p340, %p341
      %s344 = sadd.s32 %s343, 1
      %p347 = scmp.eq.s32.totalorder %s36, 1
      %p348 = scmp.ne.s32.totalorder %s343, %s345
      %p349 = scmp.eq.s32.totalorder %s36, 0
      %p350 = por %p348, %p349
      %p351 = scmp.ne.s32.totalorder %s343, %s345
      %p352 = scmp.eq.s32.totalorder %s41, 1
      %p353 = por %p351, %p352
      %p354 = scmp.ne.s32.totalorder %s345, %s346
      %p355 = scmp.eq.s32.totalorder %s41, 0
      %p356 = por %p354, %p355
      %p357 = scmp.ne.s32.totalorder %s345, %s346
      %p358 = scmp.eq.s32.totalorder %s42, 1
      %p359 = por %p357, %p358
      %p361 = scmp.ne.s32.totalorder %s346, %s360
      %p362 = scmp.eq.s32.totalorder %s42, 0
      %p363 = por %p361, %p362
      %s365 = sadd.s32 %s364, 1
      %p368 = scmp.eq.s32.totalorder %s36, 1
      %p369 = scmp.ne.s32.totalorder %s364, %s366
      %p370 = scmp.eq.s32.totalorder %s36, 0
      %p371 = por %p369, %p370
      %p372 = scmp.ne.s32.totalorder %s364, %s366
      %p373 = scmp.eq.s32.totalorder %s41, 1
      %p374 = por %p372, %p373
      %p375 = scmp.ne.s32.totalorder %s366, %s367
      %p376 = scmp.eq.s32.totalorder %s41, 0
      %p377 = por %p375, %p376
      %p378 = scmp.ne.s32.totalorder %s366, %s367
      %p379 = scmp.eq.s32.totalorder %s42, 1
      %p380 = por %p378, %p379
      %p382 = scmp.ne.s32.totalorder %s367, %s381
      %p383 = scmp.eq.s32.totalorder %s42, 0
      %p384 = por %p382, %p383
      %s386 = sadd.s32 %s385, 1
      %p389 = scmp.eq.s32.totalorder %s36, 1
      %p390 = scmp.ne.s32.totalorder %s385, %s387
      %p391 = scmp.eq.s32.totalorder %s36, 0
      %p392 = por %p390, %p391
      %p393 = scmp.ne.s32.totalorder %s385, %s387
      %p394 = scmp.eq.s32.totalorder %s41, 1
      %p395 = por %p393, %p394
      %p396 = scmp.ne.s32.totalorder %s387, %s388
      %p397 = scmp.eq.s32.totalorder %s41, 0
      %p398 = por %p396, %p397
      %p399 = scmp.ne.s32.totalorder %s387, %s388
      %p400 = scmp.eq.s32.totalorder %s42, 1
      %p401 = por %p399, %p400
      %p403 = scmp.ne.s32.totalorder %s388, %s402
      %p404 = scmp.eq.s32.totalorder %s42, 0
      %p405 = por %p403, %p404
      %s407 = sadd.s32 %s406, 1
      %p410 = scmp.eq.s32.totalorder %s36, 1
      %p411 = scmp.ne.s32.totalorder %s406, %s408
      %p412 = scmp.eq.s32.totalorder %s36, 0
      %p413 = por %p411, %p412
      %p414 = scmp.ne.s32.totalorder %s406, %s408
      %p415 = scmp.eq.s32.totalorder %s41, 1
      %p416 = por %p414, %p415
      %p417 = scmp.ne.s32.totalorder %s408, %s409
      %p418 = scmp.eq.s32.totalorder %s41, 0
      %p419 = por %p417, %p418
      %p420 = scmp.ne.s32.totalorder %s408, %s409
      %p421 = scmp.eq.s32.totalorder %s42, 1
      %p422 = por %p420, %p421
      %p424 = scmp.ne.s32.totalorder %s409, %s423
      %p425 = scmp.eq.s32.totalorder %s42, 0
      %p426 = por %p424, %p425
      %s428 = sadd.s32 %s427, 1
      %p431 = scmp.eq.s32.totalorder %s36, 1
      %p432 = scmp.ne.s32.totalorder %s427, %s429
      %p433 = scmp.eq.s32.totalorder %s36, 0
      %p434 = por %p432, %p433
      %p435 = scmp.ne.s32.totalorder %s427, %s429
      %p436 = scmp.eq.s32.totalorder %s41, 1
      %p437 = por %p435, %p436
      %p438 = scmp.ne.s32.totalorder %s429, %s430
      %p439 = scmp.eq.s32.totalorder %s41, 0
      %p440 = por %p438, %p439
      %p441 = scmp.ne.s32.totalorder %s429, %s430
      %p442 = scmp.eq.s32.totalorder %s42, 1
      %p443 = por %p441, %p442
      %p445 = scmp.ne.s32.totalorder %s430, %s444
      %p446 = scmp.eq.s32.totalorder %s42, 0
      %p447 = por %p445, %p446
      %s449 = sadd.s32 %s448, 1
      %p452 = scmp.eq.s32.totalorder %s36, 1
      %p453 = scmp.ne.s32.totalorder %s448, %s450
      %p454 = scmp.eq.s32.totalorder %s36, 0
      %p455 = por %p453, %p454
      %p456 = scmp.ne.s32.totalorder %s448, %s450
      %p457 = scmp.eq.s32.totalorder %s41, 1
      %p458 = por %p456, %p457
      %p459 = scmp.ne.s32.totalorder %s450, %s451
      %p460 = scmp.eq.s32.totalorder %s41, 0
      %p461 = por %p459, %p460
      %p462 = scmp.ne.s32.totalorder %s450, %s451
      %p463 = scmp.eq.s32.totalorder %s42, 1
      %p464 = por %p462, %p463
      %p466 = scmp.ne.s32.totalorder %s451, %s465
      %p467 = scmp.eq.s32.totalorder %s42, 0
      %p468 = por %p466, %p467
      %s470 = sadd.s32 %s469, 1
      %p473 = scmp.eq.s32.totalorder %s36, 1
      %p474 = scmp.ne.s32.totalorder %s469, %s471
      %p475 = scmp.eq.s32.totalorder %s36, 0
      %p476 = por %p474, %p475
      %p477 = scmp.ne.s32.totalorder %s469, %s471
      %p478 = scmp.eq.s32.totalorder %s41, 1
      %p479 = por %p477, %p478
      %p480 = scmp.ne.s32.totalorder %s471, %s472
      %p481 = scmp.eq.s32.totalorder %s41, 0
      %p482 = por %p480, %p481
      %p483 = scmp.ne.s32.totalorder %s471, %s472
      %p484 = scmp.eq.s32.totalorder %s42, 1
      %p485 = por %p483, %p484
      %p487 = scmp.ne.s32.totalorder %s472, %s486
      %p488 = scmp.eq.s32.totalorder %s42, 0
      %p489 = por %p487, %p488
      %s490 = ssub.s32 %s36, %s43
      %p491 = scmp.eq.s32.totalorder %s490, 0
      %s493 = sadd.s32 %s492, 1
      %s494 = scalar_select %p491, %s492, %s493
      %p497 = pneg %p491
      %p498 = scmp.eq.s32.totalorder %s36, 1
      %p499 = por %p497, %p498
      %p500 = scmp.ne.s32.totalorder %s492, %s495
      %p501 = scmp.eq.s32.totalorder %s36, 0
      %p502 = por %p500, %p501
      %p503 = scmp.ne.s32.totalorder %s492, %s495
      %p504 = scmp.eq.s32.totalorder %s41, 1
      %p505 = por %p503, %p504
      %p506 = scmp.ne.s32.totalorder %s495, %s496
      %p507 = scmp.eq.s32.totalorder %s41, 0
      %p508 = por %p506, %p507
      %p509 = scmp.ne.s32.totalorder %s495, %s496
      %p510 = scmp.eq.s32.totalorder %s42, 1
      %p511 = por %p509, %p510
      %p513 = scmp.ne.s32.totalorder %s496, %s512
      %p514 = scmp.eq.s32.totalorder %s42, 0
      %p515 = por %p513, %p514
      %p516 = scmp.le.s32.totalorder 1, %s36
      %p517 = scmp.lt.s32.totalorder %s36, 3
      %p518 = pnand %p516, %p517
      %p519 = pneg %p518
      // Predicated region
      $region9: #{fwd.1} parent=5 // pred_check
        _
      $region10: #{fwd.1} parent=5 // pred_check_branch
        %521 = sbr.rel (%p518) target = $region12
      $region11: #{fwd.1} parent=5 // pred_region
        %s522 = ssub.s32 %s36, 1
        // Predicated region
        $region13: #{fwd.1} parent=11 // pred_check
          %p523 = pneg %p83
        $region14: #{fwd.1} parent=11 // pred_check_branch
          %525 = sbr.rel (%p523) target = $region16
        $region15: #{fwd.1} parent=11 // pred_region
          %527 = vsyncadd [#allocation3], 0
          %s528 = sshll.u32 %s1, 4
          %s529 = int_to_ptr.hbm [resolvable:$true] %s528
          %s530 = sshll.u32 [#allocation2], 4
          %s531 = int_to_ptr.vmem [resolvable:$true] %s530
          %536 = dma.hbm_to_vmem [thread:$0]  %s529, 512, %s531, [#allocation3], 128, 128, 8
        $region16: #{fwd.1} parent=11 // pred_fallthru
          _
        // Predicated region
        $region17: #{fwd.1} parent=11 // pred_check
          %p537 = pneg %p104
        $region18: #{fwd.1} parent=11 // pred_check_branch
          %539 = sbr.rel (%p537) target = $region20
        $region19: #{fwd.1} parent=11 // pred_region
          %541 = vsyncadd [#allocation7], 0
          %s542 = sshll.u32 %s2, 4
          %s543 = int_to_ptr.hbm [resolvable:$true] %s542
          %s544 = sshll.u32 [#allocation6], 4
          %s545 = int_to_ptr.vmem [resolvable:$true] %s544
          %550 = dma.hbm_to_vmem [thread:$0]  %s543, 512, %s545, [#allocation7], 128, 128, 8
        $region20: #{fwd.1} parent=11 // pred_fallthru
          _
        // Predicated region
        $region21: #{fwd.1} parent=11 // pred_check
          %p551 = pneg %p125
        $region22: #{fwd.1} parent=11 // pred_check_branch
          %553 = sbr.rel (%p551) target = $region24
        $region23: #{fwd.1} parent=11 // pred_region
          _
        $region24: #{fwd.1} parent=11 // pred_fallthru
          _
        // Predicated region
        $region25: #{fwd.1} parent=11 // pred_check
          %p554 = pneg %p146
        $region26: #{fwd.1} parent=11 // pred_check_branch
          %556 = sbr.rel (%p554) target = $region28
        $region27: #{fwd.1} parent=11 // pred_region
          %558 = vsyncadd [#allocation7], 0
          %s559 = sshll.u32 %s4, 4
          %s560 = int_to_ptr.hbm [resolvable:$true] %s559
          %s561 = sshll.u32 [#allocation8], 4
          %s562 = int_to_ptr.vmem [resolvable:$true] %s561
          %567 = dma.hbm_to_vmem [thread:$0]  %s560, 6144, %s562, [#allocation7], 256, 256, 16
        $region28: #{fwd.1} parent=11 // pred_fallthru
          _
        // Predicated region
        $region29: #{fwd.1} parent=11 // pred_check
          %p568 = pneg %p167
        $region30: #{fwd.1} parent=11 // pred_check_branch
          %570 = sbr.rel (%p568) target = $region32
        $region31: #{fwd.1} parent=11 // pred_region
          %572 = vsyncadd [#allocation10], 0
          %s573 = sshll.u32 %s5, 4
          %s574 = int_to_ptr.hbm [resolvable:$true] %s573
          %s575 = sshll.u32 [#allocation9], 4
          %s576 = int_to_ptr.vmem [resolvable:$true] %s575
          %581 = dma.hbm_to_vmem [thread:$0]  %s574, 4096, %s576, [#allocation10], 128, 128, 8
        $region32: #{fwd.1} parent=11 // pred_fallthru
          _
        // Predicated region
        $region33: #{fwd.1} parent=11 // pred_check
          %p582 = pneg %p188
        $region34: #{fwd.1} parent=11 // pred_check_branch
          %584 = sbr.rel (%p582) target = $region36
        $region35: #{fwd.1} parent=11 // pred_region
          %586 = vsyncadd [#allocation10], 0
          %s587 = sshll.u32 %s6, 4
          %s588 = int_to_ptr.hbm [resolvable:$true] %s587
          %s589 = sshll.u32 [#allocation11], 4
          %s590 = int_to_ptr.vmem [resolvable:$true] %s589
          %595 = dma.hbm_to_vmem [thread:$0]  %s588, 256, %s590, [#allocation10], 128, 128, 8
        $region36: #{fwd.1} parent=11 // pred_fallthru
          _
        // Predicated region
        $region37: #{fwd.1} parent=11 // pred_check
          %p596 = pneg %p209
        $region38: #{fwd.1} parent=11 // pred_check_branch
          %598 = sbr.rel (%p596) target = $region40
        $region39: #{fwd.1} parent=11 // pred_region
          %600 = vsyncadd [#allocation13], 0
          %s601 = sshll.u32 %s7, 4
          %s602 = int_to_ptr.hbm [resolvable:$true] %s601
          %s603 = sshll.u32 [#allocation12], 4
          %s604 = int_to_ptr.vmem [resolvable:$true] %s603
          %609 = dma.hbm_to_vmem [thread:$0]  %s602, 512, %s604, [#allocation13], 128, 128, 8
        $region40: #{fwd.1} parent=11 // pred_fallthru
          _
        // Predicated region
        $region41: #{fwd.1} parent=11 // pred_check
          %p610 = pneg %p230
        $region42: #{fwd.1} parent=11 // pred_check_branch
          %612 = sbr.rel (%p610) target = $region44
        $region43: #{fwd.1} parent=11 // pred_region
          %614 = vsyncadd [#allocation13], 0
          %s615 = sshll.u32 %s8, 4
          %s616 = int_to_ptr.hbm [resolvable:$true] %s615
          %s617 = sshll.u32 [#allocation14], 4
          %s618 = int_to_ptr.vmem [resolvable:$true] %s617
          %623 = dma.hbm_to_vmem [thread:$0]  %s616, 512, %s618, [#allocation13], 128, 128, 8
        $region44: #{fwd.1} parent=11 // pred_fallthru
          _
        // Predicated region
        $region45: #{fwd.1} parent=11 // pred_check
          %p624 = pneg %p251
        $region46: #{fwd.1} parent=11 // pred_check_branch
          %626 = sbr.rel (%p624) target = $region48
        $region47: #{fwd.1} parent=11 // pred_region
          _
        $region48: #{fwd.1} parent=11 // pred_fallthru
          _
        // Predicated region
        $region49: #{fwd.1} parent=11 // pred_check
          %p627 = pneg %p272
        $region50: #{fwd.1} parent=11 // pred_check_branch
          %629 = sbr.rel (%p627) target = $region52
        $region51: #{fwd.1} parent=11 // pred_region
          _
        $region52: #{fwd.1} parent=11 // pred_fallthru
          _
        // Predicated region
        $region53: #{fwd.1} parent=11 // pred_check
          %p630 = pneg %p293
        $region54: #{fwd.1} parent=11 // pred_check_branch
          %632 = sbr.rel (%p630) target = $region56
        $region55: #{fwd.1} parent=11 // pred_region
          %634 = vsyncadd [#allocation16], 0
          %s635 = sshll.u32 %s11, 4
          %s636 = int_to_ptr.hbm [resolvable:$true] %s635
          %s637 = sshll.u32 [#allocation15], 4
          %s638 = int_to_ptr.vmem [resolvable:$true] %s637
          %643 = dma.hbm_to_vmem [thread:$0]  %s636, 4096, %s638, [#allocation16], 128, 128, 8
        $region56: #{fwd.1} parent=11 // pred_fallthru
          _
        // Predicated region
        $region57: #{fwd.1} parent=11 // pred_check
          %p644 = pneg %p314
        $region58: #{fwd.1} parent=11 // pred_check_branch
          %646 = sbr.rel (%p644) target = $region60
        $region59: #{fwd.1} parent=11 // pred_region
          %648 = vsyncadd [#allocation16], 0
          %s649 = sshll.u32 %s12, 4
          %s650 = int_to_ptr.hbm [resolvable:$true] %s649
          %s651 = sshll.u32 [#allocation17], 4
          %s652 = int_to_ptr.vmem [resolvable:$true] %s651
          %657 = dma.hbm_to_vmem [thread:$0]  %s650, 256, %s652, [#allocation16], 128, 128, 8
        $region60: #{fwd.1} parent=11 // pred_fallthru
          _
        // Predicated region
        $region61: #{fwd.1} parent=11 // pred_check
          %p658 = pneg %p335
        $region62: #{fwd.1} parent=11 // pred_check_branch
          %660 = sbr.rel (%p658) target = $region64
        $region63: #{fwd.1} parent=11 // pred_region
          _
        $region64: #{fwd.1} parent=11 // pred_fallthru
          _
        // Predicated region
        $region65: #{fwd.1} parent=11 // pred_check
          %p661 = pneg %p356
        $region66: #{fwd.1} parent=11 // pred_check_branch
          %663 = sbr.rel (%p661) target = $region68
        $region67: #{fwd.1} parent=11 // pred_region
          _
        $region68: #{fwd.1} parent=11 // pred_fallthru
          _
        // Predicated region
        $region69: #{fwd.1} parent=11 // pred_check
          %p664 = pneg %p377
        $region70: #{fwd.1} parent=11 // pred_check_branch
          %666 = sbr.rel (%p664) target = $region72
        $region71: #{fwd.1} parent=11 // pred_region
          %668 = vsyncadd [#allocation19], 0
          %s670 = sshll.u32 %s15, 4
          %s671 = int_to_ptr.hbm [resolvable:$true] %s670
          %s672 = sshll.u32 [#allocation18], 4
          %s673 = int_to_ptr.vmem [resolvable:$true] %s672
          %675 = dma.hbm_to_vmem [thread:$0]  %s671, 128, %s673, [#allocation19]
        $region72: #{fwd.1} parent=11 // pred_fallthru
          _
        // Predicated region
        $region73: #{fwd.1} parent=11 // pred_check
          %p676 = pneg %p398
        $region74: #{fwd.1} parent=11 // pred_check_branch
          %678 = sbr.rel (%p676) target = $region76
        $region75: #{fwd.1} parent=11 // pred_region
          _
        $region76: #{fwd.1} parent=11 // pred_fallthru
          _
        // Predicated region
        $region77: #{fwd.1} parent=11 // pred_check
          %p679 = pneg %p419
        $region78: #{fwd.1} parent=11 // pred_check_branch
          %681 = sbr.rel (%p679) target = $region80
        $region79: #{fwd.1} parent=11 // pred_region
          %683 = vsyncadd [#allocation4], 0
          %s685 = sshll.u32 %s17, 4
          %s686 = int_to_ptr.hbm [resolvable:$true] %s685
          %688 = dma.hbm_to_smem %s686, 64, [#allocation20], [#allocation4]
        $region80: #{fwd.1} parent=11 // pred_fallthru
          _
        // Predicated region
        $region81: #{fwd.1} parent=11 // pred_check
          %p689 = pneg %p440
        $region82: #{fwd.1} parent=11 // pred_check_branch
          %691 = sbr.rel (%p689) target = $region84
        $region83: #{fwd.1} parent=11 // pred_region
          %693 = vsyncadd [#allocation5], 0
          %s695 = sshll.u32 %s18, 4
          %s696 = int_to_ptr.vmem [resolvable:$true] %s695
          %698 = dma.vmem_to_smem %s696, 16, [#allocation21], [#allocation5]
        $region84: #{fwd.1} parent=11 // pred_fallthru
          _
        // Predicated region
        $region85: #{fwd.1} parent=11 // pred_check
          %p699 = pneg %p461
        $region86: #{fwd.1} parent=11 // pred_check_branch
          %701 = sbr.rel (%p699) target = $region88
        $region87: #{fwd.1} parent=11 // pred_region
          %703 = vsyncadd [#allocation23], 0
          %s705 = sshll.u32 %s19, 4
          %s706 = int_to_ptr.vmem [resolvable:$true] %s705
          %708 = dma.vmem_to_smem %s706, 64, [#allocation22], [#allocation23]
        $region88: #{fwd.1} parent=11 // pred_fallthru
          _
        // Predicated region
        $region89: #{fwd.1} parent=11 // pred_check
          %p709 = pneg %p482
        $region90: #{fwd.1} parent=11 // pred_check_branch
          %711 = sbr.rel (%p709) target = $region92
        $region91: #{fwd.1} parent=11 // pred_region
          %713 = vsyncadd [#allocation23], 0
          %s715 = sshll.u32 %s20, 4
          %s716 = int_to_ptr.vmem [resolvable:$true] %s715
          %718 = dma.vmem_to_smem %s716, 16, [#allocation24], [#allocation23]
        $region92: #{fwd.1} parent=11 // pred_fallthru
          _
      $region12: #{fwd.1} parent=5 // pred_fallthru
        _
      %p719 = scmp.lt.s32.totalorder %s36, 2
      // Predicated region
      $region93: #{fwd.1} parent=5 // pred_check
        %p720 = pneg %p719
      $region94: #{fwd.1} parent=5 // pred_check_branch
        %722 = sbr.rel (%p720) target = $region96
      $region95: #{fwd.1} parent=5 // pred_region
        // Predicated region
        $region97: #{fwd.1} parent=95 // pred_check
          %p723 = pneg %p56
        $region98: #{fwd.1} parent=95 // pred_check_branch
          %725 = sbr.rel (%p723) target = $region100
        $region99: #{fwd.1} parent=95 // pred_region
          %s726 = smul.u32 2, %s36
          %p727 = scmp.lt.s32.totalorder %s726, 3
          %s728 = scalar_select %p727, %s726, 3
          %s729 = smul.addr %s728, 2
          %s730 = smul.addr %s729, 8
          %s731 = scalar_lea.vmem %s0, %s730
          %s732 = smul.u32 2, %s36
        $region100: #{fwd.1} parent=95 // pred_fallthru
          _
      $region96: #{fwd.1} parent=5 // pred_fallthru
        _
      %p733 = scmp.le.s32.totalorder 1, %s36
      %p734 = scmp.lt.s32.totalorder %s36, 3
      %p735 = pnand %p733, %p734
      %p736 = pneg %p735
      // Predicated region
      $region101: #{fwd.1} parent=5 // pred_check
        _
      $region102: #{fwd.1} parent=5 // pred_check_branch
        %738 = sbr.rel (%p735) target = $region104
      $region103: #{fwd.1} parent=5 // pred_region
        %s739 = ssub.s32 %s36, 1
        // Predicated region
        $region105: #{fwd.1} parent=103 // pred_check
          %p740 = pneg %p83
        $region106: #{fwd.1} parent=103 // pred_check_branch
          %742 = sbr.rel (%p740) target = $region108
        $region107: #{fwd.1} parent=103 // pred_region
          %744 = dma.done [#allocation3], 512
        $region108: #{fwd.1} parent=103 // pred_fallthru
          _
        // Predicated region
        $region109: #{fwd.1} parent=103 // pred_check
          %p745 = pneg %p104
        $region110: #{fwd.1} parent=103 // pred_check_branch
          %747 = sbr.rel (%p745) target = $region112
        $region111: #{fwd.1} parent=103 // pred_region
          %749 = dma.done [#allocation7], 512
        $region112: #{fwd.1} parent=103 // pred_fallthru
          _
        // Predicated region
        $region113: #{fwd.1} parent=103 // pred_check
          %p750 = pneg %p146
        $region114: #{fwd.1} parent=103 // pred_check_branch
          %752 = sbr.rel (%p750) target = $region116
        $region115: #{fwd.1} parent=103 // pred_region
          %754 = dma.done [#allocation7], 6144
        $region116: #{fwd.1} parent=103 // pred_fallthru
          _
        // Predicated region
        $region117: #{fwd.1} parent=103 // pred_check
          %p755 = pneg %p167
        $region118: #{fwd.1} parent=103 // pred_check_branch
          %757 = sbr.rel (%p755) target = $region120
        $region119: #{fwd.1} parent=103 // pred_region
          %759 = dma.done [#allocation10], 4096
        $region120: #{fwd.1} parent=103 // pred_fallthru
          _
        // Predicated region
        $region121: #{fwd.1} parent=103 // pred_check
          %p760 = pneg %p188
        $region122: #{fwd.1} parent=103 // pred_check_branch
          %762 = sbr.rel (%p760) target = $region124
        $region123: #{fwd.1} parent=103 // pred_region
          %764 = dma.done [#allocation10], 256
        $region124: #{fwd.1} parent=103 // pred_fallthru
          _
        // Predicated region
        $region125: #{fwd.1} parent=103 // pred_check
          %p765 = pneg %p209
        $region126: #{fwd.1} parent=103 // pred_check_branch
          %767 = sbr.rel (%p765) target = $region128
        $region127: #{fwd.1} parent=103 // pred_region
          %769 = dma.done [#allocation13], 512
        $region128: #{fwd.1} parent=103 // pred_fallthru
          _
        // Predicated region
        $region129: #{fwd.1} parent=103 // pred_check
          %p770 = pneg %p230
        $region130: #{fwd.1} parent=103 // pred_check_branch
          %772 = sbr.rel (%p770) target = $region132
        $region131: #{fwd.1} parent=103 // pred_region
          %774 = dma.done [#allocation13], 512
        $region132: #{fwd.1} parent=103 // pred_fallthru
          _
        // Predicated region
        $region133: #{fwd.1} parent=103 // pred_check
          %p775 = pneg %p293
        $region134: #{fwd.1} parent=103 // pred_check_branch
          %777 = sbr.rel (%p775) target = $region136
        $region135: #{fwd.1} parent=103 // pred_region
          %779 = dma.done [#allocation16], 4096
        $region136: #{fwd.1} parent=103 // pred_fallthru
          _
        // Predicated region
        $region137: #{fwd.1} parent=103 // pred_check
          %p780 = pneg %p314
        $region138: #{fwd.1} parent=103 // pred_check_branch
          %782 = sbr.rel (%p780) target = $region140
        $region139: #{fwd.1} parent=103 // pred_region
          %784 = dma.done [#allocation16], 256
        $region140: #{fwd.1} parent=103 // pred_fallthru
          _
        // Predicated region
        $region141: #{fwd.1} parent=103 // pred_check
          %p785 = pneg %p377
        $region142: #{fwd.1} parent=103 // pred_check_branch
          %787 = sbr.rel (%p785) target = $region144
        $region143: #{fwd.1} parent=103 // pred_region
          %789 = dma.done [#allocation19], 128
        $region144: #{fwd.1} parent=103 // pred_fallthru
          _
        // Predicated region
        $region145: #{fwd.1} parent=103 // pred_check
          %p790 = pneg %p419
        $region146: #{fwd.1} parent=103 // pred_check_branch
          %792 = sbr.rel (%p790) target = $region148
        $region147: #{fwd.1} parent=103 // pred_region
          %794 = dma.done [#allocation4], 64
        $region148: #{fwd.1} parent=103 // pred_fallthru
          _
        // Predicated region
        $region149: #{fwd.1} parent=103 // pred_check
          %p795 = pneg %p440
        $region150: #{fwd.1} parent=103 // pred_check_branch
          %797 = sbr.rel (%p795) target = $region152
        $region151: #{fwd.1} parent=103 // pred_region
          %799 = dma.done [#allocation5], 16
        $region152: #{fwd.1} parent=103 // pred_fallthru
          _
        // Predicated region
        $region153: #{fwd.1} parent=103 // pred_check
          %p800 = pneg %p461
        $region154: #{fwd.1} parent=103 // pred_check_branch
          %802 = sbr.rel (%p800) target = $region156
        $region155: #{fwd.1} parent=103 // pred_region
          %804 = dma.done [#allocation23], 64
        $region156: #{fwd.1} parent=103 // pred_fallthru
          _
        // Predicated region
        $region157: #{fwd.1} parent=103 // pred_check
          %p805 = pneg %p482
        $region158: #{fwd.1} parent=103 // pred_check_branch
          %807 = sbr.rel (%p805) target = $region160
        $region159: #{fwd.1} parent=103 // pred_region
          %809 = dma.done [#allocation23], 16
        $region160: #{fwd.1} parent=103 // pred_fallthru
          _
        %810 = sfence
        %s811 = smul.u32 2, %s41
        %p812 = scmp.lt.s32.totalorder %s811, 3
        %s813 = scalar_select %p812, %s811, 3
        %s814 = smul.addr %s813, 2
        %s815 = smul.addr %s814, 8
        %s816 = scalar_lea.vmem %s0, %s815
        %p817 = pneg %p62
        %p818 = pneg %p59
        %p819 = pneg %p83
        %p820 = pneg %p80
        %p821 = pneg %p104
        %p822 = pneg %p101
        %p823 = pneg %p125
        %p824 = pneg %p122
        %p825 = pneg %p146
        %p826 = pneg %p143
        %p827 = pneg %p167
        %p828 = pneg %p164
        %p829 = pneg %p188
        %p830 = pneg %p185
        %p831 = pneg %p209
        %p832 = pneg %p206
        %p833 = pneg %p230
        %p834 = pneg %p227
        %p835 = pneg %p251
        %p836 = pneg %p248
        %p837 = pneg %p272
        %p838 = pneg %p269
        %p839 = pneg %p293
        %p840 = pneg %p290
        %p841 = pneg %p314
        %p842 = pneg %p311
        %p843 = pneg %p335
        %p844 = pneg %p332
        %p845 = pneg %p356
        %p846 = pneg %p353
        %p847 = pneg %p377
        %p848 = pneg %p374
        %p849 = pneg %p398
        %p850 = pneg %p395
        %p851 = pneg %p419
        %p852 = pneg %p416
        %p853 = pneg %p440
        %p854 = pneg %p437
        %p855 = pneg %p461
        %p856 = pneg %p458
        %p857 = pneg %p482
        %p858 = pneg %p479
        %p859 = pneg %p508
        %p860 = pneg %p505
        %p861 = scmp.lt.s32.totalorder %s41, 1
        %s862 = scalar_select %p861, %s41, 1
        %s863 = smul.addr %s862, 2
        %s864 = smul.addr %s863, 8
        %s865 = scalar_lea.vmem %s21, %s864
        %s866 = smul.u32 2, %s41
        %p867 = scmp.lt.s32.totalorder %s866, 3
        %s868 = scalar_select %p867, %s866, 3
        %s869 = smul.addr %s868, 2
        %s870 = smul.addr %s869, 8
        %s871 = scalar_lea.vmem %s0, %s870
        %s872 = smul.u32 2, %s41
        %p873 = scmp.lt.s32.totalorder %s41, 1
        %s874 = scalar_select %p873, %s41, 1
        %s875 = smul.addr %s874, 2
        %s876 = smul.addr %s875, 8
        %s877 = scalar_lea.vmem %s21, %s876
        %v879 = vld [vmem:[%s871] sm:$0xff]
        %v880 = vld [vmem:[%s871 + $0x8] sm:$0xff]
        %v881 = vld [vmem:[%s871 + $0x10] sm:$0xff]
        %v882 = vld [vmem:[%s871 + $0x18] sm:$0xff]
        %v883 = vld [vmem:[#allocation18] sm:$0xff]
        %v884 = vld [vmem:[%s13] sm:$0xf]
        %v885 = vld [vmem:[%s13 + $0x4] sm:$0xf]
        %v886 = vld [vmem:[%s13 + $0x8] sm:$0xf]
        %v887 = vld [vmem:[%s13 + $0xc] sm:$0xf]
        %v888 = vld [vmem:[%s13 + $0x10] sm:$0xf]
        %v889 = vld [vmem:[%s13 + $0x14] sm:$0xf]
        %v890 = vld [vmem:[%s13 + $0x18] sm:$0xf]
        %v891 = vld [vmem:[%s13 + $0x1c] sm:$0xf]
        %v892 = vld [vmem:[%s13 + $0x20] sm:$0xf]
        %v893 = vld [vmem:[%s13 + $0x24] sm:$0xf]
        %v894 = vld [vmem:[%s13 + $0x28] sm:$0xf]
        %v895 = vld [vmem:[%s13 + $0x2c] sm:$0xf]
        %v896 = vld [vmem:[%s14] sm:$0xff]
        %v897 = vld [vmem:[%s14 + $0x8] sm:$0xff]
        %v898 = vld [vmem:[%s16] sm:$0xff]
        %900 = vset.pattern.permute.xlu0 0
        %901 = vperm.xlu0 %900, %v898
        %v902 = vpop.permute.xlu0 %901
        %vm904 = vcmask 130048
        %v906 = vsel %vm904, %v883, 0
        %908 = vmatpush.msra.mxu0 0.0
        %909 = vmatpush.msra.mxu0 0.0
        %910 = vmatpush.msra.mxu0 0.0
        %911 = vmatpush.msra.mxu0 0.0
        %912 = vmatpush.msra.mxu0 0.0
        %913 = vmatpush.msra.mxu0 0.0
        %914 = vmatpush.msra.mxu0 0.0
        %915 = vmatpush.msra.mxu0 0.0
        %916 = vmatpush.msra.mxu0 0.0
        %917 = vmatpush.msra.mxu0 0.0
        %918 = vmatpush.msra.mxu0 0.0
        %919 = vmatpush.msra.mxu0 0.0
        %920 = vmatpush.msra.mxu0 0.0
        %921 = vmatpush.msra.mxu0 0.0
        %v922 = vand.u32 %v881, 4294901760
        %923 = vmatpush.msra.mxu0 %v922
        %v924 = vand.u32 %v879, 4294901760
        %925 = vmatpush.msra.mxu0 %v924
        %v926 = vand.u32 %v906, 4294901760
        %v927 = vsub.f32 %v906, %v926
        %v928 = vand.u32 %v927, 4294901760
        %v929 = vsub.f32 %v927, %v928
        %v930 = vand.u32 %v929, 4294901760
        %931 = vmatmul.f32.gmra.mxu0 %v930
        %v932 = vpop.f32.mrf.mxu0
        %v933 = vadd.f32 %v902, %v932
        %934 = vdwg.mxu0
        %935 = vmatpush.msra.mxu0 0.0
        %936 = vmatpush.msra.mxu0 0.0
        %937 = vmatpush.msra.mxu0 0.0
        %938 = vmatpush.msra.mxu0 0.0
        %939 = vmatpush.msra.mxu0 0.0
        %940 = vmatpush.msra.mxu0 0.0
        %941 = vmatpush.msra.mxu0 0.0
        %942 = vmatpush.msra.mxu0 0.0
        %943 = vmatpush.msra.mxu0 0.0
        %944 = vmatpush.msra.mxu0 0.0
        %945 = vmatpush.msra.mxu0 0.0
        %946 = vmatpush.msra.mxu0 0.0
        %947 = vmatpush.msra.mxu0 0.0
        %948 = vmatpush.msra.mxu0 0.0
        %v949 = vand.u32 %v881, 4294901760
        %v950 = vsub.f32 %v881, %v949
        %v951 = vand.u32 %v950, 4294901760
        %v952 = vsub.f32 %v950, %v951
        %v953 = vand.u32 %v952, 4294901760
        %954 = vmatpush.msra.mxu0 %v953
        %v955 = vand.u32 %v879, 4294901760
        %v956 = vsub.f32 %v879, %v955
        %v957 = vand.u32 %v956, 4294901760
        %v958 = vsub.f32 %v956, %v957
        %v959 = vand.u32 %v958, 4294901760
        %960 = vmatpush.msra.mxu0 %v959
        %v961 = vand.u32 %v906, 4294901760
        %962 = vmatmul.f32.gmra.mxu0 %v961
        %v963 = vpop.f32.mrf.mxu0
        %v964 = vadd.f32 %v933, %v963
        %965 = vdwg.mxu0
        %966 = vmatpush.msra.mxu0 0.0
        %967 = vmatpush.msra.mxu0 0.0
        %968 = vmatpush.msra.mxu0 0.0
        %969 = vmatpush.msra.mxu0 0.0
        %970 = vmatpush.msra.mxu0 0.0
        %971 = vmatpush.msra.mxu0 0.0
        %972 = vmatpush.msra.mxu0 0.0
        %973 = vmatpush.msra.mxu0 0.0
        %974 = vmatpush.msra.mxu0 0.0
        %975 = vmatpush.msra.mxu0 0.0
        %976 = vmatpush.msra.mxu0 0.0
        %977 = vmatpush.msra.mxu0 0.0
        %978 = vmatpush.msra.mxu0 0.0
        %979 = vmatpush.msra.mxu0 0.0
        %v980 = vand.u32 %v881, 4294901760
        %v981 = vsub.f32 %v881, %v980
        %982 = vmatpush.msra.mxu0 %v981
        %v983 = vand.u32 %v879, 4294901760
        %v984 = vsub.f32 %v879, %v983
        %985 = vmatpush.msra.mxu0 %v984
        %v986 = vand.u32 %v906, 4294901760
        %v987 = vsub.f32 %v906, %v986
        %988 = vmatmul.f32.gmra.mxu0 %v987
        %v989 = vpop.f32.mrf.mxu0
        %v990 = vadd.f32 %v964, %v989
        %991 = vdwg.mxu0
        %992 = vmatpush.msra.mxu0 0.0
        %993 = vmatpush.msra.mxu0 0.0
        %994 = vmatpush.msra.mxu0 0.0
        %995 = vmatpush.msra.mxu0 0.0
        %996 = vmatpush.msra.mxu0 0.0
        %997 = vmatpush.msra.mxu0 0.0
        %998 = vmatpush.msra.mxu0 0.0
        %999 = vmatpush.msra.mxu0 0.0
        %1000 = vmatpush.msra.mxu0 0.0
        %1001 = vmatpush.msra.mxu0 0.0
        %1002 = vmatpush.msra.mxu0 0.0
        %1003 = vmatpush.msra.mxu0 0.0
        %1004 = vmatpush.msra.mxu0 0.0
        %1005 = vmatpush.msra.mxu0 0.0
        %v1006 = vand.u32 %v881, 4294901760
        %1007 = vmatpush.msra.mxu0 %v1006
        %v1008 = vand.u32 %v879, 4294901760
        %1009 = vmatpush.msra.mxu0 %v1008
        %v1010 = vand.u32 %v906, 4294901760
        %v1011 = vsub.f32 %v906, %v1010
        %v1012 = vand.u32 %v1011, 4294901760
        %1013 = vmatmul.f32.gmra.mxu0 %v1012
        %v1014 = vpop.f32.mrf.mxu0
        %v1015 = vadd.f32 %v990, %v1014
        %1016 = vdwg.mxu0
        %1017 = vmatpush.msra.mxu0 0.0
        %1018 = vmatpush.msra.mxu0 0.0
        %1019 = vmatpush.msra.mxu0 0.0
        %1020 = vmatpush.msra.mxu0 0.0
        %1021 = vmatpush.msra.mxu0 0.0
        %1022 = vmatpush.msra.mxu0 0.0
        %1023 = vmatpush.msra.mxu0 0.0
        %1024 = vmatpush.msra.mxu0 0.0
        %1025 = vmatpush.msra.mxu0 0.0
        %1026 = vmatpush.msra.mxu0 0.0
        %1027 = vmatpush.msra.mxu0 0.0
        %1028 = vmatpush.msra.mxu0 0.0
        %1029 = vmatpush.msra.mxu0 0.0
        %1030 = vmatpush.msra.mxu0 0.0
        %v1031 = vand.u32 %v881, 4294901760
        %v1032 = vsub.f32 %v881, %v1031
        %v1033 = vand.u32 %v1032, 4294901760
        %1034 = vmatpush.msra.mxu0 %v1033
        %v1035 = vand.u32 %v879, 4294901760
        %v1036 = vsub.f32 %v879, %v1035
        %v1037 = vand.u32 %v1036, 4294901760
        %1038 = vmatpush.msra.mxu0 %v1037
        %v1039 = vand.u32 %v906, 4294901760
        %1040 = vmatmul.f32.gmra.mxu0 %v1039
        %v1041 = vpop.f32.mrf.mxu0
        %v1042 = vadd.f32 %v1015, %v1041
        %1043 = vdwg.mxu0
        %1044 = vmatpush.msra.mxu0 0.0
        %1045 = vmatpush.msra.mxu0 0.0
        %1046 = vmatpush.msra.mxu0 0.0
        %1047 = vmatpush.msra.mxu0 0.0
        %1048 = vmatpush.msra.mxu0 0.0
        %1049 = vmatpush.msra.mxu0 0.0
        %1050 = vmatpush.msra.mxu0 0.0
        %1051 = vmatpush.msra.mxu0 0.0
        %1052 = vmatpush.msra.mxu0 0.0
        %1053 = vmatpush.msra.mxu0 0.0
        %1054 = vmatpush.msra.mxu0 0.0
        %1055 = vmatpush.msra.mxu0 0.0
        %1056 = vmatpush.msra.mxu0 0.0
        %1057 = vmatpush.msra.mxu0 0.0
        %v1058 = vand.u32 %v881, 4294901760
        %1059 = vmatpush.msra.mxu0 %v1058
        %v1060 = vand.u32 %v879, 4294901760
        %1061 = vmatpush.msra.mxu0 %v1060
        %v1062 = vand.u32 %v906, 4294901760
        %1063 = vmatmul.f32.gmra.mxu0 %v1062
        %v1064 = vpop.f32.mrf.mxu0
        %v1065 = vadd.f32 %v1042, %v1064
        %1066 = vdwg.mxu0
        %1067 = vmatpush.msra.mxu0 0.0
        %1068 = vmatpush.msra.mxu0 0.0
        %1069 = vmatpush.msra.mxu0 0.0
        %1070 = vmatpush.msra.mxu0 0.0
        %1071 = vmatpush.msra.mxu0 0.0
        %1072 = vmatpush.msra.mxu0 0.0
        %1073 = vmatpush.msra.mxu0 0.0
        %1074 = vmatpush.msra.mxu0 0.0
        %1075 = vmatpush.msra.mxu0 0.0
        %1076 = vmatpush.msra.mxu0 0.0
        %1077 = vmatpush.msra.mxu0 0.0
        %1078 = vmatpush.msra.mxu0 0.0
        %1079 = vmatpush.msra.mxu0 0.0
        %1080 = vmatpush.msra.mxu0 0.0
        %v1081 = vand.u32 %v882, 4294901760
        %1082 = vmatpush.msra.mxu0 %v1081
        %v1083 = vand.u32 %v880, 4294901760
        %1084 = vmatpush.msra.mxu0 %v1083
        %v1085 = vand.u32 %v906, 4294901760
        %v1086 = vsub.f32 %v906, %v1085
        %v1087 = vand.u32 %v1086, 4294901760
        %v1088 = vsub.f32 %v1086, %v1087
        %v1089 = vand.u32 %v1088, 4294901760
        %1090 = vmatmul.f32.gmra.mxu0 %v1089
        %v1091 = vpop.f32.mrf.mxu0
        %v1092 = vadd.f32 %v902, %v1091
        %1093 = vdwg.mxu0
        %1094 = vmatpush.msra.mxu0 0.0
        %1095 = vmatpush.msra.mxu0 0.0
        %1096 = vmatpush.msra.mxu0 0.0
        %1097 = vmatpush.msra.mxu0 0.0
        %1098 = vmatpush.msra.mxu0 0.0
        %1099 = vmatpush.msra.mxu0 0.0
        %1100 = vmatpush.msra.mxu0 0.0
        %1101 = vmatpush.msra.mxu0 0.0
        %1102 = vmatpush.msra.mxu0 0.0
        %1103 = vmatpush.msra.mxu0 0.0
        %1104 = vmatpush.msra.mxu0 0.0
        %1105 = vmatpush.msra.mxu0 0.0
        %1106 = vmatpush.msra.mxu0 0.0
        %1107 = vmatpush.msra.mxu0 0.0
        %v1108 = vand.u32 %v882, 4294901760
        %v1109 = vsub.f32 %v882, %v1108
        %v1110 = vand.u32 %v1109, 4294901760
        %v1111 = vsub.f32 %v1109, %v1110
        %v1112 = vand.u32 %v1111, 4294901760
        %1113 = vmatpush.msra.mxu0 %v1112
        %v1114 = vand.u32 %v880, 4294901760
        %v1115 = vsub.f32 %v880, %v1114
        %v1116 = vand.u32 %v1115, 4294901760
        %v1117 = vsub.f32 %v1115, %v1116
        %v1118 = vand.u32 %v1117, 4294901760
        %1119 = vmatpush.msra.mxu0 %v1118
        %v1120 = vand.u32 %v906, 4294901760
        %1121 = vmatmul.f32.gmra.mxu0 %v1120
        %v1122 = vpop.f32.mrf.mxu0
        %v1123 = vadd.f32 %v1092, %v1122
        %1124 = vdwg.mxu0
        %1125 = vmatpush.msra.mxu0 0.0
        %1126 = vmatpush.msra.mxu0 0.0
        %1127 = vmatpush.msra.mxu0 0.0
        %1128 = vmatpush.msra.mxu0 0.0
        %1129 = vmatpush.msra.mxu0 0.0
        %1130 = vmatpush.msra.mxu0 0.0
        %1131 = vmatpush.msra.mxu0 0.0
        %1132 = vmatpush.msra.mxu0 0.0
        %1133 = vmatpush.msra.mxu0 0.0
        %1134 = vmatpush.msra.mxu0 0.0
        %1135 = vmatpush.msra.mxu0 0.0
        %1136 = vmatpush.msra.mxu0 0.0
        %1137 = vmatpush.msra.mxu0 0.0
        %1138 = vmatpush.msra.mxu0 0.0
        %v1139 = vand.u32 %v882, 4294901760
        %v1140 = vsub.f32 %v882, %v1139
        %1141 = vmatpush.msra.mxu0 %v1140
        %v1142 = vand.u32 %v880, 4294901760
        %v1143 = vsub.f32 %v880, %v1142
        %1144 = vmatpush.msra.mxu0 %v1143
        %v1145 = vand.u32 %v906, 4294901760
        %v1146 = vsub.f32 %v906, %v1145
        %1147 = vmatmul.f32.gmra.mxu0 %v1146
        %v1148 = vpop.f32.mrf.mxu0
        %v1149 = vadd.f32 %v1123, %v1148
        %1150 = vdwg.mxu0
        %1151 = vmatpush.msra.mxu0 0.0
        %1152 = vmatpush.msra.mxu0 0.0
        %1153 = vmatpush.msra.mxu0 0.0
        %1154 = vmatpush.msra.mxu0 0.0
        %1155 = vmatpush.msra.mxu0 0.0
        %1156 = vmatpush.msra.mxu0 0.0
        %1157 = vmatpush.msra.mxu0 0.0
        %1158 = vmatpush.msra.mxu0 0.0
        %1159 = vmatpush.msra.mxu0 0.0
        %1160 = vmatpush.msra.mxu0 0.0
        %1161 = vmatpush.msra.mxu0 0.0
        %1162 = vmatpush.msra.mxu0 0.0
        %1163 = vmatpush.msra.mxu0 0.0
        %1164 = vmatpush.msra.mxu0 0.0
        %v1165 = vand.u32 %v882, 4294901760
        %1166 = vmatpush.msra.mxu0 %v1165
        %v1167 = vand.u32 %v880, 4294901760
        %1168 = vmatpush.msra.mxu0 %v1167
        %v1169 = vand.u32 %v906, 4294901760
        %v1170 = vsub.f32 %v906, %v1169
        %v1171 = vand.u32 %v1170, 4294901760
        %1172 = vmatmul.f32.gmra.mxu0 %v1171
        %v1173 = vpop.f32.mrf.mxu0
        %v1174 = vadd.f32 %v1149, %v1173
        %1175 = vdwg.mxu0
        %1176 = vmatpush.msra.mxu0 0.0
        %1177 = vmatpush.msra.mxu0 0.0
        %1178 = vmatpush.msra.mxu0 0.0
        %1179 = vmatpush.msra.mxu0 0.0
        %1180 = vmatpush.msra.mxu0 0.0
        %1181 = vmatpush.msra.mxu0 0.0
        %1182 = vmatpush.msra.mxu0 0.0
        %1183 = vmatpush.msra.mxu0 0.0
        %1184 = vmatpush.msra.mxu0 0.0
        %1185 = vmatpush.msra.mxu0 0.0
        %1186 = vmatpush.msra.mxu0 0.0
        %1187 = vmatpush.msra.mxu0 0.0
        %1188 = vmatpush.msra.mxu0 0.0
        %1189 = vmatpush.msra.mxu0 0.0
        %v1190 = vand.u32 %v882, 4294901760
        %v1191 = vsub.f32 %v882, %v1190
        %v1192 = vand.u32 %v1191, 4294901760
        %1193 = vmatpush.msra.mxu0 %v1192
        %v1194 = vand.u32 %v880, 4294901760
        %v1195 = vsub.f32 %v880, %v1194
        %v1196 = vand.u32 %v1195, 4294901760
        %1197 = vmatpush.msra.mxu0 %v1196
        %v1198 = vand.u32 %v906, 4294901760
        %1199 = vmatmul.f32.gmra.mxu0 %v1198
        %v1200 = vpop.f32.mrf.mxu0
        %v1201 = vadd.f32 %v1174, %v1200
        %1202 = vdwg.mxu0
        %1203 = vmatpush.msra.mxu0 0.0
        %1204 = vmatpush.msra.mxu0 0.0
        %1205 = vmatpush.msra.mxu0 0.0
        %1206 = vmatpush.msra.mxu0 0.0
        %1207 = vmatpush.msra.mxu0 0.0
        %1208 = vmatpush.msra.mxu0 0.0
        %1209 = vmatpush.msra.mxu0 0.0
        %1210 = vmatpush.msra.mxu0 0.0
        %1211 = vmatpush.msra.mxu0 0.0
        %1212 = vmatpush.msra.mxu0 0.0
        %1213 = vmatpush.msra.mxu0 0.0
        %1214 = vmatpush.msra.mxu0 0.0
        %1215 = vmatpush.msra.mxu0 0.0
        %1216 = vmatpush.msra.mxu0 0.0
        %v1217 = vand.u32 %v882, 4294901760
        %1218 = vmatpush.msra.mxu0 %v1217
        %v1219 = vand.u32 %v880, 4294901760
        %1220 = vmatpush.msra.mxu0 %v1219
        %v1221 = vand.u32 %v906, 4294901760
        %1222 = vmatmul.f32.gmra.mxu0 %v1221
        %v1223 = vpop.f32.mrf.mxu0
        %v1224 = vadd.f32 %v1201, %v1223
        %1225 = vdwg.mxu0
        %v1226 = vld [vmem:[#allocation9] sm:$0xff]
        %v1227 = vld [vmem:[#allocation9 + $0x8] sm:$0xff]
        %v1228 = vld [vmem:[#allocation9 + $0x10] sm:$0xff]
        %v1229 = vld [vmem:[#allocation9 + $0x18] sm:$0xff]
        %v1230 = vld [vmem:[#allocation9 + $0x20] sm:$0xff]
        %v1231 = vld [vmem:[#allocation9 + $0x28] sm:$0xff]
        %v1232 = vld [vmem:[#allocation9 + $0x30] sm:$0xff]
        %v1233 = vld [vmem:[#allocation9 + $0x38] sm:$0xff]
        %v1234 = vld [vmem:[#allocation9 + $0x40] sm:$0xff]
        %v1235 = vld [vmem:[#allocation9 + $0x48] sm:$0xff]
        %v1236 = vld [vmem:[#allocation9 + $0x50] sm:$0xff]
        %v1237 = vld [vmem:[#allocation9 + $0x58] sm:$0xff]
        %v1238 = vld [vmem:[#allocation9 + $0x60] sm:$0xff]
        %v1239 = vld [vmem:[#allocation9 + $0x68] sm:$0xff]
        %v1240 = vld [vmem:[#allocation9 + $0x70] sm:$0xff]
        %v1241 = vld [vmem:[#allocation9 + $0x78] sm:$0xff]
        %v1242 = vld [vmem:[#allocation9 + $0x80] sm:$0xff]
        %v1243 = vld [vmem:[#allocation9 + $0x88] sm:$0xff]
        %v1244 = vld [vmem:[#allocation9 + $0x90] sm:$0xff]
        %v1245 = vld [vmem:[#allocation9 + $0x98] sm:$0xff]
        %v1246 = vld [vmem:[#allocation9 + $0xa0] sm:$0xff]
        %v1247 = vld [vmem:[#allocation9 + $0xa8] sm:$0xff]
        %v1248 = vld [vmem:[#allocation9 + $0xb0] sm:$0xff]
        %v1249 = vld [vmem:[#allocation9 + $0xb8] sm:$0xff]
        %v1250 = vld [vmem:[#allocation9 + $0xc0] sm:$0xff]
        %v1251 = vld [vmem:[#allocation9 + $0xc8] sm:$0xff]
        %v1252 = vld [vmem:[#allocation9 + $0xd0] sm:$0xff]
        %v1253 = vld [vmem:[#allocation9 + $0xd8] sm:$0xff]
        %v1254 = vld [vmem:[#allocation9 + $0xe0] sm:$0xff]
        %v1255 = vld [vmem:[#allocation9 + $0xe8] sm:$0xff]
        %v1256 = vld [vmem:[#allocation9 + $0xf0] sm:$0xff]
        %v1257 = vld [vmem:[#allocation9 + $0xf8] sm:$0xff]
        %v1258 = vld [vmem:[#allocation2] sm:$0xff]
        %v1259 = vld [vmem:[#allocation2 + $0x8] sm:$0xff]
        %v1260 = vld [vmem:[#allocation2 + $0x10] sm:$0xff]
        %v1261 = vld [vmem:[#allocation2 + $0x18] sm:$0xff]
        %v1262 = vld [vmem:[#allocation6] sm:$0xff]
        %v1263 = vld [vmem:[#allocation6 + $0x8] sm:$0xff]
        %v1264 = vld [vmem:[#allocation6 + $0x10] sm:$0xff]
        %v1265 = vld [vmem:[#allocation6 + $0x18] sm:$0xff]
        %1267 = vset.pattern.permute.xlu0 0
        %1268 = vperm.xlu0 %1267, %v1262
        %v1269 = vpop.permute.xlu0 %1268
        %1272 = vset.pattern.permute.xlu0 0
        %1273 = vperm.xlu0 %1272, %v1263
        %v1274 = vpop.permute.xlu0 %1273
        %1277 = vset.pattern.permute.xlu0 0
        %1278 = vperm.xlu0 %1277, %v1264
        %v1279 = vpop.permute.xlu0 %1278
        %1282 = vset.pattern.permute.xlu0 0
        %1283 = vperm.xlu0 %1282, %v1265
        %v1284 = vpop.permute.xlu0 %1283
        %v1287 = vsel %vm904, %v1258, 0
        %v1290 = vsel %vm904, %v1259, 0
        %v1293 = vsel %vm904, %v1260, 0
        %v1296 = vsel %vm904, %v1261, 0
        %1298 = vmatpush.msra.mxu0 0.0
        %1299 = vmatpush.msra.mxu0 0.0
        %1300 = vmatpush.msra.mxu0 0.0
        %1301 = vmatpush.msra.mxu0 0.0
        %1302 = vmatpush.msra.mxu0 0.0
        %1303 = vmatpush.msra.mxu0 0.0
        %1304 = vmatpush.msra.mxu0 0.0
        %1305 = vmatpush.msra.mxu0 0.0
        %1306 = vmatpush.msra.mxu0 0.0
        %1307 = vmatpush.msra.mxu0 0.0
        %1308 = vmatpush.msra.mxu0 0.0
        %1309 = vmatpush.msra.mxu0 0.0
        %1310 = vmatpush.msra.mxu0 0.0
        %1311 = vmatpush.msra.mxu0 0.0
        %v1312 = vand.u32 %v881, 4294901760
        %1313 = vmatpush.msra.mxu0 %v1312
        %v1314 = vand.u32 %v879, 4294901760
        %1315 = vmatpush.msra.mxu0 %v1314
        %v1316 = vand.u32 %v1287, 4294901760
        %v1317 = vsub.f32 %v1287, %v1316
        %v1318 = vand.u32 %v1317, 4294901760
        %v1319 = vsub.f32 %v1317, %v1318
        %v1320 = vand.u32 %v1319, 4294901760
        %1321 = vmatmul.f32.gmra.mxu0 %v1320
        %v1322 = vpop.f32.mrf.mxu0
        %v1323 = vadd.f32 %v1269, %v1322
        %v1324 = vand.u32 %v1290, 4294901760
        %v1325 = vsub.f32 %v1290, %v1324
        %v1326 = vand.u32 %v1325, 4294901760
        %v1327 = vsub.f32 %v1325, %v1326
        %v1328 = vand.u32 %v1327, 4294901760
        %1329 = vmatmul.f32.gmra.mxu0 %v1328
        %v1330 = vpop.f32.mrf.mxu0
        %v1331 = vadd.f32 %v1274, %v1330
        %v1332 = vand.u32 %v1293, 4294901760
        %v1333 = vsub.f32 %v1293, %v1332
        %v1334 = vand.u32 %v1333, 4294901760
        %v1335 = vsub.f32 %v1333, %v1334
        %v1336 = vand.u32 %v1335, 4294901760
        %1337 = vmatmul.f32.gmra.mxu0 %v1336
        %v1338 = vpop.f32.mrf.mxu0
        %v1339 = vadd.f32 %v1279, %v1338
        %v1340 = vand.u32 %v1296, 4294901760
        %v1341 = vsub.f32 %v1296, %v1340
        %v1342 = vand.u32 %v1341, 4294901760
        %v1343 = vsub.f32 %v1341, %v1342
        %v1344 = vand.u32 %v1343, 4294901760
        %1345 = vmatmul.f32.gmra.mxu0 %v1344
        %v1346 = vpop.f32.mrf.mxu0
        %v1347 = vadd.f32 %v1284, %v1346
        %1348 = vdwg.mxu0
        %1349 = vmatpush.msra.mxu0 0.0
        %1350 = vmatpush.msra.mxu0 0.0
        %1351 = vmatpush.msra.mxu0 0.0
        %1352 = vmatpush.msra.mxu0 0.0
        %1353 = vmatpush.msra.mxu0 0.0
        %1354 = vmatpush.msra.mxu0 0.0
        %1355 = vmatpush.msra.mxu0 0.0
        %1356 = vmatpush.msra.mxu0 0.0
        %1357 = vmatpush.msra.mxu0 0.0
        %1358 = vmatpush.msra.mxu0 0.0
        %1359 = vmatpush.msra.mxu0 0.0
        %1360 = vmatpush.msra.mxu0 0.0
        %1361 = vmatpush.msra.mxu0 0.0
        %1362 = vmatpush.msra.mxu0 0.0
        %v1363 = vand.u32 %v881, 4294901760
        %v1364 = vsub.f32 %v881, %v1363
        %v1365 = vand.u32 %v1364, 4294901760
        %v1366 = vsub.f32 %v1364, %v1365
        %v1367 = vand.u32 %v1366, 4294901760
        %1368 = vmatpush.msra.mxu0 %v1367
        %v1369 = vand.u32 %v879, 4294901760
        %v1370 = vsub.f32 %v879, %v1369
        %v1371 = vand.u32 %v1370, 4294901760
        %v1372 = vsub.f32 %v1370, %v1371
        %v1373 = vand.u32 %v1372, 4294901760
        %1374 = vmatpush.msra.mxu0 %v1373
        %v1375 = vand.u32 %v1287, 4294901760
        %1376 = vmatmul.f32.gmra.mxu0 %v1375
        %v1377 = vpop.f32.mrf.mxu0
        %v1378 = vadd.f32 %v1323, %v1377
        %v1379 = vand.u32 %v1290, 4294901760
        %1380 = vmatmul.f32.gmra.mxu0 %v1379
        %v1381 = vpop.f32.mrf.mxu0
        %v1382 = vadd.f32 %v1331, %v1381
        %v1383 = vand.u32 %v1293, 4294901760
        %1384 = vmatmul.f32.gmra.mxu0 %v1383
        %v1385 = vpop.f32.mrf.mxu0
        %v1386 = vadd.f32 %v1339, %v1385
        %v1387 = vand.u32 %v1296, 4294901760
        %1388 = vmatmul.f32.gmra.mxu0 %v1387
        %v1389 = vpop.f32.mrf.mxu0
        %v1390 = vadd.f32 %v1347, %v1389
        %1391 = vdwg.mxu0
        %1392 = vmatpush.msra.mxu0 0.0
        %1393 = vmatpush.msra.mxu0 0.0
        %1394 = vmatpush.msra.mxu0 0.0
        %1395 = vmatpush.msra.mxu0 0.0
        %1396 = vmatpush.msra.mxu0 0.0
        %1397 = vmatpush.msra.mxu0 0.0
        %1398 = vmatpush.msra.mxu0 0.0
        %1399 = vmatpush.msra.mxu0 0.0
        %1400 = vmatpush.msra.mxu0 0.0
        %1401 = vmatpush.msra.mxu0 0.0
        %1402 = vmatpush.msra.mxu0 0.0
        %1403 = vmatpush.msra.mxu0 0.0
        %1404 = vmatpush.msra.mxu0 0.0
        %1405 = vmatpush.msra.mxu0 0.0
        %v1406 = vand.u32 %v881, 4294901760
        %v1407 = vsub.f32 %v881, %v1406
        %1408 = vmatpush.msra.mxu0 %v1407
        %v1409 = vand.u32 %v879, 4294901760
        %v1410 = vsub.f32 %v879, %v1409
        %1411 = vmatpush.msra.mxu0 %v1410
        %v1412 = vand.u32 %v1287, 4294901760
        %v1413 = vsub.f32 %v1287, %v1412
        %1414 = vmatmul.f32.gmra.mxu0 %v1413
        %v1415 = vpop.f32.mrf.mxu0
        %v1416 = vadd.f32 %v1378, %v1415
        %v1417 = vand.u32 %v1290, 4294901760
        %v1418 = vsub.f32 %v1290, %v1417
        %1419 = vmatmul.f32.gmra.mxu0 %v1418
        %v1420 = vpop.f32.mrf.mxu0
        %v1421 = vadd.f32 %v1382, %v1420
        %v1422 = vand.u32 %v1293, 4294901760
        %v1423 = vsub.f32 %v1293, %v1422
        %1424 = vmatmul.f32.gmra.mxu0 %v1423
        %v1425 = vpop.f32.mrf.mxu0
        %v1426 = vadd.f32 %v1386, %v1425
        %v1427 = vand.u32 %v1296, 4294901760
        %v1428 = vsub.f32 %v1296, %v1427
        %1429 = vmatmul.f32.gmra.mxu0 %v1428
        %v1430 = vpop.f32.mrf.mxu0
        %v1431 = vadd.f32 %v1390, %v1430
        %1432 = vdwg.mxu0
        %1433 = vmatpush.msra.mxu0 0.0
        %1434 = vmatpush.msra.mxu0 0.0
        %1435 = vmatpush.msra.mxu0 0.0
        %1436 = vmatpush.msra.mxu0 0.0
        %1437 = vmatpush.msra.mxu0 0.0
        %1438 = vmatpush.msra.mxu0 0.0
        %1439 = vmatpush.msra.mxu0 0.0
        %1440 = vmatpush.msra.mxu0 0.0
        %1441 = vmatpush.msra.mxu0 0.0
        %1442 = vmatpush.msra.mxu0 0.0
        %1443 = vmatpush.msra.mxu0 0.0
        %1444 = vmatpush.msra.mxu0 0.0
        %1445 = vmatpush.msra.mxu0 0.0
        %1446 = vmatpush.msra.mxu0 0.0
        %v1447 = vand.u32 %v881, 4294901760
        %1448 = vmatpush.msra.mxu0 %v1447
        %v1449 = vand.u32 %v879, 4294901760
        %1450 = vmatpush.msra.mxu0 %v1449
        %v1451 = vand.u32 %v1287, 4294901760
        %v1452 = vsub.f32 %v1287, %v1451
        %v1453 = vand.u32 %v1452, 4294901760
        %1454 = vmatmul.f32.gmra.mxu0 %v1453
        %v1455 = vpop.f32.mrf.mxu0
        %v1456 = vadd.f32 %v1416, %v1455
        %v1457 = vand.u32 %v1290, 4294901760
        %v1458 = vsub.f32 %v1290, %v1457
        %v1459 = vand.u32 %v1458, 4294901760
        %1460 = vmatmul.f32.gmra.mxu0 %v1459
        %v1461 = vpop.f32.mrf.mxu0
        %v1462 = vadd.f32 %v1421, %v1461
        %v1463 = vand.u32 %v1293, 4294901760
        %v1464 = vsub.f32 %v1293, %v1463
        %v1465 = vand.u32 %v1464, 4294901760
        %1466 = vmatmul.f32.gmra.mxu0 %v1465
        %v1467 = vpop.f32.mrf.mxu0
        %v1468 = vadd.f32 %v1426, %v1467
        %v1469 = vand.u32 %v1296, 4294901760
        %v1470 = vsub.f32 %v1296, %v1469
        %v1471 = vand.u32 %v1470, 4294901760
        %1472 = vmatmul.f32.gmra.mxu0 %v1471
        %v1473 = vpop.f32.mrf.mxu0
        %v1474 = vadd.f32 %v1431, %v1473
        %1475 = vdwg.mxu0
        %1476 = vmatpush.msra.mxu0 0.0
        %1477 = vmatpush.msra.mxu0 0.0
        %1478 = vmatpush.msra.mxu0 0.0
        %1479 = vmatpush.msra.mxu0 0.0
        %1480 = vmatpush.msra.mxu0 0.0
        %1481 = vmatpush.msra.mxu0 0.0
        %1482 = vmatpush.msra.mxu0 0.0
        %1483 = vmatpush.msra.mxu0 0.0
        %1484 = vmatpush.msra.mxu0 0.0
        %1485 = vmatpush.msra.mxu0 0.0
        %1486 = vmatpush.msra.mxu0 0.0
        %1487 = vmatpush.msra.mxu0 0.0
        %1488 = vmatpush.msra.mxu0 0.0
        %1489 = vmatpush.msra.mxu0 0.0
        %v1490 = vand.u32 %v881, 4294901760
        %v1491 = vsub.f32 %v881, %v1490
        %v1492 = vand.u32 %v1491, 4294901760
        %1493 = vmatpush.msra.mxu0 %v1492
        %v1494 = vand.u32 %v879, 4294901760
        %v1495 = vsub.f32 %v879, %v1494
        %v1496 = vand.u32 %v1495, 4294901760
        %1497 = vmatpush.msra.mxu0 %v1496
        %v1498 = vand.u32 %v1287, 4294901760
        %1499 = vmatmul.f32.gmra.mxu0 %v1498
        %v1500 = vpop.f32.mrf.mxu0
        %v1501 = vadd.f32 %v1456, %v1500
        %v1502 = vand.u32 %v1290, 4294901760
        %1503 = vmatmul.f32.gmra.mxu0 %v1502
        %v1504 = vpop.f32.mrf.mxu0
        %v1505 = vadd.f32 %v1462, %v1504
        %v1506 = vand.u32 %v1293, 4294901760
        %1507 = vmatmul.f32.gmra.mxu0 %v1506
        %v1508 = vpop.f32.mrf.mxu0
        %v1509 = vadd.f32 %v1468, %v1508
        %v1510 = vand.u32 %v1296, 4294901760
        %1511 = vmatmul.f32.gmra.mxu0 %v1510
        %v1512 = vpop.f32.mrf.mxu0
        %v1513 = vadd.f32 %v1474, %v1512
        %1514 = vdwg.mxu0
        %1515 = vmatpush.msra.mxu0 0.0
        %1516 = vmatpush.msra.mxu0 0.0
        %1517 = vmatpush.msra.mxu0 0.0
        %1518 = vmatpush.msra.mxu0 0.0
        %1519 = vmatpush.msra.mxu0 0.0
        %1520 = vmatpush.msra.mxu0 0.0
        %1521 = vmatpush.msra.mxu0 0.0
        %1522 = vmatpush.msra.mxu0 0.0
        %1523 = vmatpush.msra.mxu0 0.0
        %1524 = vmatpush.msra.mxu0 0.0
        %1525 = vmatpush.msra.mxu0 0.0
        %1526 = vmatpush.msra.mxu0 0.0
        %1527 = vmatpush.msra.mxu0 0.0
        %1528 = vmatpush.msra.mxu0 0.0
        %v1529 = vand.u32 %v881, 4294901760
        %1530 = vmatpush.msra.mxu0 %v1529
        %v1531 = vand.u32 %v879, 4294901760
        %1532 = vmatpush.msra.mxu0 %v1531
        %v1533 = vand.u32 %v1287, 4294901760
        %1534 = vmatmul.f32.gmra.mxu0 %v1533
        %v1535 = vpop.f32.mrf.mxu0
        %v1536 = vadd.f32 %v1501, %v1535
        %v1537 = vand.u32 %v1290, 4294901760
        %1538 = vmatmul.f32.gmra.mxu0 %v1537
        %v1539 = vpop.f32.mrf.mxu0
        %v1540 = vadd.f32 %v1505, %v1539
        %v1541 = vand.u32 %v1293, 4294901760
        %1542 = vmatmul.f32.gmra.mxu0 %v1541
        %v1543 = vpop.f32.mrf.mxu0
        %v1544 = vadd.f32 %v1509, %v1543
        %v1545 = vand.u32 %v1296, 4294901760
        %1546 = vmatmul.f32.gmra.mxu0 %v1545
        %v1547 = vpop.f32.mrf.mxu0
        %v1548 = vadd.f32 %v1513, %v1547
        %1549 = vdwg.mxu0
        %1550 = vmatpush.msra.mxu0 0.0
        %1551 = vmatpush.msra.mxu0 0.0
        %1552 = vmatpush.msra.mxu0 0.0
        %1553 = vmatpush.msra.mxu0 0.0
        %1554 = vmatpush.msra.mxu0 0.0
        %1555 = vmatpush.msra.mxu0 0.0
        %1556 = vmatpush.msra.mxu0 0.0
        %1557 = vmatpush.msra.mxu0 0.0
        %1558 = vmatpush.msra.mxu0 0.0
        %1559 = vmatpush.msra.mxu0 0.0
        %1560 = vmatpush.msra.mxu0 0.0
        %1561 = vmatpush.msra.mxu0 0.0
        %1562 = vmatpush.msra.mxu0 0.0
        %1563 = vmatpush.msra.mxu0 0.0
        %v1564 = vand.u32 %v882, 4294901760
        %1565 = vmatpush.msra.mxu0 %v1564
        %v1566 = vand.u32 %v880, 4294901760
        %1567 = vmatpush.msra.mxu0 %v1566
        %v1568 = vand.u32 %v1287, 4294901760
        %v1569 = vsub.f32 %v1287, %v1568
        %v1570 = vand.u32 %v1569, 4294901760
        %v1571 = vsub.f32 %v1569, %v1570
        %v1572 = vand.u32 %v1571, 4294901760
        %1573 = vmatmul.f32.gmra.mxu0 %v1572
        %v1574 = vpop.f32.mrf.mxu0
        %v1575 = vadd.f32 %v1269, %v1574
        %v1576 = vand.u32 %v1290, 4294901760
        %v1577 = vsub.f32 %v1290, %v1576
        %v1578 = vand.u32 %v1577, 4294901760
        %v1579 = vsub.f32 %v1577, %v1578
        %v1580 = vand.u32 %v1579, 4294901760
        %1581 = vmatmul.f32.gmra.mxu0 %v1580
        %v1582 = vpop.f32.mrf.mxu0
        %v1583 = vadd.f32 %v1274, %v1582
        %v1584 = vand.u32 %v1293, 4294901760
        %v1585 = vsub.f32 %v1293, %v1584
        %v1586 = vand.u32 %v1585, 4294901760
        %v1587 = vsub.f32 %v1585, %v1586
        %v1588 = vand.u32 %v1587, 4294901760
        %1589 = vmatmul.f32.gmra.mxu0 %v1588
        %v1590 = vpop.f32.mrf.mxu0
        %v1591 = vadd.f32 %v1279, %v1590
        %v1592 = vand.u32 %v1296, 4294901760
        %v1593 = vsub.f32 %v1296, %v1592
        %v1594 = vand.u32 %v1593, 4294901760
        %v1595 = vsub.f32 %v1593, %v1594
        %v1596 = vand.u32 %v1595, 4294901760
        %1597 = vmatmul.f32.gmra.mxu0 %v1596
        %v1598 = vpop.f32.mrf.mxu0
        %v1599 = vadd.f32 %v1284, %v1598
        %1600 = vdwg.mxu0
        %1601 = vmatpush.msra.mxu0 0.0
        %1602 = vmatpush.msra.mxu0 0.0
        %1603 = vmatpush.msra.mxu0 0.0
        %1604 = vmatpush.msra.mxu0 0.0
        %1605 = vmatpush.msra.mxu0 0.0
        %1606 = vmatpush.msra.mxu0 0.0
        %1607 = vmatpush.msra.mxu0 0.0
        %1608 = vmatpush.msra.mxu0 0.0
        %1609 = vmatpush.msra.mxu0 0.0
        %1610 = vmatpush.msra.mxu0 0.0
        %1611 = vmatpush.msra.mxu0 0.0
        %1612 = vmatpush.msra.mxu0 0.0
        %1613 = vmatpush.msra.mxu0 0.0
        %1614 = vmatpush.msra.mxu0 0.0
        %v1615 = vand.u32 %v882, 4294901760
        %v1616 = vsub.f32 %v882, %v1615
        %v1617 = vand.u32 %v1616, 4294901760
        %v1618 = vsub.f32 %v1616, %v1617
        %v1619 = vand.u32 %v1618, 4294901760
        %1620 = vmatpush.msra.mxu0 %v1619
        %v1621 = vand.u32 %v880, 4294901760
        %v1622 = vsub.f32 %v880, %v1621
        %v1623 = vand.u32 %v1622, 4294901760
        %v1624 = vsub.f32 %v1622, %v1623
        %v1625 = vand.u32 %v1624, 4294901760
        %1626 = vmatpush.msra.mxu0 %v1625
        %v1627 = vand.u32 %v1287, 4294901760
        %1628 = vmatmul.f32.gmra.mxu0 %v1627
        %v1629 = vpop.f32.mrf.mxu0
        %v1630 = vadd.f32 %v1575, %v1629
        %v1631 = vand.u32 %v1290, 4294901760
        %1632 = vmatmul.f32.gmra.mxu0 %v1631
        %v1633 = vpop.f32.mrf.mxu0
        %v1634 = vadd.f32 %v1583, %v1633
        %v1635 = vand.u32 %v1293, 4294901760
        %1636 = vmatmul.f32.gmra.mxu0 %v1635
        %v1637 = vpop.f32.mrf.mxu0
        %v1638 = vadd.f32 %v1591, %v1637
        %v1639 = vand.u32 %v1296, 4294901760
        %1640 = vmatmul.f32.gmra.mxu0 %v1639
        %v1641 = vpop.f32.mrf.mxu0
        %v1642 = vadd.f32 %v1599, %v1641
        %1643 = vdwg.mxu0
        %1644 = vmatpush.msra.mxu0 0.0
        %1645 = vmatpush.msra.mxu0 0.0
        %1646 = vmatpush.msra.mxu0 0.0
        %1647 = vmatpush.msra.mxu0 0.0
        %1648 = vmatpush.msra.mxu0 0.0
        %1649 = vmatpush.msra.mxu0 0.0
        %1650 = vmatpush.msra.mxu0 0.0
        %1651 = vmatpush.msra.mxu0 0.0
        %1652 = vmatpush.msra.mxu0 0.0
        %1653 = vmatpush.msra.mxu0 0.0
        %1654 = vmatpush.msra.mxu0 0.0
        %1655 = vmatpush.msra.mxu0 0.0
        %1656 = vmatpush.msra.mxu0 0.0
        %1657 = vmatpush.msra.mxu0 0.0
        %v1658 = vand.u32 %v882, 4294901760
        %v1659 = vsub.f32 %v882, %v1658
        %1660 = vmatpush.msra.mxu0 %v1659
        %v1661 = vand.u32 %v880, 4294901760
        %v1662 = vsub.f32 %v880, %v1661
        %1663 = vmatpush.msra.mxu0 %v1662
        %v1664 = vand.u32 %v1287, 4294901760
        %v1665 = vsub.f32 %v1287, %v1664
        %1666 = vmatmul.f32.gmra.mxu0 %v1665
        %v1667 = vpop.f32.mrf.mxu0
        %v1668 = vadd.f32 %v1630, %v1667
        %v1669 = vand.u32 %v1290, 4294901760
        %v1670 = vsub.f32 %v1290, %v1669
        %1671 = vmatmul.f32.gmra.mxu0 %v1670
        %v1672 = vpop.f32.mrf.mxu0
        %v1673 = vadd.f32 %v1634, %v1672
        %v1674 = vand.u32 %v1293, 4294901760
        %v1675 = vsub.f32 %v1293, %v1674
        %1676 = vmatmul.f32.gmra.mxu0 %v1675
        %v1677 = vpop.f32.mrf.mxu0
        %v1678 = vadd.f32 %v1638, %v1677
        %v1679 = vand.u32 %v1296, 4294901760
        %v1680 = vsub.f32 %v1296, %v1679
        %1681 = vmatmul.f32.gmra.mxu0 %v1680
        %v1682 = vpop.f32.mrf.mxu0
        %v1683 = vadd.f32 %v1642, %v1682
        %1684 = vdwg.mxu0
        %1685 = vmatpush.msra.mxu0 0.0
        %1686 = vmatpush.msra.mxu0 0.0
        %1687 = vmatpush.msra.mxu0 0.0
        %1688 = vmatpush.msra.mxu0 0.0
        %1689 = vmatpush.msra.mxu0 0.0
        %1690 = vmatpush.msra.mxu0 0.0
        %1691 = vmatpush.msra.mxu0 0.0
        %1692 = vmatpush.msra.mxu0 0.0
        %1693 = vmatpush.msra.mxu0 0.0
        %1694 = vmatpush.msra.mxu0 0.0
        %1695 = vmatpush.msra.mxu0 0.0
        %1696 = vmatpush.msra.mxu0 0.0
        %1697 = vmatpush.msra.mxu0 0.0
        %1698 = vmatpush.msra.mxu0 0.0
        %v1699 = vand.u32 %v882, 4294901760
        %1700 = vmatpush.msra.mxu0 %v1699
        %v1701 = vand.u32 %v880, 4294901760
        %1702 = vmatpush.msra.mxu0 %v1701
        %v1703 = vand.u32 %v1287, 4294901760
        %v1704 = vsub.f32 %v1287, %v1703
        %v1705 = vand.u32 %v1704, 4294901760
        %1706 = vmatmul.f32.gmra.mxu0 %v1705
        %v1707 = vpop.f32.mrf.mxu0
        %v1708 = vadd.f32 %v1668, %v1707
        %v1709 = vand.u32 %v1290, 4294901760
        %v1710 = vsub.f32 %v1290, %v1709
        %v1711 = vand.u32 %v1710, 4294901760
        %1712 = vmatmul.f32.gmra.mxu0 %v1711
        %v1713 = vpop.f32.mrf.mxu0
        %v1714 = vadd.f32 %v1673, %v1713
        %v1715 = vand.u32 %v1293, 4294901760
        %v1716 = vsub.f32 %v1293, %v1715
        %v1717 = vand.u32 %v1716, 4294901760
        %1718 = vmatmul.f32.gmra.mxu0 %v1717
        %v1719 = vpop.f32.mrf.mxu0
        %v1720 = vadd.f32 %v1678, %v1719
        %v1721 = vand.u32 %v1296, 4294901760
        %v1722 = vsub.f32 %v1296, %v1721
        %v1723 = vand.u32 %v1722, 4294901760
        %1724 = vmatmul.f32.gmra.mxu0 %v1723
        %v1725 = vpop.f32.mrf.mxu0
        %v1726 = vadd.f32 %v1683, %v1725
        %1727 = vdwg.mxu0
        %1728 = vmatpush.msra.mxu0 0.0
        %1729 = vmatpush.msra.mxu0 0.0
        %1730 = vmatpush.msra.mxu0 0.0
        %1731 = vmatpush.msra.mxu0 0.0
        %1732 = vmatpush.msra.mxu0 0.0
        %1733 = vmatpush.msra.mxu0 0.0
        %1734 = vmatpush.msra.mxu0 0.0
        %1735 = vmatpush.msra.mxu0 0.0
        %1736 = vmatpush.msra.mxu0 0.0
        %1737 = vmatpush.msra.mxu0 0.0
        %1738 = vmatpush.msra.mxu0 0.0
        %1739 = vmatpush.msra.mxu0 0.0
        %1740 = vmatpush.msra.mxu0 0.0
        %1741 = vmatpush.msra.mxu0 0.0
        %v1742 = vand.u32 %v882, 4294901760
        %v1743 = vsub.f32 %v882, %v1742
        %v1744 = vand.u32 %v1743, 4294901760
        %1745 = vmatpush.msra.mxu0 %v1744
        %v1746 = vand.u32 %v880, 4294901760
        %v1747 = vsub.f32 %v880, %v1746
        %v1748 = vand.u32 %v1747, 4294901760
        %1749 = vmatpush.msra.mxu0 %v1748
        %v1750 = vand.u32 %v1287, 4294901760
        %1751 = vmatmul.f32.gmra.mxu0 %v1750
        %v1752 = vpop.f32.mrf.mxu0
        %v1753 = vadd.f32 %v1708, %v1752
        %v1754 = vand.u32 %v1290, 4294901760
        %1755 = vmatmul.f32.gmra.mxu0 %v1754
        %v1756 = vpop.f32.mrf.mxu0
        %v1757 = vadd.f32 %v1714, %v1756
        %v1758 = vand.u32 %v1293, 4294901760
        %1759 = vmatmul.f32.gmra.mxu0 %v1758
        %v1760 = vpop.f32.mrf.mxu0
        %v1761 = vadd.f32 %v1720, %v1760
        %v1762 = vand.u32 %v1296, 4294901760
        %1763 = vmatmul.f32.gmra.mxu0 %v1762
        %v1764 = vpop.f32.mrf.mxu0
        %v1765 = vadd.f32 %v1726, %v1764
        %1766 = vdwg.mxu0
        %1767 = vmatpush.msra.mxu0 0.0
        %1768 = vmatpush.msra.mxu0 0.0
        %1769 = vmatpush.msra.mxu0 0.0
        %1770 = vmatpush.msra.mxu0 0.0
        %1771 = vmatpush.msra.mxu0 0.0
        %1772 = vmatpush.msra.mxu0 0.0
        %1773 = vmatpush.msra.mxu0 0.0
        %1774 = vmatpush.msra.mxu0 0.0
        %1775 = vmatpush.msra.mxu0 0.0
        %1776 = vmatpush.msra.mxu0 0.0
        %1777 = vmatpush.msra.mxu0 0.0
        %1778 = vmatpush.msra.mxu0 0.0
        %1779 = vmatpush.msra.mxu0 0.0
        %1780 = vmatpush.msra.mxu0 0.0
        %v1781 = vand.u32 %v882, 4294901760
        %1782 = vmatpush.msra.mxu0 %v1781
        %v1783 = vand.u32 %v880, 4294901760
        %1784 = vmatpush.msra.mxu0 %v1783
        %v1785 = vand.u32 %v1287, 4294901760
        %1786 = vmatmul.f32.gmra.mxu0 %v1785
        %v1787 = vpop.f32.mrf.mxu0
        %v1788 = vadd.f32 %v1753, %v1787
        %v1789 = vand.u32 %v1290, 4294901760
        %1790 = vmatmul.f32.gmra.mxu0 %v1789
        %v1791 = vpop.f32.mrf.mxu0
        %v1792 = vadd.f32 %v1757, %v1791
        %v1793 = vand.u32 %v1293, 4294901760
        %1794 = vmatmul.f32.gmra.mxu0 %v1793
        %v1795 = vpop.f32.mrf.mxu0
        %v1796 = vadd.f32 %v1761, %v1795
        %v1797 = vand.u32 %v1296, 4294901760
        %1798 = vmatmul.f32.gmra.mxu0 %v1797
        %v1799 = vpop.f32.mrf.mxu0
        %v1800 = vadd.f32 %v1765, %v1799
        %1801 = vdwg.mxu0
        %v1802 = vpack.c.bf16 %v1788, %v1536
        %v1803 = vpack.c.bf16 %v1792, %v1540
        %v1804 = vpack.c.bf16 %v1796, %v1544
        %v1805 = vpack.c.bf16 %v1800, %v1548
        %v1806 = vunpack.c.l.bf16 %v1802
        %v1807 = vunpack.c.h.bf16 %v1802
        %v1808 = vunpack.c.l.bf16 %v1803
        %v1809 = vunpack.c.h.bf16 %v1803
        %v1810 = vunpack.c.l.bf16 %v1804
        %v1811 = vunpack.c.h.bf16 %v1804
        %v1812 = vunpack.c.l.bf16 %v1805
        %v1813 = vunpack.c.h.bf16 %v1805
        %v1814 = vsub.f32 %v1536, %v1806
        %v1815 = vsub.f32 %v1788, %v1807
        %v1816 = vsub.f32 %v1540, %v1808
        %v1817 = vsub.f32 %v1792, %v1809
        %v1818 = vsub.f32 %v1544, %v1810
        %v1819 = vsub.f32 %v1796, %v1811
        %v1820 = vsub.f32 %v1548, %v1812
        %v1821 = vsub.f32 %v1800, %v1813
        %v1822 = vpack.c.bf16 %v1816, %v1814
        %v1823 = vpack.c.bf16 %v1817, %v1815
        %v1824 = vpack.c.bf16 %v1820, %v1818
        %v1825 = vpack.c.bf16 %v1821, %v1819
        %v1838 = vunpack.c.l.b16 %v884
        %v1839 = vunpack.c.l.b16 %v885
        %v1840 = vunpack.c.l.b16 %v886
        %v1841 = vunpack.c.l.b16 %v887
        %v1842 = vunpack.c.l.b16 %v888
        %v1843 = vunpack.c.l.b16 %v889
        %v1844 = vunpack.c.l.b16 %v890
        %v1845 = vunpack.c.l.b16 %v891
        %v1846 = vunpack.c.l.b16 %v892
        %v1847 = vunpack.c.l.b16 %v893
        %v1848 = vunpack.c.l.b16 %v894
        %v1849 = vunpack.c.l.b16 %v895
        %v1850 = vpack.c.b16 %v1839, %v1838
        %v1851 = vpack.c.b16 %v1841, %v1840
        %v1852 = vpack.c.b16 %v1843, %v1842
        %v1853 = vpack.c.b16 %v1845, %v1844
        %v1854 = vpack.c.b16 %v1847, %v1846
        %v1855 = vpack.c.b16 %v1849, %v1848
        %vm1856 = vcmask 261120
        %v1858 = vsel %vm1856, %v1850, 0
        %v1861 = vsel %vm1856, %v1851, 0
        %v1864 = vsel %vm1856, %v1852, 0
        %v1867 = vsel %vm1856, %v1853, 0
        %v1870 = vsel %vm1856, %v1854, 0
        %v1873 = vsel %vm1856, %v1855, 0
        %1875 = vmatpush.bf16.msra.mxu0 0
        %1876 = vmatpush.bf16.msra.mxu0 0
        %1877 = vmatpush.bf16.msra.mxu0 0
        %1878 = vmatpush.bf16.msra.mxu0 0
        %1879 = vmatpush.bf16.msra.mxu0 0
        %1880 = vmatpush.bf16.msra.mxu0 0
        %1881 = vmatpush.bf16.msra.mxu0 %v1824
        %1882 = vmatpush.bf16.msra.mxu0 %v1822
        %1883 = vmatmul.bf16.gmra.mxu0 %v1858
        %v1884 = vpop.f32.mrf.mxu0
        %v1885 = vadd.f32 0.0, %v1884
        %v1886 = vpop.f32.mrf.mxu0
        %v1887 = vadd.f32 0.0, %v1886
        %1888 = vmatmul.bf16.gmra.mxu0 %v1861
        %v1889 = vpop.f32.mrf.mxu0
        %v1890 = vadd.f32 0.0, %v1889
        %v1891 = vpop.f32.mrf.mxu0
        %v1892 = vadd.f32 0.0, %v1891
        %1893 = vmatmul.bf16.gmra.mxu0 %v1864
        %v1894 = vpop.f32.mrf.mxu0
        %v1895 = vadd.f32 0.0, %v1894
        %v1896 = vpop.f32.mrf.mxu0
        %v1897 = vadd.f32 0.0, %v1896
        %1898 = vmatmul.bf16.gmra.mxu0 %v1867
        %v1899 = vpop.f32.mrf.mxu0
        %v1900 = vadd.f32 0.0, %v1899
        %v1901 = vpop.f32.mrf.mxu0
        %v1902 = vadd.f32 0.0, %v1901
        %1903 = vmatmul.bf16.gmra.mxu0 %v1870
        %v1904 = vpop.f32.mrf.mxu0
        %v1905 = vadd.f32 0.0, %v1904
        %v1906 = vpop.f32.mrf.mxu0
        %v1907 = vadd.f32 0.0, %v1906
        %1908 = vmatmul.bf16.gmra.mxu0 %v1873
        %v1909 = vpop.f32.mrf.mxu0
        %v1910 = vadd.f32 0.0, %v1909
        %v1911 = vpop.f32.mrf.mxu0
        %v1912 = vadd.f32 0.0, %v1911
        %1913 = vdwg.mxu0
        %1914 = vmatpush.bf16.msra.mxu0 0
        %1915 = vmatpush.bf16.msra.mxu0 0
        %1916 = vmatpush.bf16.msra.mxu0 0
        %1917 = vmatpush.bf16.msra.mxu0 0
        %1918 = vmatpush.bf16.msra.mxu0 0
        %1919 = vmatpush.bf16.msra.mxu0 0
        %1920 = vmatpush.bf16.msra.mxu0 %v1825
        %1921 = vmatpush.bf16.msra.mxu0 %v1823
        %1922 = vmatmul.bf16.gmra.mxu0 %v1858
        %v1923 = vpop.f32.mrf.mxu0
        %v1924 = vadd.f32 0.0, %v1923
        %v1925 = vpop.f32.mrf.mxu0
        %v1926 = vadd.f32 0.0, %v1925
        %1927 = vmatmul.bf16.gmra.mxu0 %v1861
        %v1928 = vpop.f32.mrf.mxu0
        %v1929 = vadd.f32 0.0, %v1928
        %v1930 = vpop.f32.mrf.mxu0
        %v1931 = vadd.f32 0.0, %v1930
        %1932 = vmatmul.bf16.gmra.mxu0 %v1864
        %v1933 = vpop.f32.mrf.mxu0
        %v1934 = vadd.f32 0.0, %v1933
        %v1935 = vpop.f32.mrf.mxu0
        %v1936 = vadd.f32 0.0, %v1935
        %1937 = vmatmul.bf16.gmra.mxu0 %v1867
        %v1938 = vpop.f32.mrf.mxu0
        %v1939 = vadd.f32 0.0, %v1938
        %v1940 = vpop.f32.mrf.mxu0
        %v1941 = vadd.f32 0.0, %v1940
        %1942 = vmatmul.bf16.gmra.mxu0 %v1870
        %v1943 = vpop.f32.mrf.mxu0
        %v1944 = vadd.f32 0.0, %v1943
        %v1945 = vpop.f32.mrf.mxu0
        %v1946 = vadd.f32 0.0, %v1945
        %1947 = vmatmul.bf16.gmra.mxu0 %v1873
        %v1948 = vpop.f32.mrf.mxu0
        %v1949 = vadd.f32 0.0, %v1948
        %v1950 = vpop.f32.mrf.mxu0
        %v1951 = vadd.f32 0.0, %v1950
        %1952 = vdwg.mxu0
        %v1957 = vunpack.c.l.b16 %v1802
        %v1958 = vunpack.c.h.b16 %v1802
        %v1959 = vunpack.c.l.b16 %v1803
        %v1960 = vunpack.c.h.b16 %v1803
        %v1961 = vunpack.c.l.b16 %v1804
        %v1962 = vunpack.c.h.b16 %v1804
        %v1963 = vunpack.c.l.b16 %v1805
        %v1964 = vunpack.c.h.b16 %v1805
        %v1965 = vpack.c.b16 %v1959, %v1957
        %v1966 = vpack.c.b16 %v1960, %v1958
        %v1967 = vpack.c.b16 %v1963, %v1961
        %v1968 = vpack.c.b16 %v1964, %v1962
        %1973 = vmatpush.bf16.msra.mxu0 0
        %1974 = vmatpush.bf16.msra.mxu0 0
        %1975 = vmatpush.bf16.msra.mxu0 0
        %1976 = vmatpush.bf16.msra.mxu0 0
        %1977 = vmatpush.bf16.msra.mxu0 0
        %1978 = vmatpush.bf16.msra.mxu0 0
        %1979 = vmatpush.bf16.msra.mxu0 %v1967
        %1980 = vmatpush.bf16.msra.mxu0 %v1965
        %1981 = vmatmul.bf16.gmra.mxu0 %v1858
        %v1982 = vpop.f32.mrf.mxu0
        %v1983 = vadd.f32 %v1885, %v1982
        %v1984 = vpop.f32.mrf.mxu0
        %v1985 = vadd.f32 %v1887, %v1984
        %1986 = vmatmul.bf16.gmra.mxu0 %v1861
        %v1987 = vpop.f32.mrf.mxu0
        %v1988 = vadd.f32 %v1890, %v1987
        %v1989 = vpop.f32.mrf.mxu0
        %v1990 = vadd.f32 %v1892, %v1989
        %1991 = vmatmul.bf16.gmra.mxu0 %v1864
        %v1992 = vpop.f32.mrf.mxu0
        %v1993 = vadd.f32 %v1895, %v1992
        %v1994 = vpop.f32.mrf.mxu0
        %v1995 = vadd.f32 %v1897, %v1994
        %1996 = vmatmul.bf16.gmra.mxu0 %v1867
        %v1997 = vpop.f32.mrf.mxu0
        %v1998 = vadd.f32 %v1900, %v1997
        %v1999 = vpop.f32.mrf.mxu0
        %v2000 = vadd.f32 %v1902, %v1999
        %2001 = vmatmul.bf16.gmra.mxu0 %v1870
        %v2002 = vpop.f32.mrf.mxu0
        %v2003 = vadd.f32 %v1905, %v2002
        %v2004 = vpop.f32.mrf.mxu0
        %v2005 = vadd.f32 %v1907, %v2004
        %2006 = vmatmul.bf16.gmra.mxu0 %v1873
        %v2007 = vpop.f32.mrf.mxu0
        %v2008 = vadd.f32 %v1910, %v2007
        %v2009 = vpop.f32.mrf.mxu0
        %v2010 = vadd.f32 %v1912, %v2009
        %2011 = vdwg.mxu0
        %2012 = vmatpush.bf16.msra.mxu0 0
        %2013 = vmatpush.bf16.msra.mxu0 0
        %2014 = vmatpush.bf16.msra.mxu0 0
        %2015 = vmatpush.bf16.msra.mxu0 0
        %2016 = vmatpush.bf16.msra.mxu0 0
        %2017 = vmatpush.bf16.msra.mxu0 0
        %2018 = vmatpush.bf16.msra.mxu0 %v1968
        %2019 = vmatpush.bf16.msra.mxu0 %v1966
        %2020 = vmatmul.bf16.gmra.mxu0 %v1858
        %v2021 = vpop.f32.mrf.mxu0
        %v2022 = vadd.f32 %v1924, %v2021
        %v2023 = vpop.f32.mrf.mxu0
        %v2024 = vadd.f32 %v1926, %v2023
        %2025 = vmatmul.bf16.gmra.mxu0 %v1861
        %v2026 = vpop.f32.mrf.mxu0
        %v2027 = vadd.f32 %v1929, %v2026
        %v2028 = vpop.f32.mrf.mxu0
        %v2029 = vadd.f32 %v1931, %v2028
        %2030 = vmatmul.bf16.gmra.mxu0 %v1864
        %v2031 = vpop.f32.mrf.mxu0
        %v2032 = vadd.f32 %v1934, %v2031
        %v2033 = vpop.f32.mrf.mxu0
        %v2034 = vadd.f32 %v1936, %v2033
        %2035 = vmatmul.bf16.gmra.mxu0 %v1867
        %v2036 = vpop.f32.mrf.mxu0
        %v2037 = vadd.f32 %v1939, %v2036
        %v2038 = vpop.f32.mrf.mxu0
        %v2039 = vadd.f32 %v1941, %v2038
        %2040 = vmatmul.bf16.gmra.mxu0 %v1870
        %v2041 = vpop.f32.mrf.mxu0
        %v2042 = vadd.f32 %v1944, %v2041
        %v2043 = vpop.f32.mrf.mxu0
        %v2044 = vadd.f32 %v1946, %v2043
        %2045 = vmatmul.bf16.gmra.mxu0 %v1873
        %v2046 = vpop.f32.mrf.mxu0
        %v2047 = vadd.f32 %v1949, %v2046
        %v2048 = vpop.f32.mrf.mxu0
        %v2049 = vadd.f32 %v1951, %v2048
        %2050 = vdwg.mxu0
        %v2051 = vld [vmem:[#allocation8] sm:$0xff]
        %v2052 = vld [vmem:[#allocation8 + $0x8] sm:$0xff]
        %v2053 = vld [vmem:[#allocation8 + $0x10] sm:$0xff]
        %v2054 = vld [vmem:[#allocation8 + $0x18] sm:$0xff]
        %v2055 = vld [vmem:[#allocation8 + $0x20] sm:$0xff]
        %v2056 = vld [vmem:[#allocation8 + $0x28] sm:$0xff]
        %v2057 = vld [vmem:[#allocation8 + $0x30] sm:$0xff]
        %v2058 = vld [vmem:[#allocation8 + $0x38] sm:$0xff]
        %v2059 = vld [vmem:[#allocation8 + $0x40] sm:$0xff]
        %v2060 = vld [vmem:[#allocation8 + $0x48] sm:$0xff]
        %v2061 = vld [vmem:[#allocation8 + $0x50] sm:$0xff]
        %v2062 = vld [vmem:[#allocation8 + $0x58] sm:$0xff]
        %v2063 = vld [vmem:[#allocation8 + $0x60] sm:$0xff]
        %v2064 = vld [vmem:[#allocation8 + $0x68] sm:$0xff]
        %v2065 = vld [vmem:[#allocation8 + $0x70] sm:$0xff]
        %v2066 = vld [vmem:[#allocation8 + $0x78] sm:$0xff]
        %v2067 = vld [vmem:[#allocation8 + $0x80] sm:$0xff]
        %v2068 = vld [vmem:[#allocation8 + $0x88] sm:$0xff]
        %v2069 = vld [vmem:[#allocation8 + $0x90] sm:$0xff]
        %v2070 = vld [vmem:[#allocation8 + $0x98] sm:$0xff]
        %v2071 = vld [vmem:[#allocation8 + $0xa0] sm:$0xff]
        %v2072 = vld [vmem:[#allocation8 + $0xa8] sm:$0xff]
        %v2073 = vld [vmem:[#allocation8 + $0xb0] sm:$0xff]
        %v2074 = vld [vmem:[#allocation8 + $0xb8] sm:$0xff]
        %v2075 = vmul.f32 %v1983, %v2051
        %v2076 = vmul.f32 %v2022, %v2052
        %v2077 = vmul.f32 %v1985, %v2053
        %v2078 = vmul.f32 %v2024, %v2054
        %v2079 = vmul.f32 %v1988, %v2055
        %v2080 = vmul.f32 %v2027, %v2056
        %v2081 = vmul.f32 %v1990, %v2057
        %v2082 = vmul.f32 %v2029, %v2058
        %v2083 = vmul.f32 %v1993, %v2059
        %v2084 = vmul.f32 %v2032, %v2060
        %v2085 = vmul.f32 %v1995, %v2061
        %v2086 = vmul.f32 %v2034, %v2062
        %v2087 = vmul.f32 %v1998, %v2063
        %v2088 = vmul.f32 %v2037, %v2064
        %v2089 = vmul.f32 %v2000, %v2065
        %v2090 = vmul.f32 %v2039, %v2066
        %v2091 = vmul.f32 %v2003, %v2067
        %v2092 = vmul.f32 %v2042, %v2068
        %v2093 = vmul.f32 %v2005, %v2069
        %v2094 = vmul.f32 %v2044, %v2070
        %v2095 = vmul.f32 %v2008, %v2071
        %v2096 = vmul.f32 %v2047, %v2072
        %v2097 = vmul.f32 %v2010, %v2073
        %v2098 = vmul.f32 %v2049, %v2074
        %v2099 = vpack.c.bf16 %v2076, %v2075
        %v2100 = vpack.c.bf16 %v2078, %v2077
        %v2101 = vpack.c.bf16 %v2080, %v2079
        %v2102 = vpack.c.bf16 %v2082, %v2081
        %v2103 = vpack.c.bf16 %v2084, %v2083
        %v2104 = vpack.c.bf16 %v2086, %v2085
        %v2105 = vpack.c.bf16 %v2088, %v2087
        %v2106 = vpack.c.bf16 %v2090, %v2089
        %v2107 = vpack.c.bf16 %v2092, %v2091
        %v2108 = vpack.c.bf16 %v2094, %v2093
        %v2109 = vpack.c.bf16 %v2096, %v2095
        %v2110 = vpack.c.bf16 %v2098, %v2097
        %v2111 = vunpack.c.l.bf16 %v2099
        %v2112 = vunpack.c.h.bf16 %v2099
        %v2113 = vunpack.c.l.bf16 %v2100
        %v2114 = vunpack.c.h.bf16 %v2100
        %v2115 = vunpack.c.l.bf16 %v2101
        %v2116 = vunpack.c.h.bf16 %v2101
        %v2117 = vunpack.c.l.bf16 %v2102
        %v2118 = vunpack.c.h.bf16 %v2102
        %v2119 = vunpack.c.l.bf16 %v2103
        %v2120 = vunpack.c.h.bf16 %v2103
        %v2121 = vunpack.c.l.bf16 %v2104
        %v2122 = vunpack.c.h.bf16 %v2104
        %v2123 = vunpack.c.l.bf16 %v2105
        %v2124 = vunpack.c.h.bf16 %v2105
        %v2125 = vunpack.c.l.bf16 %v2106
        %v2126 = vunpack.c.h.bf16 %v2106
        %v2127 = vunpack.c.l.bf16 %v2107
        %v2128 = vunpack.c.h.bf16 %v2107
        %v2129 = vunpack.c.l.bf16 %v2108
        %v2130 = vunpack.c.h.bf16 %v2108
        %v2131 = vunpack.c.l.bf16 %v2109
        %v2132 = vunpack.c.h.bf16 %v2109
        %v2133 = vunpack.c.l.bf16 %v2110
        %v2134 = vunpack.c.h.bf16 %v2110
        %v2135 = vsub.f32 %v2075, %v2111
        %v2136 = vsub.f32 %v2076, %v2112
        %v2137 = vsub.f32 %v2077, %v2113
        %v2138 = vsub.f32 %v2078, %v2114
        %v2139 = vsub.f32 %v2079, %v2115
        %v2140 = vsub.f32 %v2080, %v2116
        %v2141 = vsub.f32 %v2081, %v2117
        %v2142 = vsub.f32 %v2082, %v2118
        %v2143 = vsub.f32 %v2083, %v2119
        %v2144 = vsub.f32 %v2084, %v2120
        %v2145 = vsub.f32 %v2085, %v2121
        %v2146 = vsub.f32 %v2086, %v2122
        %v2147 = vsub.f32 %v2087, %v2123
        %v2148 = vsub.f32 %v2088, %v2124
        %v2149 = vsub.f32 %v2089, %v2125
        %v2150 = vsub.f32 %v2090, %v2126
        %v2151 = vsub.f32 %v2091, %v2127
        %v2152 = vsub.f32 %v2092, %v2128
        %v2153 = vsub.f32 %v2093, %v2129
        %v2154 = vsub.f32 %v2094, %v2130
        %v2155 = vsub.f32 %v2095, %v2131
        %v2156 = vsub.f32 %v2096, %v2132
        %v2157 = vsub.f32 %v2097, %v2133
        %v2158 = vsub.f32 %v2098, %v2134
        %v2159 = vpack.c.bf16 %v2137, %v2135
        %v2160 = vpack.c.bf16 %v2138, %v2136
        %v2161 = vpack.c.bf16 %v2141, %v2139
        %v2162 = vpack.c.bf16 %v2142, %v2140
        %v2163 = vpack.c.bf16 %v2145, %v2143
        %v2164 = vpack.c.bf16 %v2146, %v2144
        %v2165 = vpack.c.bf16 %v2149, %v2147
        %v2166 = vpack.c.bf16 %v2150, %v2148
        %v2167 = vpack.c.bf16 %v2153, %v2151
        %v2168 = vpack.c.bf16 %v2154, %v2152
        %v2169 = vpack.c.bf16 %v2157, %v2155
        %v2170 = vpack.c.bf16 %v2158, %v2156
        %v2203 = vunpack.c.l.b16 %v1226
        %v2204 = vunpack.c.h.b16 %v1226
        %v2205 = vunpack.c.l.b16 %v1227
        %v2206 = vunpack.c.h.b16 %v1227
        %v2207 = vunpack.c.l.b16 %v1228
        %v2208 = vunpack.c.h.b16 %v1228
        %v2209 = vunpack.c.l.b16 %v1229
        %v2210 = vunpack.c.h.b16 %v1229
        %v2211 = vunpack.c.l.b16 %v1230
        %v2212 = vunpack.c.h.b16 %v1230
        %v2213 = vunpack.c.l.b16 %v1231
        %v2214 = vunpack.c.h.b16 %v1231
        %v2215 = vunpack.c.l.b16 %v1232
        %v2216 = vunpack.c.h.b16 %v1232
        %v2217 = vunpack.c.l.b16 %v1233
        %v2218 = vunpack.c.h.b16 %v1233
        %v2219 = vunpack.c.l.b16 %v1234
        %v2220 = vunpack.c.h.b16 %v1234
        %v2221 = vunpack.c.l.b16 %v1235
        %v2222 = vunpack.c.h.b16 %v1235
        %v2223 = vunpack.c.l.b16 %v1236
        %v2224 = vunpack.c.h.b16 %v1236
        %v2225 = vunpack.c.l.b16 %v1237
        %v2226 = vunpack.c.h.b16 %v1237
        %v2227 = vunpack.c.l.b16 %v1238
        %v2228 = vunpack.c.h.b16 %v1238
        %v2229 = vunpack.c.l.b16 %v1239
        %v2230 = vunpack.c.h.b16 %v1239
        %v2231 = vunpack.c.l.b16 %v1240
        %v2232 = vunpack.c.h.b16 %v1240
        %v2233 = vunpack.c.l.b16 %v1241
        %v2234 = vunpack.c.h.b16 %v1241
        %v2235 = vunpack.c.l.b16 %v1242
        %v2236 = vunpack.c.h.b16 %v1242
        %v2237 = vunpack.c.l.b16 %v1243
        %v2238 = vunpack.c.h.b16 %v1243
        %v2239 = vunpack.c.l.b16 %v1244
        %v2240 = vunpack.c.h.b16 %v1244
        %v2241 = vunpack.c.l.b16 %v1245
        %v2242 = vunpack.c.h.b16 %v1245
        %v2243 = vunpack.c.l.b16 %v1246
        %v2244 = vunpack.c.h.b16 %v1246
        %v2245 = vunpack.c.l.b16 %v1247
        %v2246 = vunpack.c.h.b16 %v1247
        %v2247 = vunpack.c.l.b16 %v1248
        %v2248 = vunpack.c.h.b16 %v1248
        %v2249 = vunpack.c.l.b16 %v1249
        %v2250 = vunpack.c.h.b16 %v1249
        %v2251 = vunpack.c.l.b16 %v1250
        %v2252 = vunpack.c.h.b16 %v1250
        %v2253 = vunpack.c.l.b16 %v1251
        %v2254 = vunpack.c.h.b16 %v1251
        %v2255 = vunpack.c.l.b16 %v1252
        %v2256 = vunpack.c.h.b16 %v1252
        %v2257 = vunpack.c.l.b16 %v1253
        %v2258 = vunpack.c.h.b16 %v1253
        %v2259 = vunpack.c.l.b16 %v1254
        %v2260 = vunpack.c.h.b16 %v1254
        %v2261 = vunpack.c.l.b16 %v1255
        %v2262 = vunpack.c.h.b16 %v1255
        %v2263 = vunpack.c.l.b16 %v1256
        %v2264 = vunpack.c.h.b16 %v1256
        %v2265 = vunpack.c.l.b16 %v1257
        %v2266 = vunpack.c.h.b16 %v1257
        %v2267 = vpack.c.b16 %v2205, %v2203
        %v2268 = vpack.c.b16 %v2206, %v2204
        %v2269 = vpack.c.b16 %v2209, %v2207
        %v2270 = vpack.c.b16 %v2210, %v2208
        %v2271 = vpack.c.b16 %v2213, %v2211
        %v2272 = vpack.c.b16 %v2214, %v2212
        %v2273 = vpack.c.b16 %v2217, %v2215
        %v2274 = vpack.c.b16 %v2218, %v2216
        %v2275 = vpack.c.b16 %v2221, %v2219
        %v2276 = vpack.c.b16 %v2222, %v2220
        %v2277 = vpack.c.b16 %v2225, %v2223
        %v2278 = vpack.c.b16 %v2226, %v2224
        %v2279 = vpack.c.b16 %v2229, %v2227
        %v2280 = vpack.c.b16 %v2230, %v2228
        %v2281 = vpack.c.b16 %v2233, %v2231
        %v2282 = vpack.c.b16 %v2234, %v2232
        %v2283 = vpack.c.b16 %v2237, %v2235
        %v2284 = vpack.c.b16 %v2238, %v2236
        %v2285 = vpack.c.b16 %v2241, %v2239
        %v2286 = vpack.c.b16 %v2242, %v2240
        %v2287 = vpack.c.b16 %v2245, %v2243
        %v2288 = vpack.c.b16 %v2246, %v2244
        %v2289 = vpack.c.b16 %v2249, %v2247
        %v2290 = vpack.c.b16 %v2250, %v2248
        %v2291 = vpack.c.b16 %v2253, %v2251
        %v2292 = vpack.c.b16 %v2254, %v2252
        %v2293 = vpack.c.b16 %v2257, %v2255
        %v2294 = vpack.c.b16 %v2258, %v2256
        %v2295 = vpack.c.b16 %v2261, %v2259
        %v2296 = vpack.c.b16 %v2262, %v2260
        %v2297 = vpack.c.b16 %v2265, %v2263
        %v2298 = vpack.c.b16 %v2266, %v2264
        %2331 = vmatpush.bf16.msra.mxu0 %v2281
        %2332 = vmatpush.bf16.msra.mxu0 %v2279
        %2333 = vmatpush.bf16.msra.mxu0 %v2277
        %2334 = vmatpush.bf16.msra.mxu0 %v2275
        %2335 = vmatpush.bf16.msra.mxu0 %v2273
        %2336 = vmatpush.bf16.msra.mxu0 %v2271
        %2337 = vmatpush.bf16.msra.mxu0 %v2269
        %2338 = vmatpush.bf16.msra.mxu0 %v2267
        %2339 = vmatmul.bf16.gmra.mxu0 %v2159
        %v2340 = vpop.f32.mrf.mxu0
        %v2341 = vadd.f32 0.0, %v2340
        %v2342 = vpop.f32.mrf.mxu0
        %v2343 = vadd.f32 0.0, %v2342
        %2344 = vmatmul.bf16.gmra.mxu0 %v2161
        %v2345 = vpop.f32.mrf.mxu0
        %v2346 = vadd.f32 0.0, %v2345
        %v2347 = vpop.f32.mrf.mxu0
        %v2348 = vadd.f32 0.0, %v2347
        %2349 = vmatmul.bf16.gmra.mxu0 %v2163
        %v2350 = vpop.f32.mrf.mxu0
        %v2351 = vadd.f32 0.0, %v2350
        %v2352 = vpop.f32.mrf.mxu0
        %v2353 = vadd.f32 0.0, %v2352
        %2354 = vmatmul.bf16.gmra.mxu0 %v2165
        %v2355 = vpop.f32.mrf.mxu0
        %v2356 = vadd.f32 0.0, %v2355
        %v2357 = vpop.f32.mrf.mxu0
        %v2358 = vadd.f32 0.0, %v2357
        %2359 = vmatmul.bf16.gmra.mxu0 %v2167
        %v2360 = vpop.f32.mrf.mxu0
        %v2361 = vadd.f32 0.0, %v2360
        %v2362 = vpop.f32.mrf.mxu0
        %v2363 = vadd.f32 0.0, %v2362
        %2364 = vmatmul.bf16.gmra.mxu0 %v2169
        %v2365 = vpop.f32.mrf.mxu0
        %v2366 = vadd.f32 0.0, %v2365
        %v2367 = vpop.f32.mrf.mxu0
        %v2368 = vadd.f32 0.0, %v2367
        %2369 = vdwg.mxu0
        %2370 = vmatpush.bf16.msra.mxu0 %v2297
        %2371 = vmatpush.bf16.msra.mxu0 %v2295
        %2372 = vmatpush.bf16.msra.mxu0 %v2293
        %2373 = vmatpush.bf16.msra.mxu0 %v2291
        %2374 = vmatpush.bf16.msra.mxu0 %v2289
        %2375 = vmatpush.bf16.msra.mxu0 %v2287
        %2376 = vmatpush.bf16.msra.mxu0 %v2285
        %2377 = vmatpush.bf16.msra.mxu0 %v2283
        %2378 = vmatmul.bf16.gmra.mxu0 %v2160
        %v2379 = vpop.f32.mrf.mxu0
        %v2380 = vadd.f32 %v2341, %v2379
        %v2381 = vpop.f32.mrf.mxu0
        %v2382 = vadd.f32 %v2343, %v2381
        %2383 = vmatmul.bf16.gmra.mxu0 %v2162
        %v2384 = vpop.f32.mrf.mxu0
        %v2385 = vadd.f32 %v2346, %v2384
        %v2386 = vpop.f32.mrf.mxu0
        %v2387 = vadd.f32 %v2348, %v2386
        %2388 = vmatmul.bf16.gmra.mxu0 %v2164
        %v2389 = vpop.f32.mrf.mxu0
        %v2390 = vadd.f32 %v2351, %v2389
        %v2391 = vpop.f32.mrf.mxu0
        %v2392 = vadd.f32 %v2353, %v2391
        %2393 = vmatmul.bf16.gmra.mxu0 %v2166
        %v2394 = vpop.f32.mrf.mxu0
        %v2395 = vadd.f32 %v2356, %v2394
        %v2396 = vpop.f32.mrf.mxu0
        %v2397 = vadd.f32 %v2358, %v2396
        %2398 = vmatmul.bf16.gmra.mxu0 %v2168
        %v2399 = vpop.f32.mrf.mxu0
        %v2400 = vadd.f32 %v2361, %v2399
        %v2401 = vpop.f32.mrf.mxu0
        %v2402 = vadd.f32 %v2363, %v2401
        %2403 = vmatmul.bf16.gmra.mxu0 %v2170
        %v2404 = vpop.f32.mrf.mxu0
        %v2405 = vadd.f32 %v2366, %v2404
        %v2406 = vpop.f32.mrf.mxu0
        %v2407 = vadd.f32 %v2368, %v2406
        %2408 = vdwg.mxu0
        %2409 = vmatpush.bf16.msra.mxu0 %v2282
        %2410 = vmatpush.bf16.msra.mxu0 %v2280
        %2411 = vmatpush.bf16.msra.mxu0 %v2278
        %2412 = vmatpush.bf16.msra.mxu0 %v2276
        %2413 = vmatpush.bf16.msra.mxu0 %v2274
        %2414 = vmatpush.bf16.msra.mxu0 %v2272
        %2415 = vmatpush.bf16.msra.mxu0 %v2270
        %2416 = vmatpush.bf16.msra.mxu0 %v2268
        %2417 = vmatmul.bf16.gmra.mxu0 %v2159
        %v2418 = vpop.f32.mrf.mxu0
        %v2419 = vadd.f32 0.0, %v2418
        %v2420 = vpop.f32.mrf.mxu0
        %v2421 = vadd.f32 0.0, %v2420
        %2422 = vmatmul.bf16.gmra.mxu0 %v2161
        %v2423 = vpop.f32.mrf.mxu0
        %v2424 = vadd.f32 0.0, %v2423
        %v2425 = vpop.f32.mrf.mxu0
        %v2426 = vadd.f32 0.0, %v2425
        %2427 = vmatmul.bf16.gmra.mxu0 %v2163
        %v2428 = vpop.f32.mrf.mxu0
        %v2429 = vadd.f32 0.0, %v2428
        %v2430 = vpop.f32.mrf.mxu0
        %v2431 = vadd.f32 0.0, %v2430
        %2432 = vmatmul.bf16.gmra.mxu0 %v2165
        %v2433 = vpop.f32.mrf.mxu0
        %v2434 = vadd.f32 0.0, %v2433
        %v2435 = vpop.f32.mrf.mxu0
        %v2436 = vadd.f32 0.0, %v2435
        %2437 = vmatmul.bf16.gmra.mxu0 %v2167
        %v2438 = vpop.f32.mrf.mxu0
        %v2439 = vadd.f32 0.0, %v2438
        %v2440 = vpop.f32.mrf.mxu0
        %v2441 = vadd.f32 0.0, %v2440
        %2442 = vmatmul.bf16.gmra.mxu0 %v2169
        %v2443 = vpop.f32.mrf.mxu0
        %v2444 = vadd.f32 0.0, %v2443
        %v2445 = vpop.f32.mrf.mxu0
        %v2446 = vadd.f32 0.0, %v2445
        %2447 = vdwg.mxu0
        %2448 = vmatpush.bf16.msra.mxu0 %v2298
        %2449 = vmatpush.bf16.msra.mxu0 %v2296
        %2450 = vmatpush.bf16.msra.mxu0 %v2294
        %2451 = vmatpush.bf16.msra.mxu0 %v2292
        %2452 = vmatpush.bf16.msra.mxu0 %v2290
        %2453 = vmatpush.bf16.msra.mxu0 %v2288
        %2454 = vmatpush.bf16.msra.mxu0 %v2286
        %2455 = vmatpush.bf16.msra.mxu0 %v2284
        %2456 = vmatmul.bf16.gmra.mxu0 %v2160
        %v2457 = vpop.f32.mrf.mxu0
        %v2458 = vadd.f32 %v2419, %v2457
        %v2459 = vpop.f32.mrf.mxu0
        %v2460 = vadd.f32 %v2421, %v2459
        %2461 = vmatmul.bf16.gmra.mxu0 %v2162
        %v2462 = vpop.f32.mrf.mxu0
        %v2463 = vadd.f32 %v2424, %v2462
        %v2464 = vpop.f32.mrf.mxu0
        %v2465 = vadd.f32 %v2426, %v2464
        %2466 = vmatmul.bf16.gmra.mxu0 %v2164
        %v2467 = vpop.f32.mrf.mxu0
        %v2468 = vadd.f32 %v2429, %v2467
        %v2469 = vpop.f32.mrf.mxu0
        %v2470 = vadd.f32 %v2431, %v2469
        %2471 = vmatmul.bf16.gmra.mxu0 %v2166
        %v2472 = vpop.f32.mrf.mxu0
        %v2473 = vadd.f32 %v2434, %v2472
        %v2474 = vpop.f32.mrf.mxu0
        %v2475 = vadd.f32 %v2436, %v2474
        %2476 = vmatmul.bf16.gmra.mxu0 %v2168
        %v2477 = vpop.f32.mrf.mxu0
        %v2478 = vadd.f32 %v2439, %v2477
        %v2479 = vpop.f32.mrf.mxu0
        %v2480 = vadd.f32 %v2441, %v2479
        %2481 = vmatmul.bf16.gmra.mxu0 %v2170
        %v2482 = vpop.f32.mrf.mxu0
        %v2483 = vadd.f32 %v2444, %v2482
        %v2484 = vpop.f32.mrf.mxu0
        %v2485 = vadd.f32 %v2446, %v2484
        %2486 = vdwg.mxu0
        %v2499 = vunpack.c.l.b16 %v2099
        %v2500 = vunpack.c.h.b16 %v2099
        %v2501 = vunpack.c.l.b16 %v2100
        %v2502 = vunpack.c.h.b16 %v2100
        %v2503 = vunpack.c.l.b16 %v2101
        %v2504 = vunpack.c.h.b16 %v2101
        %v2505 = vunpack.c.l.b16 %v2102
        %v2506 = vunpack.c.h.b16 %v2102
        %v2507 = vunpack.c.l.b16 %v2103
        %v2508 = vunpack.c.h.b16 %v2103
        %v2509 = vunpack.c.l.b16 %v2104
        %v2510 = vunpack.c.h.b16 %v2104
        %v2511 = vunpack.c.l.b16 %v2105
        %v2512 = vunpack.c.h.b16 %v2105
        %v2513 = vunpack.c.l.b16 %v2106
        %v2514 = vunpack.c.h.b16 %v2106
        %v2515 = vunpack.c.l.b16 %v2107
        %v2516 = vunpack.c.h.b16 %v2107
        %v2517 = vunpack.c.l.b16 %v2108
        %v2518 = vunpack.c.h.b16 %v2108
        %v2519 = vunpack.c.l.b16 %v2109
        %v2520 = vunpack.c.h.b16 %v2109
        %v2521 = vunpack.c.l.b16 %v2110
        %v2522 = vunpack.c.h.b16 %v2110
        %v2523 = vpack.c.b16 %v2501, %v2499
        %v2524 = vpack.c.b16 %v2502, %v2500
        %v2525 = vpack.c.b16 %v2505, %v2503
        %v2526 = vpack.c.b16 %v2506, %v2504
        %v2527 = vpack.c.b16 %v2509, %v2507
        %v2528 = vpack.c.b16 %v2510, %v2508
        %v2529 = vpack.c.b16 %v2513, %v2511
        %v2530 = vpack.c.b16 %v2514, %v2512
        %v2531 = vpack.c.b16 %v2517, %v2515
        %v2532 = vpack.c.b16 %v2518, %v2516
        %v2533 = vpack.c.b16 %v2521, %v2519
        %v2534 = vpack.c.b16 %v2522, %v2520
        %2547 = vmatpush.bf16.msra.mxu0 %v2281
        %2548 = vmatpush.bf16.msra.mxu0 %v2279
        %2549 = vmatpush.bf16.msra.mxu0 %v2277
        %2550 = vmatpush.bf16.msra.mxu0 %v2275
        %2551 = vmatpush.bf16.msra.mxu0 %v2273
        %2552 = vmatpush.bf16.msra.mxu0 %v2271
        %2553 = vmatpush.bf16.msra.mxu0 %v2269
        %2554 = vmatpush.bf16.msra.mxu0 %v2267
        %2555 = vmatmul.bf16.gmra.mxu0 %v2523
        %v2556 = vpop.f32.mrf.mxu0
        %v2557 = vadd.f32 %v2380, %v2556
        %v2558 = vpop.f32.mrf.mxu0
        %v2559 = vadd.f32 %v2382, %v2558
        %2560 = vmatmul.bf16.gmra.mxu0 %v2525
        %v2561 = vpop.f32.mrf.mxu0
        %v2562 = vadd.f32 %v2385, %v2561
        %v2563 = vpop.f32.mrf.mxu0
        %v2564 = vadd.f32 %v2387, %v2563
        %2565 = vmatmul.bf16.gmra.mxu0 %v2527
        %v2566 = vpop.f32.mrf.mxu0
        %v2567 = vadd.f32 %v2390, %v2566
        %v2568 = vpop.f32.mrf.mxu0
        %v2569 = vadd.f32 %v2392, %v2568
        %2570 = vmatmul.bf16.gmra.mxu0 %v2529
        %v2571 = vpop.f32.mrf.mxu0
        %v2572 = vadd.f32 %v2395, %v2571
        %v2573 = vpop.f32.mrf.mxu0
        %v2574 = vadd.f32 %v2397, %v2573
        %2575 = vmatmul.bf16.gmra.mxu0 %v2531
        %v2576 = vpop.f32.mrf.mxu0
        %v2577 = vadd.f32 %v2400, %v2576
        %v2578 = vpop.f32.mrf.mxu0
        %v2579 = vadd.f32 %v2402, %v2578
        %2580 = vmatmul.bf16.gmra.mxu0 %v2533
        %v2581 = vpop.f32.mrf.mxu0
        %v2582 = vadd.f32 %v2405, %v2581
        %v2583 = vpop.f32.mrf.mxu0
        %v2584 = vadd.f32 %v2407, %v2583
        %2585 = vdwg.mxu0
        %2586 = vmatpush.bf16.msra.mxu0 %v2297
        %2587 = vmatpush.bf16.msra.mxu0 %v2295
        %2588 = vmatpush.bf16.msra.mxu0 %v2293
        %2589 = vmatpush.bf16.msra.mxu0 %v2291
        %2590 = vmatpush.bf16.msra.mxu0 %v2289
        %2591 = vmatpush.bf16.msra.mxu0 %v2287
        %2592 = vmatpush.bf16.msra.mxu0 %v2285
        %2593 = vmatpush.bf16.msra.mxu0 %v2283
        %2594 = vmatmul.bf16.gmra.mxu0 %v2524
        %v2595 = vpop.f32.mrf.mxu0
        %v2596 = vadd.f32 %v2557, %v2595
        %v2597 = vpop.f32.mrf.mxu0
        %v2598 = vadd.f32 %v2559, %v2597
        %2599 = vmatmul.bf16.gmra.mxu0 %v2526
        %v2600 = vpop.f32.mrf.mxu0
        %v2601 = vadd.f32 %v2562, %v2600
        %v2602 = vpop.f32.mrf.mxu0
        %v2603 = vadd.f32 %v2564, %v2602
        %2604 = vmatmul.bf16.gmra.mxu0 %v2528
        %v2605 = vpop.f32.mrf.mxu0
        %v2606 = vadd.f32 %v2567, %v2605
        %v2607 = vpop.f32.mrf.mxu0
        %v2608 = vadd.f32 %v2569, %v2607
        %2609 = vmatmul.bf16.gmra.mxu0 %v2530
        %v2610 = vpop.f32.mrf.mxu0
        %v2611 = vadd.f32 %v2572, %v2610
        %v2612 = vpop.f32.mrf.mxu0
        %v2613 = vadd.f32 %v2574, %v2612
        %2614 = vmatmul.bf16.gmra.mxu0 %v2532
        %v2615 = vpop.f32.mrf.mxu0
        %v2616 = vadd.f32 %v2577, %v2615
        %v2617 = vpop.f32.mrf.mxu0
        %v2618 = vadd.f32 %v2579, %v2617
        %2619 = vmatmul.bf16.gmra.mxu0 %v2534
        %v2620 = vpop.f32.mrf.mxu0
        %v2621 = vadd.f32 %v2582, %v2620
        %v2622 = vpop.f32.mrf.mxu0
        %v2623 = vadd.f32 %v2584, %v2622
        %2624 = vdwg.mxu0
        %2625 = vmatpush.bf16.msra.mxu0 %v2282
        %2626 = vmatpush.bf16.msra.mxu0 %v2280
        %2627 = vmatpush.bf16.msra.mxu0 %v2278
        %2628 = vmatpush.bf16.msra.mxu0 %v2276
        %2629 = vmatpush.bf16.msra.mxu0 %v2274
        %2630 = vmatpush.bf16.msra.mxu0 %v2272
        %2631 = vmatpush.bf16.msra.mxu0 %v2270
        %2632 = vmatpush.bf16.msra.mxu0 %v2268
        %2633 = vmatmul.bf16.gmra.mxu0 %v2523
        %v2634 = vpop.f32.mrf.mxu0
        %v2635 = vadd.f32 %v2458, %v2634
        %v2636 = vpop.f32.mrf.mxu0
        %v2637 = vadd.f32 %v2460, %v2636
        %2638 = vmatmul.bf16.gmra.mxu0 %v2525
        %v2639 = vpop.f32.mrf.mxu0
        %v2640 = vadd.f32 %v2463, %v2639
        %v2641 = vpop.f32.mrf.mxu0
        %v2642 = vadd.f32 %v2465, %v2641
        %2643 = vmatmul.bf16.gmra.mxu0 %v2527
        %v2644 = vpop.f32.mrf.mxu0
        %v2645 = vadd.f32 %v2468, %v2644
        %v2646 = vpop.f32.mrf.mxu0
        %v2647 = vadd.f32 %v2470, %v2646
        %2648 = vmatmul.bf16.gmra.mxu0 %v2529
        %v2649 = vpop.f32.mrf.mxu0
        %v2650 = vadd.f32 %v2473, %v2649
        %v2651 = vpop.f32.mrf.mxu0
        %v2652 = vadd.f32 %v2475, %v2651
        %2653 = vmatmul.bf16.gmra.mxu0 %v2531
        %v2654 = vpop.f32.mrf.mxu0
        %v2655 = vadd.f32 %v2478, %v2654
        %v2656 = vpop.f32.mrf.mxu0
        %v2657 = vadd.f32 %v2480, %v2656
        %2658 = vmatmul.bf16.gmra.mxu0 %v2533
        %v2659 = vpop.f32.mrf.mxu0
        %v2660 = vadd.f32 %v2483, %v2659
        %v2661 = vpop.f32.mrf.mxu0
        %v2662 = vadd.f32 %v2485, %v2661
        %2663 = vdwg.mxu0
        %2664 = vmatpush.bf16.msra.mxu0 %v2298
        %2665 = vmatpush.bf16.msra.mxu0 %v2296
        %2666 = vmatpush.bf16.msra.mxu0 %v2294
        %2667 = vmatpush.bf16.msra.mxu0 %v2292
        %2668 = vmatpush.bf16.msra.mxu0 %v2290
        %2669 = vmatpush.bf16.msra.mxu0 %v2288
        %2670 = vmatpush.bf16.msra.mxu0 %v2286
        %2671 = vmatpush.bf16.msra.mxu0 %v2284
        %2672 = vmatmul.bf16.gmra.mxu0 %v2524
        %v2673 = vpop.f32.mrf.mxu0
        %v2674 = vadd.f32 %v2635, %v2673
        %v2675 = vpop.f32.mrf.mxu0
        %v2676 = vadd.f32 %v2637, %v2675
        %2677 = vmatmul.bf16.gmra.mxu0 %v2526
        %v2678 = vpop.f32.mrf.mxu0
        %v2679 = vadd.f32 %v2640, %v2678
        %v2680 = vpop.f32.mrf.mxu0
        %v2681 = vadd.f32 %v2642, %v2680
        %2682 = vmatmul.bf16.gmra.mxu0 %v2528
        %v2683 = vpop.f32.mrf.mxu0
        %v2684 = vadd.f32 %v2645, %v2683
        %v2685 = vpop.f32.mrf.mxu0
        %v2686 = vadd.f32 %v2647, %v2685
        %2687 = vmatmul.bf16.gmra.mxu0 %v2530
        %v2688 = vpop.f32.mrf.mxu0
        %v2689 = vadd.f32 %v2650, %v2688
        %v2690 = vpop.f32.mrf.mxu0
        %v2691 = vadd.f32 %v2652, %v2690
        %2692 = vmatmul.bf16.gmra.mxu0 %v2532
        %v2693 = vpop.f32.mrf.mxu0
        %v2694 = vadd.f32 %v2655, %v2693
        %v2695 = vpop.f32.mrf.mxu0
        %v2696 = vadd.f32 %v2657, %v2695
        %2697 = vmatmul.bf16.gmra.mxu0 %v2534
        %v2698 = vpop.f32.mrf.mxu0
        %v2699 = vadd.f32 %v2660, %v2698
        %v2700 = vpop.f32.mrf.mxu0
        %v2701 = vadd.f32 %v2662, %v2700
        %2702 = vdwg.mxu0
        %v2703 = vperm.slane %v1540, 0
        %v2704 = vperm.slane %v1792, 0
        %v2705 = vmul.f32 %v2596, %v2703
        %v2706 = vmul.f32 %v2674, %v2704
        %v2707 = vmul.f32 %v2598, %v2703
        %v2708 = vmul.f32 %v2676, %v2704
        %v2709 = vld [vmem:[%s3] sm:$0xff]
        %v2710 = vld [vmem:[%s3 + $0x8] sm:$0xff]
        %v2711 = vld [vmem:[%s3 + $0x10] sm:$0xff]
        %v2712 = vld [vmem:[%s3 + $0x18] sm:$0xff]
        %v2713 = vmul.f32 %v2596, %v2709
        %v2714 = vmul.f32 %v2674, %v2710
        %v2715 = vmul.f32 %v2598, %v2711
        %v2716 = vmul.f32 %v2676, %v2712
        %s2717 = scalar_lea.vmem %s3, 64
        %v2718 = vld [vmem:[%s2717] sm:$0xff]
        %v2719 = vld [vmem:[%s2717 + $0x8] sm:$0xff]
        %v2720 = vld [vmem:[%s2717 + $0x10] sm:$0xff]
        %v2721 = vld [vmem:[%s2717 + $0x18] sm:$0xff]
        %v2722 = vmul.f32 %v2703, %v2718
        %v2723 = vmul.f32 %v2704, %v2719
        %v2724 = vmul.f32 %v2703, %v2720
        %v2725 = vmul.f32 %v2704, %v2721
        %v2726 = vperm.slane %v1540, 1
        %v2727 = vperm.slane %v1792, 1
        %v2728 = vmul.f32 %v2601, %v2726
        %v2729 = vmul.f32 %v2679, %v2727
        %v2730 = vmul.f32 %v2603, %v2726
        %v2731 = vmul.f32 %v2681, %v2727
        %s2732 = scalar_lea.vmem %s3, 32
        %v2733 = vld [vmem:[%s2732] sm:$0xff]
        %v2734 = vld [vmem:[%s2732 + $0x8] sm:$0xff]
        %v2735 = vld [vmem:[%s2732 + $0x10] sm:$0xff]
        %v2736 = vld [vmem:[%s2732 + $0x18] sm:$0xff]
        %v2737 = vmul.f32 %v2601, %v2733
        %v2738 = vmul.f32 %v2679, %v2734
        %v2739 = vmul.f32 %v2603, %v2735
        %v2740 = vmul.f32 %v2681, %v2736
        %s2741 = scalar_lea.vmem %s3, 96
        %v2742 = vld [vmem:[%s2741] sm:$0xff]
        %v2743 = vld [vmem:[%s2741 + $0x8] sm:$0xff]
        %v2744 = vld [vmem:[%s2741 + $0x10] sm:$0xff]
        %v2745 = vld [vmem:[%s2741 + $0x18] sm:$0xff]
        %v2746 = vmul.f32 %v2726, %v2742
        %v2747 = vmul.f32 %v2727, %v2743
        %v2748 = vmul.f32 %v2726, %v2744
        %v2749 = vmul.f32 %v2727, %v2745
        %v2750 = vadd.f32 %v2705, %v2728
        %v2751 = vadd.f32 %v2706, %v2729
        %v2752 = vadd.f32 %v2707, %v2730
        %v2753 = vadd.f32 %v2708, %v2731
        %v2754 = vadd.f32 %v2713, %v2737
        %v2755 = vadd.f32 %v2714, %v2738
        %v2756 = vadd.f32 %v2715, %v2739
        %v2757 = vadd.f32 %v2716, %v2740
        %v2758 = vadd.f32 %v2722, %v2746
        %v2759 = vadd.f32 %v2723, %v2747
        %v2760 = vadd.f32 %v2724, %v2748
        %v2761 = vadd.f32 %v2725, %v2749
        %s2762 = sld [smem:[#allocation20]]
        %v2763 = vstv %s2762
        %v2764 = vmul.f32 %v2763, %v2750
        %v2765 = vmul.f32 %v2763, %v2751
        %v2766 = vmul.f32 %v2763, %v2752
        %v2767 = vmul.f32 %v2763, %v2753
        %s2768 = sld [smem:[#allocation20 + $0x80]]
        %v2769 = vstv %s2768
        %v2770 = vmul.f32 %v2769, %v2754
        %v2771 = vmul.f32 %v2769, %v2755
        %v2772 = vmul.f32 %v2769, %v2756
        %v2773 = vmul.f32 %v2769, %v2757
        %v2774 = vadd.f32 %v2764, %v2770
        %v2775 = vadd.f32 %v2765, %v2771
        %v2776 = vadd.f32 %v2766, %v2772
        %v2777 = vadd.f32 %v2767, %v2773
        %s2778 = sld [smem:[#allocation20 + $0x100]]
        %v2779 = vstv %s2778
        %v2780 = vmul.f32 %v2779, %v2758
        %v2781 = vmul.f32 %v2779, %v2759
        %v2782 = vmul.f32 %v2779, %v2760
        %v2783 = vmul.f32 %v2779, %v2761
        %v2784 = vadd.f32 %v2774, %v2780
        %v2785 = vadd.f32 %v2775, %v2781
        %v2786 = vadd.f32 %v2776, %v2782
        %v2787 = vadd.f32 %v2777, %v2783
        %s2788 = sld [smem:[#allocation21]]
        %v2789 = vstv %s2788
        %v2790 = vadd.f32 %v2784, %v2789
        %v2791 = vadd.f32 %v2785, %v2789
        %v2792 = vadd.f32 %v2786, %v2789
        %v2793 = vadd.f32 %v2787, %v2789
        %v2794 = vmax.f32 %v2790, %v2791
        %2795 = vmax.xlane.f32.xlu0 %v2794
        %v2796 = vpop.xlane.xlu0 %2795
        %v2797 = vmax.f32 %v2792, %v2793
        %2798 = vmax.xlane.f32.xlu0 %v2797
        %v2799 = vpop.xlane.xlu0 %2798
        %v2800 = vsub.f32 %v2790, %v2796
        %v2801 = vsub.f32 %v2791, %v2796
        %v2802 = vsub.f32 %v2792, %v2799
        %v2803 = vsub.f32 %v2793, %v2799
        %v2804 = vmul.f32 %v2800, 1.442695
        %v2805 = vpow.pop %v2804
        %v2806 = vmul.f32 %v2801, 1.442695
        %v2807 = vpow.pop %v2806
        %v2808 = vmul.f32 %v2802, 1.442695
        %v2809 = vpow.pop %v2808
        %v2810 = vmul.f32 %v2803, 1.442695
        %v2811 = vpow.pop %v2810
        %v2812 = vperm.slane %v1540, 2
        %v2813 = vperm.slane %v1792, 2
        %v2814 = vmul.f32 %v2606, %v2812
        %v2815 = vmul.f32 %v2684, %v2813
        %v2816 = vmul.f32 %v2608, %v2812
        %v2817 = vmul.f32 %v2686, %v2813
        %v2818 = vmul.f32 %v2606, %v2709
        %v2819 = vmul.f32 %v2684, %v2710
        %v2820 = vmul.f32 %v2608, %v2711
        %v2821 = vmul.f32 %v2686, %v2712
        %v2822 = vmul.f32 %v2812, %v2718
        %v2823 = vmul.f32 %v2813, %v2719
        %v2824 = vmul.f32 %v2812, %v2720
        %v2825 = vmul.f32 %v2813, %v2721
        %v2826 = vperm.slane %v1540, 3
        %v2827 = vperm.slane %v1792, 3
        %v2828 = vmul.f32 %v2611, %v2826
        %v2829 = vmul.f32 %v2689, %v2827
        %v2830 = vmul.f32 %v2613, %v2826
        %v2831 = vmul.f32 %v2691, %v2827
        %v2832 = vmul.f32 %v2611, %v2733
        %v2833 = vmul.f32 %v2689, %v2734
        %v2834 = vmul.f32 %v2613, %v2735
        %v2835 = vmul.f32 %v2691, %v2736
        %v2836 = vmul.f32 %v2826, %v2742
        %v2837 = vmul.f32 %v2827, %v2743
        %v2838 = vmul.f32 %v2826, %v2744
        %v2839 = vmul.f32 %v2827, %v2745
        %v2840 = vadd.f32 %v2814, %v2828
        %v2841 = vadd.f32 %v2815, %v2829
        %v2842 = vadd.f32 %v2816, %v2830
        %v2843 = vadd.f32 %v2817, %v2831
        %v2844 = vadd.f32 %v2818, %v2832
        %v2845 = vadd.f32 %v2819, %v2833
        %v2846 = vadd.f32 %v2820, %v2834
        %v2847 = vadd.f32 %v2821, %v2835
        %v2848 = vadd.f32 %v2822, %v2836
        %v2849 = vadd.f32 %v2823, %v2837
        %v2850 = vadd.f32 %v2824, %v2838
        %v2851 = vadd.f32 %v2825, %v2839
        %s2852 = sld [smem:[#allocation20 + $0x1]]
        %v2853 = vstv %s2852
        %v2854 = vmul.f32 %v2853, %v2840
        %v2855 = vmul.f32 %v2853, %v2841
        %v2856 = vmul.f32 %v2853, %v2842
        %v2857 = vmul.f32 %v2853, %v2843
        %s2858 = sld [smem:[#allocation20 + $0x81]]
        %v2859 = vstv %s2858
        %v2860 = vmul.f32 %v2859, %v2844
        %v2861 = vmul.f32 %v2859, %v2845
        %v2862 = vmul.f32 %v2859, %v2846
        %v2863 = vmul.f32 %v2859, %v2847
        %v2864 = vadd.f32 %v2854, %v2860
        %v2865 = vadd.f32 %v2855, %v2861
        %v2866 = vadd.f32 %v2856, %v2862
        %v2867 = vadd.f32 %v2857, %v2863
        %s2868 = sld [smem:[#allocation20 + $0x101]]
        %v2869 = vstv %s2868
        %v2870 = vmul.f32 %v2869, %v2848
        %v2871 = vmul.f32 %v2869, %v2849
        %v2872 = vmul.f32 %v2869, %v2850
        %v2873 = vmul.f32 %v2869, %v2851
        %v2874 = vadd.f32 %v2864, %v2870
        %v2875 = vadd.f32 %v2865, %v2871
        %v2876 = vadd.f32 %v2866, %v2872
        %v2877 = vadd.f32 %v2867, %v2873
        %s2878 = sld [smem:[#allocation21 + $0x1]]
        %v2879 = vstv %s2878
        %v2880 = vadd.f32 %v2874, %v2879
        %v2881 = vadd.f32 %v2875, %v2879
        %v2882 = vadd.f32 %v2876, %v2879
        %v2883 = vadd.f32 %v2877, %v2879
        %v2884 = vmax.f32 %v2880, %v2881
        %2885 = vmax.xlane.f32.xlu0 %v2884
        %v2886 = vpop.xlane.xlu0 %2885
        %v2887 = vmax.f32 %v2882, %v2883
        %2888 = vmax.xlane.f32.xlu0 %v2887
        %v2889 = vpop.xlane.xlu0 %2888
        %v2890 = vsub.f32 %v2880, %v2886
        %v2891 = vsub.f32 %v2881, %v2886
        %v2892 = vsub.f32 %v2882, %v2889
        %v2893 = vsub.f32 %v2883, %v2889
        %v2894 = vmul.f32 %v2890, 1.442695
        %v2895 = vpow.pop %v2894
        %v2896 = vmul.f32 %v2891, 1.442695
        %v2897 = vpow.pop %v2896
        %v2898 = vmul.f32 %v2892, 1.442695
        %v2899 = vpow.pop %v2898
        %v2900 = vmul.f32 %v2893, 1.442695
        %v2901 = vpow.pop %v2900
        %v2902 = vperm.slane %v1540, 4
        %v2903 = vperm.slane %v1792, 4
        %v2904 = vmul.f32 %v2616, %v2902
        %v2905 = vmul.f32 %v2694, %v2903
        %v2906 = vmul.f32 %v2618, %v2902
        %v2907 = vmul.f32 %v2696, %v2903
        %v2908 = vmul.f32 %v2616, %v2709
        %v2909 = vmul.f32 %v2694, %v2710
        %v2910 = vmul.f32 %v2618, %v2711
        %v2911 = vmul.f32 %v2696, %v2712
        %v2912 = vmul.f32 %v2902, %v2718
        %v2913 = vmul.f32 %v2903, %v2719
        %v2914 = vmul.f32 %v2902, %v2720
        %v2915 = vmul.f32 %v2903, %v2721
        %v2916 = vperm.slane %v1540, 5
        %v2917 = vperm.slane %v1792, 5
        %v2918 = vmul.f32 %v2621, %v2916
        %v2919 = vmul.f32 %v2699, %v2917
        %v2920 = vmul.f32 %v2623, %v2916
        %v2921 = vmul.f32 %v2701, %v2917
        %v2922 = vmul.f32 %v2621, %v2733
        %v2923 = vmul.f32 %v2699, %v2734
        %v2924 = vmul.f32 %v2623, %v2735
        %v2925 = vmul.f32 %v2701, %v2736
        %v2926 = vmul.f32 %v2916, %v2742
        %v2927 = vmul.f32 %v2917, %v2743
        %v2928 = vmul.f32 %v2916, %v2744
        %v2929 = vmul.f32 %v2917, %v2745
        %v2930 = vadd.f32 %v2904, %v2918
        %v2931 = vadd.f32 %v2905, %v2919
        %v2932 = vadd.f32 %v2906, %v2920
        %v2933 = vadd.f32 %v2907, %v2921
        %v2934 = vadd.f32 %v2908, %v2922
        %v2935 = vadd.f32 %v2909, %v2923
        %v2936 = vadd.f32 %v2910, %v2924
        %v2937 = vadd.f32 %v2911, %v2925
        %v2938 = vadd.f32 %v2912, %v2926
        %v2939 = vadd.f32 %v2913, %v2927
        %v2940 = vadd.f32 %v2914, %v2928
        %v2941 = vadd.f32 %v2915, %v2929
        %s2942 = sld [smem:[#allocation20 + $0x2]]
        %v2943 = vstv %s2942
        %v2944 = vmul.f32 %v2943, %v2930
        %v2945 = vmul.f32 %v2943, %v2931
        %v2946 = vmul.f32 %v2943, %v2932
        %v2947 = vmul.f32 %v2943, %v2933
        %s2948 = sld [smem:[#allocation20 + $0x82]]
        %v2949 = vstv %s2948
        %v2950 = vmul.f32 %v2949, %v2934
        %v2951 = vmul.f32 %v2949, %v2935
        %v2952 = vmul.f32 %v2949, %v2936
        %v2953 = vmul.f32 %v2949, %v2937
        %v2954 = vadd.f32 %v2944, %v2950
        %v2955 = vadd.f32 %v2945, %v2951
        %v2956 = vadd.f32 %v2946, %v2952
        %v2957 = vadd.f32 %v2947, %v2953
        %s2958 = sld [smem:[#allocation20 + $0x102]]
        %v2959 = vstv %s2958
        %v2960 = vmul.f32 %v2959, %v2938
        %v2961 = vmul.f32 %v2959, %v2939
        %v2962 = vmul.f32 %v2959, %v2940
        %v2963 = vmul.f32 %v2959, %v2941
        %v2964 = vadd.f32 %v2954, %v2960
        %v2965 = vadd.f32 %v2955, %v2961
        %v2966 = vadd.f32 %v2956, %v2962
        %v2967 = vadd.f32 %v2957, %v2963
        %s2968 = sld [smem:[#allocation21 + $0x2]]
        %v2969 = vstv %s2968
        %v2970 = vadd.f32 %v2964, %v2969
        %v2971 = vadd.f32 %v2965, %v2969
        %v2972 = vadd.f32 %v2966, %v2969
        %v2973 = vadd.f32 %v2967, %v2969
        %v2974 = vmax.f32 %v2970, %v2971
        %2975 = vmax.xlane.f32.xlu0 %v2974
        %v2976 = vpop.xlane.xlu0 %2975
        %v2977 = vmax.f32 %v2972, %v2973
        %2978 = vmax.xlane.f32.xlu0 %v2977
        %v2979 = vpop.xlane.xlu0 %2978
        %v2980 = vsub.f32 %v2970, %v2976
        %v2981 = vsub.f32 %v2971, %v2976
        %v2982 = vsub.f32 %v2972, %v2979
        %v2983 = vsub.f32 %v2973, %v2979
        %v2984 = vmul.f32 %v2980, 1.442695
        %v2985 = vpow.pop %v2984
        %v2986 = vmul.f32 %v2981, 1.442695
        %v2987 = vpow.pop %v2986
        %v2988 = vmul.f32 %v2982, 1.442695
        %v2989 = vpow.pop %v2988
        %v2990 = vmul.f32 %v2983, 1.442695
        %v2991 = vpow.pop %v2990
        %v2992 = vpack.c.bf16 %v2807, %v2805
        %v2993 = vpack.c.bf16 %v2811, %v2809
        %v2994 = vpack.c.bf16 %v2897, %v2895
        %v2995 = vpack.c.bf16 %v2901, %v2899
        %v2996 = vpack.c.bf16 %v2987, %v2985
        %v2997 = vpack.c.bf16 %v2991, %v2989
        %v2998 = vunpack.c.l.bf16 %v2992
        %v2999 = vunpack.c.h.bf16 %v2992
        %v3000 = vunpack.c.l.bf16 %v2993
        %v3001 = vunpack.c.h.bf16 %v2993
        %v3002 = vunpack.c.l.bf16 %v2994
        %v3003 = vunpack.c.h.bf16 %v2994
        %v3004 = vunpack.c.l.bf16 %v2995
        %v3005 = vunpack.c.h.bf16 %v2995
        %v3006 = vunpack.c.l.bf16 %v2996
        %v3007 = vunpack.c.h.bf16 %v2996
        %v3008 = vunpack.c.l.bf16 %v2997
        %v3009 = vunpack.c.h.bf16 %v2997
        %v3010 = vsub.f32 %v2805, %v2998
        %v3011 = vsub.f32 %v2807, %v2999
        %v3012 = vsub.f32 %v2809, %v3000
        %v3013 = vsub.f32 %v2811, %v3001
        %v3014 = vsub.f32 %v2895, %v3002
        %v3015 = vsub.f32 %v2897, %v3003
        %v3016 = vsub.f32 %v2899, %v3004
        %v3017 = vsub.f32 %v2901, %v3005
        %v3018 = vsub.f32 %v2985, %v3006
        %v3019 = vsub.f32 %v2987, %v3007
        %v3020 = vsub.f32 %v2989, %v3008
        %v3021 = vsub.f32 %v2991, %v3009
        %v3022 = vpack.c.bf16 %v3012, %v3010
        %v3023 = vpack.c.bf16 %v3013, %v3011
        %v3024 = vpack.c.bf16 %v3016, %v3014
        %v3025 = vpack.c.bf16 %v3017, %v3015
        %v3026 = vpack.c.bf16 %v3020, %v3018
        %v3027 = vpack.c.bf16 %v3021, %v3019
        %3028 = vmatpush.bf16.msra.mxu0 %v2281
        %3029 = vmatpush.bf16.msra.mxu0 %v2279
        %3030 = vmatpush.bf16.msra.mxu0 %v2277
        %3031 = vmatpush.bf16.msra.mxu0 %v2275
        %3032 = vmatpush.bf16.msra.mxu0 %v2273
        %3033 = vmatpush.bf16.msra.mxu0 %v2271
        %3034 = vmatpush.bf16.msra.mxu0 %v2269
        %3035 = vmatpush.bf16.msra.mxu0 %v2267
        %3036 = vmatmul.bf16.gmra.mxu0 %v3022
        %v3037 = vpop.f32.mrf.mxu0
        %v3038 = vadd.f32 0.0, %v3037
        %v3039 = vpop.f32.mrf.mxu0
        %v3040 = vadd.f32 0.0, %v3039
        %3041 = vmatmul.bf16.gmra.mxu0 %v3024
        %v3042 = vpop.f32.mrf.mxu0
        %v3043 = vadd.f32 0.0, %v3042
        %v3044 = vpop.f32.mrf.mxu0
        %v3045 = vadd.f32 0.0, %v3044
        %3046 = vmatmul.bf16.gmra.mxu0 %v3026
        %v3047 = vpop.f32.mrf.mxu0
        %v3048 = vadd.f32 0.0, %v3047
        %v3049 = vpop.f32.mrf.mxu0
        %v3050 = vadd.f32 0.0, %v3049
        %3051 = vdwg.mxu0
        %3052 = vmatpush.bf16.msra.mxu0 %v2297
        %3053 = vmatpush.bf16.msra.mxu0 %v2295
        %3054 = vmatpush.bf16.msra.mxu0 %v2293
        %3055 = vmatpush.bf16.msra.mxu0 %v2291
        %3056 = vmatpush.bf16.msra.mxu0 %v2289
        %3057 = vmatpush.bf16.msra.mxu0 %v2287
        %3058 = vmatpush.bf16.msra.mxu0 %v2285
        %3059 = vmatpush.bf16.msra.mxu0 %v2283
        %3060 = vmatmul.bf16.gmra.mxu0 %v3023
        %v3061 = vpop.f32.mrf.mxu0
        %v3062 = vadd.f32 %v3038, %v3061
        %v3063 = vpop.f32.mrf.mxu0
        %v3064 = vadd.f32 %v3040, %v3063
        %3065 = vmatmul.bf16.gmra.mxu0 %v3025
        %v3066 = vpop.f32.mrf.mxu0
        %v3067 = vadd.f32 %v3043, %v3066
        %v3068 = vpop.f32.mrf.mxu0
        %v3069 = vadd.f32 %v3045, %v3068
        %3070 = vmatmul.bf16.gmra.mxu0 %v3027
        %v3071 = vpop.f32.mrf.mxu0
        %v3072 = vadd.f32 %v3048, %v3071
        %v3073 = vpop.f32.mrf.mxu0
        %v3074 = vadd.f32 %v3050, %v3073
        %3075 = vdwg.mxu0
        %3076 = vmatpush.bf16.msra.mxu0 %v2282
        %3077 = vmatpush.bf16.msra.mxu0 %v2280
        %3078 = vmatpush.bf16.msra.mxu0 %v2278
        %3079 = vmatpush.bf16.msra.mxu0 %v2276
        %3080 = vmatpush.bf16.msra.mxu0 %v2274
        %3081 = vmatpush.bf16.msra.mxu0 %v2272
        %3082 = vmatpush.bf16.msra.mxu0 %v2270
        %3083 = vmatpush.bf16.msra.mxu0 %v2268
        %3084 = vmatmul.bf16.gmra.mxu0 %v3022
        %v3085 = vpop.f32.mrf.mxu0
        %v3086 = vadd.f32 0.0, %v3085
        %v3087 = vpop.f32.mrf.mxu0
        %v3088 = vadd.f32 0.0, %v3087
        %3089 = vmatmul.bf16.gmra.mxu0 %v3024
        %v3090 = vpop.f32.mrf.mxu0
        %v3091 = vadd.f32 0.0, %v3090
        %v3092 = vpop.f32.mrf.mxu0
        %v3093 = vadd.f32 0.0, %v3092
        %3094 = vmatmul.bf16.gmra.mxu0 %v3026
        %v3095 = vpop.f32.mrf.mxu0
        %v3096 = vadd.f32 0.0, %v3095
        %v3097 = vpop.f32.mrf.mxu0
        %v3098 = vadd.f32 0.0, %v3097
        %3099 = vdwg.mxu0
        %3100 = vmatpush.bf16.msra.mxu0 %v2298
        %3101 = vmatpush.bf16.msra.mxu0 %v2296
        %3102 = vmatpush.bf16.msra.mxu0 %v2294
        %3103 = vmatpush.bf16.msra.mxu0 %v2292
        %3104 = vmatpush.bf16.msra.mxu0 %v2290
        %3105 = vmatpush.bf16.msra.mxu0 %v2288
        %3106 = vmatpush.bf16.msra.mxu0 %v2286
        %3107 = vmatpush.bf16.msra.mxu0 %v2284
        %3108 = vmatmul.bf16.gmra.mxu0 %v3023
        %v3109 = vpop.f32.mrf.mxu0
        %v3110 = vadd.f32 %v3086, %v3109
        %v3111 = vpop.f32.mrf.mxu0
        %v3112 = vadd.f32 %v3088, %v3111
        %3113 = vmatmul.bf16.gmra.mxu0 %v3025
        %v3114 = vpop.f32.mrf.mxu0
        %v3115 = vadd.f32 %v3091, %v3114
        %v3116 = vpop.f32.mrf.mxu0
        %v3117 = vadd.f32 %v3093, %v3116
        %3118 = vmatmul.bf16.gmra.mxu0 %v3027
        %v3119 = vpop.f32.mrf.mxu0
        %v3120 = vadd.f32 %v3096, %v3119
        %v3121 = vpop.f32.mrf.mxu0
        %v3122 = vadd.f32 %v3098, %v3121
        %3123 = vdwg.mxu0
        %v3130 = vunpack.c.l.b16 %v2992
        %v3131 = vunpack.c.h.b16 %v2992
        %v3132 = vunpack.c.l.b16 %v2993
        %v3133 = vunpack.c.h.b16 %v2993
        %v3134 = vunpack.c.l.b16 %v2994
        %v3135 = vunpack.c.h.b16 %v2994
        %v3136 = vunpack.c.l.b16 %v2995
        %v3137 = vunpack.c.h.b16 %v2995
        %v3138 = vunpack.c.l.b16 %v2996
        %v3139 = vunpack.c.h.b16 %v2996
        %v3140 = vunpack.c.l.b16 %v2997
        %v3141 = vunpack.c.h.b16 %v2997
        %v3142 = vpack.c.b16 %v3132, %v3130
        %v3143 = vpack.c.b16 %v3133, %v3131
        %v3144 = vpack.c.b16 %v3136, %v3134
        %v3145 = vpack.c.b16 %v3137, %v3135
        %v3146 = vpack.c.b16 %v3140, %v3138
        %v3147 = vpack.c.b16 %v3141, %v3139
        %3154 = vmatpush.bf16.msra.mxu0 %v2281
        %3155 = vmatpush.bf16.msra.mxu0 %v2279
        %3156 = vmatpush.bf16.msra.mxu0 %v2277
        %3157 = vmatpush.bf16.msra.mxu0 %v2275
        %3158 = vmatpush.bf16.msra.mxu0 %v2273
        %3159 = vmatpush.bf16.msra.mxu0 %v2271
        %3160 = vmatpush.bf16.msra.mxu0 %v2269
        %3161 = vmatpush.bf16.msra.mxu0 %v2267
        %3162 = vmatmul.bf16.gmra.mxu0 %v3142
        %v3163 = vpop.f32.mrf.mxu0
        %v3164 = vadd.f32 %v3062, %v3163
        %v3165 = vpop.f32.mrf.mxu0
        %v3166 = vadd.f32 %v3064, %v3165
        %3167 = vmatmul.bf16.gmra.mxu0 %v3144
        %v3168 = vpop.f32.mrf.mxu0
        %v3169 = vadd.f32 %v3067, %v3168
        %v3170 = vpop.f32.mrf.mxu0
        %v3171 = vadd.f32 %v3069, %v3170
        %3172 = vmatmul.bf16.gmra.mxu0 %v3146
        %v3173 = vpop.f32.mrf.mxu0
        %v3174 = vadd.f32 %v3072, %v3173
        %v3175 = vpop.f32.mrf.mxu0
        %v3176 = vadd.f32 %v3074, %v3175
        %3177 = vdwg.mxu0
        %3178 = vmatpush.bf16.msra.mxu0 %v2297
        %3179 = vmatpush.bf16.msra.mxu0 %v2295
        %3180 = vmatpush.bf16.msra.mxu0 %v2293
        %3181 = vmatpush.bf16.msra.mxu0 %v2291
        %3182 = vmatpush.bf16.msra.mxu0 %v2289
        %3183 = vmatpush.bf16.msra.mxu0 %v2287
        %3184 = vmatpush.bf16.msra.mxu0 %v2285
        %3185 = vmatpush.bf16.msra.mxu0 %v2283
        %3186 = vmatmul.bf16.gmra.mxu0 %v3143
        %v3187 = vpop.f32.mrf.mxu0
        %v3188 = vadd.f32 %v3164, %v3187
        %v3189 = vpop.f32.mrf.mxu0
        %v3190 = vadd.f32 %v3166, %v3189
        %3191 = vmatmul.bf16.gmra.mxu0 %v3145
        %v3192 = vpop.f32.mrf.mxu0
        %v3193 = vadd.f32 %v3169, %v3192
        %v3194 = vpop.f32.mrf.mxu0
        %v3195 = vadd.f32 %v3171, %v3194
        %3196 = vmatmul.bf16.gmra.mxu0 %v3147
        %v3197 = vpop.f32.mrf.mxu0
        %v3198 = vadd.f32 %v3174, %v3197
        %v3199 = vpop.f32.mrf.mxu0
        %v3200 = vadd.f32 %v3176, %v3199
        %3201 = vdwg.mxu0
        %3202 = vmatpush.bf16.msra.mxu0 %v2282
        %3203 = vmatpush.bf16.msra.mxu0 %v2280
        %3204 = vmatpush.bf16.msra.mxu0 %v2278
        %3205 = vmatpush.bf16.msra.mxu0 %v2276
        %3206 = vmatpush.bf16.msra.mxu0 %v2274
        %3207 = vmatpush.bf16.msra.mxu0 %v2272
        %3208 = vmatpush.bf16.msra.mxu0 %v2270
        %3209 = vmatpush.bf16.msra.mxu0 %v2268
        %3210 = vmatmul.bf16.gmra.mxu0 %v3142
        %v3211 = vpop.f32.mrf.mxu0
        %v3212 = vadd.f32 %v3110, %v3211
        %v3213 = vpop.f32.mrf.mxu0
        %v3214 = vadd.f32 %v3112, %v3213
        %3215 = vmatmul.bf16.gmra.mxu0 %v3144
        %v3216 = vpop.f32.mrf.mxu0
        %v3217 = vadd.f32 %v3115, %v3216
        %v3218 = vpop.f32.mrf.mxu0
        %v3219 = vadd.f32 %v3117, %v3218
        %3220 = vmatmul.bf16.gmra.mxu0 %v3146
        %v3221 = vpop.f32.mrf.mxu0
        %v3222 = vadd.f32 %v3120, %v3221
        %v3223 = vpop.f32.mrf.mxu0
        %v3224 = vadd.f32 %v3122, %v3223
        %3225 = vdwg.mxu0
        %3226 = vmatpush.bf16.msra.mxu0 %v2298
        %3227 = vmatpush.bf16.msra.mxu0 %v2296
        %3228 = vmatpush.bf16.msra.mxu0 %v2294
        %3229 = vmatpush.bf16.msra.mxu0 %v2292
        %3230 = vmatpush.bf16.msra.mxu0 %v2290
        %3231 = vmatpush.bf16.msra.mxu0 %v2288
        %3232 = vmatpush.bf16.msra.mxu0 %v2286
        %3233 = vmatpush.bf16.msra.mxu0 %v2284
        %3234 = vmatmul.bf16.gmra.mxu0 %v3143
        %v3235 = vpop.f32.mrf.mxu0
        %v3236 = vadd.f32 %v3212, %v3235
        %v3237 = vpop.f32.mrf.mxu0
        %v3238 = vadd.f32 %v3214, %v3237
        %3239 = vmatmul.bf16.gmra.mxu0 %v3145
        %v3240 = vpop.f32.mrf.mxu0
        %v3241 = vadd.f32 %v3217, %v3240
        %v3242 = vpop.f32.mrf.mxu0
        %v3243 = vadd.f32 %v3219, %v3242
        %3244 = vmatmul.bf16.gmra.mxu0 %v3147
        %v3245 = vpop.f32.mrf.mxu0
        %v3246 = vadd.f32 %v3222, %v3245
        %v3247 = vpop.f32.mrf.mxu0
        %v3248 = vadd.f32 %v3224, %v3247
        %3249 = vdwg.mxu0
        %v3250 = vrcp.pop %v3188
        %v3251 = vmul.f32 %v3188, %v3250
        %v3252 = vsub.f32 1.0, %v3251
        %v3253 = vmul.f32 %v3250, %v3252
        %v3254 = vadd.f32 %v3250, %v3253
        %vm3255 = vweird.f32 %v3188
        %vm3256 = vweird.f32 %v3250
        %vm3257 = vmor %vm3255, %vm3256
        %v3258 = vsel %vm3257, %v3250, %v3254
        %v3259 = vand.u32 2147483647, %v3188
        %vm3260 = vcmp.eq.f32.partialorder %v3259, 8.507059e+37
        %v3261 = vand.u32 %v3188, 2147483648
        %v3262 = vor.u32 1.1754944e-38, %v3261
        %v3263 = vsel %vm3260, %v3262, %v3258
        %v3264 = vrcp.pop %v3236
        %v3265 = vmul.f32 %v3236, %v3264
        %v3266 = vsub.f32 1.0, %v3265
        %v3267 = vmul.f32 %v3264, %v3266
        %v3268 = vadd.f32 %v3264, %v3267
        %vm3269 = vweird.f32 %v3236
        %vm3270 = vweird.f32 %v3264
        %vm3271 = vmor %vm3269, %vm3270
        %v3272 = vsel %vm3271, %v3264, %v3268
        %v3273 = vand.u32 2147483647, %v3236
        %vm3274 = vcmp.eq.f32.partialorder %v3273, 8.507059e+37
        %v3275 = vand.u32 %v3236, 2147483648
        %v3276 = vor.u32 1.1754944e-38, %v3275
        %v3277 = vsel %vm3274, %v3276, %v3272
        %v3278 = vrcp.pop %v3190
        %v3279 = vmul.f32 %v3190, %v3278
        %v3280 = vsub.f32 1.0, %v3279
        %v3281 = vmul.f32 %v3278, %v3280
        %v3282 = vadd.f32 %v3278, %v3281
        %vm3283 = vweird.f32 %v3190
        %vm3284 = vweird.f32 %v3278
        %vm3285 = vmor %vm3283, %vm3284
        %v3286 = vsel %vm3285, %v3278, %v3282
        %v3287 = vand.u32 2147483647, %v3190
        %vm3288 = vcmp.eq.f32.partialorder %v3287, 8.507059e+37
        %v3289 = vand.u32 %v3190, 2147483648
        %v3290 = vor.u32 1.1754944e-38, %v3289
        %v3291 = vsel %vm3288, %v3290, %v3286
        %v3292 = vrcp.pop %v3238
        %v3293 = vmul.f32 %v3238, %v3292
        %v3294 = vsub.f32 1.0, %v3293
        %v3295 = vmul.f32 %v3292, %v3294
        %v3296 = vadd.f32 %v3292, %v3295
        %vm3297 = vweird.f32 %v3238
        %vm3298 = vweird.f32 %v3292
        %vm3299 = vmor %vm3297, %vm3298
        %v3300 = vsel %vm3299, %v3292, %v3296
        %v3301 = vand.u32 2147483647, %v3238
        %vm3302 = vcmp.eq.f32.partialorder %v3301, 8.507059e+37
        %v3303 = vand.u32 %v3238, 2147483648
        %v3304 = vor.u32 1.1754944e-38, %v3303
        %v3305 = vsel %vm3302, %v3304, %v3300
        %v3306 = vrcp.pop %v3193
        %v3307 = vmul.f32 %v3193, %v3306
        %v3308 = vsub.f32 1.0, %v3307
        %v3309 = vmul.f32 %v3306, %v3308
        %v3310 = vadd.f32 %v3306, %v3309
        %vm3311 = vweird.f32 %v3193
        %vm3312 = vweird.f32 %v3306
        %vm3313 = vmor %vm3311, %vm3312
        %v3314 = vsel %vm3313, %v3306, %v3310
        %v3315 = vand.u32 2147483647, %v3193
        %vm3316 = vcmp.eq.f32.partialorder %v3315, 8.507059e+37
        %v3317 = vand.u32 %v3193, 2147483648
        %v3318 = vor.u32 1.1754944e-38, %v3317
        %v3319 = vsel %vm3316, %v3318, %v3314
        %v3320 = vrcp.pop %v3241
        %v3321 = vmul.f32 %v3241, %v3320
        %v3322 = vsub.f32 1.0, %v3321
        %v3323 = vmul.f32 %v3320, %v3322
        %v3324 = vadd.f32 %v3320, %v3323
        %vm3325 = vweird.f32 %v3241
        %vm3326 = vweird.f32 %v3320
        %vm3327 = vmor %vm3325, %vm3326
        %v3328 = vsel %vm3327, %v3320, %v3324
        %v3329 = vand.u32 2147483647, %v3241
        %vm3330 = vcmp.eq.f32.partialorder %v3329, 8.507059e+37
        %v3331 = vand.u32 %v3241, 2147483648
        %v3332 = vor.u32 1.1754944e-38, %v3331
        %v3333 = vsel %vm3330, %v3332, %v3328
        %v3334 = vrcp.pop %v3195
        %v3335 = vmul.f32 %v3195, %v3334
        %v3336 = vsub.f32 1.0, %v3335
        %v3337 = vmul.f32 %v3334, %v3336
        %v3338 = vadd.f32 %v3334, %v3337
        %vm3339 = vweird.f32 %v3195
        %vm3340 = vweird.f32 %v3334
        %vm3341 = vmor %vm3339, %vm3340
        %v3342 = vsel %vm3341, %v3334, %v3338
        %v3343 = vand.u32 2147483647, %v3195
        %vm3344 = vcmp.eq.f32.partialorder %v3343, 8.507059e+37
        %v3345 = vand.u32 %v3195, 2147483648
        %v3346 = vor.u32 1.1754944e-38, %v3345
        %v3347 = vsel %vm3344, %v3346, %v3342
        %v3348 = vrcp.pop %v3243
        %v3349 = vmul.f32 %v3243, %v3348
        %v3350 = vsub.f32 1.0, %v3349
        %v3351 = vmul.f32 %v3348, %v3350
        %v3352 = vadd.f32 %v3348, %v3351
        %vm3353 = vweird.f32 %v3243
        %vm3354 = vweird.f32 %v3348
        %vm3355 = vmor %vm3353, %vm3354
        %v3356 = vsel %vm3355, %v3348, %v3352
        %v3357 = vand.u32 2147483647, %v3243
        %vm3358 = vcmp.eq.f32.partialorder %v3357, 8.507059e+37
        %v3359 = vand.u32 %v3243, 2147483648
        %v3360 = vor.u32 1.1754944e-38, %v3359
        %v3361 = vsel %vm3358, %v3360, %v3356
        %v3362 = vrcp.pop %v3198
        %v3363 = vmul.f32 %v3198, %v3362
        %v3364 = vsub.f32 1.0, %v3363
        %v3365 = vmul.f32 %v3362, %v3364
        %v3366 = vadd.f32 %v3362, %v3365
        %vm3367 = vweird.f32 %v3198
        %vm3368 = vweird.f32 %v3362
        %vm3369 = vmor %vm3367, %vm3368
        %v3370 = vsel %vm3369, %v3362, %v3366
        %v3371 = vand.u32 2147483647, %v3198
        %vm3372 = vcmp.eq.f32.partialorder %v3371, 8.507059e+37
        %v3373 = vand.u32 %v3198, 2147483648
        %v3374 = vor.u32 1.1754944e-38, %v3373
        %v3375 = vsel %vm3372, %v3374, %v3370
        %v3376 = vrcp.pop %v3246
        %v3377 = vmul.f32 %v3246, %v3376
        %v3378 = vsub.f32 1.0, %v3377
        %v3379 = vmul.f32 %v3376, %v3378
        %v3380 = vadd.f32 %v3376, %v3379
        %vm3381 = vweird.f32 %v3246
        %vm3382 = vweird.f32 %v3376
        %vm3383 = vmor %vm3381, %vm3382
        %v3384 = vsel %vm3383, %v3376, %v3380
        %v3385 = vand.u32 2147483647, %v3246
        %vm3386 = vcmp.eq.f32.partialorder %v3385, 8.507059e+37
        %v3387 = vand.u32 %v3246, 2147483648
        %v3388 = vor.u32 1.1754944e-38, %v3387
        %v3389 = vsel %vm3386, %v3388, %v3384
        %v3390 = vrcp.pop %v3200
        %v3391 = vmul.f32 %v3200, %v3390
        %v3392 = vsub.f32 1.0, %v3391
        %v3393 = vmul.f32 %v3390, %v3392
        %v3394 = vadd.f32 %v3390, %v3393
        %vm3395 = vweird.f32 %v3200
        %vm3396 = vweird.f32 %v3390
        %vm3397 = vmor %vm3395, %vm3396
        %v3398 = vsel %vm3397, %v3390, %v3394
        %v3399 = vand.u32 2147483647, %v3200
        %vm3400 = vcmp.eq.f32.partialorder %v3399, 8.507059e+37
        %v3401 = vand.u32 %v3200, 2147483648
        %v3402 = vor.u32 1.1754944e-38, %v3401
        %v3403 = vsel %vm3400, %v3402, %v3398
        %v3404 = vrcp.pop %v3248
        %v3405 = vmul.f32 %v3248, %v3404
        %v3406 = vsub.f32 1.0, %v3405
        %v3407 = vmul.f32 %v3404, %v3406
        %v3408 = vadd.f32 %v3404, %v3407
        %vm3409 = vweird.f32 %v3248
        %vm3410 = vweird.f32 %v3404
        %vm3411 = vmor %vm3409, %vm3410
        %v3412 = vsel %vm3411, %v3404, %v3408
        %v3413 = vand.u32 2147483647, %v3248
        %vm3414 = vcmp.eq.f32.partialorder %v3413, 8.507059e+37
        %v3415 = vand.u32 %v3248, 2147483648
        %v3416 = vor.u32 1.1754944e-38, %v3415
        %v3417 = vsel %vm3414, %v3416, %v3412
        %v3418 = vmul.f32 %v2805, %v3263
        %v3419 = vmul.f32 %v2807, %v3277
        %v3420 = vmul.f32 %v2809, %v3291
        %v3421 = vmul.f32 %v2811, %v3305
        %s3422 = scalar_lea.vmem %s3, 128
        %v3423 = vld [vmem:[%s3422] sm:$0xff]
        %v3424 = vld [vmem:[%s3422 + $0x8] sm:$0xff]
        %v3425 = vld [vmem:[%s3422 + $0x10] sm:$0xff]
        %v3426 = vld [vmem:[%s3422 + $0x18] sm:$0xff]
        %v3427 = vperm.slane %v1544, 0
        %v3428 = vperm.slane %v1796, 0
        %v3429 = vadd.f32 %v3427, %v3423
        %v3430 = vadd.f32 %v3428, %v3424
        %v3431 = vadd.f32 %v3427, %v3425
        %v3432 = vadd.f32 %v3428, %v3426
        %v3433 = vmul.f32 %v3418, %v3429
        %v3434 = vmul.f32 %v3419, %v3430
        %v3435 = vmul.f32 %v3420, %v3431
        %v3436 = vmul.f32 %v3421, %v3432
        %s3437 = scalar_lea.vmem %s3, 160
        %v3438 = vld [vmem:[%s3437] sm:$0xff]
        %v3439 = vld [vmem:[%s3437 + $0x8] sm:$0xff]
        %v3440 = vld [vmem:[%s3437 + $0x10] sm:$0xff]
        %v3441 = vld [vmem:[%s3437 + $0x18] sm:$0xff]
        %v3442 = vperm.slane %v1544, 1
        %v3443 = vperm.slane %v1796, 1
        %v3444 = vadd.f32 %v3442, %v3438
        %v3445 = vadd.f32 %v3443, %v3439
        %v3446 = vadd.f32 %v3442, %v3440
        %v3447 = vadd.f32 %v3443, %v3441
        %v3448 = vmul.f32 %v3418, %v3444
        %v3449 = vmul.f32 %v3419, %v3445
        %v3450 = vmul.f32 %v3420, %v3446
        %v3451 = vmul.f32 %v3421, %v3447
        %s3452 = scalar_lea.vmem %s3, 192
        %v3453 = vld [vmem:[%s3452] sm:$0xff]
        %v3454 = vld [vmem:[%s3452 + $0x8] sm:$0xff]
        %v3455 = vld [vmem:[%s3452 + $0x10] sm:$0xff]
        %v3456 = vld [vmem:[%s3452 + $0x18] sm:$0xff]
        %v3457 = vperm.slane %v1544, 2
        %v3458 = vperm.slane %v1796, 2
        %v3459 = vadd.f32 %v3457, %v3453
        %v3460 = vadd.f32 %v3458, %v3454
        %v3461 = vadd.f32 %v3457, %v3455
        %v3462 = vadd.f32 %v3458, %v3456
        %v3463 = vmul.f32 %v3418, %v3459
        %v3464 = vmul.f32 %v3419, %v3460
        %v3465 = vmul.f32 %v3420, %v3461
        %v3466 = vmul.f32 %v3421, %v3462
        %s3467 = scalar_lea.vmem %s3, 224
        %v3468 = vld [vmem:[%s3467] sm:$0xff]
        %v3469 = vld [vmem:[%s3467 + $0x8] sm:$0xff]
        %v3470 = vld [vmem:[%s3467 + $0x10] sm:$0xff]
        %v3471 = vld [vmem:[%s3467 + $0x18] sm:$0xff]
        %v3472 = vperm.slane %v1544, 3
        %v3473 = vperm.slane %v1796, 3
        %v3474 = vadd.f32 %v3472, %v3468
        %v3475 = vadd.f32 %v3473, %v3469
        %v3476 = vadd.f32 %v3472, %v3470
        %v3477 = vadd.f32 %v3473, %v3471
        %v3478 = vmul.f32 %v3418, %v3474
        %v3479 = vmul.f32 %v3419, %v3475
        %v3480 = vmul.f32 %v3420, %v3476
        %v3481 = vmul.f32 %v3421, %v3477
        %v3482 = vmul.f32 %v2895, %v3319
        %v3483 = vmul.f32 %v2897, %v3333
        %v3484 = vmul.f32 %v2899, %v3347
        %v3485 = vmul.f32 %v2901, %v3361
        %s3486 = scalar_lea.vmem %s3, 256
        %v3487 = vld [vmem:[%s3486] sm:$0xff]
        %v3488 = vld [vmem:[%s3486 + $0x8] sm:$0xff]
        %v3489 = vld [vmem:[%s3486 + $0x10] sm:$0xff]
        %v3490 = vld [vmem:[%s3486 + $0x18] sm:$0xff]
        %v3491 = vperm.slane %v1544, 4
        %v3492 = vperm.slane %v1796, 4
        %v3493 = vadd.f32 %v3491, %v3487
        %v3494 = vadd.f32 %v3492, %v3488
        %v3495 = vadd.f32 %v3491, %v3489
        %v3496 = vadd.f32 %v3492, %v3490
        %v3497 = vmul.f32 %v3482, %v3493
        %v3498 = vmul.f32 %v3483, %v3494
        %v3499 = vmul.f32 %v3484, %v3495
        %v3500 = vmul.f32 %v3485, %v3496
        %s3501 = scalar_lea.vmem %s3, 288
        %v3502 = vld [vmem:[%s3501] sm:$0xff]
        %v3503 = vld [vmem:[%s3501 + $0x8] sm:$0xff]
        %v3504 = vld [vmem:[%s3501 + $0x10] sm:$0xff]
        %v3505 = vld [vmem:[%s3501 + $0x18] sm:$0xff]
        %v3506 = vperm.slane %v1544, 5
        %v3507 = vperm.slane %v1796, 5
        %v3508 = vadd.f32 %v3506, %v3502
        %v3509 = vadd.f32 %v3507, %v3503
        %v3510 = vadd.f32 %v3506, %v3504
        %v3511 = vadd.f32 %v3507, %v3505
        %v3512 = vmul.f32 %v3482, %v3508
        %v3513 = vmul.f32 %v3483, %v3509
        %v3514 = vmul.f32 %v3484, %v3510
        %v3515 = vmul.f32 %v3485, %v3511
        %s3516 = scalar_lea.vmem %s3, 320
        %v3517 = vld [vmem:[%s3516] sm:$0xff]
        %v3518 = vld [vmem:[%s3516 + $0x8] sm:$0xff]
        %v3519 = vld [vmem:[%s3516 + $0x10] sm:$0xff]
        %v3520 = vld [vmem:[%s3516 + $0x18] sm:$0xff]
        %v3521 = vperm.slane %v1544, 6
        %v3522 = vperm.slane %v1796, 6
        %v3523 = vadd.f32 %v3521, %v3517
        %v3524 = vadd.f32 %v3522, %v3518
        %v3525 = vadd.f32 %v3521, %v3519
        %v3526 = vadd.f32 %v3522, %v3520
        %v3527 = vmul.f32 %v3482, %v3523
        %v3528 = vmul.f32 %v3483, %v3524
        %v3529 = vmul.f32 %v3484, %v3525
        %v3530 = vmul.f32 %v3485, %v3526
        %s3531 = scalar_lea.vmem %s3, 352
        %v3532 = vld [vmem:[%s3531] sm:$0xff]
        %v3533 = vld [vmem:[%s3531 + $0x8] sm:$0xff]
        %v3534 = vld [vmem:[%s3531 + $0x10] sm:$0xff]
        %v3535 = vld [vmem:[%s3531 + $0x18] sm:$0xff]
        %v3536 = vperm.slane %v1544, 7
        %v3537 = vperm.slane %v1796, 7
        %v3538 = vadd.f32 %v3536, %v3532
        %v3539 = vadd.f32 %v3537, %v3533
        %v3540 = vadd.f32 %v3536, %v3534
        %v3541 = vadd.f32 %v3537, %v3535
        %v3542 = vmul.f32 %v3482, %v3538
        %v3543 = vmul.f32 %v3483, %v3539
        %v3544 = vmul.f32 %v3484, %v3540
        %v3545 = vmul.f32 %v3485, %v3541
        %v3546 = vmul.f32 %v2985, %v3375
        %v3547 = vmul.f32 %v2987, %v3389
        %v3548 = vmul.f32 %v2989, %v3403
        %v3549 = vmul.f32 %v2991, %v3417
        %s3550 = scalar_lea.vmem %s3, 384
        %v3551 = vld [vmem:[%s3550] sm:$0xff]
        %v3552 = vld [vmem:[%s3550 + $0x8] sm:$0xff]
        %v3553 = vld [vmem:[%s3550 + $0x10] sm:$0xff]
        %v3554 = vld [vmem:[%s3550 + $0x18] sm:$0xff]
        %v3555 = vperm.slane %v1548, 0
        %v3556 = vperm.slane %v1800, 0
        %v3557 = vadd.f32 %v3555, %v3551
        %v3558 = vadd.f32 %v3556, %v3552
        %v3559 = vadd.f32 %v3555, %v3553
        %v3560 = vadd.f32 %v3556, %v3554
        %v3561 = vmul.f32 %v3546, %v3557
        %v3562 = vmul.f32 %v3547, %v3558
        %v3563 = vmul.f32 %v3548, %v3559
        %v3564 = vmul.f32 %v3549, %v3560
        %s3565 = scalar_lea.vmem %s3, 416
        %v3566 = vld [vmem:[%s3565] sm:$0xff]
        %v3567 = vld [vmem:[%s3565 + $0x8] sm:$0xff]
        %v3568 = vld [vmem:[%s3565 + $0x10] sm:$0xff]
        %v3569 = vld [vmem:[%s3565 + $0x18] sm:$0xff]
        %v3570 = vperm.slane %v1548, 1
        %v3571 = vperm.slane %v1800, 1
        %v3572 = vadd.f32 %v3570, %v3566
        %v3573 = vadd.f32 %v3571, %v3567
        %v3574 = vadd.f32 %v3570, %v3568
        %v3575 = vadd.f32 %v3571, %v3569
        %v3576 = vmul.f32 %v3546, %v3572
        %v3577 = vmul.f32 %v3547, %v3573
        %v3578 = vmul.f32 %v3548, %v3574
        %v3579 = vmul.f32 %v3549, %v3575
        %s3580 = scalar_lea.vmem %s3, 448
        %v3581 = vld [vmem:[%s3580] sm:$0xff]
        %v3582 = vld [vmem:[%s3580 + $0x8] sm:$0xff]
        %v3583 = vld [vmem:[%s3580 + $0x10] sm:$0xff]
        %v3584 = vld [vmem:[%s3580 + $0x18] sm:$0xff]
        %v3585 = vperm.slane %v1548, 2
        %v3586 = vperm.slane %v1800, 2
        %v3587 = vadd.f32 %v3585, %v3581
        %v3588 = vadd.f32 %v3586, %v3582
        %v3589 = vadd.f32 %v3585, %v3583
        %v3590 = vadd.f32 %v3586, %v3584
        %v3591 = vmul.f32 %v3546, %v3587
        %v3592 = vmul.f32 %v3547, %v3588
        %v3593 = vmul.f32 %v3548, %v3589
        %v3594 = vmul.f32 %v3549, %v3590
        %s3595 = scalar_lea.vmem %s3, 480
        %v3596 = vld [vmem:[%s3595] sm:$0xff]
        %v3597 = vld [vmem:[%s3595 + $0x8] sm:$0xff]
        %v3598 = vld [vmem:[%s3595 + $0x10] sm:$0xff]
        %v3599 = vld [vmem:[%s3595 + $0x18] sm:$0xff]
        %v3600 = vperm.slane %v1548, 3
        %v3601 = vperm.slane %v1800, 3
        %v3602 = vadd.f32 %v3600, %v3596
        %v3603 = vadd.f32 %v3601, %v3597
        %v3604 = vadd.f32 %v3600, %v3598
        %v3605 = vadd.f32 %v3601, %v3599
        %v3606 = vmul.f32 %v3546, %v3602
        %v3607 = vmul.f32 %v3547, %v3603
        %v3608 = vmul.f32 %v3548, %v3604
        %v3609 = vmul.f32 %v3549, %v3605
        %v3610 = vpack.c.bf16 %v3434, %v3433
        %v3611 = vpack.c.bf16 %v3436, %v3435
        %v3612 = vpack.c.bf16 %v3449, %v3448
        %v3613 = vpack.c.bf16 %v3451, %v3450
        %v3614 = vpack.c.bf16 %v3464, %v3463
        %v3615 = vpack.c.bf16 %v3466, %v3465
        %v3616 = vpack.c.bf16 %v3479, %v3478
        %v3617 = vpack.c.bf16 %v3481, %v3480
        %v3618 = vpack.c.bf16 %v3498, %v3497
        %v3619 = vpack.c.bf16 %v3500, %v3499
        %v3620 = vpack.c.bf16 %v3513, %v3512
        %v3621 = vpack.c.bf16 %v3515, %v3514
        %v3622 = vpack.c.bf16 %v3528, %v3527
        %v3623 = vpack.c.bf16 %v3530, %v3529
        %v3624 = vpack.c.bf16 %v3543, %v3542
        %v3625 = vpack.c.bf16 %v3545, %v3544
        %v3626 = vpack.c.bf16 %v3562, %v3561
        %v3627 = vpack.c.bf16 %v3564, %v3563
        %v3628 = vpack.c.bf16 %v3577, %v3576
        %v3629 = vpack.c.bf16 %v3579, %v3578
        %v3630 = vpack.c.bf16 %v3592, %v3591
        %v3631 = vpack.c.bf16 %v3594, %v3593
        %v3632 = vpack.c.bf16 %v3607, %v3606
        %v3633 = vpack.c.bf16 %v3609, %v3608
        %v3634 = vunpack.c.l.bf16 %v3610
        %v3635 = vunpack.c.h.bf16 %v3610
        %v3636 = vunpack.c.l.bf16 %v3611
        %v3637 = vunpack.c.h.bf16 %v3611
        %v3638 = vunpack.c.l.bf16 %v3612
        %v3639 = vunpack.c.h.bf16 %v3612
        %v3640 = vunpack.c.l.bf16 %v3613
        %v3641 = vunpack.c.h.bf16 %v3613
        %v3642 = vunpack.c.l.bf16 %v3614
        %v3643 = vunpack.c.h.bf16 %v3614
        %v3644 = vunpack.c.l.bf16 %v3615
        %v3645 = vunpack.c.h.bf16 %v3615
        %v3646 = vunpack.c.l.bf16 %v3616
        %v3647 = vunpack.c.h.bf16 %v3616
        %v3648 = vunpack.c.l.bf16 %v3617
        %v3649 = vunpack.c.h.bf16 %v3617
        %v3650 = vunpack.c.l.bf16 %v3618
        %v3651 = vunpack.c.h.bf16 %v3618
        %v3652 = vunpack.c.l.bf16 %v3619
        %v3653 = vunpack.c.h.bf16 %v3619
        %v3654 = vunpack.c.l.bf16 %v3620
        %v3655 = vunpack.c.h.bf16 %v3620
        %v3656 = vunpack.c.l.bf16 %v3621
        %v3657 = vunpack.c.h.bf16 %v3621
        %v3658 = vunpack.c.l.bf16 %v3622
        %v3659 = vunpack.c.h.bf16 %v3622
        %v3660 = vunpack.c.l.bf16 %v3623
        %v3661 = vunpack.c.h.bf16 %v3623
        %v3662 = vunpack.c.l.bf16 %v3624
        %v3663 = vunpack.c.h.bf16 %v3624
        %v3664 = vunpack.c.l.bf16 %v3625
        %v3665 = vunpack.c.h.bf16 %v3625
        %v3666 = vunpack.c.l.bf16 %v3626
        %v3667 = vunpack.c.h.bf16 %v3626
        %v3668 = vunpack.c.l.bf16 %v3627
        %v3669 = vunpack.c.h.bf16 %v3627
        %v3670 = vunpack.c.l.bf16 %v3628
        %v3671 = vunpack.c.h.bf16 %v3628
        %v3672 = vunpack.c.l.bf16 %v3629
        %v3673 = vunpack.c.h.bf16 %v3629
        %v3674 = vunpack.c.l.bf16 %v3630
        %v3675 = vunpack.c.h.bf16 %v3630
        %v3676 = vunpack.c.l.bf16 %v3631
        %v3677 = vunpack.c.h.bf16 %v3631
        %v3678 = vunpack.c.l.bf16 %v3632
        %v3679 = vunpack.c.h.bf16 %v3632
        %v3680 = vunpack.c.l.bf16 %v3633
        %v3681 = vunpack.c.h.bf16 %v3633
        %v3682 = vsub.f32 %v3433, %v3634
        %v3683 = vsub.f32 %v3434, %v3635
        %v3684 = vsub.f32 %v3435, %v3636
        %v3685 = vsub.f32 %v3436, %v3637
        %v3686 = vsub.f32 %v3448, %v3638
        %v3687 = vsub.f32 %v3449, %v3639
        %v3688 = vsub.f32 %v3450, %v3640
        %v3689 = vsub.f32 %v3451, %v3641
        %v3690 = vsub.f32 %v3463, %v3642
        %v3691 = vsub.f32 %v3464, %v3643
        %v3692 = vsub.f32 %v3465, %v3644
        %v3693 = vsub.f32 %v3466, %v3645
        %v3694 = vsub.f32 %v3478, %v3646
        %v3695 = vsub.f32 %v3479, %v3647
        %v3696 = vsub.f32 %v3480, %v3648
        %v3697 = vsub.f32 %v3481, %v3649
        %v3698 = vsub.f32 %v3497, %v3650
        %v3699 = vsub.f32 %v3498, %v3651
        %v3700 = vsub.f32 %v3499, %v3652
        %v3701 = vsub.f32 %v3500, %v3653
        %v3702 = vsub.f32 %v3512, %v3654
        %v3703 = vsub.f32 %v3513, %v3655
        %v3704 = vsub.f32 %v3514, %v3656
        %v3705 = vsub.f32 %v3515, %v3657
        %v3706 = vsub.f32 %v3527, %v3658
        %v3707 = vsub.f32 %v3528, %v3659
        %v3708 = vsub.f32 %v3529, %v3660
        %v3709 = vsub.f32 %v3530, %v3661
        %v3710 = vsub.f32 %v3542, %v3662
        %v3711 = vsub.f32 %v3543, %v3663
        %v3712 = vsub.f32 %v3544, %v3664
        %v3713 = vsub.f32 %v3545, %v3665
        %v3714 = vsub.f32 %v3561, %v3666
        %v3715 = vsub.f32 %v3562, %v3667
        %v3716 = vsub.f32 %v3563, %v3668
        %v3717 = vsub.f32 %v3564, %v3669
        %v3718 = vsub.f32 %v3576, %v3670
        %v3719 = vsub.f32 %v3577, %v3671
        %v3720 = vsub.f32 %v3578, %v3672
        %v3721 = vsub.f32 %v3579, %v3673
        %v3722 = vsub.f32 %v3591, %v3674
        %v3723 = vsub.f32 %v3592, %v3675
        %v3724 = vsub.f32 %v3593, %v3676
        %v3725 = vsub.f32 %v3594, %v3677
        %v3726 = vsub.f32 %v3606, %v3678
        %v3727 = vsub.f32 %v3607, %v3679
        %v3728 = vsub.f32 %v3608, %v3680
        %v3729 = vsub.f32 %v3609, %v3681
        %v3730 = vpack.c.bf16 %v3684, %v3682
        %v3731 = vpack.c.bf16 %v3685, %v3683
        %v3732 = vpack.c.bf16 %v3688, %v3686
        %v3733 = vpack.c.bf16 %v3689, %v3687
        %v3734 = vpack.c.bf16 %v3692, %v3690
        %v3735 = vpack.c.bf16 %v3693, %v3691
        %v3736 = vpack.c.bf16 %v3696, %v3694
        %v3737 = vpack.c.bf16 %v3697, %v3695
        %v3738 = vpack.c.bf16 %v3700, %v3698
        %v3739 = vpack.c.bf16 %v3701, %v3699
        %v3740 = vpack.c.bf16 %v3704, %v3702
        %v3741 = vpack.c.bf16 %v3705, %v3703
        %v3742 = vpack.c.bf16 %v3708, %v3706
        %v3743 = vpack.c.bf16 %v3709, %v3707
        %v3744 = vpack.c.bf16 %v3712, %v3710
        %v3745 = vpack.c.bf16 %v3713, %v3711
        %v3746 = vpack.c.bf16 %v3716, %v3714
        %v3747 = vpack.c.bf16 %v3717, %v3715
        %v3748 = vpack.c.bf16 %v3720, %v3718
        %v3749 = vpack.c.bf16 %v3721, %v3719
        %v3750 = vpack.c.bf16 %v3724, %v3722
        %v3751 = vpack.c.bf16 %v3725, %v3723
        %v3752 = vpack.c.bf16 %v3728, %v3726
        %v3753 = vpack.c.bf16 %v3729, %v3727
        %3754 = vmatpush.bf16.msra.mxu0 %v2281
        %3755 = vmatpush.bf16.msra.mxu0 %v2279
        %3756 = vmatpush.bf16.msra.mxu0 %v2277
        %3757 = vmatpush.bf16.msra.mxu0 %v2275
        %3758 = vmatpush.bf16.msra.mxu0 %v2273
        %3759 = vmatpush.bf16.msra.mxu0 %v2271
        %3760 = vmatpush.bf16.msra.mxu0 %v2269
        %3761 = vmatpush.bf16.msra.mxu0 %v2267
        %3762 = vmatmul.bf16.gmra.mxu0 %v3730
        %v3763 = vpop.f32.mrf.mxu0
        %v3764 = vadd.f32 0.0, %v3763
        %v3765 = vpop.f32.mrf.mxu0
        %v3766 = vadd.f32 0.0, %v3765
        %3767 = vmatmul.bf16.gmra.mxu0 %v3732
        %v3768 = vpop.f32.mrf.mxu0
        %v3769 = vadd.f32 0.0, %v3768
        %v3770 = vpop.f32.mrf.mxu0
        %v3771 = vadd.f32 0.0, %v3770
        %3772 = vmatmul.bf16.gmra.mxu0 %v3734
        %v3773 = vpop.f32.mrf.mxu0
        %v3774 = vadd.f32 0.0, %v3773
        %v3775 = vpop.f32.mrf.mxu0
        %v3776 = vadd.f32 0.0, %v3775
        %3777 = vmatmul.bf16.gmra.mxu0 %v3736
        %v3778 = vpop.f32.mrf.mxu0
        %v3779 = vadd.f32 0.0, %v3778
        %v3780 = vpop.f32.mrf.mxu0
        %v3781 = vadd.f32 0.0, %v3780
        %3782 = vmatmul.bf16.gmra.mxu0 %v3738
        %v3783 = vpop.f32.mrf.mxu0
        %v3784 = vadd.f32 0.0, %v3783
        %v3785 = vpop.f32.mrf.mxu0
        %v3786 = vadd.f32 0.0, %v3785
        %3787 = vmatmul.bf16.gmra.mxu0 %v3740
        %v3788 = vpop.f32.mrf.mxu0
        %v3789 = vadd.f32 0.0, %v3788
        %v3790 = vpop.f32.mrf.mxu0
        %v3791 = vadd.f32 0.0, %v3790
        %3792 = vmatmul.bf16.gmra.mxu0 %v3742
        %v3793 = vpop.f32.mrf.mxu0
        %v3794 = vadd.f32 0.0, %v3793
        %v3795 = vpop.f32.mrf.mxu0
        %v3796 = vadd.f32 0.0, %v3795
        %3797 = vmatmul.bf16.gmra.mxu0 %v3744
        %v3798 = vpop.f32.mrf.mxu0
        %v3799 = vadd.f32 0.0, %v3798
        %v3800 = vpop.f32.mrf.mxu0
        %v3801 = vadd.f32 0.0, %v3800
        %3802 = vmatmul.bf16.gmra.mxu0 %v3746
        %v3803 = vpop.f32.mrf.mxu0
        %v3804 = vadd.f32 0.0, %v3803
        %v3805 = vpop.f32.mrf.mxu0
        %v3806 = vadd.f32 0.0, %v3805
        %3807 = vmatmul.bf16.gmra.mxu0 %v3748
        %v3808 = vpop.f32.mrf.mxu0
        %v3809 = vadd.f32 0.0, %v3808
        %v3810 = vpop.f32.mrf.mxu0
        %v3811 = vadd.f32 0.0, %v3810
        %3812 = vmatmul.bf16.gmra.mxu0 %v3750
        %v3813 = vpop.f32.mrf.mxu0
        %v3814 = vadd.f32 0.0, %v3813
        %v3815 = vpop.f32.mrf.mxu0
        %v3816 = vadd.f32 0.0, %v3815
        %3817 = vmatmul.bf16.gmra.mxu0 %v3752
        %v3818 = vpop.f32.mrf.mxu0
        %v3819 = vadd.f32 0.0, %v3818
        %v3820 = vpop.f32.mrf.mxu0
        %v3821 = vadd.f32 0.0, %v3820
        %3822 = vdwg.mxu0
        %3823 = vmatpush.bf16.msra.mxu0 %v2297
        %3824 = vmatpush.bf16.msra.mxu0 %v2295
        %3825 = vmatpush.bf16.msra.mxu0 %v2293
        %3826 = vmatpush.bf16.msra.mxu0 %v2291
        %3827 = vmatpush.bf16.msra.mxu0 %v2289
        %3828 = vmatpush.bf16.msra.mxu0 %v2287
        %3829 = vmatpush.bf16.msra.mxu0 %v2285
        %3830 = vmatpush.bf16.msra.mxu0 %v2283
        %3831 = vmatmul.bf16.gmra.mxu0 %v3731
        %v3832 = vpop.f32.mrf.mxu0
        %v3833 = vadd.f32 %v3764, %v3832
        %v3834 = vpop.f32.mrf.mxu0
        %v3835 = vadd.f32 %v3766, %v3834
        %3836 = vmatmul.bf16.gmra.mxu0 %v3733
        %v3837 = vpop.f32.mrf.mxu0
        %v3838 = vadd.f32 %v3769, %v3837
        %v3839 = vpop.f32.mrf.mxu0
        %v3840 = vadd.f32 %v3771, %v3839
        %3841 = vmatmul.bf16.gmra.mxu0 %v3735
        %v3842 = vpop.f32.mrf.mxu0
        %v3843 = vadd.f32 %v3774, %v3842
        %v3844 = vpop.f32.mrf.mxu0
        %v3845 = vadd.f32 %v3776, %v3844
        %3846 = vmatmul.bf16.gmra.mxu0 %v3737
        %v3847 = vpop.f32.mrf.mxu0
        %v3848 = vadd.f32 %v3779, %v3847
        %v3849 = vpop.f32.mrf.mxu0
        %v3850 = vadd.f32 %v3781, %v3849
        %3851 = vmatmul.bf16.gmra.mxu0 %v3739
        %v3852 = vpop.f32.mrf.mxu0
        %v3853 = vadd.f32 %v3784, %v3852
        %v3854 = vpop.f32.mrf.mxu0
        %v3855 = vadd.f32 %v3786, %v3854
        %3856 = vmatmul.bf16.gmra.mxu0 %v3741
        %v3857 = vpop.f32.mrf.mxu0
        %v3858 = vadd.f32 %v3789, %v3857
        %v3859 = vpop.f32.mrf.mxu0
        %v3860 = vadd.f32 %v3791, %v3859
        %3861 = vmatmul.bf16.gmra.mxu0 %v3743
        %v3862 = vpop.f32.mrf.mxu0
        %v3863 = vadd.f32 %v3794, %v3862
        %v3864 = vpop.f32.mrf.mxu0
        %v3865 = vadd.f32 %v3796, %v3864
        %3866 = vmatmul.bf16.gmra.mxu0 %v3745
        %v3867 = vpop.f32.mrf.mxu0
        %v3868 = vadd.f32 %v3799, %v3867
        %v3869 = vpop.f32.mrf.mxu0
        %v3870 = vadd.f32 %v3801, %v3869
        %3871 = vmatmul.bf16.gmra.mxu0 %v3747
        %v3872 = vpop.f32.mrf.mxu0
        %v3873 = vadd.f32 %v3804, %v3872
        %v3874 = vpop.f32.mrf.mxu0
        %v3875 = vadd.f32 %v3806, %v3874
        %3876 = vmatmul.bf16.gmra.mxu0 %v3749
        %v3877 = vpop.f32.mrf.mxu0
        %v3878 = vadd.f32 %v3809, %v3877
        %v3879 = vpop.f32.mrf.mxu0
        %v3880 = vadd.f32 %v3811, %v3879
        %3881 = vmatmul.bf16.gmra.mxu0 %v3751
        %v3882 = vpop.f32.mrf.mxu0
        %v3883 = vadd.f32 %v3814, %v3882
        %v3884 = vpop.f32.mrf.mxu0
        %v3885 = vadd.f32 %v3816, %v3884
        %3886 = vmatmul.bf16.gmra.mxu0 %v3753
        %v3887 = vpop.f32.mrf.mxu0
        %v3888 = vadd.f32 %v3819, %v3887
        %v3889 = vpop.f32.mrf.mxu0
        %v3890 = vadd.f32 %v3821, %v3889
        %3891 = vdwg.mxu0
        %3892 = vmatpush.bf16.msra.mxu0 %v2282
        %3893 = vmatpush.bf16.msra.mxu0 %v2280
        %3894 = vmatpush.bf16.msra.mxu0 %v2278
        %3895 = vmatpush.bf16.msra.mxu0 %v2276
        %3896 = vmatpush.bf16.msra.mxu0 %v2274
        %3897 = vmatpush.bf16.msra.mxu0 %v2272
        %3898 = vmatpush.bf16.msra.mxu0 %v2270
        %3899 = vmatpush.bf16.msra.mxu0 %v2268
        %3900 = vmatmul.bf16.gmra.mxu0 %v3730
        %v3901 = vpop.f32.mrf.mxu0
        %v3902 = vadd.f32 0.0, %v3901
        %v3903 = vpop.f32.mrf.mxu0
        %v3904 = vadd.f32 0.0, %v3903
        %3905 = vmatmul.bf16.gmra.mxu0 %v3732
        %v3906 = vpop.f32.mrf.mxu0
        %v3907 = vadd.f32 0.0, %v3906
        %v3908 = vpop.f32.mrf.mxu0
        %v3909 = vadd.f32 0.0, %v3908
        %3910 = vmatmul.bf16.gmra.mxu0 %v3734
        %v3911 = vpop.f32.mrf.mxu0
        %v3912 = vadd.f32 0.0, %v3911
        %v3913 = vpop.f32.mrf.mxu0
        %v3914 = vadd.f32 0.0, %v3913
        %3915 = vmatmul.bf16.gmra.mxu0 %v3736
        %v3916 = vpop.f32.mrf.mxu0
        %v3917 = vadd.f32 0.0, %v3916
        %v3918 = vpop.f32.mrf.mxu0
        %v3919 = vadd.f32 0.0, %v3918
        %3920 = vmatmul.bf16.gmra.mxu0 %v3738
        %v3921 = vpop.f32.mrf.mxu0
        %v3922 = vadd.f32 0.0, %v3921
        %v3923 = vpop.f32.mrf.mxu0
        %v3924 = vadd.f32 0.0, %v3923
        %3925 = vmatmul.bf16.gmra.mxu0 %v3740
        %v3926 = vpop.f32.mrf.mxu0
        %v3927 = vadd.f32 0.0, %v3926
        %v3928 = vpop.f32.mrf.mxu0
        %v3929 = vadd.f32 0.0, %v3928
        %3930 = vmatmul.bf16.gmra.mxu0 %v3742
        %v3931 = vpop.f32.mrf.mxu0
        %v3932 = vadd.f32 0.0, %v3931
        %v3933 = vpop.f32.mrf.mxu0
        %v3934 = vadd.f32 0.0, %v3933
        %3935 = vmatmul.bf16.gmra.mxu0 %v3744
        %v3936 = vpop.f32.mrf.mxu0
        %v3937 = vadd.f32 0.0, %v3936
        %v3938 = vpop.f32.mrf.mxu0
        %v3939 = vadd.f32 0.0, %v3938
        %3940 = vmatmul.bf16.gmra.mxu0 %v3746
        %v3941 = vpop.f32.mrf.mxu0
        %v3942 = vadd.f32 0.0, %v3941
        %v3943 = vpop.f32.mrf.mxu0
        %v3944 = vadd.f32 0.0, %v3943
        %3945 = vmatmul.bf16.gmra.mxu0 %v3748
        %v3946 = vpop.f32.mrf.mxu0
        %v3947 = vadd.f32 0.0, %v3946
        %v3948 = vpop.f32.mrf.mxu0
        %v3949 = vadd.f32 0.0, %v3948
        %3950 = vmatmul.bf16.gmra.mxu0 %v3750
        %v3951 = vpop.f32.mrf.mxu0
        %v3952 = vadd.f32 0.0, %v3951
        %v3953 = vpop.f32.mrf.mxu0
        %v3954 = vadd.f32 0.0, %v3953
        %3955 = vmatmul.bf16.gmra.mxu0 %v3752
        %v3956 = vpop.f32.mrf.mxu0
        %v3957 = vadd.f32 0.0, %v3956
        %v3958 = vpop.f32.mrf.mxu0
        %v3959 = vadd.f32 0.0, %v3958
        %3960 = vdwg.mxu0
        %3961 = vmatpush.bf16.msra.mxu0 %v2298
        %3962 = vmatpush.bf16.msra.mxu0 %v2296
        %3963 = vmatpush.bf16.msra.mxu0 %v2294
        %3964 = vmatpush.bf16.msra.mxu0 %v2292
        %3965 = vmatpush.bf16.msra.mxu0 %v2290
        %3966 = vmatpush.bf16.msra.mxu0 %v2288
        %3967 = vmatpush.bf16.msra.mxu0 %v2286
        %3968 = vmatpush.bf16.msra.mxu0 %v2284
        %3969 = vmatmul.bf16.gmra.mxu0 %v3731
        %v3970 = vpop.f32.mrf.mxu0
        %v3971 = vadd.f32 %v3902, %v3970
        %v3972 = vpop.f32.mrf.mxu0
        %v3973 = vadd.f32 %v3904, %v3972
        %3974 = vmatmul.bf16.gmra.mxu0 %v3733
        %v3975 = vpop.f32.mrf.mxu0
        %v3976 = vadd.f32 %v3907, %v3975
        %v3977 = vpop.f32.mrf.mxu0
        %v3978 = vadd.f32 %v3909, %v3977
        %3979 = vmatmul.bf16.gmra.mxu0 %v3735
        %v3980 = vpop.f32.mrf.mxu0
        %v3981 = vadd.f32 %v3912, %v3980
        %v3982 = vpop.f32.mrf.mxu0
        %v3983 = vadd.f32 %v3914, %v3982
        %3984 = vmatmul.bf16.gmra.mxu0 %v3737
        %v3985 = vpop.f32.mrf.mxu0
        %v3986 = vadd.f32 %v3917, %v3985
        %v3987 = vpop.f32.mrf.mxu0
        %v3988 = vadd.f32 %v3919, %v3987
        %3989 = vmatmul.bf16.gmra.mxu0 %v3739
        %v3990 = vpop.f32.mrf.mxu0
        %v3991 = vadd.f32 %v3922, %v3990
        %v3992 = vpop.f32.mrf.mxu0
        %v3993 = vadd.f32 %v3924, %v3992
        %3994 = vmatmul.bf16.gmra.mxu0 %v3741
        %v3995 = vpop.f32.mrf.mxu0
        %v3996 = vadd.f32 %v3927, %v3995
        %v3997 = vpop.f32.mrf.mxu0
        %v3998 = vadd.f32 %v3929, %v3997
        %3999 = vmatmul.bf16.gmra.mxu0 %v3743
        %v4000 = vpop.f32.mrf.mxu0
        %v4001 = vadd.f32 %v3932, %v4000
        %v4002 = vpop.f32.mrf.mxu0
        %v4003 = vadd.f32 %v3934, %v4002
        %4004 = vmatmul.bf16.gmra.mxu0 %v3745
        %v4005 = vpop.f32.mrf.mxu0
        %v4006 = vadd.f32 %v3937, %v4005
        %v4007 = vpop.f32.mrf.mxu0
        %v4008 = vadd.f32 %v3939, %v4007
        %4009 = vmatmul.bf16.gmra.mxu0 %v3747
        %v4010 = vpop.f32.mrf.mxu0
        %v4011 = vadd.f32 %v3942, %v4010
        %v4012 = vpop.f32.mrf.mxu0
        %v4013 = vadd.f32 %v3944, %v4012
        %4014 = vmatmul.bf16.gmra.mxu0 %v3749
        %v4015 = vpop.f32.mrf.mxu0
        %v4016 = vadd.f32 %v3947, %v4015
        %v4017 = vpop.f32.mrf.mxu0
        %v4018 = vadd.f32 %v3949, %v4017
        %4019 = vmatmul.bf16.gmra.mxu0 %v3751
        %v4020 = vpop.f32.mrf.mxu0
        %v4021 = vadd.f32 %v3952, %v4020
        %v4022 = vpop.f32.mrf.mxu0
        %v4023 = vadd.f32 %v3954, %v4022
        %4024 = vmatmul.bf16.gmra.mxu0 %v3753
        %v4025 = vpop.f32.mrf.mxu0
        %v4026 = vadd.f32 %v3957, %v4025
        %v4027 = vpop.f32.mrf.mxu0
        %v4028 = vadd.f32 %v3959, %v4027
        %4029 = vdwg.mxu0
        %v4054 = vunpack.c.l.b16 %v3610
        %v4055 = vunpack.c.h.b16 %v3610
        %v4056 = vunpack.c.l.b16 %v3611
        %v4057 = vunpack.c.h.b16 %v3611
        %v4058 = vunpack.c.l.b16 %v3612
        %v4059 = vunpack.c.h.b16 %v3612
        %v4060 = vunpack.c.l.b16 %v3613
        %v4061 = vunpack.c.h.b16 %v3613
        %v4062 = vunpack.c.l.b16 %v3614
        %v4063 = vunpack.c.h.b16 %v3614
        %v4064 = vunpack.c.l.b16 %v3615
        %v4065 = vunpack.c.h.b16 %v3615
        %v4066 = vunpack.c.l.b16 %v3616
        %v4067 = vunpack.c.h.b16 %v3616
        %v4068 = vunpack.c.l.b16 %v3617
        %v4069 = vunpack.c.h.b16 %v3617
        %v4070 = vunpack.c.l.b16 %v3618
        %v4071 = vunpack.c.h.b16 %v3618
        %v4072 = vunpack.c.l.b16 %v3619
        %v4073 = vunpack.c.h.b16 %v3619
        %v4074 = vunpack.c.l.b16 %v3620
        %v4075 = vunpack.c.h.b16 %v3620
        %v4076 = vunpack.c.l.b16 %v3621
        %v4077 = vunpack.c.h.b16 %v3621
        %v4078 = vunpack.c.l.b16 %v3622
        %v4079 = vunpack.c.h.b16 %v3622
        %v4080 = vunpack.c.l.b16 %v3623
        %v4081 = vunpack.c.h.b16 %v3623
        %v4082 = vunpack.c.l.b16 %v3624
        %v4083 = vunpack.c.h.b16 %v3624
        %v4084 = vunpack.c.l.b16 %v3625
        %v4085 = vunpack.c.h.b16 %v3625
        %v4086 = vunpack.c.l.b16 %v3626
        %v4087 = vunpack.c.h.b16 %v3626
        %v4088 = vunpack.c.l.b16 %v3627
        %v4089 = vunpack.c.h.b16 %v3627
        %v4090 = vunpack.c.l.b16 %v3628
        %v4091 = vunpack.c.h.b16 %v3628
        %v4092 = vunpack.c.l.b16 %v3629
        %v4093 = vunpack.c.h.b16 %v3629
        %v4094 = vunpack.c.l.b16 %v3630
        %v4095 = vunpack.c.h.b16 %v3630
        %v4096 = vunpack.c.l.b16 %v3631
        %v4097 = vunpack.c.h.b16 %v3631
        %v4098 = vunpack.c.l.b16 %v3632
        %v4099 = vunpack.c.h.b16 %v3632
        %v4100 = vunpack.c.l.b16 %v3633
        %v4101 = vunpack.c.h.b16 %v3633
        %v4102 = vpack.c.b16 %v4056, %v4054
        %v4103 = vpack.c.b16 %v4057, %v4055
        %v4104 = vpack.c.b16 %v4060, %v4058
        %v4105 = vpack.c.b16 %v4061, %v4059
        %v4106 = vpack.c.b16 %v4064, %v4062
        %v4107 = vpack.c.b16 %v4065, %v4063
        %v4108 = vpack.c.b16 %v4068, %v4066
        %v4109 = vpack.c.b16 %v4069, %v4067
        %v4110 = vpack.c.b16 %v4072, %v4070
        %v4111 = vpack.c.b16 %v4073, %v4071
        %v4112 = vpack.c.b16 %v4076, %v4074
        %v4113 = vpack.c.b16 %v4077, %v4075
        %v4114 = vpack.c.b16 %v4080, %v4078
        %v4115 = vpack.c.b16 %v4081, %v4079
        %v4116 = vpack.c.b16 %v4084, %v4082
        %v4117 = vpack.c.b16 %v4085, %v4083
        %v4118 = vpack.c.b16 %v4088, %v4086
        %v4119 = vpack.c.b16 %v4089, %v4087
        %v4120 = vpack.c.b16 %v4092, %v4090
        %v4121 = vpack.c.b16 %v4093, %v4091
        %v4122 = vpack.c.b16 %v4096, %v4094
        %v4123 = vpack.c.b16 %v4097, %v4095
        %v4124 = vpack.c.b16 %v4100, %v4098
        %v4125 = vpack.c.b16 %v4101, %v4099
        %4150 = vmatpush.bf16.msra.mxu0 %v2281
        %4151 = vmatpush.bf16.msra.mxu0 %v2279
        %4152 = vmatpush.bf16.msra.mxu0 %v2277
        %4153 = vmatpush.bf16.msra.mxu0 %v2275
        %4154 = vmatpush.bf16.msra.mxu0 %v2273
        %4155 = vmatpush.bf16.msra.mxu0 %v2271
        %4156 = vmatpush.bf16.msra.mxu0 %v2269
        %4157 = vmatpush.bf16.msra.mxu0 %v2267
        %4158 = vmatmul.bf16.gmra.mxu0 %v4102
        %v4159 = vpop.f32.mrf.mxu0
        %v4160 = vadd.f32 %v3833, %v4159
        %v4161 = vpop.f32.mrf.mxu0
        %v4162 = vadd.f32 %v3835, %v4161
        %4163 = vmatmul.bf16.gmra.mxu0 %v4104
        %v4164 = vpop.f32.mrf.mxu0
        %v4165 = vadd.f32 %v3838, %v4164
        %v4166 = vpop.f32.mrf.mxu0
        %v4167 = vadd.f32 %v3840, %v4166
        %4168 = vmatmul.bf16.gmra.mxu0 %v4106
        %v4169 = vpop.f32.mrf.mxu0
        %v4170 = vadd.f32 %v3843, %v4169
        %v4171 = vpop.f32.mrf.mxu0
        %v4172 = vadd.f32 %v3845, %v4171
        %4173 = vmatmul.bf16.gmra.mxu0 %v4108
        %v4174 = vpop.f32.mrf.mxu0
        %v4175 = vadd.f32 %v3848, %v4174
        %v4176 = vpop.f32.mrf.mxu0
        %v4177 = vadd.f32 %v3850, %v4176
        %4178 = vmatmul.bf16.gmra.mxu0 %v4110
        %v4179 = vpop.f32.mrf.mxu0
        %v4180 = vadd.f32 %v3853, %v4179
        %v4181 = vpop.f32.mrf.mxu0
        %v4182 = vadd.f32 %v3855, %v4181
        %4183 = vmatmul.bf16.gmra.mxu0 %v4112
        %v4184 = vpop.f32.mrf.mxu0
        %v4185 = vadd.f32 %v3858, %v4184
        %v4186 = vpop.f32.mrf.mxu0
        %v4187 = vadd.f32 %v3860, %v4186
        %4188 = vmatmul.bf16.gmra.mxu0 %v4114
        %v4189 = vpop.f32.mrf.mxu0
        %v4190 = vadd.f32 %v3863, %v4189
        %v4191 = vpop.f32.mrf.mxu0
        %v4192 = vadd.f32 %v3865, %v4191
        %4193 = vmatmul.bf16.gmra.mxu0 %v4116
        %v4194 = vpop.f32.mrf.mxu0
        %v4195 = vadd.f32 %v3868, %v4194
        %v4196 = vpop.f32.mrf.mxu0
        %v4197 = vadd.f32 %v3870, %v4196
        %4198 = vmatmul.bf16.gmra.mxu0 %v4118
        %v4199 = vpop.f32.mrf.mxu0
        %v4200 = vadd.f32 %v3873, %v4199
        %v4201 = vpop.f32.mrf.mxu0
        %v4202 = vadd.f32 %v3875, %v4201
        %4203 = vmatmul.bf16.gmra.mxu0 %v4120
        %v4204 = vpop.f32.mrf.mxu0
        %v4205 = vadd.f32 %v3878, %v4204
        %v4206 = vpop.f32.mrf.mxu0
        %v4207 = vadd.f32 %v3880, %v4206
        %4208 = vmatmul.bf16.gmra.mxu0 %v4122
        %v4209 = vpop.f32.mrf.mxu0
        %v4210 = vadd.f32 %v3883, %v4209
        %v4211 = vpop.f32.mrf.mxu0
        %v4212 = vadd.f32 %v3885, %v4211
        %4213 = vmatmul.bf16.gmra.mxu0 %v4124
        %v4214 = vpop.f32.mrf.mxu0
        %v4215 = vadd.f32 %v3888, %v4214
        %v4216 = vpop.f32.mrf.mxu0
        %v4217 = vadd.f32 %v3890, %v4216
        %4218 = vdwg.mxu0
        %4219 = vmatpush.bf16.msra.mxu0 %v2297
        %4220 = vmatpush.bf16.msra.mxu0 %v2295
        %4221 = vmatpush.bf16.msra.mxu0 %v2293
        %4222 = vmatpush.bf16.msra.mxu0 %v2291
        %4223 = vmatpush.bf16.msra.mxu0 %v2289
        %4224 = vmatpush.bf16.msra.mxu0 %v2287
        %4225 = vmatpush.bf16.msra.mxu0 %v2285
        %4226 = vmatpush.bf16.msra.mxu0 %v2283
        %4227 = vmatmul.bf16.gmra.mxu0 %v4103
        %v4228 = vpop.f32.mrf.mxu0
        %v4229 = vadd.f32 %v4160, %v4228
        %v4230 = vpop.f32.mrf.mxu0
        %v4231 = vadd.f32 %v4162, %v4230
        %4232 = vmatmul.bf16.gmra.mxu0 %v4105
        %v4233 = vpop.f32.mrf.mxu0
        %v4234 = vadd.f32 %v4165, %v4233
        %v4235 = vpop.f32.mrf.mxu0
        %v4236 = vadd.f32 %v4167, %v4235
        %4237 = vmatmul.bf16.gmra.mxu0 %v4107
        %v4238 = vpop.f32.mrf.mxu0
        %v4239 = vadd.f32 %v4170, %v4238
        %v4240 = vpop.f32.mrf.mxu0
        %v4241 = vadd.f32 %v4172, %v4240
        %4242 = vmatmul.bf16.gmra.mxu0 %v4109
        %v4243 = vpop.f32.mrf.mxu0
        %v4244 = vadd.f32 %v4175, %v4243
        %v4245 = vpop.f32.mrf.mxu0
        %v4246 = vadd.f32 %v4177, %v4245
        %4247 = vmatmul.bf16.gmra.mxu0 %v4111
        %v4248 = vpop.f32.mrf.mxu0
        %v4249 = vadd.f32 %v4180, %v4248
        %v4250 = vpop.f32.mrf.mxu0
        %v4251 = vadd.f32 %v4182, %v4250
        %4252 = vmatmul.bf16.gmra.mxu0 %v4113
        %v4253 = vpop.f32.mrf.mxu0
        %v4254 = vadd.f32 %v4185, %v4253
        %v4255 = vpop.f32.mrf.mxu0
        %v4256 = vadd.f32 %v4187, %v4255
        %4257 = vmatmul.bf16.gmra.mxu0 %v4115
        %v4258 = vpop.f32.mrf.mxu0
        %v4259 = vadd.f32 %v4190, %v4258
        %v4260 = vpop.f32.mrf.mxu0
        %v4261 = vadd.f32 %v4192, %v4260
        %4262 = vmatmul.bf16.gmra.mxu0 %v4117
        %v4263 = vpop.f32.mrf.mxu0
        %v4264 = vadd.f32 %v4195, %v4263
        %v4265 = vpop.f32.mrf.mxu0
        %v4266 = vadd.f32 %v4197, %v4265
        %4267 = vmatmul.bf16.gmra.mxu0 %v4119
        %v4268 = vpop.f32.mrf.mxu0
        %v4269 = vadd.f32 %v4200, %v4268
        %v4270 = vpop.f32.mrf.mxu0
        %v4271 = vadd.f32 %v4202, %v4270
        %4272 = vmatmul.bf16.gmra.mxu0 %v4121
        %v4273 = vpop.f32.mrf.mxu0
        %v4274 = vadd.f32 %v4205, %v4273
        %v4275 = vpop.f32.mrf.mxu0
        %v4276 = vadd.f32 %v4207, %v4275
        %4277 = vmatmul.bf16.gmra.mxu0 %v4123
        %v4278 = vpop.f32.mrf.mxu0
        %v4279 = vadd.f32 %v4210, %v4278
        %v4280 = vpop.f32.mrf.mxu0
        %v4281 = vadd.f32 %v4212, %v4280
        %4282 = vmatmul.bf16.gmra.mxu0 %v4125
        %v4283 = vpop.f32.mrf.mxu0
        %v4284 = vadd.f32 %v4215, %v4283
        %v4285 = vpop.f32.mrf.mxu0
        %v4286 = vadd.f32 %v4217, %v4285
        %4287 = vdwg.mxu0
        %4288 = vmatpush.bf16.msra.mxu0 %v2282
        %4289 = vmatpush.bf16.msra.mxu0 %v2280
        %4290 = vmatpush.bf16.msra.mxu0 %v2278
        %4291 = vmatpush.bf16.msra.mxu0 %v2276
        %4292 = vmatpush.bf16.msra.mxu0 %v2274
        %4293 = vmatpush.bf16.msra.mxu0 %v2272
        %4294 = vmatpush.bf16.msra.mxu0 %v2270
        %4295 = vmatpush.bf16.msra.mxu0 %v2268
        %4296 = vmatmul.bf16.gmra.mxu0 %v4102
        %v4297 = vpop.f32.mrf.mxu0
        %v4298 = vadd.f32 %v3971, %v4297
        %v4299 = vpop.f32.mrf.mxu0
        %v4300 = vadd.f32 %v3973, %v4299
        %4301 = vmatmul.bf16.gmra.mxu0 %v4104
        %v4302 = vpop.f32.mrf.mxu0
        %v4303 = vadd.f32 %v3976, %v4302
        %v4304 = vpop.f32.mrf.mxu0
        %v4305 = vadd.f32 %v3978, %v4304
        %4306 = vmatmul.bf16.gmra.mxu0 %v4106
        %v4307 = vpop.f32.mrf.mxu0
        %v4308 = vadd.f32 %v3981, %v4307
        %v4309 = vpop.f32.mrf.mxu0
        %v4310 = vadd.f32 %v3983, %v4309
        %4311 = vmatmul.bf16.gmra.mxu0 %v4108
        %v4312 = vpop.f32.mrf.mxu0
        %v4313 = vadd.f32 %v3986, %v4312
        %v4314 = vpop.f32.mrf.mxu0
        %v4315 = vadd.f32 %v3988, %v4314
        %4316 = vmatmul.bf16.gmra.mxu0 %v4110
        %v4317 = vpop.f32.mrf.mxu0
        %v4318 = vadd.f32 %v3991, %v4317
        %v4319 = vpop.f32.mrf.mxu0
        %v4320 = vadd.f32 %v3993, %v4319
        %4321 = vmatmul.bf16.gmra.mxu0 %v4112
        %v4322 = vpop.f32.mrf.mxu0
        %v4323 = vadd.f32 %v3996, %v4322
        %v4324 = vpop.f32.mrf.mxu0
        %v4325 = vadd.f32 %v3998, %v4324
        %4326 = vmatmul.bf16.gmra.mxu0 %v4114
        %v4327 = vpop.f32.mrf.mxu0
        %v4328 = vadd.f32 %v4001, %v4327
        %v4329 = vpop.f32.mrf.mxu0
        %v4330 = vadd.f32 %v4003, %v4329
        %4331 = vmatmul.bf16.gmra.mxu0 %v4116
        %v4332 = vpop.f32.mrf.mxu0
        %v4333 = vadd.f32 %v4006, %v4332
        %v4334 = vpop.f32.mrf.mxu0
        %v4335 = vadd.f32 %v4008, %v4334
        %4336 = vmatmul.bf16.gmra.mxu0 %v4118
        %v4337 = vpop.f32.mrf.mxu0
        %v4338 = vadd.f32 %v4011, %v4337
        %v4339 = vpop.f32.mrf.mxu0
        %v4340 = vadd.f32 %v4013, %v4339
        %4341 = vmatmul.bf16.gmra.mxu0 %v4120
        %v4342 = vpop.f32.mrf.mxu0
        %v4343 = vadd.f32 %v4016, %v4342
        %v4344 = vpop.f32.mrf.mxu0
        %v4345 = vadd.f32 %v4018, %v4344
        %4346 = vmatmul.bf16.gmra.mxu0 %v4122
        %v4347 = vpop.f32.mrf.mxu0
        %v4348 = vadd.f32 %v4021, %v4347
        %v4349 = vpop.f32.mrf.mxu0
        %v4350 = vadd.f32 %v4023, %v4349
        %4351 = vmatmul.bf16.gmra.mxu0 %v4124
        %v4352 = vpop.f32.mrf.mxu0
        %v4353 = vadd.f32 %v4026, %v4352
        %v4354 = vpop.f32.mrf.mxu0
        %v4355 = vadd.f32 %v4028, %v4354
        %4356 = vdwg.mxu0
        %4357 = vmatpush.bf16.msra.mxu0 %v2298
        %4358 = vmatpush.bf16.msra.mxu0 %v2296
        %4359 = vmatpush.bf16.msra.mxu0 %v2294
        %4360 = vmatpush.bf16.msra.mxu0 %v2292
        %4361 = vmatpush.bf16.msra.mxu0 %v2290
        %4362 = vmatpush.bf16.msra.mxu0 %v2288
        %4363 = vmatpush.bf16.msra.mxu0 %v2286
        %4364 = vmatpush.bf16.msra.mxu0 %v2284
        %4365 = vmatmul.bf16.gmra.mxu0 %v4103
        %v4366 = vpop.f32.mrf.mxu0
        %v4367 = vadd.f32 %v4298, %v4366
        %v4368 = vpop.f32.mrf.mxu0
        %v4369 = vadd.f32 %v4300, %v4368
        %4370 = vmatmul.bf16.gmra.mxu0 %v4105
        %v4371 = vpop.f32.mrf.mxu0
        %v4372 = vadd.f32 %v4303, %v4371
        %v4373 = vpop.f32.mrf.mxu0
        %v4374 = vadd.f32 %v4305, %v4373
        %4375 = vmatmul.bf16.gmra.mxu0 %v4107
        %v4376 = vpop.f32.mrf.mxu0
        %v4377 = vadd.f32 %v4308, %v4376
        %v4378 = vpop.f32.mrf.mxu0
        %v4379 = vadd.f32 %v4310, %v4378
        %4380 = vmatmul.bf16.gmra.mxu0 %v4109
        %v4381 = vpop.f32.mrf.mxu0
        %v4382 = vadd.f32 %v4313, %v4381
        %v4383 = vpop.f32.mrf.mxu0
        %v4384 = vadd.f32 %v4315, %v4383
        %4385 = vmatmul.bf16.gmra.mxu0 %v4111
        %v4386 = vpop.f32.mrf.mxu0
        %v4387 = vadd.f32 %v4318, %v4386
        %v4388 = vpop.f32.mrf.mxu0
        %v4389 = vadd.f32 %v4320, %v4388
        %4390 = vmatmul.bf16.gmra.mxu0 %v4113
        %v4391 = vpop.f32.mrf.mxu0
        %v4392 = vadd.f32 %v4323, %v4391
        %v4393 = vpop.f32.mrf.mxu0
        %v4394 = vadd.f32 %v4325, %v4393
        %4395 = vmatmul.bf16.gmra.mxu0 %v4115
        %v4396 = vpop.f32.mrf.mxu0
        %v4397 = vadd.f32 %v4328, %v4396
        %v4398 = vpop.f32.mrf.mxu0
        %v4399 = vadd.f32 %v4330, %v4398
        %4400 = vmatmul.bf16.gmra.mxu0 %v4117
        %v4401 = vpop.f32.mrf.mxu0
        %v4402 = vadd.f32 %v4333, %v4401
        %v4403 = vpop.f32.mrf.mxu0
        %v4404 = vadd.f32 %v4335, %v4403
        %4405 = vmatmul.bf16.gmra.mxu0 %v4119
        %v4406 = vpop.f32.mrf.mxu0
        %v4407 = vadd.f32 %v4338, %v4406
        %v4408 = vpop.f32.mrf.mxu0
        %v4409 = vadd.f32 %v4340, %v4408
        %4410 = vmatmul.bf16.gmra.mxu0 %v4121
        %v4411 = vpop.f32.mrf.mxu0
        %v4412 = vadd.f32 %v4343, %v4411
        %v4413 = vpop.f32.mrf.mxu0
        %v4414 = vadd.f32 %v4345, %v4413
        %4415 = vmatmul.bf16.gmra.mxu0 %v4123
        %v4416 = vpop.f32.mrf.mxu0
        %v4417 = vadd.f32 %v4348, %v4416
        %v4418 = vpop.f32.mrf.mxu0
        %v4419 = vadd.f32 %v4350, %v4418
        %4420 = vmatmul.bf16.gmra.mxu0 %v4125
        %v4421 = vpop.f32.mrf.mxu0
        %v4422 = vadd.f32 %v4353, %v4421
        %v4423 = vpop.f32.mrf.mxu0
        %v4424 = vadd.f32 %v4355, %v4423
        %4425 = vdwg.mxu0
        %v4426 = vld [vmem:[#allocation8] sm:$0xff]
        %v4427 = vld [vmem:[#allocation8 + $0x8] sm:$0xff]
        %v4428 = vld [vmem:[#allocation8 + $0x10] sm:$0xff]
        %v4429 = vld [vmem:[#allocation8 + $0x18] sm:$0xff]
        %v4430 = vld [vmem:[#allocation8 + $0x20] sm:$0xff]
        %v4431 = vld [vmem:[#allocation8 + $0x28] sm:$0xff]
        %v4432 = vld [vmem:[#allocation8 + $0x30] sm:$0xff]
        %v4433 = vld [vmem:[#allocation8 + $0x38] sm:$0xff]
        %v4434 = vld [vmem:[#allocation8 + $0x40] sm:$0xff]
        %v4435 = vld [vmem:[#allocation8 + $0x48] sm:$0xff]
        %v4436 = vld [vmem:[#allocation8 + $0x50] sm:$0xff]
        %v4437 = vld [vmem:[#allocation8 + $0x58] sm:$0xff]
        %v4438 = vld [vmem:[#allocation8 + $0x60] sm:$0xff]
        %v4439 = vld [vmem:[#allocation8 + $0x68] sm:$0xff]
        %v4440 = vld [vmem:[#allocation8 + $0x70] sm:$0xff]
        %v4441 = vld [vmem:[#allocation8 + $0x78] sm:$0xff]
        %v4442 = vld [vmem:[#allocation8 + $0x80] sm:$0xff]
        %v4443 = vld [vmem:[#allocation8 + $0x88] sm:$0xff]
        %v4444 = vld [vmem:[#allocation8 + $0x90] sm:$0xff]
        %v4445 = vld [vmem:[#allocation8 + $0x98] sm:$0xff]
        %v4446 = vld [vmem:[#allocation8 + $0xa0] sm:$0xff]
        %v4447 = vld [vmem:[#allocation8 + $0xa8] sm:$0xff]
        %v4448 = vld [vmem:[#allocation8 + $0xb0] sm:$0xff]
        %v4449 = vld [vmem:[#allocation8 + $0xb8] sm:$0xff]
        %v4450 = vld [vmem:[#allocation8 + $0xc0] sm:$0xff]
        %v4451 = vld [vmem:[#allocation8 + $0xc8] sm:$0xff]
        %v4452 = vld [vmem:[#allocation8 + $0xd0] sm:$0xff]
        %v4453 = vld [vmem:[#allocation8 + $0xd8] sm:$0xff]
        %v4454 = vld [vmem:[#allocation8 + $0xe0] sm:$0xff]
        %v4455 = vld [vmem:[#allocation8 + $0xe8] sm:$0xff]
        %v4456 = vld [vmem:[#allocation8 + $0xf0] sm:$0xff]
        %v4457 = vld [vmem:[#allocation8 + $0xf8] sm:$0xff]
        %v4458 = vld [vmem:[#allocation8 + $0x100] sm:$0xff]
        %v4459 = vld [vmem:[#allocation8 + $0x108] sm:$0xff]
        %v4460 = vld [vmem:[#allocation8 + $0x110] sm:$0xff]
        %v4461 = vld [vmem:[#allocation8 + $0x118] sm:$0xff]
        %v4462 = vld [vmem:[#allocation8 + $0x120] sm:$0xff]
        %v4463 = vld [vmem:[#allocation8 + $0x128] sm:$0xff]
        %v4464 = vld [vmem:[#allocation8 + $0x130] sm:$0xff]
        %v4465 = vld [vmem:[#allocation8 + $0x138] sm:$0xff]
        %v4466 = vld [vmem:[#allocation8 + $0x140] sm:$0xff]
        %v4467 = vld [vmem:[#allocation8 + $0x148] sm:$0xff]
        %v4468 = vld [vmem:[#allocation8 + $0x150] sm:$0xff]
        %v4469 = vld [vmem:[#allocation8 + $0x158] sm:$0xff]
        %v4470 = vld [vmem:[#allocation8 + $0x160] sm:$0xff]
        %v4471 = vld [vmem:[#allocation8 + $0x168] sm:$0xff]
        %v4472 = vld [vmem:[#allocation8 + $0x170] sm:$0xff]
        %v4473 = vld [vmem:[#allocation8 + $0x178] sm:$0xff]
        %v4474 = vmul.f32 %v4229, %v4426
        %v4475 = vmul.f32 %v4367, %v4427
        %v4476 = vmul.f32 %v4231, %v4428
        %v4477 = vmul.f32 %v4369, %v4429
        %v4478 = vmul.f32 %v4234, %v4430
        %v4479 = vmul.f32 %v4372, %v4431
        %v4480 = vmul.f32 %v4236, %v4432
        %v4481 = vmul.f32 %v4374, %v4433
        %v4482 = vmul.f32 %v4239, %v4434
        %v4483 = vmul.f32 %v4377, %v4435
        %v4484 = vmul.f32 %v4241, %v4436
        %v4485 = vmul.f32 %v4379, %v4437
        %v4486 = vmul.f32 %v4244, %v4438
        %v4487 = vmul.f32 %v4382, %v4439
        %v4488 = vmul.f32 %v4246, %v4440
        %v4489 = vmul.f32 %v4384, %v4441
        %v4490 = vmul.f32 %v4249, %v4442
        %v4491 = vmul.f32 %v4387, %v4443
        %v4492 = vmul.f32 %v4251, %v4444
        %v4493 = vmul.f32 %v4389, %v4445
        %v4494 = vmul.f32 %v4254, %v4446
        %v4495 = vmul.f32 %v4392, %v4447
        %v4496 = vmul.f32 %v4256, %v4448
        %v4497 = vmul.f32 %v4394, %v4449
        %v4498 = vmul.f32 %v4259, %v4450
        %v4499 = vmul.f32 %v4397, %v4451
        %v4500 = vmul.f32 %v4261, %v4452
        %v4501 = vmul.f32 %v4399, %v4453
        %v4502 = vmul.f32 %v4264, %v4454
        %v4503 = vmul.f32 %v4402, %v4455
        %v4504 = vmul.f32 %v4266, %v4456
        %v4505 = vmul.f32 %v4404, %v4457
        %v4506 = vmul.f32 %v4269, %v4458
        %v4507 = vmul.f32 %v4407, %v4459
        %v4508 = vmul.f32 %v4271, %v4460
        %v4509 = vmul.f32 %v4409, %v4461
        %v4510 = vmul.f32 %v4274, %v4462
        %v4511 = vmul.f32 %v4412, %v4463
        %v4512 = vmul.f32 %v4276, %v4464
        %v4513 = vmul.f32 %v4414, %v4465
        %v4514 = vmul.f32 %v4279, %v4466
        %v4515 = vmul.f32 %v4417, %v4467
        %v4516 = vmul.f32 %v4281, %v4468
        %v4517 = vmul.f32 %v4419, %v4469
        %v4518 = vmul.f32 %v4284, %v4470
        %v4519 = vmul.f32 %v4422, %v4471
        %v4520 = vmul.f32 %v4286, %v4472
        %v4521 = vmul.f32 %v4424, %v4473
        %v4522 = vpack.c.bf16 %v4475, %v4474
        %v4523 = vpack.c.bf16 %v4477, %v4476
        %v4524 = vpack.c.bf16 %v4479, %v4478
        %v4525 = vpack.c.bf16 %v4481, %v4480
        %v4526 = vpack.c.bf16 %v4483, %v4482
        %v4527 = vpack.c.bf16 %v4485, %v4484
        %v4528 = vpack.c.bf16 %v4487, %v4486
        %v4529 = vpack.c.bf16 %v4489, %v4488
        %v4530 = vpack.c.bf16 %v4491, %v4490
        %v4531 = vpack.c.bf16 %v4493, %v4492
        %v4532 = vpack.c.bf16 %v4495, %v4494
        %v4533 = vpack.c.bf16 %v4497, %v4496
        %v4534 = vpack.c.bf16 %v4499, %v4498
        %v4535 = vpack.c.bf16 %v4501, %v4500
        %v4536 = vpack.c.bf16 %v4503, %v4502
        %v4537 = vpack.c.bf16 %v4505, %v4504
        %v4538 = vpack.c.bf16 %v4507, %v4506
        %v4539 = vpack.c.bf16 %v4509, %v4508
        %v4540 = vpack.c.bf16 %v4511, %v4510
        %v4541 = vpack.c.bf16 %v4513, %v4512
        %v4542 = vpack.c.bf16 %v4515, %v4514
        %v4543 = vpack.c.bf16 %v4517, %v4516
        %v4544 = vpack.c.bf16 %v4519, %v4518
        %v4545 = vpack.c.bf16 %v4521, %v4520
        %v4546 = vunpack.c.l.bf16 %v4522
        %v4547 = vunpack.c.h.bf16 %v4522
        %v4548 = vunpack.c.l.bf16 %v4523
        %v4549 = vunpack.c.h.bf16 %v4523
        %v4550 = vunpack.c.l.bf16 %v4524
        %v4551 = vunpack.c.h.bf16 %v4524
        %v4552 = vunpack.c.l.bf16 %v4525
        %v4553 = vunpack.c.h.bf16 %v4525
        %v4554 = vunpack.c.l.bf16 %v4526
        %v4555 = vunpack.c.h.bf16 %v4526
        %v4556 = vunpack.c.l.bf16 %v4527
        %v4557 = vunpack.c.h.bf16 %v4527
        %v4558 = vunpack.c.l.bf16 %v4528
        %v4559 = vunpack.c.h.bf16 %v4528
        %v4560 = vunpack.c.l.bf16 %v4529
        %v4561 = vunpack.c.h.bf16 %v4529
        %v4562 = vunpack.c.l.bf16 %v4530
        %v4563 = vunpack.c.h.bf16 %v4530
        %v4564 = vunpack.c.l.bf16 %v4531
        %v4565 = vunpack.c.h.bf16 %v4531
        %v4566 = vunpack.c.l.bf16 %v4532
        %v4567 = vunpack.c.h.bf16 %v4532
        %v4568 = vunpack.c.l.bf16 %v4533
        %v4569 = vunpack.c.h.bf16 %v4533
        %v4570 = vunpack.c.l.bf16 %v4534
        %v4571 = vunpack.c.h.bf16 %v4534
        %v4572 = vunpack.c.l.bf16 %v4535
        %v4573 = vunpack.c.h.bf16 %v4535
        %v4574 = vunpack.c.l.bf16 %v4536
        %v4575 = vunpack.c.h.bf16 %v4536
        %v4576 = vunpack.c.l.bf16 %v4537
        %v4577 = vunpack.c.h.bf16 %v4537
        %v4578 = vunpack.c.l.bf16 %v4538
        %v4579 = vunpack.c.h.bf16 %v4538
        %v4580 = vunpack.c.l.bf16 %v4539
        %v4581 = vunpack.c.h.bf16 %v4539
        %v4582 = vunpack.c.l.bf16 %v4540
        %v4583 = vunpack.c.h.bf16 %v4540
        %v4584 = vunpack.c.l.bf16 %v4541
        %v4585 = vunpack.c.h.bf16 %v4541
        %v4586 = vunpack.c.l.bf16 %v4542
        %v4587 = vunpack.c.h.bf16 %v4542
        %v4588 = vunpack.c.l.bf16 %v4543
        %v4589 = vunpack.c.h.bf16 %v4543
        %v4590 = vunpack.c.l.bf16 %v4544
        %v4591 = vunpack.c.h.bf16 %v4544
        %v4592 = vunpack.c.l.bf16 %v4545
        %v4593 = vunpack.c.h.bf16 %v4545
        %v4594 = vsub.f32 %v4474, %v4546
        %v4595 = vsub.f32 %v4475, %v4547
        %v4596 = vsub.f32 %v4476, %v4548
        %v4597 = vsub.f32 %v4477, %v4549
        %v4598 = vsub.f32 %v4478, %v4550
        %v4599 = vsub.f32 %v4479, %v4551
        %v4600 = vsub.f32 %v4480, %v4552
        %v4601 = vsub.f32 %v4481, %v4553
        %v4602 = vsub.f32 %v4482, %v4554
        %v4603 = vsub.f32 %v4483, %v4555
        %v4604 = vsub.f32 %v4484, %v4556
        %v4605 = vsub.f32 %v4485, %v4557
        %v4606 = vsub.f32 %v4486, %v4558
        %v4607 = vsub.f32 %v4487, %v4559
        %v4608 = vsub.f32 %v4488, %v4560
        %v4609 = vsub.f32 %v4489, %v4561
        %v4610 = vsub.f32 %v4490, %v4562
        %v4611 = vsub.f32 %v4491, %v4563
        %v4612 = vsub.f32 %v4492, %v4564
        %v4613 = vsub.f32 %v4493, %v4565
        %v4614 = vsub.f32 %v4494, %v4566
        %v4615 = vsub.f32 %v4495, %v4567
        %v4616 = vsub.f32 %v4496, %v4568
        %v4617 = vsub.f32 %v4497, %v4569
        %v4618 = vsub.f32 %v4498, %v4570
        %v4619 = vsub.f32 %v4499, %v4571
        %v4620 = vsub.f32 %v4500, %v4572
        %v4621 = vsub.f32 %v4501, %v4573
        %v4622 = vsub.f32 %v4502, %v4574
        %v4623 = vsub.f32 %v4503, %v4575
        %v4624 = vsub.f32 %v4504, %v4576
        %v4625 = vsub.f32 %v4505, %v4577
        %v4626 = vsub.f32 %v4506, %v4578
        %v4627 = vsub.f32 %v4507, %v4579
        %v4628 = vsub.f32 %v4508, %v4580
        %v4629 = vsub.f32 %v4509, %v4581
        %v4630 = vsub.f32 %v4510, %v4582
        %v4631 = vsub.f32 %v4511, %v4583
        %v4632 = vsub.f32 %v4512, %v4584
        %v4633 = vsub.f32 %v4513, %v4585
        %v4634 = vsub.f32 %v4514, %v4586
        %v4635 = vsub.f32 %v4515, %v4587
        %v4636 = vsub.f32 %v4516, %v4588
        %v4637 = vsub.f32 %v4517, %v4589
        %v4638 = vsub.f32 %v4518, %v4590
        %v4639 = vsub.f32 %v4519, %v4591
        %v4640 = vsub.f32 %v4520, %v4592
        %v4641 = vsub.f32 %v4521, %v4593
        %v4642 = vpack.c.bf16 %v4596, %v4594
        %v4643 = vpack.c.bf16 %v4597, %v4595
        %v4644 = vpack.c.bf16 %v4600, %v4598
        %v4645 = vpack.c.bf16 %v4601, %v4599
        %v4646 = vpack.c.bf16 %v4604, %v4602
        %v4647 = vpack.c.bf16 %v4605, %v4603
        %v4648 = vpack.c.bf16 %v4608, %v4606
        %v4649 = vpack.c.bf16 %v4609, %v4607
        %v4650 = vpack.c.bf16 %v4612, %v4610
        %v4651 = vpack.c.bf16 %v4613, %v4611
        %v4652 = vpack.c.bf16 %v4616, %v4614
        %v4653 = vpack.c.bf16 %v4617, %v4615
        %v4654 = vpack.c.bf16 %v4620, %v4618
        %v4655 = vpack.c.bf16 %v4621, %v4619
        %v4656 = vpack.c.bf16 %v4624, %v4622
        %v4657 = vpack.c.bf16 %v4625, %v4623
        %v4658 = vpack.c.bf16 %v4628, %v4626
        %v4659 = vpack.c.bf16 %v4629, %v4627
        %v4660 = vpack.c.bf16 %v4632, %v4630
        %v4661 = vpack.c.bf16 %v4633, %v4631
        %v4662 = vpack.c.bf16 %v4636, %v4634
        %v4663 = vpack.c.bf16 %v4637, %v4635
        %v4664 = vpack.c.bf16 %v4640, %v4638
        %v4665 = vpack.c.bf16 %v4641, %v4639
        %v4668 = vunpack.c.l.b16 %v896
        %v4669 = vunpack.c.h.b16 %v896
        %v4670 = vunpack.c.l.b16 %v897
        %v4671 = vunpack.c.h.b16 %v897
        %v4672 = vpack.c.b16 %v4670, %v4668
        %v4673 = vpack.c.b16 %v4671, %v4669
        %vm4675 = vcmask 523264
        %v4677 = vsel %vm4675, %v4673, 0
        %4679 = vmatpush.bf16.msra.mxu0 %v4656
        %4680 = vmatpush.bf16.msra.mxu0 %v4654
        %4681 = vmatpush.bf16.msra.mxu0 %v4652
        %4682 = vmatpush.bf16.msra.mxu0 %v4650
        %4683 = vmatpush.bf16.msra.mxu0 %v4648
        %4684 = vmatpush.bf16.msra.mxu0 %v4646
        %4685 = vmatpush.bf16.msra.mxu0 %v4644
        %4686 = vmatpush.bf16.msra.mxu0 %v4642
        %4687 = vmatmul.bf16.gmra.mxu0 %v4672
        %v4688 = vpop.f32.mrf.mxu0
        %v4689 = vadd.f32 0.0, %v4688
        %v4690 = vpop.f32.mrf.mxu0
        %v4691 = vadd.f32 0.0, %v4690
        %4692 = vdwg.mxu0
        %4693 = vmatpush.bf16.msra.mxu0 0
        %4694 = vmatpush.bf16.msra.mxu0 0
        %4695 = vmatpush.bf16.msra.mxu0 0
        %4696 = vmatpush.bf16.msra.mxu0 0
        %4697 = vmatpush.bf16.msra.mxu0 %v4664
        %4698 = vmatpush.bf16.msra.mxu0 %v4662
        %4699 = vmatpush.bf16.msra.mxu0 %v4660
        %4700 = vmatpush.bf16.msra.mxu0 %v4658
        %4701 = vmatmul.bf16.gmra.mxu0 %v4677
        %v4702 = vpop.f32.mrf.mxu0
        %v4703 = vadd.f32 %v4689, %v4702
        %v4704 = vpop.f32.mrf.mxu0
        %v4705 = vadd.f32 %v4691, %v4704
        %4706 = vdwg.mxu0
        %4707 = vmatpush.bf16.msra.mxu0 %v4657
        %4708 = vmatpush.bf16.msra.mxu0 %v4655
        %4709 = vmatpush.bf16.msra.mxu0 %v4653
        %4710 = vmatpush.bf16.msra.mxu0 %v4651
        %4711 = vmatpush.bf16.msra.mxu0 %v4649
        %4712 = vmatpush.bf16.msra.mxu0 %v4647
        %4713 = vmatpush.bf16.msra.mxu0 %v4645
        %4714 = vmatpush.bf16.msra.mxu0 %v4643
        %4715 = vmatmul.bf16.gmra.mxu0 %v4672
        %v4716 = vpop.f32.mrf.mxu0
        %v4717 = vadd.f32 0.0, %v4716
        %v4718 = vpop.f32.mrf.mxu0
        %v4719 = vadd.f32 0.0, %v4718
        %4720 = vdwg.mxu0
        %4721 = vmatpush.bf16.msra.mxu0 0
        %4722 = vmatpush.bf16.msra.mxu0 0
        %4723 = vmatpush.bf16.msra.mxu0 0
        %4724 = vmatpush.bf16.msra.mxu0 0
        %4725 = vmatpush.bf16.msra.mxu0 %v4665
        %4726 = vmatpush.bf16.msra.mxu0 %v4663
        %4727 = vmatpush.bf16.msra.mxu0 %v4661
        %4728 = vmatpush.bf16.msra.mxu0 %v4659
        %4729 = vmatmul.bf16.gmra.mxu0 %v4677
        %v4730 = vpop.f32.mrf.mxu0
        %v4731 = vadd.f32 %v4717, %v4730
        %v4732 = vpop.f32.mrf.mxu0
        %v4733 = vadd.f32 %v4719, %v4732
        %4734 = vdwg.mxu0
        %v4759 = vunpack.c.l.b16 %v4522
        %v4760 = vunpack.c.h.b16 %v4522
        %v4761 = vunpack.c.l.b16 %v4523
        %v4762 = vunpack.c.h.b16 %v4523
        %v4763 = vunpack.c.l.b16 %v4524
        %v4764 = vunpack.c.h.b16 %v4524
        %v4765 = vunpack.c.l.b16 %v4525
        %v4766 = vunpack.c.h.b16 %v4525
        %v4767 = vunpack.c.l.b16 %v4526
        %v4768 = vunpack.c.h.b16 %v4526
        %v4769 = vunpack.c.l.b16 %v4527
        %v4770 = vunpack.c.h.b16 %v4527
        %v4771 = vunpack.c.l.b16 %v4528
        %v4772 = vunpack.c.h.b16 %v4528
        %v4773 = vunpack.c.l.b16 %v4529
        %v4774 = vunpack.c.h.b16 %v4529
        %v4775 = vunpack.c.l.b16 %v4530
        %v4776 = vunpack.c.h.b16 %v4530
        %v4777 = vunpack.c.l.b16 %v4531
        %v4778 = vunpack.c.h.b16 %v4531
        %v4779 = vunpack.c.l.b16 %v4532
        %v4780 = vunpack.c.h.b16 %v4532
        %v4781 = vunpack.c.l.b16 %v4533
        %v4782 = vunpack.c.h.b16 %v4533
        %v4783 = vunpack.c.l.b16 %v4534
        %v4784 = vunpack.c.h.b16 %v4534
        %v4785 = vunpack.c.l.b16 %v4535
        %v4786 = vunpack.c.h.b16 %v4535
        %v4787 = vunpack.c.l.b16 %v4536
        %v4788 = vunpack.c.h.b16 %v4536
        %v4789 = vunpack.c.l.b16 %v4537
        %v4790 = vunpack.c.h.b16 %v4537
        %v4791 = vunpack.c.l.b16 %v4538
        %v4792 = vunpack.c.h.b16 %v4538
        %v4793 = vunpack.c.l.b16 %v4539
        %v4794 = vunpack.c.h.b16 %v4539
        %v4795 = vunpack.c.l.b16 %v4540
        %v4796 = vunpack.c.h.b16 %v4540
        %v4797 = vunpack.c.l.b16 %v4541
        %v4798 = vunpack.c.h.b16 %v4541
        %v4799 = vunpack.c.l.b16 %v4542
        %v4800 = vunpack.c.h.b16 %v4542
        %v4801 = vunpack.c.l.b16 %v4543
        %v4802 = vunpack.c.h.b16 %v4543
        %v4803 = vunpack.c.l.b16 %v4544
        %v4804 = vunpack.c.h.b16 %v4544
        %v4805 = vunpack.c.l.b16 %v4545
        %v4806 = vunpack.c.h.b16 %v4545
        %v4807 = vpack.c.b16 %v4761, %v4759
        %v4808 = vpack.c.b16 %v4762, %v4760
        %v4809 = vpack.c.b16 %v4765, %v4763
        %v4810 = vpack.c.b16 %v4766, %v4764
        %v4811 = vpack.c.b16 %v4769, %v4767
        %v4812 = vpack.c.b16 %v4770, %v4768
        %v4813 = vpack.c.b16 %v4773, %v4771
        %v4814 = vpack.c.b16 %v4774, %v4772
        %v4815 = vpack.c.b16 %v4777, %v4775
        %v4816 = vpack.c.b16 %v4778, %v4776
        %v4817 = vpack.c.b16 %v4781, %v4779
        %v4818 = vpack.c.b16 %v4782, %v4780
        %v4819 = vpack.c.b16 %v4785, %v4783
        %v4820 = vpack.c.b16 %v4786, %v4784
        %v4821 = vpack.c.b16 %v4789, %v4787
        %v4822 = vpack.c.b16 %v4790, %v4788
        %v4823 = vpack.c.b16 %v4793, %v4791
        %v4824 = vpack.c.b16 %v4794, %v4792
        %v4825 = vpack.c.b16 %v4797, %v4795
        %v4826 = vpack.c.b16 %v4798, %v4796
        %v4827 = vpack.c.b16 %v4801, %v4799
        %v4828 = vpack.c.b16 %v4802, %v4800
        %v4829 = vpack.c.b16 %v4805, %v4803
        %v4830 = vpack.c.b16 %v4806, %v4804
        %4855 = vmatpush.bf16.msra.mxu0 %v4821
        %4856 = vmatpush.bf16.msra.mxu0 %v4819
        %4857 = vmatpush.bf16.msra.mxu0 %v4817
        %4858 = vmatpush.bf16.msra.mxu0 %v4815
        %4859 = vmatpush.bf16.msra.mxu0 %v4813
        %4860 = vmatpush.bf16.msra.mxu0 %v4811
        %4861 = vmatpush.bf16.msra.mxu0 %v4809
        %4862 = vmatpush.bf16.msra.mxu0 %v4807
        %4863 = vmatmul.bf16.gmra.mxu0 %v4672
        %v4864 = vpop.f32.mrf.mxu0
        %v4865 = vadd.f32 %v4703, %v4864
        %v4866 = vpop.f32.mrf.mxu0
        %v4867 = vadd.f32 %v4705, %v4866
        %4868 = vdwg.mxu0
        %4869 = vmatpush.bf16.msra.mxu0 0
        %4870 = vmatpush.bf16.msra.mxu0 0
        %4871 = vmatpush.bf16.msra.mxu0 0
        %4872 = vmatpush.bf16.msra.mxu0 0
        %4873 = vmatpush.bf16.msra.mxu0 %v4829
        %4874 = vmatpush.bf16.msra.mxu0 %v4827
        %4875 = vmatpush.bf16.msra.mxu0 %v4825
        %4876 = vmatpush.bf16.msra.mxu0 %v4823
        %4877 = vmatmul.bf16.gmra.mxu0 %v4677
        %v4878 = vpop.f32.mrf.mxu0
        %v4879 = vadd.f32 %v4865, %v4878
        %v4880 = vpop.f32.mrf.mxu0
        %v4881 = vadd.f32 %v4867, %v4880
        %4882 = vdwg.mxu0
        %4883 = vmatpush.bf16.msra.mxu0 %v4822
        %4884 = vmatpush.bf16.msra.mxu0 %v4820
        %4885 = vmatpush.bf16.msra.mxu0 %v4818
        %4886 = vmatpush.bf16.msra.mxu0 %v4816
        %4887 = vmatpush.bf16.msra.mxu0 %v4814
        %4888 = vmatpush.bf16.msra.mxu0 %v4812
        %4889 = vmatpush.bf16.msra.mxu0 %v4810
        %4890 = vmatpush.bf16.msra.mxu0 %v4808
        %4891 = vmatmul.bf16.gmra.mxu0 %v4672
        %v4892 = vpop.f32.mrf.mxu0
        %v4893 = vadd.f32 %v4731, %v4892
        %v4894 = vpop.f32.mrf.mxu0
        %v4895 = vadd.f32 %v4733, %v4894
        %4896 = vdwg.mxu0
        %4897 = vmatpush.bf16.msra.mxu0 0
        %4898 = vmatpush.bf16.msra.mxu0 0
        %4899 = vmatpush.bf16.msra.mxu0 0
        %4900 = vmatpush.bf16.msra.mxu0 0
        %4901 = vmatpush.bf16.msra.mxu0 %v4830
        %4902 = vmatpush.bf16.msra.mxu0 %v4828
        %4903 = vmatpush.bf16.msra.mxu0 %v4826
        %4904 = vmatpush.bf16.msra.mxu0 %v4824
        %4905 = vmatmul.bf16.gmra.mxu0 %v4677
        %v4906 = vpop.f32.mrf.mxu0
        %v4907 = vadd.f32 %v4893, %v4906
        %v4908 = vpop.f32.mrf.mxu0
        %v4909 = vadd.f32 %v4895, %v4908
        %4910 = vdwg.mxu0
        %v4911 = vld [vmem:[#allocation11] sm:$0xff]
        %v4912 = vld [vmem:[#allocation11 + $0x8] sm:$0xff]
        %4914 = vset.pattern.permute.xlu0 0
        %4915 = vperm.xlu0 %4914, %v4911
        %v4916 = vpop.permute.xlu0 %4915
        %4919 = vset.pattern.permute.xlu0 0
        %4920 = vperm.xlu0 %4919, %v4912
        %v4921 = vpop.permute.xlu0 %4920
        %v4923 = vadd.f32 %v4879, %v4916
        %v4924 = vadd.f32 %v4907, %v4916
        %v4925 = vadd.f32 %v4881, %v4921
        %v4926 = vadd.f32 %v4909, %v4921
        %v4927 = vld [vmem:[#allocation15] sm:$0xff]
        %v4928 = vld [vmem:[#allocation15 + $0x8] sm:$0xff]
        %v4929 = vld [vmem:[#allocation15 + $0x10] sm:$0xff]
        %v4930 = vld [vmem:[#allocation15 + $0x18] sm:$0xff]
        %v4931 = vld [vmem:[#allocation15 + $0x20] sm:$0xff]
        %v4932 = vld [vmem:[#allocation15 + $0x28] sm:$0xff]
        %v4933 = vld [vmem:[#allocation15 + $0x30] sm:$0xff]
        %v4934 = vld [vmem:[#allocation15 + $0x38] sm:$0xff]
        %v4935 = vld [vmem:[#allocation15 + $0x40] sm:$0xff]
        %v4936 = vld [vmem:[#allocation15 + $0x48] sm:$0xff]
        %v4937 = vld [vmem:[#allocation15 + $0x50] sm:$0xff]
        %v4938 = vld [vmem:[#allocation15 + $0x58] sm:$0xff]
        %v4939 = vld [vmem:[#allocation15 + $0x60] sm:$0xff]
        %v4940 = vld [vmem:[#allocation15 + $0x68] sm:$0xff]
        %v4941 = vld [vmem:[#allocation15 + $0x70] sm:$0xff]
        %v4942 = vld [vmem:[#allocation15 + $0x78] sm:$0xff]
        %v4943 = vld [vmem:[#allocation15 + $0x80] sm:$0xff]
        %v4944 = vld [vmem:[#allocation15 + $0x88] sm:$0xff]
        %v4945 = vld [vmem:[#allocation15 + $0x90] sm:$0xff]
        %v4946 = vld [vmem:[#allocation15 + $0x98] sm:$0xff]
        %v4947 = vld [vmem:[#allocation15 + $0xa0] sm:$0xff]
        %v4948 = vld [vmem:[#allocation15 + $0xa8] sm:$0xff]
        %v4949 = vld [vmem:[#allocation15 + $0xb0] sm:$0xff]
        %v4950 = vld [vmem:[#allocation15 + $0xb8] sm:$0xff]
        %v4951 = vld [vmem:[#allocation15 + $0xc0] sm:$0xff]
        %v4952 = vld [vmem:[#allocation15 + $0xc8] sm:$0xff]
        %v4953 = vld [vmem:[#allocation15 + $0xd0] sm:$0xff]
        %v4954 = vld [vmem:[#allocation15 + $0xd8] sm:$0xff]
        %v4955 = vld [vmem:[#allocation15 + $0xe0] sm:$0xff]
        %v4956 = vld [vmem:[#allocation15 + $0xe8] sm:$0xff]
        %v4957 = vld [vmem:[#allocation15 + $0xf0] sm:$0xff]
        %v4958 = vld [vmem:[#allocation15 + $0xf8] sm:$0xff]
        %v4959 = vld [vmem:[#allocation12] sm:$0xff]
        %v4960 = vld [vmem:[#allocation12 + $0x8] sm:$0xff]
        %v4961 = vld [vmem:[#allocation12 + $0x10] sm:$0xff]
        %v4962 = vld [vmem:[#allocation12 + $0x18] sm:$0xff]
        %v4963 = vld [vmem:[#allocation14] sm:$0xff]
        %v4964 = vld [vmem:[#allocation14 + $0x8] sm:$0xff]
        %v4965 = vld [vmem:[#allocation14 + $0x10] sm:$0xff]
        %v4966 = vld [vmem:[#allocation14 + $0x18] sm:$0xff]
        %4968 = vset.pattern.permute.xlu0 0
        %4969 = vperm.xlu0 %4968, %v4963
        %v4970 = vpop.permute.xlu0 %4969
        %4973 = vset.pattern.permute.xlu0 0
        %4974 = vperm.xlu0 %4973, %v4964
        %v4975 = vpop.permute.xlu0 %4974
        %4978 = vset.pattern.permute.xlu0 0
        %4979 = vperm.xlu0 %4978, %v4965
        %v4980 = vpop.permute.xlu0 %4979
        %4983 = vset.pattern.permute.xlu0 0
        %4984 = vperm.xlu0 %4983, %v4966
        %v4985 = vpop.permute.xlu0 %4984
        %v4988 = vsel %vm904, %v4959, 0
        %v4991 = vsel %vm904, %v4960, 0
        %v4994 = vsel %vm904, %v4961, 0
        %v4997 = vsel %vm904, %v4962, 0
        %4999 = vmatpush.msra.mxu0 0.0
        %5000 = vmatpush.msra.mxu0 0.0
        %5001 = vmatpush.msra.mxu0 0.0
        %5002 = vmatpush.msra.mxu0 0.0
        %5003 = vmatpush.msra.mxu0 0.0
        %5004 = vmatpush.msra.mxu0 0.0
        %5005 = vmatpush.msra.mxu0 0.0
        %5006 = vmatpush.msra.mxu0 0.0
        %5007 = vmatpush.msra.mxu0 0.0
        %5008 = vmatpush.msra.mxu0 0.0
        %5009 = vmatpush.msra.mxu0 0.0
        %5010 = vmatpush.msra.mxu0 0.0
        %5011 = vmatpush.msra.mxu0 0.0
        %5012 = vmatpush.msra.mxu0 0.0
        %v5013 = vand.u32 %v4925, 4294901760
        %5014 = vmatpush.msra.mxu0 %v5013
        %v5015 = vand.u32 %v4923, 4294901760
        %5016 = vmatpush.msra.mxu0 %v5015
        %v5017 = vand.u32 %v4988, 4294901760
        %v5018 = vsub.f32 %v4988, %v5017
        %v5019 = vand.u32 %v5018, 4294901760
        %v5020 = vsub.f32 %v5018, %v5019
        %v5021 = vand.u32 %v5020, 4294901760
        %5022 = vmatmul.f32.gmra.mxu0 %v5021
        %v5023 = vpop.f32.mrf.mxu0
        %v5024 = vadd.f32 %v4970, %v5023
        %v5025 = vand.u32 %v4991, 4294901760
        %v5026 = vsub.f32 %v4991, %v5025
        %v5027 = vand.u32 %v5026, 4294901760
        %v5028 = vsub.f32 %v5026, %v5027
        %v5029 = vand.u32 %v5028, 4294901760
        %5030 = vmatmul.f32.gmra.mxu0 %v5029
        %v5031 = vpop.f32.mrf.mxu0
        %v5032 = vadd.f32 %v4975, %v5031
        %v5033 = vand.u32 %v4994, 4294901760
        %v5034 = vsub.f32 %v4994, %v5033
        %v5035 = vand.u32 %v5034, 4294901760
        %v5036 = vsub.f32 %v5034, %v5035
        %v5037 = vand.u32 %v5036, 4294901760
        %5038 = vmatmul.f32.gmra.mxu0 %v5037
        %v5039 = vpop.f32.mrf.mxu0
        %v5040 = vadd.f32 %v4980, %v5039
        %v5041 = vand.u32 %v4997, 4294901760
        %v5042 = vsub.f32 %v4997, %v5041
        %v5043 = vand.u32 %v5042, 4294901760
        %v5044 = vsub.f32 %v5042, %v5043
        %v5045 = vand.u32 %v5044, 4294901760
        %5046 = vmatmul.f32.gmra.mxu0 %v5045
        %v5047 = vpop.f32.mrf.mxu0
        %v5048 = vadd.f32 %v4985, %v5047
        %5049 = vdwg.mxu0
        %5050 = vmatpush.msra.mxu0 0.0
        %5051 = vmatpush.msra.mxu0 0.0
        %5052 = vmatpush.msra.mxu0 0.0
        %5053 = vmatpush.msra.mxu0 0.0
        %5054 = vmatpush.msra.mxu0 0.0
        %5055 = vmatpush.msra.mxu0 0.0
        %5056 = vmatpush.msra.mxu0 0.0
        %5057 = vmatpush.msra.mxu0 0.0
        %5058 = vmatpush.msra.mxu0 0.0
        %5059 = vmatpush.msra.mxu0 0.0
        %5060 = vmatpush.msra.mxu0 0.0
        %5061 = vmatpush.msra.mxu0 0.0
        %5062 = vmatpush.msra.mxu0 0.0
        %5063 = vmatpush.msra.mxu0 0.0
        %v5064 = vand.u32 %v4925, 4294901760
        %v5065 = vsub.f32 %v4925, %v5064
        %v5066 = vand.u32 %v5065, 4294901760
        %v5067 = vsub.f32 %v5065, %v5066
        %v5068 = vand.u32 %v5067, 4294901760
        %5069 = vmatpush.msra.mxu0 %v5068
        %v5070 = vand.u32 %v4923, 4294901760
        %v5071 = vsub.f32 %v4923, %v5070
        %v5072 = vand.u32 %v5071, 4294901760
        %v5073 = vsub.f32 %v5071, %v5072
        %v5074 = vand.u32 %v5073, 4294901760
        %5075 = vmatpush.msra.mxu0 %v5074
        %v5076 = vand.u32 %v4988, 4294901760
        %5077 = vmatmul.f32.gmra.mxu0 %v5076
        %v5078 = vpop.f32.mrf.mxu0
        %v5079 = vadd.f32 %v5024, %v5078
        %v5080 = vand.u32 %v4991, 4294901760
        %5081 = vmatmul.f32.gmra.mxu0 %v5080
        %v5082 = vpop.f32.mrf.mxu0
        %v5083 = vadd.f32 %v5032, %v5082
        %v5084 = vand.u32 %v4994, 4294901760
        %5085 = vmatmul.f32.gmra.mxu0 %v5084
        %v5086 = vpop.f32.mrf.mxu0
        %v5087 = vadd.f32 %v5040, %v5086
        %v5088 = vand.u32 %v4997, 4294901760
        %5089 = vmatmul.f32.gmra.mxu0 %v5088
        %v5090 = vpop.f32.mrf.mxu0
        %v5091 = vadd.f32 %v5048, %v5090
        %5092 = vdwg.mxu0
        %5093 = vmatpush.msra.mxu0 0.0
        %5094 = vmatpush.msra.mxu0 0.0
        %5095 = vmatpush.msra.mxu0 0.0
        %5096 = vmatpush.msra.mxu0 0.0
        %5097 = vmatpush.msra.mxu0 0.0
        %5098 = vmatpush.msra.mxu0 0.0
        %5099 = vmatpush.msra.mxu0 0.0
        %5100 = vmatpush.msra.mxu0 0.0
        %5101 = vmatpush.msra.mxu0 0.0
        %5102 = vmatpush.msra.mxu0 0.0
        %5103 = vmatpush.msra.mxu0 0.0
        %5104 = vmatpush.msra.mxu0 0.0
        %5105 = vmatpush.msra.mxu0 0.0
        %5106 = vmatpush.msra.mxu0 0.0
        %v5107 = vand.u32 %v4925, 4294901760
        %v5108 = vsub.f32 %v4925, %v5107
        %5109 = vmatpush.msra.mxu0 %v5108
        %v5110 = vand.u32 %v4923, 4294901760
        %v5111 = vsub.f32 %v4923, %v5110
        %5112 = vmatpush.msra.mxu0 %v5111
        %v5113 = vand.u32 %v4988, 4294901760
        %v5114 = vsub.f32 %v4988, %v5113
        %5115 = vmatmul.f32.gmra.mxu0 %v5114
        %v5116 = vpop.f32.mrf.mxu0
        %v5117 = vadd.f32 %v5079, %v5116
        %v5118 = vand.u32 %v4991, 4294901760
        %v5119 = vsub.f32 %v4991, %v5118
        %5120 = vmatmul.f32.gmra.mxu0 %v5119
        %v5121 = vpop.f32.mrf.mxu0
        %v5122 = vadd.f32 %v5083, %v5121
        %v5123 = vand.u32 %v4994, 4294901760
        %v5124 = vsub.f32 %v4994, %v5123
        %5125 = vmatmul.f32.gmra.mxu0 %v5124
        %v5126 = vpop.f32.mrf.mxu0
        %v5127 = vadd.f32 %v5087, %v5126
        %v5128 = vand.u32 %v4997, 4294901760
        %v5129 = vsub.f32 %v4997, %v5128
        %5130 = vmatmul.f32.gmra.mxu0 %v5129
        %v5131 = vpop.f32.mrf.mxu0
        %v5132 = vadd.f32 %v5091, %v5131
        %5133 = vdwg.mxu0
        %5134 = vmatpush.msra.mxu0 0.0
        %5135 = vmatpush.msra.mxu0 0.0
        %5136 = vmatpush.msra.mxu0 0.0
        %5137 = vmatpush.msra.mxu0 0.0
        %5138 = vmatpush.msra.mxu0 0.0
        %5139 = vmatpush.msra.mxu0 0.0
        %5140 = vmatpush.msra.mxu0 0.0
        %5141 = vmatpush.msra.mxu0 0.0
        %5142 = vmatpush.msra.mxu0 0.0
        %5143 = vmatpush.msra.mxu0 0.0
        %5144 = vmatpush.msra.mxu0 0.0
        %5145 = vmatpush.msra.mxu0 0.0
        %5146 = vmatpush.msra.mxu0 0.0
        %5147 = vmatpush.msra.mxu0 0.0
        %v5148 = vand.u32 %v4925, 4294901760
        %5149 = vmatpush.msra.mxu0 %v5148
        %v5150 = vand.u32 %v4923, 4294901760
        %5151 = vmatpush.msra.mxu0 %v5150
        %v5152 = vand.u32 %v4988, 4294901760
        %v5153 = vsub.f32 %v4988, %v5152
        %v5154 = vand.u32 %v5153, 4294901760
        %5155 = vmatmul.f32.gmra.mxu0 %v5154
        %v5156 = vpop.f32.mrf.mxu0
        %v5157 = vadd.f32 %v5117, %v5156
        %v5158 = vand.u32 %v4991, 4294901760
        %v5159 = vsub.f32 %v4991, %v5158
        %v5160 = vand.u32 %v5159, 4294901760
        %5161 = vmatmul.f32.gmra.mxu0 %v5160
        %v5162 = vpop.f32.mrf.mxu0
        %v5163 = vadd.f32 %v5122, %v5162
        %v5164 = vand.u32 %v4994, 4294901760
        %v5165 = vsub.f32 %v4994, %v5164
        %v5166 = vand.u32 %v5165, 4294901760
        %5167 = vmatmul.f32.gmra.mxu0 %v5166
        %v5168 = vpop.f32.mrf.mxu0
        %v5169 = vadd.f32 %v5127, %v5168
        %v5170 = vand.u32 %v4997, 4294901760
        %v5171 = vsub.f32 %v4997, %v5170
        %v5172 = vand.u32 %v5171, 4294901760
        %5173 = vmatmul.f32.gmra.mxu0 %v5172
        %v5174 = vpop.f32.mrf.mxu0
        %v5175 = vadd.f32 %v5132, %v5174
        %5176 = vdwg.mxu0
        %5177 = vmatpush.msra.mxu0 0.0
        %5178 = vmatpush.msra.mxu0 0.0
        %5179 = vmatpush.msra.mxu0 0.0
        %5180 = vmatpush.msra.mxu0 0.0
        %5181 = vmatpush.msra.mxu0 0.0
        %5182 = vmatpush.msra.mxu0 0.0
        %5183 = vmatpush.msra.mxu0 0.0
        %5184 = vmatpush.msra.mxu0 0.0
        %5185 = vmatpush.msra.mxu0 0.0
        %5186 = vmatpush.msra.mxu0 0.0
        %5187 = vmatpush.msra.mxu0 0.0
        %5188 = vmatpush.msra.mxu0 0.0
        %5189 = vmatpush.msra.mxu0 0.0
        %5190 = vmatpush.msra.mxu0 0.0
        %v5191 = vand.u32 %v4925, 4294901760
        %v5192 = vsub.f32 %v4925, %v5191
        %v5193 = vand.u32 %v5192, 4294901760
        %5194 = vmatpush.msra.mxu0 %v5193
        %v5195 = vand.u32 %v4923, 4294901760
        %v5196 = vsub.f32 %v4923, %v5195
        %v5197 = vand.u32 %v5196, 4294901760
        %5198 = vmatpush.msra.mxu0 %v5197
        %v5199 = vand.u32 %v4988, 4294901760
        %5200 = vmatmul.f32.gmra.mxu0 %v5199
        %v5201 = vpop.f32.mrf.mxu0
        %v5202 = vadd.f32 %v5157, %v5201
        %v5203 = vand.u32 %v4991, 4294901760
        %5204 = vmatmul.f32.gmra.mxu0 %v5203
        %v5205 = vpop.f32.mrf.mxu0
        %v5206 = vadd.f32 %v5163, %v5205
        %v5207 = vand.u32 %v4994, 4294901760
        %5208 = vmatmul.f32.gmra.mxu0 %v5207
        %v5209 = vpop.f32.mrf.mxu0
        %v5210 = vadd.f32 %v5169, %v5209
        %v5211 = vand.u32 %v4997, 4294901760
        %5212 = vmatmul.f32.gmra.mxu0 %v5211
        %v5213 = vpop.f32.mrf.mxu0
        %v5214 = vadd.f32 %v5175, %v5213
        %5215 = vdwg.mxu0
        %5216 = vmatpush.msra.mxu0 0.0
        %5217 = vmatpush.msra.mxu0 0.0
        %5218 = vmatpush.msra.mxu0 0.0
        %5219 = vmatpush.msra.mxu0 0.0
        %5220 = vmatpush.msra.mxu0 0.0
        %5221 = vmatpush.msra.mxu0 0.0
        %5222 = vmatpush.msra.mxu0 0.0
        %5223 = vmatpush.msra.mxu0 0.0
        %5224 = vmatpush.msra.mxu0 0.0
        %5225 = vmatpush.msra.mxu0 0.0
        %5226 = vmatpush.msra.mxu0 0.0
        %5227 = vmatpush.msra.mxu0 0.0
        %5228 = vmatpush.msra.mxu0 0.0
        %5229 = vmatpush.msra.mxu0 0.0
        %v5230 = vand.u32 %v4925, 4294901760
        %5231 = vmatpush.msra.mxu0 %v5230
        %v5232 = vand.u32 %v4923, 4294901760
        %5233 = vmatpush.msra.mxu0 %v5232
        %v5234 = vand.u32 %v4988, 4294901760
        %5235 = vmatmul.f32.gmra.mxu0 %v5234
        %v5236 = vpop.f32.mrf.mxu0
        %v5237 = vadd.f32 %v5202, %v5236
        %v5238 = vand.u32 %v4991, 4294901760
        %5239 = vmatmul.f32.gmra.mxu0 %v5238
        %v5240 = vpop.f32.mrf.mxu0
        %v5241 = vadd.f32 %v5206, %v5240
        %v5242 = vand.u32 %v4994, 4294901760
        %5243 = vmatmul.f32.gmra.mxu0 %v5242
        %v5244 = vpop.f32.mrf.mxu0
        %v5245 = vadd.f32 %v5210, %v5244
        %v5246 = vand.u32 %v4997, 4294901760
        %5247 = vmatmul.f32.gmra.mxu0 %v5246
        %v5248 = vpop.f32.mrf.mxu0
        %v5249 = vadd.f32 %v5214, %v5248
        %5250 = vdwg.mxu0
        %5251 = vmatpush.msra.mxu0 0.0
        %5252 = vmatpush.msra.mxu0 0.0
        %5253 = vmatpush.msra.mxu0 0.0
        %5254 = vmatpush.msra.mxu0 0.0
        %5255 = vmatpush.msra.mxu0 0.0
        %5256 = vmatpush.msra.mxu0 0.0
        %5257 = vmatpush.msra.mxu0 0.0
        %5258 = vmatpush.msra.mxu0 0.0
        %5259 = vmatpush.msra.mxu0 0.0
        %5260 = vmatpush.msra.mxu0 0.0
        %5261 = vmatpush.msra.mxu0 0.0
        %5262 = vmatpush.msra.mxu0 0.0
        %5263 = vmatpush.msra.mxu0 0.0
        %5264 = vmatpush.msra.mxu0 0.0
        %v5265 = vand.u32 %v4926, 4294901760
        %5266 = vmatpush.msra.mxu0 %v5265
        %v5267 = vand.u32 %v4924, 4294901760
        %5268 = vmatpush.msra.mxu0 %v5267
        %v5269 = vand.u32 %v4988, 4294901760
        %v5270 = vsub.f32 %v4988, %v5269
        %v5271 = vand.u32 %v5270, 4294901760
        %v5272 = vsub.f32 %v5270, %v5271
        %v5273 = vand.u32 %v5272, 4294901760
        %5274 = vmatmul.f32.gmra.mxu0 %v5273
        %v5275 = vpop.f32.mrf.mxu0
        %v5276 = vadd.f32 %v4970, %v5275
        %v5277 = vand.u32 %v4991, 4294901760
        %v5278 = vsub.f32 %v4991, %v5277
        %v5279 = vand.u32 %v5278, 4294901760
        %v5280 = vsub.f32 %v5278, %v5279
        %v5281 = vand.u32 %v5280, 4294901760
        %5282 = vmatmul.f32.gmra.mxu0 %v5281
        %v5283 = vpop.f32.mrf.mxu0
        %v5284 = vadd.f32 %v4975, %v5283
        %v5285 = vand.u32 %v4994, 4294901760
        %v5286 = vsub.f32 %v4994, %v5285
        %v5287 = vand.u32 %v5286, 4294901760
        %v5288 = vsub.f32 %v5286, %v5287
        %v5289 = vand.u32 %v5288, 4294901760
        %5290 = vmatmul.f32.gmra.mxu0 %v5289
        %v5291 = vpop.f32.mrf.mxu0
        %v5292 = vadd.f32 %v4980, %v5291
        %v5293 = vand.u32 %v4997, 4294901760
        %v5294 = vsub.f32 %v4997, %v5293
        %v5295 = vand.u32 %v5294, 4294901760
        %v5296 = vsub.f32 %v5294, %v5295
        %v5297 = vand.u32 %v5296, 4294901760
        %5298 = vmatmul.f32.gmra.mxu0 %v5297
        %v5299 = vpop.f32.mrf.mxu0
        %v5300 = vadd.f32 %v4985, %v5299
        %5301 = vdwg.mxu0
        %5302 = vmatpush.msra.mxu0 0.0
        %5303 = vmatpush.msra.mxu0 0.0
        %5304 = vmatpush.msra.mxu0 0.0
        %5305 = vmatpush.msra.mxu0 0.0
        %5306 = vmatpush.msra.mxu0 0.0
        %5307 = vmatpush.msra.mxu0 0.0
        %5308 = vmatpush.msra.mxu0 0.0
        %5309 = vmatpush.msra.mxu0 0.0
        %5310 = vmatpush.msra.mxu0 0.0
        %5311 = vmatpush.msra.mxu0 0.0
        %5312 = vmatpush.msra.mxu0 0.0
        %5313 = vmatpush.msra.mxu0 0.0
        %5314 = vmatpush.msra.mxu0 0.0
        %5315 = vmatpush.msra.mxu0 0.0
        %v5316 = vand.u32 %v4926, 4294901760
        %v5317 = vsub.f32 %v4926, %v5316
        %v5318 = vand.u32 %v5317, 4294901760
        %v5319 = vsub.f32 %v5317, %v5318
        %v5320 = vand.u32 %v5319, 4294901760
        %5321 = vmatpush.msra.mxu0 %v5320
        %v5322 = vand.u32 %v4924, 4294901760
        %v5323 = vsub.f32 %v4924, %v5322
        %v5324 = vand.u32 %v5323, 4294901760
        %v5325 = vsub.f32 %v5323, %v5324
        %v5326 = vand.u32 %v5325, 4294901760
        %5327 = vmatpush.msra.mxu0 %v5326
        %v5328 = vand.u32 %v4988, 4294901760
        %5329 = vmatmul.f32.gmra.mxu0 %v5328
        %v5330 = vpop.f32.mrf.mxu0
        %v5331 = vadd.f32 %v5276, %v5330
        %v5332 = vand.u32 %v4991, 4294901760
        %5333 = vmatmul.f32.gmra.mxu0 %v5332
        %v5334 = vpop.f32.mrf.mxu0
        %v5335 = vadd.f32 %v5284, %v5334
        %v5336 = vand.u32 %v4994, 4294901760
        %5337 = vmatmul.f32.gmra.mxu0 %v5336
        %v5338 = vpop.f32.mrf.mxu0
        %v5339 = vadd.f32 %v5292, %v5338
        %v5340 = vand.u32 %v4997, 4294901760
        %5341 = vmatmul.f32.gmra.mxu0 %v5340
        %v5342 = vpop.f32.mrf.mxu0
        %v5343 = vadd.f32 %v5300, %v5342
        %5344 = vdwg.mxu0
        %5345 = vmatpush.msra.mxu0 0.0
        %5346 = vmatpush.msra.mxu0 0.0
        %5347 = vmatpush.msra.mxu0 0.0
        %5348 = vmatpush.msra.mxu0 0.0
        %5349 = vmatpush.msra.mxu0 0.0
        %5350 = vmatpush.msra.mxu0 0.0
        %5351 = vmatpush.msra.mxu0 0.0
        %5352 = vmatpush.msra.mxu0 0.0
        %5353 = vmatpush.msra.mxu0 0.0
        %5354 = vmatpush.msra.mxu0 0.0
        %5355 = vmatpush.msra.mxu0 0.0
        %5356 = vmatpush.msra.mxu0 0.0
        %5357 = vmatpush.msra.mxu0 0.0
        %5358 = vmatpush.msra.mxu0 0.0
        %v5359 = vand.u32 %v4926, 4294901760
        %v5360 = vsub.f32 %v4926, %v5359
        %5361 = vmatpush.msra.mxu0 %v5360
        %v5362 = vand.u32 %v4924, 4294901760
        %v5363 = vsub.f32 %v4924, %v5362
        %5364 = vmatpush.msra.mxu0 %v5363
        %v5365 = vand.u32 %v4988, 4294901760
        %v5366 = vsub.f32 %v4988, %v5365
        %5367 = vmatmul.f32.gmra.mxu0 %v5366
        %v5368 = vpop.f32.mrf.mxu0
        %v5369 = vadd.f32 %v5331, %v5368
        %v5370 = vand.u32 %v4991, 4294901760
        %v5371 = vsub.f32 %v4991, %v5370
        %5372 = vmatmul.f32.gmra.mxu0 %v5371
        %v5373 = vpop.f32.mrf.mxu0
        %v5374 = vadd.f32 %v5335, %v5373
        %v5375 = vand.u32 %v4994, 4294901760
        %v5376 = vsub.f32 %v4994, %v5375
        %5377 = vmatmul.f32.gmra.mxu0 %v5376
        %v5378 = vpop.f32.mrf.mxu0
        %v5379 = vadd.f32 %v5339, %v5378
        %v5380 = vand.u32 %v4997, 4294901760
        %v5381 = vsub.f32 %v4997, %v5380
        %5382 = vmatmul.f32.gmra.mxu0 %v5381
        %v5383 = vpop.f32.mrf.mxu0
        %v5384 = vadd.f32 %v5343, %v5383
        %5385 = vdwg.mxu0
        %5386 = vmatpush.msra.mxu0 0.0
        %5387 = vmatpush.msra.mxu0 0.0
        %5388 = vmatpush.msra.mxu0 0.0
        %5389 = vmatpush.msra.mxu0 0.0
        %5390 = vmatpush.msra.mxu0 0.0
        %5391 = vmatpush.msra.mxu0 0.0
        %5392 = vmatpush.msra.mxu0 0.0
        %5393 = vmatpush.msra.mxu0 0.0
        %5394 = vmatpush.msra.mxu0 0.0
        %5395 = vmatpush.msra.mxu0 0.0
        %5396 = vmatpush.msra.mxu0 0.0
        %5397 = vmatpush.msra.mxu0 0.0
        %5398 = vmatpush.msra.mxu0 0.0
        %5399 = vmatpush.msra.mxu0 0.0
        %v5400 = vand.u32 %v4926, 4294901760
        %5401 = vmatpush.msra.mxu0 %v5400
        %v5402 = vand.u32 %v4924, 4294901760
        %5403 = vmatpush.msra.mxu0 %v5402
        %v5404 = vand.u32 %v4988, 4294901760
        %v5405 = vsub.f32 %v4988, %v5404
        %v5406 = vand.u32 %v5405, 4294901760
        %5407 = vmatmul.f32.gmra.mxu0 %v5406
        %v5408 = vpop.f32.mrf.mxu0
        %v5409 = vadd.f32 %v5369, %v5408
        %v5410 = vand.u32 %v4991, 4294901760
        %v5411 = vsub.f32 %v4991, %v5410
        %v5412 = vand.u32 %v5411, 4294901760
        %5413 = vmatmul.f32.gmra.mxu0 %v5412
        %v5414 = vpop.f32.mrf.mxu0
        %v5415 = vadd.f32 %v5374, %v5414
        %v5416 = vand.u32 %v4994, 4294901760
        %v5417 = vsub.f32 %v4994, %v5416
        %v5418 = vand.u32 %v5417, 4294901760
        %5419 = vmatmul.f32.gmra.mxu0 %v5418
        %v5420 = vpop.f32.mrf.mxu0
        %v5421 = vadd.f32 %v5379, %v5420
        %v5422 = vand.u32 %v4997, 4294901760
        %v5423 = vsub.f32 %v4997, %v5422
        %v5424 = vand.u32 %v5423, 4294901760
        %5425 = vmatmul.f32.gmra.mxu0 %v5424
        %v5426 = vpop.f32.mrf.mxu0
        %v5427 = vadd.f32 %v5384, %v5426
        %5428 = vdwg.mxu0
        %5429 = vmatpush.msra.mxu0 0.0
        %5430 = vmatpush.msra.mxu0 0.0
        %5431 = vmatpush.msra.mxu0 0.0
        %5432 = vmatpush.msra.mxu0 0.0
        %5433 = vmatpush.msra.mxu0 0.0
        %5434 = vmatpush.msra.mxu0 0.0
        %5435 = vmatpush.msra.mxu0 0.0
        %5436 = vmatpush.msra.mxu0 0.0
        %5437 = vmatpush.msra.mxu0 0.0
        %5438 = vmatpush.msra.mxu0 0.0
        %5439 = vmatpush.msra.mxu0 0.0
        %5440 = vmatpush.msra.mxu0 0.0
        %5441 = vmatpush.msra.mxu0 0.0
        %5442 = vmatpush.msra.mxu0 0.0
        %v5443 = vand.u32 %v4926, 4294901760
        %v5444 = vsub.f32 %v4926, %v5443
        %v5445 = vand.u32 %v5444, 4294901760
        %5446 = vmatpush.msra.mxu0 %v5445
        %v5447 = vand.u32 %v4924, 4294901760
        %v5448 = vsub.f32 %v4924, %v5447
        %v5449 = vand.u32 %v5448, 4294901760
        %5450 = vmatpush.msra.mxu0 %v5449
        %v5451 = vand.u32 %v4988, 4294901760
        %5452 = vmatmul.f32.gmra.mxu0 %v5451
        %v5453 = vpop.f32.mrf.mxu0
        %v5454 = vadd.f32 %v5409, %v5453
        %v5455 = vand.u32 %v4991, 4294901760
        %5456 = vmatmul.f32.gmra.mxu0 %v5455
        %v5457 = vpop.f32.mrf.mxu0
        %v5458 = vadd.f32 %v5415, %v5457
        %v5459 = vand.u32 %v4994, 4294901760
        %5460 = vmatmul.f32.gmra.mxu0 %v5459
        %v5461 = vpop.f32.mrf.mxu0
        %v5462 = vadd.f32 %v5421, %v5461
        %v5463 = vand.u32 %v4997, 4294901760
        %5464 = vmatmul.f32.gmra.mxu0 %v5463
        %v5465 = vpop.f32.mrf.mxu0
        %v5466 = vadd.f32 %v5427, %v5465
        %5467 = vdwg.mxu0
        %5468 = vmatpush.msra.mxu0 0.0
        %5469 = vmatpush.msra.mxu0 0.0
        %5470 = vmatpush.msra.mxu0 0.0
        %5471 = vmatpush.msra.mxu0 0.0
        %5472 = vmatpush.msra.mxu0 0.0
        %5473 = vmatpush.msra.mxu0 0.0
        %5474 = vmatpush.msra.mxu0 0.0
        %5475 = vmatpush.msra.mxu0 0.0
        %5476 = vmatpush.msra.mxu0 0.0
        %5477 = vmatpush.msra.mxu0 0.0
        %5478 = vmatpush.msra.mxu0 0.0
        %5479 = vmatpush.msra.mxu0 0.0
        %5480 = vmatpush.msra.mxu0 0.0
        %5481 = vmatpush.msra.mxu0 0.0
        %v5482 = vand.u32 %v4926, 4294901760
        %5483 = vmatpush.msra.mxu0 %v5482
        %v5484 = vand.u32 %v4924, 4294901760
        %5485 = vmatpush.msra.mxu0 %v5484
        %v5486 = vand.u32 %v4988, 4294901760
        %5487 = vmatmul.f32.gmra.mxu0 %v5486
        %v5488 = vpop.f32.mrf.mxu0
        %v5489 = vadd.f32 %v5454, %v5488
        %v5490 = vand.u32 %v4991, 4294901760
        %5491 = vmatmul.f32.gmra.mxu0 %v5490
        %v5492 = vpop.f32.mrf.mxu0
        %v5493 = vadd.f32 %v5458, %v5492
        %v5494 = vand.u32 %v4994, 4294901760
        %5495 = vmatmul.f32.gmra.mxu0 %v5494
        %v5496 = vpop.f32.mrf.mxu0
        %v5497 = vadd.f32 %v5462, %v5496
        %v5498 = vand.u32 %v4997, 4294901760
        %5499 = vmatmul.f32.gmra.mxu0 %v5498
        %v5500 = vpop.f32.mrf.mxu0
        %v5501 = vadd.f32 %v5466, %v5500
        %5502 = vdwg.mxu0
        %v5503 = vpack.c.bf16 %v5489, %v5237
        %v5504 = vpack.c.bf16 %v5493, %v5241
        %v5505 = vpack.c.bf16 %v5497, %v5245
        %v5506 = vpack.c.bf16 %v5501, %v5249
        %v5507 = vunpack.c.l.bf16 %v5503
        %v5508 = vunpack.c.h.bf16 %v5503
        %v5509 = vunpack.c.l.bf16 %v5504
        %v5510 = vunpack.c.h.bf16 %v5504
        %v5511 = vunpack.c.l.bf16 %v5505
        %v5512 = vunpack.c.h.bf16 %v5505
        %v5513 = vunpack.c.l.bf16 %v5506
        %v5514 = vunpack.c.h.bf16 %v5506
        %v5515 = vsub.f32 %v5237, %v5507
        %v5516 = vsub.f32 %v5489, %v5508
        %v5517 = vsub.f32 %v5241, %v5509
        %v5518 = vsub.f32 %v5493, %v5510
        %v5519 = vsub.f32 %v5245, %v5511
        %v5520 = vsub.f32 %v5497, %v5512
        %v5521 = vsub.f32 %v5249, %v5513
        %v5522 = vsub.f32 %v5501, %v5514
        %v5523 = vpack.c.bf16 %v5517, %v5515
        %v5524 = vpack.c.bf16 %v5518, %v5516
        %v5525 = vpack.c.bf16 %v5521, %v5519
        %v5526 = vpack.c.bf16 %v5522, %v5520
        %5527 = vmatpush.bf16.msra.mxu0 0
        %5528 = vmatpush.bf16.msra.mxu0 0
        %5529 = vmatpush.bf16.msra.mxu0 0
        %5530 = vmatpush.bf16.msra.mxu0 0
        %5531 = vmatpush.bf16.msra.mxu0 0
        %5532 = vmatpush.bf16.msra.mxu0 0
        %5533 = vmatpush.bf16.msra.mxu0 %v5525
        %5534 = vmatpush.bf16.msra.mxu0 %v5523
        %5535 = vmatmul.bf16.gmra.mxu0 %v1858
        %v5536 = vpop.f32.mrf.mxu0
        %v5537 = vadd.f32 0.0, %v5536
        %v5538 = vpop.f32.mrf.mxu0
        %v5539 = vadd.f32 0.0, %v5538
        %5540 = vmatmul.bf16.gmra.mxu0 %v1861
        %v5541 = vpop.f32.mrf.mxu0
        %v5542 = vadd.f32 0.0, %v5541
        %v5543 = vpop.f32.mrf.mxu0
        %v5544 = vadd.f32 0.0, %v5543
        %5545 = vmatmul.bf16.gmra.mxu0 %v1864
        %v5546 = vpop.f32.mrf.mxu0
        %v5547 = vadd.f32 0.0, %v5546
        %v5548 = vpop.f32.mrf.mxu0
        %v5549 = vadd.f32 0.0, %v5548
        %5550 = vmatmul.bf16.gmra.mxu0 %v1867
        %v5551 = vpop.f32.mrf.mxu0
        %v5552 = vadd.f32 0.0, %v5551
        %v5553 = vpop.f32.mrf.mxu0
        %v5554 = vadd.f32 0.0, %v5553
        %5555 = vmatmul.bf16.gmra.mxu0 %v1870
        %v5556 = vpop.f32.mrf.mxu0
        %v5557 = vadd.f32 0.0, %v5556
        %v5558 = vpop.f32.mrf.mxu0
        %v5559 = vadd.f32 0.0, %v5558
        %5560 = vmatmul.bf16.gmra.mxu0 %v1873
        %v5561 = vpop.f32.mrf.mxu0
        %v5562 = vadd.f32 0.0, %v5561
        %v5563 = vpop.f32.mrf.mxu0
        %v5564 = vadd.f32 0.0, %v5563
        %5565 = vdwg.mxu0
        %5566 = vmatpush.bf16.msra.mxu0 0
        %5567 = vmatpush.bf16.msra.mxu0 0
        %5568 = vmatpush.bf16.msra.mxu0 0
        %5569 = vmatpush.bf16.msra.mxu0 0
        %5570 = vmatpush.bf16.msra.mxu0 0
        %5571 = vmatpush.bf16.msra.mxu0 0
        %5572 = vmatpush.bf16.msra.mxu0 %v5526
        %5573 = vmatpush.bf16.msra.mxu0 %v5524
        %5574 = vmatmul.bf16.gmra.mxu0 %v1858
        %v5575 = vpop.f32.mrf.mxu0
        %v5576 = vadd.f32 0.0, %v5575
        %v5577 = vpop.f32.mrf.mxu0
        %v5578 = vadd.f32 0.0, %v5577
        %5579 = vmatmul.bf16.gmra.mxu0 %v1861
        %v5580 = vpop.f32.mrf.mxu0
        %v5581 = vadd.f32 0.0, %v5580
        %v5582 = vpop.f32.mrf.mxu0
        %v5583 = vadd.f32 0.0, %v5582
        %5584 = vmatmul.bf16.gmra.mxu0 %v1864
        %v5585 = vpop.f32.mrf.mxu0
        %v5586 = vadd.f32 0.0, %v5585
        %v5587 = vpop.f32.mrf.mxu0
        %v5588 = vadd.f32 0.0, %v5587
        %5589 = vmatmul.bf16.gmra.mxu0 %v1867
        %v5590 = vpop.f32.mrf.mxu0
        %v5591 = vadd.f32 0.0, %v5590
        %v5592 = vpop.f32.mrf.mxu0
        %v5593 = vadd.f32 0.0, %v5592
        %5594 = vmatmul.bf16.gmra.mxu0 %v1870
        %v5595 = vpop.f32.mrf.mxu0
        %v5596 = vadd.f32 0.0, %v5595
        %v5597 = vpop.f32.mrf.mxu0
        %v5598 = vadd.f32 0.0, %v5597
        %5599 = vmatmul.bf16.gmra.mxu0 %v1873
        %v5600 = vpop.f32.mrf.mxu0
        %v5601 = vadd.f32 0.0, %v5600
        %v5602 = vpop.f32.mrf.mxu0
        %v5603 = vadd.f32 0.0, %v5602
        %5604 = vdwg.mxu0
        %v5609 = vunpack.c.l.b16 %v5503
        %v5610 = vunpack.c.h.b16 %v5503
        %v5611 = vunpack.c.l.b16 %v5504
        %v5612 = vunpack.c.h.b16 %v5504
        %v5613 = vunpack.c.l.b16 %v5505
        %v5614 = vunpack.c.h.b16 %v5505
        %v5615 = vunpack.c.l.b16 %v5506
        %v5616 = vunpack.c.h.b16 %v5506
        %v5617 = vpack.c.b16 %v5611, %v5609
        %v5618 = vpack.c.b16 %v5612, %v5610
        %v5619 = vpack.c.b16 %v5615, %v5613
        %v5620 = vpack.c.b16 %v5616, %v5614
        %5625 = vmatpush.bf16.msra.mxu0 0
        %5626 = vmatpush.bf16.msra.mxu0 0
        %5627 = vmatpush.bf16.msra.mxu0 0
        %5628 = vmatpush.bf16.msra.mxu0 0
        %5629 = vmatpush.bf16.msra.mxu0 0
        %5630 = vmatpush.bf16.msra.mxu0 0
        %5631 = vmatpush.bf16.msra.mxu0 %v5619
        %5632 = vmatpush.bf16.msra.mxu0 %v5617
        %5633 = vmatmul.bf16.gmra.mxu0 %v1858
        %v5634 = vpop.f32.mrf.mxu0
        %v5635 = vadd.f32 %v5537, %v5634
        %v5636 = vpop.f32.mrf.mxu0
        %v5637 = vadd.f32 %v5539, %v5636
        %5638 = vmatmul.bf16.gmra.mxu0 %v1861
        %v5639 = vpop.f32.mrf.mxu0
        %v5640 = vadd.f32 %v5542, %v5639
        %v5641 = vpop.f32.mrf.mxu0
        %v5642 = vadd.f32 %v5544, %v5641
        %5643 = vmatmul.bf16.gmra.mxu0 %v1864
        %v5644 = vpop.f32.mrf.mxu0
        %v5645 = vadd.f32 %v5547, %v5644
        %v5646 = vpop.f32.mrf.mxu0
        %v5647 = vadd.f32 %v5549, %v5646
        %5648 = vmatmul.bf16.gmra.mxu0 %v1867
        %v5649 = vpop.f32.mrf.mxu0
        %v5650 = vadd.f32 %v5552, %v5649
        %v5651 = vpop.f32.mrf.mxu0
        %v5652 = vadd.f32 %v5554, %v5651
        %5653 = vmatmul.bf16.gmra.mxu0 %v1870
        %v5654 = vpop.f32.mrf.mxu0
        %v5655 = vadd.f32 %v5557, %v5654
        %v5656 = vpop.f32.mrf.mxu0
        %v5657 = vadd.f32 %v5559, %v5656
        %5658 = vmatmul.bf16.gmra.mxu0 %v1873
        %v5659 = vpop.f32.mrf.mxu0
        %v5660 = vadd.f32 %v5562, %v5659
        %v5661 = vpop.f32.mrf.mxu0
        %v5662 = vadd.f32 %v5564, %v5661
        %5663 = vdwg.mxu0
        %5664 = vmatpush.bf16.msra.mxu0 0
        %5665 = vmatpush.bf16.msra.mxu0 0
        %5666 = vmatpush.bf16.msra.mxu0 0
        %5667 = vmatpush.bf16.msra.mxu0 0
        %5668 = vmatpush.bf16.msra.mxu0 0
        %5669 = vmatpush.bf16.msra.mxu0 0
        %5670 = vmatpush.bf16.msra.mxu0 %v5620
        %5671 = vmatpush.bf16.msra.mxu0 %v5618
        %5672 = vmatmul.bf16.gmra.mxu0 %v1858
        %v5673 = vpop.f32.mrf.mxu0
        %v5674 = vadd.f32 %v5576, %v5673
        %v5675 = vpop.f32.mrf.mxu0
        %v5676 = vadd.f32 %v5578, %v5675
        %5677 = vmatmul.bf16.gmra.mxu0 %v1861
        %v5678 = vpop.f32.mrf.mxu0
        %v5679 = vadd.f32 %v5581, %v5678
        %v5680 = vpop.f32.mrf.mxu0
        %v5681 = vadd.f32 %v5583, %v5680
        %5682 = vmatmul.bf16.gmra.mxu0 %v1864
        %v5683 = vpop.f32.mrf.mxu0
        %v5684 = vadd.f32 %v5586, %v5683
        %v5685 = vpop.f32.mrf.mxu0
        %v5686 = vadd.f32 %v5588, %v5685
        %5687 = vmatmul.bf16.gmra.mxu0 %v1867
        %v5688 = vpop.f32.mrf.mxu0
        %v5689 = vadd.f32 %v5591, %v5688
        %v5690 = vpop.f32.mrf.mxu0
        %v5691 = vadd.f32 %v5593, %v5690
        %5692 = vmatmul.bf16.gmra.mxu0 %v1870
        %v5693 = vpop.f32.mrf.mxu0
        %v5694 = vadd.f32 %v5596, %v5693
        %v5695 = vpop.f32.mrf.mxu0
        %v5696 = vadd.f32 %v5598, %v5695
        %5697 = vmatmul.bf16.gmra.mxu0 %v1873
        %v5698 = vpop.f32.mrf.mxu0
        %v5699 = vadd.f32 %v5601, %v5698
        %v5700 = vpop.f32.mrf.mxu0
        %v5701 = vadd.f32 %v5603, %v5700
        %5702 = vdwg.mxu0
        %v5703 = vld [vmem:[%s10] sm:$0xff]
        %v5704 = vld [vmem:[%s10 + $0x8] sm:$0xff]
        %v5705 = vld [vmem:[%s10 + $0x10] sm:$0xff]
        %v5706 = vld [vmem:[%s10 + $0x18] sm:$0xff]
        %v5707 = vld [vmem:[%s10 + $0x20] sm:$0xff]
        %v5708 = vld [vmem:[%s10 + $0x28] sm:$0xff]
        %v5709 = vld [vmem:[%s10 + $0x30] sm:$0xff]
        %v5710 = vld [vmem:[%s10 + $0x38] sm:$0xff]
        %v5711 = vld [vmem:[%s10 + $0x40] sm:$0xff]
        %v5712 = vld [vmem:[%s10 + $0x48] sm:$0xff]
        %v5713 = vld [vmem:[%s10 + $0x50] sm:$0xff]
        %v5714 = vld [vmem:[%s10 + $0x58] sm:$0xff]
        %v5715 = vld [vmem:[%s10 + $0x60] sm:$0xff]
        %v5716 = vld [vmem:[%s10 + $0x68] sm:$0xff]
        %v5717 = vld [vmem:[%s10 + $0x70] sm:$0xff]
        %v5718 = vld [vmem:[%s10 + $0x78] sm:$0xff]
        %v5719 = vld [vmem:[%s10 + $0x80] sm:$0xff]
        %v5720 = vld [vmem:[%s10 + $0x88] sm:$0xff]
        %v5721 = vld [vmem:[%s10 + $0x90] sm:$0xff]
        %v5722 = vld [vmem:[%s10 + $0x98] sm:$0xff]
        %v5723 = vld [vmem:[%s10 + $0xa0] sm:$0xff]
        %v5724 = vld [vmem:[%s10 + $0xa8] sm:$0xff]
        %v5725 = vld [vmem:[%s10 + $0xb0] sm:$0xff]
        %v5726 = vld [vmem:[%s10 + $0xb8] sm:$0xff]
        %v5727 = vmul.f32 %v5635, %v5703
        %v5728 = vmul.f32 %v5674, %v5704
        %v5729 = vmul.f32 %v5637, %v5705
        %v5730 = vmul.f32 %v5676, %v5706
        %v5731 = vmul.f32 %v5640, %v5707
        %v5732 = vmul.f32 %v5679, %v5708
        %v5733 = vmul.f32 %v5642, %v5709
        %v5734 = vmul.f32 %v5681, %v5710
        %v5735 = vmul.f32 %v5645, %v5711
        %v5736 = vmul.f32 %v5684, %v5712
        %v5737 = vmul.f32 %v5647, %v5713
        %v5738 = vmul.f32 %v5686, %v5714
        %v5739 = vmul.f32 %v5650, %v5715
        %v5740 = vmul.f32 %v5689, %v5716
        %v5741 = vmul.f32 %v5652, %v5717
        %v5742 = vmul.f32 %v5691, %v5718
        %v5743 = vmul.f32 %v5655, %v5719
        %v5744 = vmul.f32 %v5694, %v5720
        %v5745 = vmul.f32 %v5657, %v5721
        %v5746 = vmul.f32 %v5696, %v5722
        %v5747 = vmul.f32 %v5660, %v5723
        %v5748 = vmul.f32 %v5699, %v5724
        %v5749 = vmul.f32 %v5662, %v5725
        %v5750 = vmul.f32 %v5701, %v5726
        %v5751 = vpack.c.bf16 %v5728, %v5727
        %v5752 = vpack.c.bf16 %v5730, %v5729
        %v5753 = vpack.c.bf16 %v5732, %v5731
        %v5754 = vpack.c.bf16 %v5734, %v5733
        %v5755 = vpack.c.bf16 %v5736, %v5735
        %v5756 = vpack.c.bf16 %v5738, %v5737
        %v5757 = vpack.c.bf16 %v5740, %v5739
        %v5758 = vpack.c.bf16 %v5742, %v5741
        %v5759 = vpack.c.bf16 %v5744, %v5743
        %v5760 = vpack.c.bf16 %v5746, %v5745
        %v5761 = vpack.c.bf16 %v5748, %v5747
        %v5762 = vpack.c.bf16 %v5750, %v5749
        %v5763 = vunpack.c.l.bf16 %v5751
        %v5764 = vunpack.c.h.bf16 %v5751
        %v5765 = vunpack.c.l.bf16 %v5752
        %v5766 = vunpack.c.h.bf16 %v5752
        %v5767 = vunpack.c.l.bf16 %v5753
        %v5768 = vunpack.c.h.bf16 %v5753
        %v5769 = vunpack.c.l.bf16 %v5754
        %v5770 = vunpack.c.h.bf16 %v5754
        %v5771 = vunpack.c.l.bf16 %v5755
        %v5772 = vunpack.c.h.bf16 %v5755
        %v5773 = vunpack.c.l.bf16 %v5756
        %v5774 = vunpack.c.h.bf16 %v5756
        %v5775 = vunpack.c.l.bf16 %v5757
        %v5776 = vunpack.c.h.bf16 %v5757
        %v5777 = vunpack.c.l.bf16 %v5758
        %v5778 = vunpack.c.h.bf16 %v5758
        %v5779 = vunpack.c.l.bf16 %v5759
        %v5780 = vunpack.c.h.bf16 %v5759
        %v5781 = vunpack.c.l.bf16 %v5760
        %v5782 = vunpack.c.h.bf16 %v5760
        %v5783 = vunpack.c.l.bf16 %v5761
        %v5784 = vunpack.c.h.bf16 %v5761
        %v5785 = vunpack.c.l.bf16 %v5762
        %v5786 = vunpack.c.h.bf16 %v5762
        %v5787 = vsub.f32 %v5727, %v5763
        %v5788 = vsub.f32 %v5728, %v5764
        %v5789 = vsub.f32 %v5729, %v5765
        %v5790 = vsub.f32 %v5730, %v5766
        %v5791 = vsub.f32 %v5731, %v5767
        %v5792 = vsub.f32 %v5732, %v5768
        %v5793 = vsub.f32 %v5733, %v5769
        %v5794 = vsub.f32 %v5734, %v5770
        %v5795 = vsub.f32 %v5735, %v5771
        %v5796 = vsub.f32 %v5736, %v5772
        %v5797 = vsub.f32 %v5737, %v5773
        %v5798 = vsub.f32 %v5738, %v5774
        %v5799 = vsub.f32 %v5739, %v5775
        %v5800 = vsub.f32 %v5740, %v5776
        %v5801 = vsub.f32 %v5741, %v5777
        %v5802 = vsub.f32 %v5742, %v5778
        %v5803 = vsub.f32 %v5743, %v5779
        %v5804 = vsub.f32 %v5744, %v5780
        %v5805 = vsub.f32 %v5745, %v5781
        %v5806 = vsub.f32 %v5746, %v5782
        %v5807 = vsub.f32 %v5747, %v5783
        %v5808 = vsub.f32 %v5748, %v5784
        %v5809 = vsub.f32 %v5749, %v5785
        %v5810 = vsub.f32 %v5750, %v5786
        %v5811 = vpack.c.bf16 %v5789, %v5787
        %v5812 = vpack.c.bf16 %v5790, %v5788
        %v5813 = vpack.c.bf16 %v5793, %v5791
        %v5814 = vpack.c.bf16 %v5794, %v5792
        %v5815 = vpack.c.bf16 %v5797, %v5795
        %v5816 = vpack.c.bf16 %v5798, %v5796
        %v5817 = vpack.c.bf16 %v5801, %v5799
        %v5818 = vpack.c.bf16 %v5802, %v5800
        %v5819 = vpack.c.bf16 %v5805, %v5803
        %v5820 = vpack.c.bf16 %v5806, %v5804
        %v5821 = vpack.c.bf16 %v5809, %v5807
        %v5822 = vpack.c.bf16 %v5810, %v5808
        %v5855 = vunpack.c.l.b16 %v4927
        %v5856 = vunpack.c.h.b16 %v4927
        %v5857 = vunpack.c.l.b16 %v4928
        %v5858 = vunpack.c.h.b16 %v4928
        %v5859 = vunpack.c.l.b16 %v4929
        %v5860 = vunpack.c.h.b16 %v4929
        %v5861 = vunpack.c.l.b16 %v4930
        %v5862 = vunpack.c.h.b16 %v4930
        %v5863 = vunpack.c.l.b16 %v4931
        %v5864 = vunpack.c.h.b16 %v4931
        %v5865 = vunpack.c.l.b16 %v4932
        %v5866 = vunpack.c.h.b16 %v4932
        %v5867 = vunpack.c.l.b16 %v4933
        %v5868 = vunpack.c.h.b16 %v4933
        %v5869 = vunpack.c.l.b16 %v4934
        %v5870 = vunpack.c.h.b16 %v4934
        %v5871 = vunpack.c.l.b16 %v4935
        %v5872 = vunpack.c.h.b16 %v4935
        %v5873 = vunpack.c.l.b16 %v4936
        %v5874 = vunpack.c.h.b16 %v4936
        %v5875 = vunpack.c.l.b16 %v4937
        %v5876 = vunpack.c.h.b16 %v4937
        %v5877 = vunpack.c.l.b16 %v4938
        %v5878 = vunpack.c.h.b16 %v4938
        %v5879 = vunpack.c.l.b16 %v4939
        %v5880 = vunpack.c.h.b16 %v4939
        %v5881 = vunpack.c.l.b16 %v4940
        %v5882 = vunpack.c.h.b16 %v4940
        %v5883 = vunpack.c.l.b16 %v4941
        %v5884 = vunpack.c.h.b16 %v4941
        %v5885 = vunpack.c.l.b16 %v4942
        %v5886 = vunpack.c.h.b16 %v4942
        %v5887 = vunpack.c.l.b16 %v4943
        %v5888 = vunpack.c.h.b16 %v4943
        %v5889 = vunpack.c.l.b16 %v4944
        %v5890 = vunpack.c.h.b16 %v4944
        %v5891 = vunpack.c.l.b16 %v4945
        %v5892 = vunpack.c.h.b16 %v4945
        %v5893 = vunpack.c.l.b16 %v4946
        %v5894 = vunpack.c.h.b16 %v4946
        %v5895 = vunpack.c.l.b16 %v4947
        %v5896 = vunpack.c.h.b16 %v4947
        %v5897 = vunpack.c.l.b16 %v4948
        %v5898 = vunpack.c.h.b16 %v4948
        %v5899 = vunpack.c.l.b16 %v4949
        %v5900 = vunpack.c.h.b16 %v4949
        %v5901 = vunpack.c.l.b16 %v4950
        %v5902 = vunpack.c.h.b16 %v4950
        %v5903 = vunpack.c.l.b16 %v4951
        %v5904 = vunpack.c.h.b16 %v4951
        %v5905 = vunpack.c.l.b16 %v4952
        %v5906 = vunpack.c.h.b16 %v4952
        %v5907 = vunpack.c.l.b16 %v4953
        %v5908 = vunpack.c.h.b16 %v4953
        %v5909 = vunpack.c.l.b16 %v4954
        %v5910 = vunpack.c.h.b16 %v4954
        %v5911 = vunpack.c.l.b16 %v4955
        %v5912 = vunpack.c.h.b16 %v4955
        %v5913 = vunpack.c.l.b16 %v4956
        %v5914 = vunpack.c.h.b16 %v4956
        %v5915 = vunpack.c.l.b16 %v4957
        %v5916 = vunpack.c.h.b16 %v4957
        %v5917 = vunpack.c.l.b16 %v4958
        %v5918 = vunpack.c.h.b16 %v4958
        %v5919 = vpack.c.b16 %v5857, %v5855
        %v5920 = vpack.c.b16 %v5858, %v5856
        %v5921 = vpack.c.b16 %v5861, %v5859
        %v5922 = vpack.c.b16 %v5862, %v5860
        %v5923 = vpack.c.b16 %v5865, %v5863
        %v5924 = vpack.c.b16 %v5866, %v5864
        %v5925 = vpack.c.b16 %v5869, %v5867
        %v5926 = vpack.c.b16 %v5870, %v5868
        %v5927 = vpack.c.b16 %v5873, %v5871
        %v5928 = vpack.c.b16 %v5874, %v5872
        %v5929 = vpack.c.b16 %v5877, %v5875
        %v5930 = vpack.c.b16 %v5878, %v5876
        %v5931 = vpack.c.b16 %v5881, %v5879
        %v5932 = vpack.c.b16 %v5882, %v5880
        %v5933 = vpack.c.b16 %v5885, %v5883
        %v5934 = vpack.c.b16 %v5886, %v5884
        %v5935 = vpack.c.b16 %v5889, %v5887
        %v5936 = vpack.c.b16 %v5890, %v5888
        %v5937 = vpack.c.b16 %v5893, %v5891
        %v5938 = vpack.c.b16 %v5894, %v5892
        %v5939 = vpack.c.b16 %v5897, %v5895
        %v5940 = vpack.c.b16 %v5898, %v5896
        %v5941 = vpack.c.b16 %v5901, %v5899
        %v5942 = vpack.c.b16 %v5902, %v5900
        %v5943 = vpack.c.b16 %v5905, %v5903
        %v5944 = vpack.c.b16 %v5906, %v5904
        %v5945 = vpack.c.b16 %v5909, %v5907
        %v5946 = vpack.c.b16 %v5910, %v5908
        %v5947 = vpack.c.b16 %v5913, %v5911
        %v5948 = vpack.c.b16 %v5914, %v5912
        %v5949 = vpack.c.b16 %v5917, %v5915
        %v5950 = vpack.c.b16 %v5918, %v5916
        %5983 = vmatpush.bf16.msra.mxu0 %v5933
        %5984 = vmatpush.bf16.msra.mxu0 %v5931
        %5985 = vmatpush.bf16.msra.mxu0 %v5929
        %5986 = vmatpush.bf16.msra.mxu0 %v5927
        %5987 = vmatpush.bf16.msra.mxu0 %v5925
        %5988 = vmatpush.bf16.msra.mxu0 %v5923
        %5989 = vmatpush.bf16.msra.mxu0 %v5921
        %5990 = vmatpush.bf16.msra.mxu0 %v5919
        %5991 = vmatmul.bf16.gmra.mxu0 %v5811
        %v5992 = vpop.f32.mrf.mxu0
        %v5993 = vadd.f32 0.0, %v5992
        %v5994 = vpop.f32.mrf.mxu0
        %v5995 = vadd.f32 0.0, %v5994
        %5996 = vmatmul.bf16.gmra.mxu0 %v5813
        %v5997 = vpop.f32.mrf.mxu0
        %v5998 = vadd.f32 0.0, %v5997
        %v5999 = vpop.f32.mrf.mxu0
        %v6000 = vadd.f32 0.0, %v5999
        %6001 = vmatmul.bf16.gmra.mxu0 %v5815
        %v6002 = vpop.f32.mrf.mxu0
        %v6003 = vadd.f32 0.0, %v6002
        %v6004 = vpop.f32.mrf.mxu0
        %v6005 = vadd.f32 0.0, %v6004
        %6006 = vmatmul.bf16.gmra.mxu0 %v5817
        %v6007 = vpop.f32.mrf.mxu0
        %v6008 = vadd.f32 0.0, %v6007
        %v6009 = vpop.f32.mrf.mxu0
        %v6010 = vadd.f32 0.0, %v6009
        %6011 = vmatmul.bf16.gmra.mxu0 %v5819
        %v6012 = vpop.f32.mrf.mxu0
        %v6013 = vadd.f32 0.0, %v6012
        %v6014 = vpop.f32.mrf.mxu0
        %v6015 = vadd.f32 0.0, %v6014
        %6016 = vmatmul.bf16.gmra.mxu0 %v5821
        %v6017 = vpop.f32.mrf.mxu0
        %v6018 = vadd.f32 0.0, %v6017
        %v6019 = vpop.f32.mrf.mxu0
        %v6020 = vadd.f32 0.0, %v6019
        %6021 = vdwg.mxu0
        %6022 = vmatpush.bf16.msra.mxu0 %v5949
        %6023 = vmatpush.bf16.msra.mxu0 %v5947
        %6024 = vmatpush.bf16.msra.mxu0 %v5945
        %6025 = vmatpush.bf16.msra.mxu0 %v5943
        %6026 = vmatpush.bf16.msra.mxu0 %v5941
        %6027 = vmatpush.bf16.msra.mxu0 %v5939
        %6028 = vmatpush.bf16.msra.mxu0 %v5937
        %6029 = vmatpush.bf16.msra.mxu0 %v5935
        %6030 = vmatmul.bf16.gmra.mxu0 %v5812
        %v6031 = vpop.f32.mrf.mxu0
        %v6032 = vadd.f32 %v5993, %v6031
        %v6033 = vpop.f32.mrf.mxu0
        %v6034 = vadd.f32 %v5995, %v6033
        %6035 = vmatmul.bf16.gmra.mxu0 %v5814
        %v6036 = vpop.f32.mrf.mxu0
        %v6037 = vadd.f32 %v5998, %v6036
        %v6038 = vpop.f32.mrf.mxu0
        %v6039 = vadd.f32 %v6000, %v6038
        %6040 = vmatmul.bf16.gmra.mxu0 %v5816
        %v6041 = vpop.f32.mrf.mxu0
        %v6042 = vadd.f32 %v6003, %v6041
        %v6043 = vpop.f32.mrf.mxu0
        %v6044 = vadd.f32 %v6005, %v6043
        %6045 = vmatmul.bf16.gmra.mxu0 %v5818
        %v6046 = vpop.f32.mrf.mxu0
        %v6047 = vadd.f32 %v6008, %v6046
        %v6048 = vpop.f32.mrf.mxu0
        %v6049 = vadd.f32 %v6010, %v6048
        %6050 = vmatmul.bf16.gmra.mxu0 %v5820
        %v6051 = vpop.f32.mrf.mxu0
        %v6052 = vadd.f32 %v6013, %v6051
        %v6053 = vpop.f32.mrf.mxu0
        %v6054 = vadd.f32 %v6015, %v6053
        %6055 = vmatmul.bf16.gmra.mxu0 %v5822
        %v6056 = vpop.f32.mrf.mxu0
        %v6057 = vadd.f32 %v6018, %v6056
        %v6058 = vpop.f32.mrf.mxu0
        %v6059 = vadd.f32 %v6020, %v6058
        %6060 = vdwg.mxu0
        %6061 = vmatpush.bf16.msra.mxu0 %v5934
        %6062 = vmatpush.bf16.msra.mxu0 %v5932
        %6063 = vmatpush.bf16.msra.mxu0 %v5930
        %6064 = vmatpush.bf16.msra.mxu0 %v5928
        %6065 = vmatpush.bf16.msra.mxu0 %v5926
        %6066 = vmatpush.bf16.msra.mxu0 %v5924
        %6067 = vmatpush.bf16.msra.mxu0 %v5922
        %6068 = vmatpush.bf16.msra.mxu0 %v5920
        %6069 = vmatmul.bf16.gmra.mxu0 %v5811
        %v6070 = vpop.f32.mrf.mxu0
        %v6071 = vadd.f32 0.0, %v6070
        %v6072 = vpop.f32.mrf.mxu0
        %v6073 = vadd.f32 0.0, %v6072
        %6074 = vmatmul.bf16.gmra.mxu0 %v5813
        %v6075 = vpop.f32.mrf.mxu0
        %v6076 = vadd.f32 0.0, %v6075
        %v6077 = vpop.f32.mrf.mxu0
        %v6078 = vadd.f32 0.0, %v6077
        %6079 = vmatmul.bf16.gmra.mxu0 %v5815
        %v6080 = vpop.f32.mrf.mxu0
        %v6081 = vadd.f32 0.0, %v6080
        %v6082 = vpop.f32.mrf.mxu0
        %v6083 = vadd.f32 0.0, %v6082
        %6084 = vmatmul.bf16.gmra.mxu0 %v5817
        %v6085 = vpop.f32.mrf.mxu0
        %v6086 = vadd.f32 0.0, %v6085
        %v6087 = vpop.f32.mrf.mxu0
        %v6088 = vadd.f32 0.0, %v6087
        %6089 = vmatmul.bf16.gmra.mxu0 %v5819
        %v6090 = vpop.f32.mrf.mxu0
        %v6091 = vadd.f32 0.0, %v6090
        %v6092 = vpop.f32.mrf.mxu0
        %v6093 = vadd.f32 0.0, %v6092
        %6094 = vmatmul.bf16.gmra.mxu0 %v5821
        %v6095 = vpop.f32.mrf.mxu0
        %v6096 = vadd.f32 0.0, %v6095
        %v6097 = vpop.f32.mrf.mxu0
        %v6098 = vadd.f32 0.0, %v6097
        %6099 = vdwg.mxu0
        %6100 = vmatpush.bf16.msra.mxu0 %v5950
        %6101 = vmatpush.bf16.msra.mxu0 %v5948
        %6102 = vmatpush.bf16.msra.mxu0 %v5946
        %6103 = vmatpush.bf16.msra.mxu0 %v5944
        %6104 = vmatpush.bf16.msra.mxu0 %v5942
        %6105 = vmatpush.bf16.msra.mxu0 %v5940
        %6106 = vmatpush.bf16.msra.mxu0 %v5938
        %6107 = vmatpush.bf16.msra.mxu0 %v5936
        %6108 = vmatmul.bf16.gmra.mxu0 %v5812
        %v6109 = vpop.f32.mrf.mxu0
        %v6110 = vadd.f32 %v6071, %v6109
        %v6111 = vpop.f32.mrf.mxu0
        %v6112 = vadd.f32 %v6073, %v6111
        %6113 = vmatmul.bf16.gmra.mxu0 %v5814
        %v6114 = vpop.f32.mrf.mxu0
        %v6115 = vadd.f32 %v6076, %v6114
        %v6116 = vpop.f32.mrf.mxu0
        %v6117 = vadd.f32 %v6078, %v6116
        %6118 = vmatmul.bf16.gmra.mxu0 %v5816
        %v6119 = vpop.f32.mrf.mxu0
        %v6120 = vadd.f32 %v6081, %v6119
        %v6121 = vpop.f32.mrf.mxu0
        %v6122 = vadd.f32 %v6083, %v6121
        %6123 = vmatmul.bf16.gmra.mxu0 %v5818
        %v6124 = vpop.f32.mrf.mxu0
        %v6125 = vadd.f32 %v6086, %v6124
        %v6126 = vpop.f32.mrf.mxu0
        %v6127 = vadd.f32 %v6088, %v6126
        %6128 = vmatmul.bf16.gmra.mxu0 %v5820
        %v6129 = vpop.f32.mrf.mxu0
        %v6130 = vadd.f32 %v6091, %v6129
        %v6131 = vpop.f32.mrf.mxu0
        %v6132 = vadd.f32 %v6093, %v6131
        %6133 = vmatmul.bf16.gmra.mxu0 %v5822
        %v6134 = vpop.f32.mrf.mxu0
        %v6135 = vadd.f32 %v6096, %v6134
        %v6136 = vpop.f32.mrf.mxu0
        %v6137 = vadd.f32 %v6098, %v6136
        %6138 = vdwg.mxu0
        %v6151 = vunpack.c.l.b16 %v5751
        %v6152 = vunpack.c.h.b16 %v5751
        %v6153 = vunpack.c.l.b16 %v5752
        %v6154 = vunpack.c.h.b16 %v5752
        %v6155 = vunpack.c.l.b16 %v5753
        %v6156 = vunpack.c.h.b16 %v5753
        %v6157 = vunpack.c.l.b16 %v5754
        %v6158 = vunpack.c.h.b16 %v5754
        %v6159 = vunpack.c.l.b16 %v5755
        %v6160 = vunpack.c.h.b16 %v5755
        %v6161 = vunpack.c.l.b16 %v5756
        %v6162 = vunpack.c.h.b16 %v5756
        %v6163 = vunpack.c.l.b16 %v5757
        %v6164 = vunpack.c.h.b16 %v5757
        %v6165 = vunpack.c.l.b16 %v5758
        %v6166 = vunpack.c.h.b16 %v5758
        %v6167 = vunpack.c.l.b16 %v5759
        %v6168 = vunpack.c.h.b16 %v5759
        %v6169 = vunpack.c.l.b16 %v5760
        %v6170 = vunpack.c.h.b16 %v5760
        %v6171 = vunpack.c.l.b16 %v5761
        %v6172 = vunpack.c.h.b16 %v5761
        %v6173 = vunpack.c.l.b16 %v5762
        %v6174 = vunpack.c.h.b16 %v5762
        %v6175 = vpack.c.b16 %v6153, %v6151
        %v6176 = vpack.c.b16 %v6154, %v6152
        %v6177 = vpack.c.b16 %v6157, %v6155
        %v6178 = vpack.c.b16 %v6158, %v6156
        %v6179 = vpack.c.b16 %v6161, %v6159
        %v6180 = vpack.c.b16 %v6162, %v6160
        %v6181 = vpack.c.b16 %v6165, %v6163
        %v6182 = vpack.c.b16 %v6166, %v6164
        %v6183 = vpack.c.b16 %v6169, %v6167
        %v6184 = vpack.c.b16 %v6170, %v6168
        %v6185 = vpack.c.b16 %v6173, %v6171
        %v6186 = vpack.c.b16 %v6174, %v6172
        %6199 = vmatpush.bf16.msra.mxu0 %v5933
        %6200 = vmatpush.bf16.msra.mxu0 %v5931
        %6201 = vmatpush.bf16.msra.mxu0 %v5929
        %6202 = vmatpush.bf16.msra.mxu0 %v5927
        %6203 = vmatpush.bf16.msra.mxu0 %v5925
        %6204 = vmatpush.bf16.msra.mxu0 %v5923
        %6205 = vmatpush.bf16.msra.mxu0 %v5921
        %6206 = vmatpush.bf16.msra.mxu0 %v5919
        %6207 = vmatmul.bf16.gmra.mxu0 %v6175
        %v6208 = vpop.f32.mrf.mxu0
        %v6209 = vadd.f32 %v6032, %v6208
        %v6210 = vpop.f32.mrf.mxu0
        %v6211 = vadd.f32 %v6034, %v6210
        %6212 = vmatmul.bf16.gmra.mxu0 %v6177
        %v6213 = vpop.f32.mrf.mxu0
        %v6214 = vadd.f32 %v6037, %v6213
        %v6215 = vpop.f32.mrf.mxu0
        %v6216 = vadd.f32 %v6039, %v6215
        %6217 = vmatmul.bf16.gmra.mxu0 %v6179
        %v6218 = vpop.f32.mrf.mxu0
        %v6219 = vadd.f32 %v6042, %v6218
        %v6220 = vpop.f32.mrf.mxu0
        %v6221 = vadd.f32 %v6044, %v6220
        %6222 = vmatmul.bf16.gmra.mxu0 %v6181
        %v6223 = vpop.f32.mrf.mxu0
        %v6224 = vadd.f32 %v6047, %v6223
        %v6225 = vpop.f32.mrf.mxu0
        %v6226 = vadd.f32 %v6049, %v6225
        %6227 = vmatmul.bf16.gmra.mxu0 %v6183
        %v6228 = vpop.f32.mrf.mxu0
        %v6229 = vadd.f32 %v6052, %v6228
        %v6230 = vpop.f32.mrf.mxu0
        %v6231 = vadd.f32 %v6054, %v6230
        %6232 = vmatmul.bf16.gmra.mxu0 %v6185
        %v6233 = vpop.f32.mrf.mxu0
        %v6234 = vadd.f32 %v6057, %v6233
        %v6235 = vpop.f32.mrf.mxu0
        %v6236 = vadd.f32 %v6059, %v6235
        %6237 = vdwg.mxu0
        %6238 = vmatpush.bf16.msra.mxu0 %v5949
        %6239 = vmatpush.bf16.msra.mxu0 %v5947
        %6240 = vmatpush.bf16.msra.mxu0 %v5945
        %6241 = vmatpush.bf16.msra.mxu0 %v5943
        %6242 = vmatpush.bf16.msra.mxu0 %v5941
        %6243 = vmatpush.bf16.msra.mxu0 %v5939
        %6244 = vmatpush.bf16.msra.mxu0 %v5937
        %6245 = vmatpush.bf16.msra.mxu0 %v5935
        %6246 = vmatmul.bf16.gmra.mxu0 %v6176
        %v6247 = vpop.f32.mrf.mxu0
        %v6248 = vadd.f32 %v6209, %v6247
        %v6249 = vpop.f32.mrf.mxu0
        %v6250 = vadd.f32 %v6211, %v6249
        %6251 = vmatmul.bf16.gmra.mxu0 %v6178
        %v6252 = vpop.f32.mrf.mxu0
        %v6253 = vadd.f32 %v6214, %v6252
        %v6254 = vpop.f32.mrf.mxu0
        %v6255 = vadd.f32 %v6216, %v6254
        %6256 = vmatmul.bf16.gmra.mxu0 %v6180
        %v6257 = vpop.f32.mrf.mxu0
        %v6258 = vadd.f32 %v6219, %v6257
        %v6259 = vpop.f32.mrf.mxu0
        %v6260 = vadd.f32 %v6221, %v6259
        %6261 = vmatmul.bf16.gmra.mxu0 %v6182
        %v6262 = vpop.f32.mrf.mxu0
        %v6263 = vadd.f32 %v6224, %v6262
        %v6264 = vpop.f32.mrf.mxu0
        %v6265 = vadd.f32 %v6226, %v6264
        %6266 = vmatmul.bf16.gmra.mxu0 %v6184
        %v6267 = vpop.f32.mrf.mxu0
        %v6268 = vadd.f32 %v6229, %v6267
        %v6269 = vpop.f32.mrf.mxu0
        %v6270 = vadd.f32 %v6231, %v6269
        %6271 = vmatmul.bf16.gmra.mxu0 %v6186
        %v6272 = vpop.f32.mrf.mxu0
        %v6273 = vadd.f32 %v6234, %v6272
        %v6274 = vpop.f32.mrf.mxu0
        %v6275 = vadd.f32 %v6236, %v6274
        %6276 = vdwg.mxu0
        %6277 = vmatpush.bf16.msra.mxu0 %v5934
        %6278 = vmatpush.bf16.msra.mxu0 %v5932
        %6279 = vmatpush.bf16.msra.mxu0 %v5930
        %6280 = vmatpush.bf16.msra.mxu0 %v5928
        %6281 = vmatpush.bf16.msra.mxu0 %v5926
        %6282 = vmatpush.bf16.msra.mxu0 %v5924
        %6283 = vmatpush.bf16.msra.mxu0 %v5922
        %6284 = vmatpush.bf16.msra.mxu0 %v5920
        %6285 = vmatmul.bf16.gmra.mxu0 %v6175
        %v6286 = vpop.f32.mrf.mxu0
        %v6287 = vadd.f32 %v6110, %v6286
        %v6288 = vpop.f32.mrf.mxu0
        %v6289 = vadd.f32 %v6112, %v6288
        %6290 = vmatmul.bf16.gmra.mxu0 %v6177
        %v6291 = vpop.f32.mrf.mxu0
        %v6292 = vadd.f32 %v6115, %v6291
        %v6293 = vpop.f32.mrf.mxu0
        %v6294 = vadd.f32 %v6117, %v6293
        %6295 = vmatmul.bf16.gmra.mxu0 %v6179
        %v6296 = vpop.f32.mrf.mxu0
        %v6297 = vadd.f32 %v6120, %v6296
        %v6298 = vpop.f32.mrf.mxu0
        %v6299 = vadd.f32 %v6122, %v6298
        %6300 = vmatmul.bf16.gmra.mxu0 %v6181
        %v6301 = vpop.f32.mrf.mxu0
        %v6302 = vadd.f32 %v6125, %v6301
        %v6303 = vpop.f32.mrf.mxu0
        %v6304 = vadd.f32 %v6127, %v6303
        %6305 = vmatmul.bf16.gmra.mxu0 %v6183
        %v6306 = vpop.f32.mrf.mxu0
        %v6307 = vadd.f32 %v6130, %v6306
        %v6308 = vpop.f32.mrf.mxu0
        %v6309 = vadd.f32 %v6132, %v6308
        %6310 = vmatmul.bf16.gmra.mxu0 %v6185
        %v6311 = vpop.f32.mrf.mxu0
        %v6312 = vadd.f32 %v6135, %v6311
        %v6313 = vpop.f32.mrf.mxu0
        %v6314 = vadd.f32 %v6137, %v6313
        %6315 = vdwg.mxu0
        %6316 = vmatpush.bf16.msra.mxu0 %v5950
        %6317 = vmatpush.bf16.msra.mxu0 %v5948
        %6318 = vmatpush.bf16.msra.mxu0 %v5946
        %6319 = vmatpush.bf16.msra.mxu0 %v5944
        %6320 = vmatpush.bf16.msra.mxu0 %v5942
        %6321 = vmatpush.bf16.msra.mxu0 %v5940
        %6322 = vmatpush.bf16.msra.mxu0 %v5938
        %6323 = vmatpush.bf16.msra.mxu0 %v5936
        %6324 = vmatmul.bf16.gmra.mxu0 %v6176
        %v6325 = vpop.f32.mrf.mxu0
        %v6326 = vadd.f32 %v6287, %v6325
        %v6327 = vpop.f32.mrf.mxu0
        %v6328 = vadd.f32 %v6289, %v6327
        %6329 = vmatmul.bf16.gmra.mxu0 %v6178
        %v6330 = vpop.f32.mrf.mxu0
        %v6331 = vadd.f32 %v6292, %v6330
        %v6332 = vpop.f32.mrf.mxu0
        %v6333 = vadd.f32 %v6294, %v6332
        %6334 = vmatmul.bf16.gmra.mxu0 %v6180
        %v6335 = vpop.f32.mrf.mxu0
        %v6336 = vadd.f32 %v6297, %v6335
        %v6337 = vpop.f32.mrf.mxu0
        %v6338 = vadd.f32 %v6299, %v6337
        %6339 = vmatmul.bf16.gmra.mxu0 %v6182
        %v6340 = vpop.f32.mrf.mxu0
        %v6341 = vadd.f32 %v6302, %v6340
        %v6342 = vpop.f32.mrf.mxu0
        %v6343 = vadd.f32 %v6304, %v6342
        %6344 = vmatmul.bf16.gmra.mxu0 %v6184
        %v6345 = vpop.f32.mrf.mxu0
        %v6346 = vadd.f32 %v6307, %v6345
        %v6347 = vpop.f32.mrf.mxu0
        %v6348 = vadd.f32 %v6309, %v6347
        %6349 = vmatmul.bf16.gmra.mxu0 %v6186
        %v6350 = vpop.f32.mrf.mxu0
        %v6351 = vadd.f32 %v6312, %v6350
        %v6352 = vpop.f32.mrf.mxu0
        %v6353 = vadd.f32 %v6314, %v6352
        %6354 = vdwg.mxu0
        %v6355 = vperm.slane %v5241, 0
        %v6356 = vperm.slane %v5493, 0
        %v6357 = vmul.f32 %v6248, %v6355
        %v6358 = vmul.f32 %v6326, %v6356
        %v6359 = vmul.f32 %v6250, %v6355
        %v6360 = vmul.f32 %v6328, %v6356
        %v6361 = vld [vmem:[%s9] sm:$0xff]
        %v6362 = vld [vmem:[%s9 + $0x8] sm:$0xff]
        %v6363 = vld [vmem:[%s9 + $0x10] sm:$0xff]
        %v6364 = vld [vmem:[%s9 + $0x18] sm:$0xff]
        %v6365 = vmul.f32 %v6248, %v6361
        %v6366 = vmul.f32 %v6326, %v6362
        %v6367 = vmul.f32 %v6250, %v6363
        %v6368 = vmul.f32 %v6328, %v6364
        %s6369 = scalar_lea.vmem %s9, 64
        %v6370 = vld [vmem:[%s6369] sm:$0xff]
        %v6371 = vld [vmem:[%s6369 + $0x8] sm:$0xff]
        %v6372 = vld [vmem:[%s6369 + $0x10] sm:$0xff]
        %v6373 = vld [vmem:[%s6369 + $0x18] sm:$0xff]
        %v6374 = vmul.f32 %v6355, %v6370
        %v6375 = vmul.f32 %v6356, %v6371
        %v6376 = vmul.f32 %v6355, %v6372
        %v6377 = vmul.f32 %v6356, %v6373
        %v6378 = vperm.slane %v5241, 1
        %v6379 = vperm.slane %v5493, 1
        %v6380 = vmul.f32 %v6253, %v6378
        %v6381 = vmul.f32 %v6331, %v6379
        %v6382 = vmul.f32 %v6255, %v6378
        %v6383 = vmul.f32 %v6333, %v6379
        %s6384 = scalar_lea.vmem %s9, 32
        %v6385 = vld [vmem:[%s6384] sm:$0xff]
        %v6386 = vld [vmem:[%s6384 + $0x8] sm:$0xff]
        %v6387 = vld [vmem:[%s6384 + $0x10] sm:$0xff]
        %v6388 = vld [vmem:[%s6384 + $0x18] sm:$0xff]
        %v6389 = vmul.f32 %v6253, %v6385
        %v6390 = vmul.f32 %v6331, %v6386
        %v6391 = vmul.f32 %v6255, %v6387
        %v6392 = vmul.f32 %v6333, %v6388
        %s6393 = scalar_lea.vmem %s9, 96
        %v6394 = vld [vmem:[%s6393] sm:$0xff]
        %v6395 = vld [vmem:[%s6393 + $0x8] sm:$0xff]
        %v6396 = vld [vmem:[%s6393 + $0x10] sm:$0xff]
        %v6397 = vld [vmem:[%s6393 + $0x18] sm:$0xff]
        %v6398 = vmul.f32 %v6378, %v6394
        %v6399 = vmul.f32 %v6379, %v6395
        %v6400 = vmul.f32 %v6378, %v6396
        %v6401 = vmul.f32 %v6379, %v6397
        %v6402 = vadd.f32 %v6357, %v6380
        %v6403 = vadd.f32 %v6358, %v6381
        %v6404 = vadd.f32 %v6359, %v6382
        %v6405 = vadd.f32 %v6360, %v6383
        %v6406 = vadd.f32 %v6365, %v6389
        %v6407 = vadd.f32 %v6366, %v6390
        %v6408 = vadd.f32 %v6367, %v6391
        %v6409 = vadd.f32 %v6368, %v6392
        %v6410 = vadd.f32 %v6374, %v6398
        %v6411 = vadd.f32 %v6375, %v6399
        %v6412 = vadd.f32 %v6376, %v6400
        %v6413 = vadd.f32 %v6377, %v6401
        %s6414 = sld [smem:[#allocation22]]
        %v6415 = vstv %s6414
        %v6416 = vmul.f32 %v6415, %v6402
        %v6417 = vmul.f32 %v6415, %v6403
        %v6418 = vmul.f32 %v6415, %v6404
        %v6419 = vmul.f32 %v6415, %v6405
        %s6420 = sld [smem:[#allocation22 + $0x80]]
        %v6421 = vstv %s6420
        %v6422 = vmul.f32 %v6421, %v6406
        %v6423 = vmul.f32 %v6421, %v6407
        %v6424 = vmul.f32 %v6421, %v6408
        %v6425 = vmul.f32 %v6421, %v6409
        %v6426 = vadd.f32 %v6416, %v6422
        %v6427 = vadd.f32 %v6417, %v6423
        %v6428 = vadd.f32 %v6418, %v6424
        %v6429 = vadd.f32 %v6419, %v6425
        %s6430 = sld [smem:[#allocation22 + $0x100]]
        %v6431 = vstv %s6430
        %v6432 = vmul.f32 %v6431, %v6410
        %v6433 = vmul.f32 %v6431, %v6411
        %v6434 = vmul.f32 %v6431, %v6412
        %v6435 = vmul.f32 %v6431, %v6413
        %v6436 = vadd.f32 %v6426, %v6432
        %v6437 = vadd.f32 %v6427, %v6433
        %v6438 = vadd.f32 %v6428, %v6434
        %v6439 = vadd.f32 %v6429, %v6435
        %s6440 = sld [smem:[#allocation24]]
        %v6441 = vstv %s6440
        %v6442 = vadd.f32 %v6436, %v6441
        %v6443 = vadd.f32 %v6437, %v6441
        %v6444 = vadd.f32 %v6438, %v6441
        %v6445 = vadd.f32 %v6439, %v6441
        %v6446 = vmax.f32 %v6442, %v6443
        %6447 = vmax.xlane.f32.xlu0 %v6446
        %v6448 = vpop.xlane.xlu0 %6447
        %v6449 = vmax.f32 %v6444, %v6445
        %6450 = vmax.xlane.f32.xlu0 %v6449
        %v6451 = vpop.xlane.xlu0 %6450
        %v6452 = vsub.f32 %v6442, %v6448
        %v6453 = vsub.f32 %v6443, %v6448
        %v6454 = vsub.f32 %v6444, %v6451
        %v6455 = vsub.f32 %v6445, %v6451
        %v6456 = vmul.f32 %v6452, 1.442695
        %v6457 = vpow.pop %v6456
        %v6458 = vmul.f32 %v6453, 1.442695
        %v6459 = vpow.pop %v6458
        %v6460 = vmul.f32 %v6454, 1.442695
        %v6461 = vpow.pop %v6460
        %v6462 = vmul.f32 %v6455, 1.442695
        %v6463 = vpow.pop %v6462
        %v6464 = vperm.slane %v5241, 2
        %v6465 = vperm.slane %v5493, 2
        %v6466 = vmul.f32 %v6258, %v6464
        %v6467 = vmul.f32 %v6336, %v6465
        %v6468 = vmul.f32 %v6260, %v6464
        %v6469 = vmul.f32 %v6338, %v6465
        %v6470 = vmul.f32 %v6258, %v6361
        %v6471 = vmul.f32 %v6336, %v6362
        %v6472 = vmul.f32 %v6260, %v6363
        %v6473 = vmul.f32 %v6338, %v6364
        %v6474 = vmul.f32 %v6464, %v6370
        %v6475 = vmul.f32 %v6465, %v6371
        %v6476 = vmul.f32 %v6464, %v6372
        %v6477 = vmul.f32 %v6465, %v6373
        %v6478 = vperm.slane %v5241, 3
        %v6479 = vperm.slane %v5493, 3
        %v6480 = vmul.f32 %v6263, %v6478
        %v6481 = vmul.f32 %v6341, %v6479
        %v6482 = vmul.f32 %v6265, %v6478
        %v6483 = vmul.f32 %v6343, %v6479
        %v6484 = vmul.f32 %v6263, %v6385
        %v6485 = vmul.f32 %v6341, %v6386
        %v6486 = vmul.f32 %v6265, %v6387
        %v6487 = vmul.f32 %v6343, %v6388
        %v6488 = vmul.f32 %v6478, %v6394
        %v6489 = vmul.f32 %v6479, %v6395
        %v6490 = vmul.f32 %v6478, %v6396
        %v6491 = vmul.f32 %v6479, %v6397
        %v6492 = vadd.f32 %v6466, %v6480
        %v6493 = vadd.f32 %v6467, %v6481
        %v6494 = vadd.f32 %v6468, %v6482
        %v6495 = vadd.f32 %v6469, %v6483
        %v6496 = vadd.f32 %v6470, %v6484
        %v6497 = vadd.f32 %v6471, %v6485
        %v6498 = vadd.f32 %v6472, %v6486
        %v6499 = vadd.f32 %v6473, %v6487
        %v6500 = vadd.f32 %v6474, %v6488
        %v6501 = vadd.f32 %v6475, %v6489
        %v6502 = vadd.f32 %v6476, %v6490
        %v6503 = vadd.f32 %v6477, %v6491
        %s6504 = sld [smem:[#allocation22 + $0x1]]
        %v6505 = vstv %s6504
        %v6506 = vmul.f32 %v6505, %v6492
        %v6507 = vmul.f32 %v6505, %v6493
        %v6508 = vmul.f32 %v6505, %v6494
        %v6509 = vmul.f32 %v6505, %v6495
        %s6510 = sld [smem:[#allocation22 + $0x81]]
        %v6511 = vstv %s6510
        %v6512 = vmul.f32 %v6511, %v6496
        %v6513 = vmul.f32 %v6511, %v6497
        %v6514 = vmul.f32 %v6511, %v6498
        %v6515 = vmul.f32 %v6511, %v6499
        %v6516 = vadd.f32 %v6506, %v6512
        %v6517 = vadd.f32 %v6507, %v6513
        %v6518 = vadd.f32 %v6508, %v6514
        %v6519 = vadd.f32 %v6509, %v6515
        %s6520 = sld [smem:[#allocation22 + $0x101]]
        %v6521 = vstv %s6520
        %v6522 = vmul.f32 %v6521, %v6500
        %v6523 = vmul.f32 %v6521, %v6501
        %v6524 = vmul.f32 %v6521, %v6502
        %v6525 = vmul.f32 %v6521, %v6503
        %v6526 = vadd.f32 %v6516, %v6522
        %v6527 = vadd.f32 %v6517, %v6523
        %v6528 = vadd.f32 %v6518, %v6524
        %v6529 = vadd.f32 %v6519, %v6525
        %s6530 = sld [smem:[#allocation24 + $0x1]]
        %v6531 = vstv %s6530
        %v6532 = vadd.f32 %v6526, %v6531
        %v6533 = vadd.f32 %v6527, %v6531
        %v6534 = vadd.f32 %v6528, %v6531
        %v6535 = vadd.f32 %v6529, %v6531
        %v6536 = vmax.f32 %v6532, %v6533
        %6537 = vmax.xlane.f32.xlu0 %v6536
        %v6538 = vpop.xlane.xlu0 %6537
        %v6539 = vmax.f32 %v6534, %v6535
        %6540 = vmax.xlane.f32.xlu0 %v6539
        %v6541 = vpop.xlane.xlu0 %6540
        %v6542 = vsub.f32 %v6532, %v6538
        %v6543 = vsub.f32 %v6533, %v6538
        %v6544 = vsub.f32 %v6534, %v6541
        %v6545 = vsub.f32 %v6535, %v6541
        %v6546 = vmul.f32 %v6542, 1.442695
        %v6547 = vpow.pop %v6546
        %v6548 = vmul.f32 %v6543, 1.442695
        %v6549 = vpow.pop %v6548
        %v6550 = vmul.f32 %v6544, 1.442695
        %v6551 = vpow.pop %v6550
        %v6552 = vmul.f32 %v6545, 1.442695
        %v6553 = vpow.pop %v6552
        %v6554 = vperm.slane %v5241, 4
        %v6555 = vperm.slane %v5493, 4
        %v6556 = vmul.f32 %v6268, %v6554
        %v6557 = vmul.f32 %v6346, %v6555
        %v6558 = vmul.f32 %v6270, %v6554
        %v6559 = vmul.f32 %v6348, %v6555
        %v6560 = vmul.f32 %v6268, %v6361
        %v6561 = vmul.f32 %v6346, %v6362
        %v6562 = vmul.f32 %v6270, %v6363
        %v6563 = vmul.f32 %v6348, %v6364
        %v6564 = vmul.f32 %v6554, %v6370
        %v6565 = vmul.f32 %v6555, %v6371
        %v6566 = vmul.f32 %v6554, %v6372
        %v6567 = vmul.f32 %v6555, %v6373
        %v6568 = vperm.slane %v5241, 5
        %v6569 = vperm.slane %v5493, 5
        %v6570 = vmul.f32 %v6273, %v6568
        %v6571 = vmul.f32 %v6351, %v6569
        %v6572 = vmul.f32 %v6275, %v6568
        %v6573 = vmul.f32 %v6353, %v6569
        %v6574 = vmul.f32 %v6273, %v6385
        %v6575 = vmul.f32 %v6351, %v6386
        %v6576 = vmul.f32 %v6275, %v6387
        %v6577 = vmul.f32 %v6353, %v6388
        %v6578 = vmul.f32 %v6568, %v6394
        %v6579 = vmul.f32 %v6569, %v6395
        %v6580 = vmul.f32 %v6568, %v6396
        %v6581 = vmul.f32 %v6569, %v6397
        %v6582 = vadd.f32 %v6556, %v6570
        %v6583 = vadd.f32 %v6557, %v6571
        %v6584 = vadd.f32 %v6558, %v6572
        %v6585 = vadd.f32 %v6559, %v6573
        %v6586 = vadd.f32 %v6560, %v6574
        %v6587 = vadd.f32 %v6561, %v6575
        %v6588 = vadd.f32 %v6562, %v6576
        %v6589 = vadd.f32 %v6563, %v6577
        %v6590 = vadd.f32 %v6564, %v6578
        %v6591 = vadd.f32 %v6565, %v6579
        %v6592 = vadd.f32 %v6566, %v6580
        %v6593 = vadd.f32 %v6567, %v6581
        %s6594 = sld [smem:[#allocation22 + $0x2]]
        %v6595 = vstv %s6594
        %v6596 = vmul.f32 %v6595, %v6582
        %v6597 = vmul.f32 %v6595, %v6583
        %v6598 = vmul.f32 %v6595, %v6584
        %v6599 = vmul.f32 %v6595, %v6585
        %s6600 = sld [smem:[#allocation22 + $0x82]]
        %v6601 = vstv %s6600
        %v6602 = vmul.f32 %v6601, %v6586
        %v6603 = vmul.f32 %v6601, %v6587
        %v6604 = vmul.f32 %v6601, %v6588
        %v6605 = vmul.f32 %v6601, %v6589
        %v6606 = vadd.f32 %v6596, %v6602
        %v6607 = vadd.f32 %v6597, %v6603
        %v6608 = vadd.f32 %v6598, %v6604
        %v6609 = vadd.f32 %v6599, %v6605
        %s6610 = sld [smem:[#allocation22 + $0x102]]
        %v6611 = vstv %s6610
        %v6612 = vmul.f32 %v6611, %v6590
        %v6613 = vmul.f32 %v6611, %v6591
        %v6614 = vmul.f32 %v6611, %v6592
        %v6615 = vmul.f32 %v6611, %v6593
        %v6616 = vadd.f32 %v6606, %v6612
        %v6617 = vadd.f32 %v6607, %v6613
        %v6618 = vadd.f32 %v6608, %v6614
        %v6619 = vadd.f32 %v6609, %v6615
        %s6620 = sld [smem:[#allocation24 + $0x2]]
        %v6621 = vstv %s6620
        %v6622 = vadd.f32 %v6616, %v6621
        %v6623 = vadd.f32 %v6617, %v6621
        %v6624 = vadd.f32 %v6618, %v6621
        %v6625 = vadd.f32 %v6619, %v6621
        %v6626 = vmax.f32 %v6622, %v6623
        %6627 = vmax.xlane.f32.xlu0 %v6626
        %v6628 = vpop.xlane.xlu0 %6627
        %v6629 = vmax.f32 %v6624, %v6625
        %6630 = vmax.xlane.f32.xlu0 %v6629
        %v6631 = vpop.xlane.xlu0 %6630
        %v6632 = vsub.f32 %v6622, %v6628
        %v6633 = vsub.f32 %v6623, %v6628
        %v6634 = vsub.f32 %v6624, %v6631
        %v6635 = vsub.f32 %v6625, %v6631
        %v6636 = vmul.f32 %v6632, 1.442695
        %v6637 = vpow.pop %v6636
        %v6638 = vmul.f32 %v6633, 1.442695
        %v6639 = vpow.pop %v6638
        %v6640 = vmul.f32 %v6634, 1.442695
        %v6641 = vpow.pop %v6640
        %v6642 = vmul.f32 %v6635, 1.442695
        %v6643 = vpow.pop %v6642
        %v6644 = vpack.c.bf16 %v6459, %v6457
        %v6645 = vpack.c.bf16 %v6463, %v6461
        %v6646 = vpack.c.bf16 %v6549, %v6547
        %v6647 = vpack.c.bf16 %v6553, %v6551
        %v6648 = vpack.c.bf16 %v6639, %v6637
        %v6649 = vpack.c.bf16 %v6643, %v6641
        %v6650 = vunpack.c.l.bf16 %v6644
        %v6651 = vunpack.c.h.bf16 %v6644
        %v6652 = vunpack.c.l.bf16 %v6645
        %v6653 = vunpack.c.h.bf16 %v6645
        %v6654 = vunpack.c.l.bf16 %v6646
        %v6655 = vunpack.c.h.bf16 %v6646
        %v6656 = vunpack.c.l.bf16 %v6647
        %v6657 = vunpack.c.h.bf16 %v6647
        %v6658 = vunpack.c.l.bf16 %v6648
        %v6659 = vunpack.c.h.bf16 %v6648
        %v6660 = vunpack.c.l.bf16 %v6649
        %v6661 = vunpack.c.h.bf16 %v6649
        %v6662 = vsub.f32 %v6457, %v6650
        %v6663 = vsub.f32 %v6459, %v6651
        %v6664 = vsub.f32 %v6461, %v6652
        %v6665 = vsub.f32 %v6463, %v6653
        %v6666 = vsub.f32 %v6547, %v6654
        %v6667 = vsub.f32 %v6549, %v6655
        %v6668 = vsub.f32 %v6551, %v6656
        %v6669 = vsub.f32 %v6553, %v6657
        %v6670 = vsub.f32 %v6637, %v6658
        %v6671 = vsub.f32 %v6639, %v6659
        %v6672 = vsub.f32 %v6641, %v6660
        %v6673 = vsub.f32 %v6643, %v6661
        %v6674 = vpack.c.bf16 %v6664, %v6662
        %v6675 = vpack.c.bf16 %v6665, %v6663
        %v6676 = vpack.c.bf16 %v6668, %v6666
        %v6677 = vpack.c.bf16 %v6669, %v6667
        %v6678 = vpack.c.bf16 %v6672, %v6670
        %v6679 = vpack.c.bf16 %v6673, %v6671
        %6680 = vmatpush.bf16.msra.mxu0 %v5933
        %6681 = vmatpush.bf16.msra.mxu0 %v5931
        %6682 = vmatpush.bf16.msra.mxu0 %v5929
        %6683 = vmatpush.bf16.msra.mxu0 %v5927
        %6684 = vmatpush.bf16.msra.mxu0 %v5925
        %6685 = vmatpush.bf16.msra.mxu0 %v5923
        %6686 = vmatpush.bf16.msra.mxu0 %v5921
        %6687 = vmatpush.bf16.msra.mxu0 %v5919
        %6688 = vmatmul.bf16.gmra.mxu0 %v6674
        %v6689 = vpop.f32.mrf.mxu0
        %v6690 = vadd.f32 0.0, %v6689
        %v6691 = vpop.f32.mrf.mxu0
        %v6692 = vadd.f32 0.0, %v6691
        %6693 = vmatmul.bf16.gmra.mxu0 %v6676
        %v6694 = vpop.f32.mrf.mxu0
        %v6695 = vadd.f32 0.0, %v6694
        %v6696 = vpop.f32.mrf.mxu0
        %v6697 = vadd.f32 0.0, %v6696
        %6698 = vmatmul.bf16.gmra.mxu0 %v6678
        %v6699 = vpop.f32.mrf.mxu0
        %v6700 = vadd.f32 0.0, %v6699
        %v6701 = vpop.f32.mrf.mxu0
        %v6702 = vadd.f32 0.0, %v6701
        %6703 = vdwg.mxu0
        %6704 = vmatpush.bf16.msra.mxu0 %v5949
        %6705 = vmatpush.bf16.msra.mxu0 %v5947
        %6706 = vmatpush.bf16.msra.mxu0 %v5945
        %6707 = vmatpush.bf16.msra.mxu0 %v5943
        %6708 = vmatpush.bf16.msra.mxu0 %v5941
        %6709 = vmatpush.bf16.msra.mxu0 %v5939
        %6710 = vmatpush.bf16.msra.mxu0 %v5937
        %6711 = vmatpush.bf16.msra.mxu0 %v5935
        %6712 = vmatmul.bf16.gmra.mxu0 %v6675
        %v6713 = vpop.f32.mrf.mxu0
        %v6714 = vadd.f32 %v6690, %v6713
        %v6715 = vpop.f32.mrf.mxu0
        %v6716 = vadd.f32 %v6692, %v6715
        %6717 = vmatmul.bf16.gmra.mxu0 %v6677
        %v6718 = vpop.f32.mrf.mxu0
        %v6719 = vadd.f32 %v6695, %v6718
        %v6720 = vpop.f32.mrf.mxu0
        %v6721 = vadd.f32 %v6697, %v6720
        %6722 = vmatmul.bf16.gmra.mxu0 %v6679
        %v6723 = vpop.f32.mrf.mxu0
        %v6724 = vadd.f32 %v6700, %v6723
        %v6725 = vpop.f32.mrf.mxu0
        %v6726 = vadd.f32 %v6702, %v6725
        %6727 = vdwg.mxu0
        %6728 = vmatpush.bf16.msra.mxu0 %v5934
        %6729 = vmatpush.bf16.msra.mxu0 %v5932
        %6730 = vmatpush.bf16.msra.mxu0 %v5930
        %6731 = vmatpush.bf16.msra.mxu0 %v5928
        %6732 = vmatpush.bf16.msra.mxu0 %v5926
        %6733 = vmatpush.bf16.msra.mxu0 %v5924
        %6734 = vmatpush.bf16.msra.mxu0 %v5922
        %6735 = vmatpush.bf16.msra.mxu0 %v5920
        %6736 = vmatmul.bf16.gmra.mxu0 %v6674
        %v6737 = vpop.f32.mrf.mxu0
        %v6738 = vadd.f32 0.0, %v6737
        %v6739 = vpop.f32.mrf.mxu0
        %v6740 = vadd.f32 0.0, %v6739
        %6741 = vmatmul.bf16.gmra.mxu0 %v6676
        %v6742 = vpop.f32.mrf.mxu0
        %v6743 = vadd.f32 0.0, %v6742
        %v6744 = vpop.f32.mrf.mxu0
        %v6745 = vadd.f32 0.0, %v6744
        %6746 = vmatmul.bf16.gmra.mxu0 %v6678
        %v6747 = vpop.f32.mrf.mxu0
        %v6748 = vadd.f32 0.0, %v6747
        %v6749 = vpop.f32.mrf.mxu0
        %v6750 = vadd.f32 0.0, %v6749
        %6751 = vdwg.mxu0
        %6752 = vmatpush.bf16.msra.mxu0 %v5950
        %6753 = vmatpush.bf16.msra.mxu0 %v5948
        %6754 = vmatpush.bf16.msra.mxu0 %v5946
        %6755 = vmatpush.bf16.msra.mxu0 %v5944
        %6756 = vmatpush.bf16.msra.mxu0 %v5942
        %6757 = vmatpush.bf16.msra.mxu0 %v5940
        %6758 = vmatpush.bf16.msra.mxu0 %v5938
        %6759 = vmatpush.bf16.msra.mxu0 %v5936
        %6760 = vmatmul.bf16.gmra.mxu0 %v6675
        %v6761 = vpop.f32.mrf.mxu0
        %v6762 = vadd.f32 %v6738, %v6761
        %v6763 = vpop.f32.mrf.mxu0
        %v6764 = vadd.f32 %v6740, %v6763
        %6765 = vmatmul.bf16.gmra.mxu0 %v6677
        %v6766 = vpop.f32.mrf.mxu0
        %v6767 = vadd.f32 %v6743, %v6766
        %v6768 = vpop.f32.mrf.mxu0
        %v6769 = vadd.f32 %v6745, %v6768
        %6770 = vmatmul.bf16.gmra.mxu0 %v6679
        %v6771 = vpop.f32.mrf.mxu0
        %v6772 = vadd.f32 %v6748, %v6771
        %v6773 = vpop.f32.mrf.mxu0
        %v6774 = vadd.f32 %v6750, %v6773
        %6775 = vdwg.mxu0
        %v6782 = vunpack.c.l.b16 %v6644
        %v6783 = vunpack.c.h.b16 %v6644
        %v6784 = vunpack.c.l.b16 %v6645
        %v6785 = vunpack.c.h.b16 %v6645
        %v6786 = vunpack.c.l.b16 %v6646
        %v6787 = vunpack.c.h.b16 %v6646
        %v6788 = vunpack.c.l.b16 %v6647
        %v6789 = vunpack.c.h.b16 %v6647
        %v6790 = vunpack.c.l.b16 %v6648
        %v6791 = vunpack.c.h.b16 %v6648
        %v6792 = vunpack.c.l.b16 %v6649
        %v6793 = vunpack.c.h.b16 %v6649
        %v6794 = vpack.c.b16 %v6784, %v6782
        %v6795 = vpack.c.b16 %v6785, %v6783
        %v6796 = vpack.c.b16 %v6788, %v6786
        %v6797 = vpack.c.b16 %v6789, %v6787
        %v6798 = vpack.c.b16 %v6792, %v6790
        %v6799 = vpack.c.b16 %v6793, %v6791
        %6806 = vmatpush.bf16.msra.mxu0 %v5933
        %6807 = vmatpush.bf16.msra.mxu0 %v5931
        %6808 = vmatpush.bf16.msra.mxu0 %v5929
        %6809 = vmatpush.bf16.msra.mxu0 %v5927
        %6810 = vmatpush.bf16.msra.mxu0 %v5925
        %6811 = vmatpush.bf16.msra.mxu0 %v5923
        %6812 = vmatpush.bf16.msra.mxu0 %v5921
        %6813 = vmatpush.bf16.msra.mxu0 %v5919
        %6814 = vmatmul.bf16.gmra.mxu0 %v6794
        %v6815 = vpop.f32.mrf.mxu0
        %v6816 = vadd.f32 %v6714, %v6815
        %v6817 = vpop.f32.mrf.mxu0
        %v6818 = vadd.f32 %v6716, %v6817
        %6819 = vmatmul.bf16.gmra.mxu0 %v6796
        %v6820 = vpop.f32.mrf.mxu0
        %v6821 = vadd.f32 %v6719, %v6820
        %v6822 = vpop.f32.mrf.mxu0
        %v6823 = vadd.f32 %v6721, %v6822
        %6824 = vmatmul.bf16.gmra.mxu0 %v6798
        %v6825 = vpop.f32.mrf.mxu0
        %v6826 = vadd.f32 %v6724, %v6825
        %v6827 = vpop.f32.mrf.mxu0
        %v6828 = vadd.f32 %v6726, %v6827
        %6829 = vdwg.mxu0
        %6830 = vmatpush.bf16.msra.mxu0 %v5949
        %6831 = vmatpush.bf16.msra.mxu0 %v5947
        %6832 = vmatpush.bf16.msra.mxu0 %v5945
        %6833 = vmatpush.bf16.msra.mxu0 %v5943
        %6834 = vmatpush.bf16.msra.mxu0 %v5941
        %6835 = vmatpush.bf16.msra.mxu0 %v5939
        %6836 = vmatpush.bf16.msra.mxu0 %v5937
        %6837 = vmatpush.bf16.msra.mxu0 %v5935
        %6838 = vmatmul.bf16.gmra.mxu0 %v6795
        %v6839 = vpop.f32.mrf.mxu0
        %v6840 = vadd.f32 %v6816, %v6839
        %v6841 = vpop.f32.mrf.mxu0
        %v6842 = vadd.f32 %v6818, %v6841
        %6843 = vmatmul.bf16.gmra.mxu0 %v6797
        %v6844 = vpop.f32.mrf.mxu0
        %v6845 = vadd.f32 %v6821, %v6844
        %v6846 = vpop.f32.mrf.mxu0
        %v6847 = vadd.f32 %v6823, %v6846
        %6848 = vmatmul.bf16.gmra.mxu0 %v6799
        %v6849 = vpop.f32.mrf.mxu0
        %v6850 = vadd.f32 %v6826, %v6849
        %v6851 = vpop.f32.mrf.mxu0
        %v6852 = vadd.f32 %v6828, %v6851
        %6853 = vdwg.mxu0
        %6854 = vmatpush.bf16.msra.mxu0 %v5934
        %6855 = vmatpush.bf16.msra.mxu0 %v5932
        %6856 = vmatpush.bf16.msra.mxu0 %v5930
        %6857 = vmatpush.bf16.msra.mxu0 %v5928
        %6858 = vmatpush.bf16.msra.mxu0 %v5926
        %6859 = vmatpush.bf16.msra.mxu0 %v5924
        %6860 = vmatpush.bf16.msra.mxu0 %v5922
        %6861 = vmatpush.bf16.msra.mxu0 %v5920
        %6862 = vmatmul.bf16.gmra.mxu0 %v6794
        %v6863 = vpop.f32.mrf.mxu0
        %v6864 = vadd.f32 %v6762, %v6863
        %v6865 = vpop.f32.mrf.mxu0
        %v6866 = vadd.f32 %v6764, %v6865
        %6867 = vmatmul.bf16.gmra.mxu0 %v6796
        %v6868 = vpop.f32.mrf.mxu0
        %v6869 = vadd.f32 %v6767, %v6868
        %v6870 = vpop.f32.mrf.mxu0
        %v6871 = vadd.f32 %v6769, %v6870
        %6872 = vmatmul.bf16.gmra.mxu0 %v6798
        %v6873 = vpop.f32.mrf.mxu0
        %v6874 = vadd.f32 %v6772, %v6873
        %v6875 = vpop.f32.mrf.mxu0
        %v6876 = vadd.f32 %v6774, %v6875
        %6877 = vdwg.mxu0
        %6878 = vmatpush.bf16.msra.mxu0 %v5950
        %6879 = vmatpush.bf16.msra.mxu0 %v5948
        %6880 = vmatpush.bf16.msra.mxu0 %v5946
        %6881 = vmatpush.bf16.msra.mxu0 %v5944
        %6882 = vmatpush.bf16.msra.mxu0 %v5942
        %6883 = vmatpush.bf16.msra.mxu0 %v5940
        %6884 = vmatpush.bf16.msra.mxu0 %v5938
        %6885 = vmatpush.bf16.msra.mxu0 %v5936
        %6886 = vmatmul.bf16.gmra.mxu0 %v6795
        %v6887 = vpop.f32.mrf.mxu0
        %v6888 = vadd.f32 %v6864, %v6887
        %v6889 = vpop.f32.mrf.mxu0
        %v6890 = vadd.f32 %v6866, %v6889
        %6891 = vmatmul.bf16.gmra.mxu0 %v6797
        %v6892 = vpop.f32.mrf.mxu0
        %v6893 = vadd.f32 %v6869, %v6892
        %v6894 = vpop.f32.mrf.mxu0
        %v6895 = vadd.f32 %v6871, %v6894
        %6896 = vmatmul.bf16.gmra.mxu0 %v6799
        %v6897 = vpop.f32.mrf.mxu0
        %v6898 = vadd.f32 %v6874, %v6897
        %v6899 = vpop.f32.mrf.mxu0
        %v6900 = vadd.f32 %v6876, %v6899
        %6901 = vdwg.mxu0
        %v6902 = vrcp.pop %v6840
        %v6903 = vmul.f32 %v6840, %v6902
        %v6904 = vsub.f32 1.0, %v6903
        %v6905 = vmul.f32 %v6902, %v6904
        %v6906 = vadd.f32 %v6902, %v6905
        %vm6907 = vweird.f32 %v6840
        %vm6908 = vweird.f32 %v6902
        %vm6909 = vmor %vm6907, %vm6908
        %v6910 = vsel %vm6909, %v6902, %v6906
        %v6911 = vand.u32 2147483647, %v6840
        %vm6912 = vcmp.eq.f32.partialorder %v6911, 8.507059e+37
        %v6913 = vand.u32 %v6840, 2147483648
        %v6914 = vor.u32 1.1754944e-38, %v6913
        %v6915 = vsel %vm6912, %v6914, %v6910
        %v6916 = vrcp.pop %v6888
        %v6917 = vmul.f32 %v6888, %v6916
        %v6918 = vsub.f32 1.0, %v6917
        %v6919 = vmul.f32 %v6916, %v6918
        %v6920 = vadd.f32 %v6916, %v6919
        %vm6921 = vweird.f32 %v6888
        %vm6922 = vweird.f32 %v6916
        %vm6923 = vmor %vm6921, %vm6922
        %v6924 = vsel %vm6923, %v6916, %v6920
        %v6925 = vand.u32 2147483647, %v6888
        %vm6926 = vcmp.eq.f32.partialorder %v6925, 8.507059e+37
        %v6927 = vand.u32 %v6888, 2147483648
        %v6928 = vor.u32 1.1754944e-38, %v6927
        %v6929 = vsel %vm6926, %v6928, %v6924
        %v6930 = vrcp.pop %v6842
        %v6931 = vmul.f32 %v6842, %v6930
        %v6932 = vsub.f32 1.0, %v6931
        %v6933 = vmul.f32 %v6930, %v6932
        %v6934 = vadd.f32 %v6930, %v6933
        %vm6935 = vweird.f32 %v6842
        %vm6936 = vweird.f32 %v6930
        %vm6937 = vmor %vm6935, %vm6936
        %v6938 = vsel %vm6937, %v6930, %v6934
        %v6939 = vand.u32 2147483647, %v6842
        %vm6940 = vcmp.eq.f32.partialorder %v6939, 8.507059e+37
        %v6941 = vand.u32 %v6842, 2147483648
        %v6942 = vor.u32 1.1754944e-38, %v6941
        %v6943 = vsel %vm6940, %v6942, %v6938
        %v6944 = vrcp.pop %v6890
        %v6945 = vmul.f32 %v6890, %v6944
        %v6946 = vsub.f32 1.0, %v6945
        %v6947 = vmul.f32 %v6944, %v6946
        %v6948 = vadd.f32 %v6944, %v6947
        %vm6949 = vweird.f32 %v6890
        %vm6950 = vweird.f32 %v6944
        %vm6951 = vmor %vm6949, %vm6950
        %v6952 = vsel %vm6951, %v6944, %v6948
        %v6953 = vand.u32 2147483647, %v6890
        %vm6954 = vcmp.eq.f32.partialorder %v6953, 8.507059e+37
        %v6955 = vand.u32 %v6890, 2147483648
        %v6956 = vor.u32 1.1754944e-38, %v6955
        %v6957 = vsel %vm6954, %v6956, %v6952
        %v6958 = vrcp.pop %v6845
        %v6959 = vmul.f32 %v6845, %v6958
        %v6960 = vsub.f32 1.0, %v6959
        %v6961 = vmul.f32 %v6958, %v6960
        %v6962 = vadd.f32 %v6958, %v6961
        %vm6963 = vweird.f32 %v6845
        %vm6964 = vweird.f32 %v6958
        %vm6965 = vmor %vm6963, %vm6964
        %v6966 = vsel %vm6965, %v6958, %v6962
        %v6967 = vand.u32 2147483647, %v6845
        %vm6968 = vcmp.eq.f32.partialorder %v6967, 8.507059e+37
        %v6969 = vand.u32 %v6845, 2147483648
        %v6970 = vor.u32 1.1754944e-38, %v6969
        %v6971 = vsel %vm6968, %v6970, %v6966
        %v6972 = vrcp.pop %v6893
        %v6973 = vmul.f32 %v6893, %v6972
        %v6974 = vsub.f32 1.0, %v6973
        %v6975 = vmul.f32 %v6972, %v6974
        %v6976 = vadd.f32 %v6972, %v6975
        %vm6977 = vweird.f32 %v6893
        %vm6978 = vweird.f32 %v6972
        %vm6979 = vmor %vm6977, %vm6978
        %v6980 = vsel %vm6979, %v6972, %v6976
        %v6981 = vand.u32 2147483647, %v6893
        %vm6982 = vcmp.eq.f32.partialorder %v6981, 8.507059e+37
        %v6983 = vand.u32 %v6893, 2147483648
        %v6984 = vor.u32 1.1754944e-38, %v6983
        %v6985 = vsel %vm6982, %v6984, %v6980
        %v6986 = vrcp.pop %v6847
        %v6987 = vmul.f32 %v6847, %v6986
        %v6988 = vsub.f32 1.0, %v6987
        %v6989 = vmul.f32 %v6986, %v6988
        %v6990 = vadd.f32 %v6986, %v6989
        %vm6991 = vweird.f32 %v6847
        %vm6992 = vweird.f32 %v6986
        %vm6993 = vmor %vm6991, %vm6992
        %v6994 = vsel %vm6993, %v6986, %v6990
        %v6995 = vand.u32 2147483647, %v6847
        %vm6996 = vcmp.eq.f32.partialorder %v6995, 8.507059e+37
        %v6997 = vand.u32 %v6847, 2147483648
        %v6998 = vor.u32 1.1754944e-38, %v6997
        %v6999 = vsel %vm6996, %v6998, %v6994
        %v7000 = vrcp.pop %v6895
        %v7001 = vmul.f32 %v6895, %v7000
        %v7002 = vsub.f32 1.0, %v7001
        %v7003 = vmul.f32 %v7000, %v7002
        %v7004 = vadd.f32 %v7000, %v7003
        %vm7005 = vweird.f32 %v6895
        %vm7006 = vweird.f32 %v7000
        %vm7007 = vmor %vm7005, %vm7006
        %v7008 = vsel %vm7007, %v7000, %v7004
        %v7009 = vand.u32 2147483647, %v6895
        %vm7010 = vcmp.eq.f32.partialorder %v7009, 8.507059e+37
        %v7011 = vand.u32 %v6895, 2147483648
        %v7012 = vor.u32 1.1754944e-38, %v7011
        %v7013 = vsel %vm7010, %v7012, %v7008
        %v7014 = vrcp.pop %v6850
        %v7015 = vmul.f32 %v6850, %v7014
        %v7016 = vsub.f32 1.0, %v7015
        %v7017 = vmul.f32 %v7014, %v7016
        %v7018 = vadd.f32 %v7014, %v7017
        %vm7019 = vweird.f32 %v6850
        %vm7020 = vweird.f32 %v7014
        %vm7021 = vmor %vm7019, %vm7020
        %v7022 = vsel %vm7021, %v7014, %v7018
        %v7023 = vand.u32 2147483647, %v6850
        %vm7024 = vcmp.eq.f32.partialorder %v7023, 8.507059e+37
        %v7025 = vand.u32 %v6850, 2147483648
        %v7026 = vor.u32 1.1754944e-38, %v7025
        %v7027 = vsel %vm7024, %v7026, %v7022
        %v7028 = vrcp.pop %v6898
        %v7029 = vmul.f32 %v6898, %v7028
        %v7030 = vsub.f32 1.0, %v7029
        %v7031 = vmul.f32 %v7028, %v7030
        %v7032 = vadd.f32 %v7028, %v7031
        %vm7033 = vweird.f32 %v6898
        %vm7034 = vweird.f32 %v7028
        %vm7035 = vmor %vm7033, %vm7034
        %v7036 = vsel %vm7035, %v7028, %v7032
        %v7037 = vand.u32 2147483647, %v6898
        %vm7038 = vcmp.eq.f32.partialorder %v7037, 8.507059e+37
        %v7039 = vand.u32 %v6898, 2147483648
        %v7040 = vor.u32 1.1754944e-38, %v7039
        %v7041 = vsel %vm7038, %v7040, %v7036
        %v7042 = vrcp.pop %v6852
        %v7043 = vmul.f32 %v6852, %v7042
        %v7044 = vsub.f32 1.0, %v7043
        %v7045 = vmul.f32 %v7042, %v7044
        %v7046 = vadd.f32 %v7042, %v7045
        %vm7047 = vweird.f32 %v6852
        %vm7048 = vweird.f32 %v7042
        %vm7049 = vmor %vm7047, %vm7048
        %v7050 = vsel %vm7049, %v7042, %v7046
        %v7051 = vand.u32 2147483647, %v6852
        %vm7052 = vcmp.eq.f32.partialorder %v7051, 8.507059e+37
        %v7053 = vand.u32 %v6852, 2147483648
        %v7054 = vor.u32 1.1754944e-38, %v7053
        %v7055 = vsel %vm7052, %v7054, %v7050
        %v7056 = vrcp.pop %v6900
        %v7057 = vmul.f32 %v6900, %v7056
        %v7058 = vsub.f32 1.0, %v7057
        %v7059 = vmul.f32 %v7056, %v7058
        %v7060 = vadd.f32 %v7056, %v7059
        %vm7061 = vweird.f32 %v6900
        %vm7062 = vweird.f32 %v7056
        %vm7063 = vmor %vm7061, %vm7062
        %v7064 = vsel %vm7063, %v7056, %v7060
        %v7065 = vand.u32 2147483647, %v6900
        %vm7066 = vcmp.eq.f32.partialorder %v7065, 8.507059e+37
        %v7067 = vand.u32 %v6900, 2147483648
        %v7068 = vor.u32 1.1754944e-38, %v7067
        %v7069 = vsel %vm7066, %v7068, %v7064
        %v7070 = vmul.f32 %v6457, %v6915
        %v7071 = vmul.f32 %v6459, %v6929
        %v7072 = vmul.f32 %v6461, %v6943
        %v7073 = vmul.f32 %v6463, %v6957
        %s7074 = scalar_lea.vmem %s9, 128
        %v7075 = vld [vmem:[%s7074] sm:$0xff]
        %v7076 = vld [vmem:[%s7074 + $0x8] sm:$0xff]
        %v7077 = vld [vmem:[%s7074 + $0x10] sm:$0xff]
        %v7078 = vld [vmem:[%s7074 + $0x18] sm:$0xff]
        %v7079 = vperm.slane %v5245, 0
        %v7080 = vperm.slane %v5497, 0
        %v7081 = vadd.f32 %v7079, %v7075
        %v7082 = vadd.f32 %v7080, %v7076
        %v7083 = vadd.f32 %v7079, %v7077
        %v7084 = vadd.f32 %v7080, %v7078
        %v7085 = vmul.f32 %v7070, %v7081
        %v7086 = vmul.f32 %v7071, %v7082
        %v7087 = vmul.f32 %v7072, %v7083
        %v7088 = vmul.f32 %v7073, %v7084
        %s7089 = scalar_lea.vmem %s9, 160
        %v7090 = vld [vmem:[%s7089] sm:$0xff]
        %v7091 = vld [vmem:[%s7089 + $0x8] sm:$0xff]
        %v7092 = vld [vmem:[%s7089 + $0x10] sm:$0xff]
        %v7093 = vld [vmem:[%s7089 + $0x18] sm:$0xff]
        %v7094 = vperm.slane %v5245, 1
        %v7095 = vperm.slane %v5497, 1
        %v7096 = vadd.f32 %v7094, %v7090
        %v7097 = vadd.f32 %v7095, %v7091
        %v7098 = vadd.f32 %v7094, %v7092
        %v7099 = vadd.f32 %v7095, %v7093
        %v7100 = vmul.f32 %v7070, %v7096
        %v7101 = vmul.f32 %v7071, %v7097
        %v7102 = vmul.f32 %v7072, %v7098
        %v7103 = vmul.f32 %v7073, %v7099
        %s7104 = scalar_lea.vmem %s9, 192
        %v7105 = vld [vmem:[%s7104] sm:$0xff]
        %v7106 = vld [vmem:[%s7104 + $0x8] sm:$0xff]
        %v7107 = vld [vmem:[%s7104 + $0x10] sm:$0xff]
        %v7108 = vld [vmem:[%s7104 + $0x18] sm:$0xff]
        %v7109 = vperm.slane %v5245, 2
        %v7110 = vperm.slane %v5497, 2
        %v7111 = vadd.f32 %v7109, %v7105
        %v7112 = vadd.f32 %v7110, %v7106
        %v7113 = vadd.f32 %v7109, %v7107
        %v7114 = vadd.f32 %v7110, %v7108
        %v7115 = vmul.f32 %v7070, %v7111
        %v7116 = vmul.f32 %v7071, %v7112
        %v7117 = vmul.f32 %v7072, %v7113
        %v7118 = vmul.f32 %v7073, %v7114
        %s7119 = scalar_lea.vmem %s9, 224
        %v7120 = vld [vmem:[%s7119] sm:$0xff]
        %v7121 = vld [vmem:[%s7119 + $0x8] sm:$0xff]
        %v7122 = vld [vmem:[%s7119 + $0x10] sm:$0xff]
        %v7123 = vld [vmem:[%s7119 + $0x18] sm:$0xff]
        %v7124 = vperm.slane %v5245, 3
        %v7125 = vperm.slane %v5497, 3
        %v7126 = vadd.f32 %v7124, %v7120
        %v7127 = vadd.f32 %v7125, %v7121
        %v7128 = vadd.f32 %v7124, %v7122
        %v7129 = vadd.f32 %v7125, %v7123
        %v7130 = vmul.f32 %v7070, %v7126
        %v7131 = vmul.f32 %v7071, %v7127
        %v7132 = vmul.f32 %v7072, %v7128
        %v7133 = vmul.f32 %v7073, %v7129
        %v7134 = vmul.f32 %v6547, %v6971
        %v7135 = vmul.f32 %v6549, %v6985
        %v7136 = vmul.f32 %v6551, %v6999
        %v7137 = vmul.f32 %v6553, %v7013
        %s7138 = scalar_lea.vmem %s9, 256
        %v7139 = vld [vmem:[%s7138] sm:$0xff]
        %v7140 = vld [vmem:[%s7138 + $0x8] sm:$0xff]
        %v7141 = vld [vmem:[%s7138 + $0x10] sm:$0xff]
        %v7142 = vld [vmem:[%s7138 + $0x18] sm:$0xff]
        %v7143 = vperm.slane %v5245, 4
        %v7144 = vperm.slane %v5497, 4
        %v7145 = vadd.f32 %v7143, %v7139
        %v7146 = vadd.f32 %v7144, %v7140
        %v7147 = vadd.f32 %v7143, %v7141
        %v7148 = vadd.f32 %v7144, %v7142
        %v7149 = vmul.f32 %v7134, %v7145
        %v7150 = vmul.f32 %v7135, %v7146
        %v7151 = vmul.f32 %v7136, %v7147
        %v7152 = vmul.f32 %v7137, %v7148
        %s7153 = scalar_lea.vmem %s9, 288
        %v7154 = vld [vmem:[%s7153] sm:$0xff]
        %v7155 = vld [vmem:[%s7153 + $0x8] sm:$0xff]
        %v7156 = vld [vmem:[%s7153 + $0x10] sm:$0xff]
        %v7157 = vld [vmem:[%s7153 + $0x18] sm:$0xff]
        %v7158 = vperm.slane %v5245, 5
        %v7159 = vperm.slane %v5497, 5
        %v7160 = vadd.f32 %v7158, %v7154
        %v7161 = vadd.f32 %v7159, %v7155
        %v7162 = vadd.f32 %v7158, %v7156
        %v7163 = vadd.f32 %v7159, %v7157
        %v7164 = vmul.f32 %v7134, %v7160
        %v7165 = vmul.f32 %v7135, %v7161
        %v7166 = vmul.f32 %v7136, %v7162
        %v7167 = vmul.f32 %v7137, %v7163
        %s7168 = scalar_lea.vmem %s9, 320
        %v7169 = vld [vmem:[%s7168] sm:$0xff]
        %v7170 = vld [vmem:[%s7168 + $0x8] sm:$0xff]
        %v7171 = vld [vmem:[%s7168 + $0x10] sm:$0xff]
        %v7172 = vld [vmem:[%s7168 + $0x18] sm:$0xff]
        %v7173 = vperm.slane %v5245, 6
        %v7174 = vperm.slane %v5497, 6
        %v7175 = vadd.f32 %v7173, %v7169
        %v7176 = vadd.f32 %v7174, %v7170
        %v7177 = vadd.f32 %v7173, %v7171
        %v7178 = vadd.f32 %v7174, %v7172
        %v7179 = vmul.f32 %v7134, %v7175
        %v7180 = vmul.f32 %v7135, %v7176
        %v7181 = vmul.f32 %v7136, %v7177
        %v7182 = vmul.f32 %v7137, %v7178
        %s7183 = scalar_lea.vmem %s9, 352
        %v7184 = vld [vmem:[%s7183] sm:$0xff]
        %v7185 = vld [vmem:[%s7183 + $0x8] sm:$0xff]
        %v7186 = vld [vmem:[%s7183 + $0x10] sm:$0xff]
        %v7187 = vld [vmem:[%s7183 + $0x18] sm:$0xff]
        %v7188 = vperm.slane %v5245, 7
        %v7189 = vperm.slane %v5497, 7
        %v7190 = vadd.f32 %v7188, %v7184
        %v7191 = vadd.f32 %v7189, %v7185
        %v7192 = vadd.f32 %v7188, %v7186
        %v7193 = vadd.f32 %v7189, %v7187
        %v7194 = vmul.f32 %v7134, %v7190
        %v7195 = vmul.f32 %v7135, %v7191
        %v7196 = vmul.f32 %v7136, %v7192
        %v7197 = vmul.f32 %v7137, %v7193
        %v7198 = vmul.f32 %v6637, %v7027
        %v7199 = vmul.f32 %v6639, %v7041
        %v7200 = vmul.f32 %v6641, %v7055
        %v7201 = vmul.f32 %v6643, %v7069
        %s7202 = scalar_lea.vmem %s9, 384
        %v7203 = vld [vmem:[%s7202] sm:$0xff]
        %v7204 = vld [vmem:[%s7202 + $0x8] sm:$0xff]
        %v7205 = vld [vmem:[%s7202 + $0x10] sm:$0xff]
        %v7206 = vld [vmem:[%s7202 + $0x18] sm:$0xff]
        %v7207 = vperm.slane %v5249, 0
        %v7208 = vperm.slane %v5501, 0
        %v7209 = vadd.f32 %v7207, %v7203
        %v7210 = vadd.f32 %v7208, %v7204
        %v7211 = vadd.f32 %v7207, %v7205
        %v7212 = vadd.f32 %v7208, %v7206
        %v7213 = vmul.f32 %v7198, %v7209
        %v7214 = vmul.f32 %v7199, %v7210
        %v7215 = vmul.f32 %v7200, %v7211
        %v7216 = vmul.f32 %v7201, %v7212
        %s7217 = scalar_lea.vmem %s9, 416
        %v7218 = vld [vmem:[%s7217] sm:$0xff]
        %v7219 = vld [vmem:[%s7217 + $0x8] sm:$0xff]
        %v7220 = vld [vmem:[%s7217 + $0x10] sm:$0xff]
        %v7221 = vld [vmem:[%s7217 + $0x18] sm:$0xff]
        %v7222 = vperm.slane %v5249, 1
        %v7223 = vperm.slane %v5501, 1
        %v7224 = vadd.f32 %v7222, %v7218
        %v7225 = vadd.f32 %v7223, %v7219
        %v7226 = vadd.f32 %v7222, %v7220
        %v7227 = vadd.f32 %v7223, %v7221
        %v7228 = vmul.f32 %v7198, %v7224
        %v7229 = vmul.f32 %v7199, %v7225
        %v7230 = vmul.f32 %v7200, %v7226
        %v7231 = vmul.f32 %v7201, %v7227
        %s7232 = scalar_lea.vmem %s9, 448
        %v7233 = vld [vmem:[%s7232] sm:$0xff]
        %v7234 = vld [vmem:[%s7232 + $0x8] sm:$0xff]
        %v7235 = vld [vmem:[%s7232 + $0x10] sm:$0xff]
        %v7236 = vld [vmem:[%s7232 + $0x18] sm:$0xff]
        %v7237 = vperm.slane %v5249, 2
        %v7238 = vperm.slane %v5501, 2
        %v7239 = vadd.f32 %v7237, %v7233
        %v7240 = vadd.f32 %v7238, %v7234
        %v7241 = vadd.f32 %v7237, %v7235
        %v7242 = vadd.f32 %v7238, %v7236
        %v7243 = vmul.f32 %v7198, %v7239
        %v7244 = vmul.f32 %v7199, %v7240
        %v7245 = vmul.f32 %v7200, %v7241
        %v7246 = vmul.f32 %v7201, %v7242
        %s7247 = scalar_lea.vmem %s9, 480
        %v7248 = vld [vmem:[%s7247] sm:$0xff]
        %v7249 = vld [vmem:[%s7247 + $0x8] sm:$0xff]
        %v7250 = vld [vmem:[%s7247 + $0x10] sm:$0xff]
        %v7251 = vld [vmem:[%s7247 + $0x18] sm:$0xff]
        %v7252 = vperm.slane %v5249, 3
        %v7253 = vperm.slane %v5501, 3
        %v7254 = vadd.f32 %v7252, %v7248
        %v7255 = vadd.f32 %v7253, %v7249
        %v7256 = vadd.f32 %v7252, %v7250
        %v7257 = vadd.f32 %v7253, %v7251
        %v7258 = vmul.f32 %v7198, %v7254
        %v7259 = vmul.f32 %v7199, %v7255
        %v7260 = vmul.f32 %v7200, %v7256
        %v7261 = vmul.f32 %v7201, %v7257
        %v7262 = vpack.c.bf16 %v7086, %v7085
        %v7263 = vpack.c.bf16 %v7088, %v7087
        %v7264 = vpack.c.bf16 %v7101, %v7100
        %v7265 = vpack.c.bf16 %v7103, %v7102
        %v7266 = vpack.c.bf16 %v7116, %v7115
        %v7267 = vpack.c.bf16 %v7118, %v7117
        %v7268 = vpack.c.bf16 %v7131, %v7130
        %v7269 = vpack.c.bf16 %v7133, %v7132
        %v7270 = vpack.c.bf16 %v7150, %v7149
        %v7271 = vpack.c.bf16 %v7152, %v7151
        %v7272 = vpack.c.bf16 %v7165, %v7164
        %v7273 = vpack.c.bf16 %v7167, %v7166
        %v7274 = vpack.c.bf16 %v7180, %v7179
        %v7275 = vpack.c.bf16 %v7182, %v7181
        %v7276 = vpack.c.bf16 %v7195, %v7194
        %v7277 = vpack.c.bf16 %v7197, %v7196
        %v7278 = vpack.c.bf16 %v7214, %v7213
        %v7279 = vpack.c.bf16 %v7216, %v7215
        %v7280 = vpack.c.bf16 %v7229, %v7228
        %v7281 = vpack.c.bf16 %v7231, %v7230
        %v7282 = vpack.c.bf16 %v7244, %v7243
        %v7283 = vpack.c.bf16 %v7246, %v7245
        %v7284 = vpack.c.bf16 %v7259, %v7258
        %v7285 = vpack.c.bf16 %v7261, %v7260
        %v7286 = vunpack.c.l.bf16 %v7262
        %v7287 = vunpack.c.h.bf16 %v7262
        %v7288 = vunpack.c.l.bf16 %v7263
        %v7289 = vunpack.c.h.bf16 %v7263
        %v7290 = vunpack.c.l.bf16 %v7264
        %v7291 = vunpack.c.h.bf16 %v7264
        %v7292 = vunpack.c.l.bf16 %v7265
        %v7293 = vunpack.c.h.bf16 %v7265
        %v7294 = vunpack.c.l.bf16 %v7266
        %v7295 = vunpack.c.h.bf16 %v7266
        %v7296 = vunpack.c.l.bf16 %v7267
        %v7297 = vunpack.c.h.bf16 %v7267
        %v7298 = vunpack.c.l.bf16 %v7268
        %v7299 = vunpack.c.h.bf16 %v7268
        %v7300 = vunpack.c.l.bf16 %v7269
        %v7301 = vunpack.c.h.bf16 %v7269
        %v7302 = vunpack.c.l.bf16 %v7270
        %v7303 = vunpack.c.h.bf16 %v7270
        %v7304 = vunpack.c.l.bf16 %v7271
        %v7305 = vunpack.c.h.bf16 %v7271
        %v7306 = vunpack.c.l.bf16 %v7272
        %v7307 = vunpack.c.h.bf16 %v7272
        %v7308 = vunpack.c.l.bf16 %v7273
        %v7309 = vunpack.c.h.bf16 %v7273
        %v7310 = vunpack.c.l.bf16 %v7274
        %v7311 = vunpack.c.h.bf16 %v7274
        %v7312 = vunpack.c.l.bf16 %v7275
        %v7313 = vunpack.c.h.bf16 %v7275
        %v7314 = vunpack.c.l.bf16 %v7276
        %v7315 = vunpack.c.h.bf16 %v7276
        %v7316 = vunpack.c.l.bf16 %v7277
        %v7317 = vunpack.c.h.bf16 %v7277
        %v7318 = vunpack.c.l.bf16 %v7278
        %v7319 = vunpack.c.h.bf16 %v7278
        %v7320 = vunpack.c.l.bf16 %v7279
        %v7321 = vunpack.c.h.bf16 %v7279
        %v7322 = vunpack.c.l.bf16 %v7280
        %v7323 = vunpack.c.h.bf16 %v7280
        %v7324 = vunpack.c.l.bf16 %v7281
        %v7325 = vunpack.c.h.bf16 %v7281
        %v7326 = vunpack.c.l.bf16 %v7282
        %v7327 = vunpack.c.h.bf16 %v7282
        %v7328 = vunpack.c.l.bf16 %v7283
        %v7329 = vunpack.c.h.bf16 %v7283
        %v7330 = vunpack.c.l.bf16 %v7284
        %v7331 = vunpack.c.h.bf16 %v7284
        %v7332 = vunpack.c.l.bf16 %v7285
        %v7333 = vunpack.c.h.bf16 %v7285
        %v7334 = vsub.f32 %v7085, %v7286
        %v7335 = vsub.f32 %v7086, %v7287
        %v7336 = vsub.f32 %v7087, %v7288
        %v7337 = vsub.f32 %v7088, %v7289
        %v7338 = vsub.f32 %v7100, %v7290
        %v7339 = vsub.f32 %v7101, %v7291
        %v7340 = vsub.f32 %v7102, %v7292
        %v7341 = vsub.f32 %v7103, %v7293
        %v7342 = vsub.f32 %v7115, %v7294
        %v7343 = vsub.f32 %v7116, %v7295
        %v7344 = vsub.f32 %v7117, %v7296
        %v7345 = vsub.f32 %v7118, %v7297
        %v7346 = vsub.f32 %v7130, %v7298
        %v7347 = vsub.f32 %v7131, %v7299
        %v7348 = vsub.f32 %v7132, %v7300
        %v7349 = vsub.f32 %v7133, %v7301
        %v7350 = vsub.f32 %v7149, %v7302
        %v7351 = vsub.f32 %v7150, %v7303
        %v7352 = vsub.f32 %v7151, %v7304
        %v7353 = vsub.f32 %v7152, %v7305
        %v7354 = vsub.f32 %v7164, %v7306
        %v7355 = vsub.f32 %v7165, %v7307
        %v7356 = vsub.f32 %v7166, %v7308
        %v7357 = vsub.f32 %v7167, %v7309
        %v7358 = vsub.f32 %v7179, %v7310
        %v7359 = vsub.f32 %v7180, %v7311
        %v7360 = vsub.f32 %v7181, %v7312
        %v7361 = vsub.f32 %v7182, %v7313
        %v7362 = vsub.f32 %v7194, %v7314
        %v7363 = vsub.f32 %v7195, %v7315
        %v7364 = vsub.f32 %v7196, %v7316
        %v7365 = vsub.f32 %v7197, %v7317
        %v7366 = vsub.f32 %v7213, %v7318
        %v7367 = vsub.f32 %v7214, %v7319
        %v7368 = vsub.f32 %v7215, %v7320
        %v7369 = vsub.f32 %v7216, %v7321
        %v7370 = vsub.f32 %v7228, %v7322
        %v7371 = vsub.f32 %v7229, %v7323
        %v7372 = vsub.f32 %v7230, %v7324
        %v7373 = vsub.f32 %v7231, %v7325
        %v7374 = vsub.f32 %v7243, %v7326
        %v7375 = vsub.f32 %v7244, %v7327
        %v7376 = vsub.f32 %v7245, %v7328
        %v7377 = vsub.f32 %v7246, %v7329
        %v7378 = vsub.f32 %v7258, %v7330
        %v7379 = vsub.f32 %v7259, %v7331
        %v7380 = vsub.f32 %v7260, %v7332
        %v7381 = vsub.f32 %v7261, %v7333
        %v7382 = vpack.c.bf16 %v7336, %v7334
        %v7383 = vpack.c.bf16 %v7337, %v7335
        %v7384 = vpack.c.bf16 %v7340, %v7338
        %v7385 = vpack.c.bf16 %v7341, %v7339
        %v7386 = vpack.c.bf16 %v7344, %v7342
        %v7387 = vpack.c.bf16 %v7345, %v7343
        %v7388 = vpack.c.bf16 %v7348, %v7346
        %v7389 = vpack.c.bf16 %v7349, %v7347
        %v7390 = vpack.c.bf16 %v7352, %v7350
        %v7391 = vpack.c.bf16 %v7353, %v7351
        %v7392 = vpack.c.bf16 %v7356, %v7354
        %v7393 = vpack.c.bf16 %v7357, %v7355
        %v7394 = vpack.c.bf16 %v7360, %v7358
        %v7395 = vpack.c.bf16 %v7361, %v7359
        %v7396 = vpack.c.bf16 %v7364, %v7362
        %v7397 = vpack.c.bf16 %v7365, %v7363
        %v7398 = vpack.c.bf16 %v7368, %v7366
        %v7399 = vpack.c.bf16 %v7369, %v7367
        %v7400 = vpack.c.bf16 %v7372, %v7370
        %v7401 = vpack.c.bf16 %v7373, %v7371
        %v7402 = vpack.c.bf16 %v7376, %v7374
        %v7403 = vpack.c.bf16 %v7377, %v7375
        %v7404 = vpack.c.bf16 %v7380, %v7378
        %v7405 = vpack.c.bf16 %v7381, %v7379
        %7406 = vmatpush.bf16.msra.mxu0 %v5933
        %7407 = vmatpush.bf16.msra.mxu0 %v5931
        %7408 = vmatpush.bf16.msra.mxu0 %v5929
        %7409 = vmatpush.bf16.msra.mxu0 %v5927
        %7410 = vmatpush.bf16.msra.mxu0 %v5925
        %7411 = vmatpush.bf16.msra.mxu0 %v5923
        %7412 = vmatpush.bf16.msra.mxu0 %v5921
        %7413 = vmatpush.bf16.msra.mxu0 %v5919
        %7414 = vmatmul.bf16.gmra.mxu0 %v7382
        %v7415 = vpop.f32.mrf.mxu0
        %v7416 = vadd.f32 0.0, %v7415
        %v7417 = vpop.f32.mrf.mxu0
        %v7418 = vadd.f32 0.0, %v7417
        %7419 = vmatmul.bf16.gmra.mxu0 %v7384
        %v7420 = vpop.f32.mrf.mxu0
        %v7421 = vadd.f32 0.0, %v7420
        %v7422 = vpop.f32.mrf.mxu0
        %v7423 = vadd.f32 0.0, %v7422
        %7424 = vmatmul.bf16.gmra.mxu0 %v7386
        %v7425 = vpop.f32.mrf.mxu0
        %v7426 = vadd.f32 0.0, %v7425
        %v7427 = vpop.f32.mrf.mxu0
        %v7428 = vadd.f32 0.0, %v7427
        %7429 = vmatmul.bf16.gmra.mxu0 %v7388
        %v7430 = vpop.f32.mrf.mxu0
        %v7431 = vadd.f32 0.0, %v7430
        %v7432 = vpop.f32.mrf.mxu0
        %v7433 = vadd.f32 0.0, %v7432
        %7434 = vmatmul.bf16.gmra.mxu0 %v7390
        %v7435 = vpop.f32.mrf.mxu0
        %v7436 = vadd.f32 0.0, %v7435
        %v7437 = vpop.f32.mrf.mxu0
        %v7438 = vadd.f32 0.0, %v7437
        %7439 = vmatmul.bf16.gmra.mxu0 %v7392
        %v7440 = vpop.f32.mrf.mxu0
        %v7441 = vadd.f32 0.0, %v7440
        %v7442 = vpop.f32.mrf.mxu0
        %v7443 = vadd.f32 0.0, %v7442
        %7444 = vmatmul.bf16.gmra.mxu0 %v7394
        %v7445 = vpop.f32.mrf.mxu0
        %v7446 = vadd.f32 0.0, %v7445
        %v7447 = vpop.f32.mrf.mxu0
        %v7448 = vadd.f32 0.0, %v7447
        %7449 = vmatmul.bf16.gmra.mxu0 %v7396
        %v7450 = vpop.f32.mrf.mxu0
        %v7451 = vadd.f32 0.0, %v7450
        %v7452 = vpop.f32.mrf.mxu0
        %v7453 = vadd.f32 0.0, %v7452
        %7454 = vmatmul.bf16.gmra.mxu0 %v7398
        %v7455 = vpop.f32.mrf.mxu0
        %v7456 = vadd.f32 0.0, %v7455
        %v7457 = vpop.f32.mrf.mxu0
        %v7458 = vadd.f32 0.0, %v7457
        %7459 = vmatmul.bf16.gmra.mxu0 %v7400
        %v7460 = vpop.f32.mrf.mxu0
        %v7461 = vadd.f32 0.0, %v7460
        %v7462 = vpop.f32.mrf.mxu0
        %v7463 = vadd.f32 0.0, %v7462
        %7464 = vmatmul.bf16.gmra.mxu0 %v7402
        %v7465 = vpop.f32.mrf.mxu0
        %v7466 = vadd.f32 0.0, %v7465
        %v7467 = vpop.f32.mrf.mxu0
        %v7468 = vadd.f32 0.0, %v7467
        %7469 = vmatmul.bf16.gmra.mxu0 %v7404
        %v7470 = vpop.f32.mrf.mxu0
        %v7471 = vadd.f32 0.0, %v7470
        %v7472 = vpop.f32.mrf.mxu0
        %v7473 = vadd.f32 0.0, %v7472
        %7474 = vdwg.mxu0
        %7475 = vmatpush.bf16.msra.mxu0 %v5949
        %7476 = vmatpush.bf16.msra.mxu0 %v5947
        %7477 = vmatpush.bf16.msra.mxu0 %v5945
        %7478 = vmatpush.bf16.msra.mxu0 %v5943
        %7479 = vmatpush.bf16.msra.mxu0 %v5941
        %7480 = vmatpush.bf16.msra.mxu0 %v5939
        %7481 = vmatpush.bf16.msra.mxu0 %v5937
        %7482 = vmatpush.bf16.msra.mxu0 %v5935
        %7483 = vmatmul.bf16.gmra.mxu0 %v7383
        %v7484 = vpop.f32.mrf.mxu0
        %v7485 = vadd.f32 %v7416, %v7484
        %v7486 = vpop.f32.mrf.mxu0
        %v7487 = vadd.f32 %v7418, %v7486
        %7488 = vmatmul.bf16.gmra.mxu0 %v7385
        %v7489 = vpop.f32.mrf.mxu0
        %v7490 = vadd.f32 %v7421, %v7489
        %v7491 = vpop.f32.mrf.mxu0
        %v7492 = vadd.f32 %v7423, %v7491
        %7493 = vmatmul.bf16.gmra.mxu0 %v7387
        %v7494 = vpop.f32.mrf.mxu0
        %v7495 = vadd.f32 %v7426, %v7494
        %v7496 = vpop.f32.mrf.mxu0
        %v7497 = vadd.f32 %v7428, %v7496
        %7498 = vmatmul.bf16.gmra.mxu0 %v7389
        %v7499 = vpop.f32.mrf.mxu0
        %v7500 = vadd.f32 %v7431, %v7499
        %v7501 = vpop.f32.mrf.mxu0
        %v7502 = vadd.f32 %v7433, %v7501
        %7503 = vmatmul.bf16.gmra.mxu0 %v7391
        %v7504 = vpop.f32.mrf.mxu0
        %v7505 = vadd.f32 %v7436, %v7504
        %v7506 = vpop.f32.mrf.mxu0
        %v7507 = vadd.f32 %v7438, %v7506
        %7508 = vmatmul.bf16.gmra.mxu0 %v7393
        %v7509 = vpop.f32.mrf.mxu0
        %v7510 = vadd.f32 %v7441, %v7509
        %v7511 = vpop.f32.mrf.mxu0
        %v7512 = vadd.f32 %v7443, %v7511
        %7513 = vmatmul.bf16.gmra.mxu0 %v7395
        %v7514 = vpop.f32.mrf.mxu0
        %v7515 = vadd.f32 %v7446, %v7514
        %v7516 = vpop.f32.mrf.mxu0
        %v7517 = vadd.f32 %v7448, %v7516
        %7518 = vmatmul.bf16.gmra.mxu0 %v7397
        %v7519 = vpop.f32.mrf.mxu0
        %v7520 = vadd.f32 %v7451, %v7519
        %v7521 = vpop.f32.mrf.mxu0
        %v7522 = vadd.f32 %v7453, %v7521
        %7523 = vmatmul.bf16.gmra.mxu0 %v7399
        %v7524 = vpop.f32.mrf.mxu0
        %v7525 = vadd.f32 %v7456, %v7524
        %v7526 = vpop.f32.mrf.mxu0
        %v7527 = vadd.f32 %v7458, %v7526
        %7528 = vmatmul.bf16.gmra.mxu0 %v7401
        %v7529 = vpop.f32.mrf.mxu0
        %v7530 = vadd.f32 %v7461, %v7529
        %v7531 = vpop.f32.mrf.mxu0
        %v7532 = vadd.f32 %v7463, %v7531
        %7533 = vmatmul.bf16.gmra.mxu0 %v7403
        %v7534 = vpop.f32.mrf.mxu0
        %v7535 = vadd.f32 %v7466, %v7534
        %v7536 = vpop.f32.mrf.mxu0
        %v7537 = vadd.f32 %v7468, %v7536
        %7538 = vmatmul.bf16.gmra.mxu0 %v7405
        %v7539 = vpop.f32.mrf.mxu0
        %v7540 = vadd.f32 %v7471, %v7539
        %v7541 = vpop.f32.mrf.mxu0
        %v7542 = vadd.f32 %v7473, %v7541
        %7543 = vdwg.mxu0
        %7544 = vmatpush.bf16.msra.mxu0 %v5934
        %7545 = vmatpush.bf16.msra.mxu0 %v5932
        %7546 = vmatpush.bf16.msra.mxu0 %v5930
        %7547 = vmatpush.bf16.msra.mxu0 %v5928
        %7548 = vmatpush.bf16.msra.mxu0 %v5926
        %7549 = vmatpush.bf16.msra.mxu0 %v5924
        %7550 = vmatpush.bf16.msra.mxu0 %v5922
        %7551 = vmatpush.bf16.msra.mxu0 %v5920
        %7552 = vmatmul.bf16.gmra.mxu0 %v7382
        %v7553 = vpop.f32.mrf.mxu0
        %v7554 = vadd.f32 0.0, %v7553
        %v7555 = vpop.f32.mrf.mxu0
        %v7556 = vadd.f32 0.0, %v7555
        %7557 = vmatmul.bf16.gmra.mxu0 %v7384
        %v7558 = vpop.f32.mrf.mxu0
        %v7559 = vadd.f32 0.0, %v7558
        %v7560 = vpop.f32.mrf.mxu0
        %v7561 = vadd.f32 0.0, %v7560
        %7562 = vmatmul.bf16.gmra.mxu0 %v7386
        %v7563 = vpop.f32.mrf.mxu0
        %v7564 = vadd.f32 0.0, %v7563
        %v7565 = vpop.f32.mrf.mxu0
        %v7566 = vadd.f32 0.0, %v7565
        %7567 = vmatmul.bf16.gmra.mxu0 %v7388
        %v7568 = vpop.f32.mrf.mxu0
        %v7569 = vadd.f32 0.0, %v7568
        %v7570 = vpop.f32.mrf.mxu0
        %v7571 = vadd.f32 0.0, %v7570
        %7572 = vmatmul.bf16.gmra.mxu0 %v7390
        %v7573 = vpop.f32.mrf.mxu0
        %v7574 = vadd.f32 0.0, %v7573
        %v7575 = vpop.f32.mrf.mxu0
        %v7576 = vadd.f32 0.0, %v7575
        %7577 = vmatmul.bf16.gmra.mxu0 %v7392
        %v7578 = vpop.f32.mrf.mxu0
        %v7579 = vadd.f32 0.0, %v7578
        %v7580 = vpop.f32.mrf.mxu0
        %v7581 = vadd.f32 0.0, %v7580
        %7582 = vmatmul.bf16.gmra.mxu0 %v7394
        %v7583 = vpop.f32.mrf.mxu0
        %v7584 = vadd.f32 0.0, %v7583
        %v7585 = vpop.f32.mrf.mxu0
        %v7586 = vadd.f32 0.0, %v7585
        %7587 = vmatmul.bf16.gmra.mxu0 %v7396
        %v7588 = vpop.f32.mrf.mxu0
        %v7589 = vadd.f32 0.0, %v7588
        %v7590 = vpop.f32.mrf.mxu0
        %v7591 = vadd.f32 0.0, %v7590
        %7592 = vmatmul.bf16.gmra.mxu0 %v7398
        %v7593 = vpop.f32.mrf.mxu0
        %v7594 = vadd.f32 0.0, %v7593
        %v7595 = vpop.f32.mrf.mxu0
        %v7596 = vadd.f32 0.0, %v7595
        %7597 = vmatmul.bf16.gmra.mxu0 %v7400
        %v7598 = vpop.f32.mrf.mxu0
        %v7599 = vadd.f32 0.0, %v7598
        %v7600 = vpop.f32.mrf.mxu0
        %v7601 = vadd.f32 0.0, %v7600
        %7602 = vmatmul.bf16.gmra.mxu0 %v7402
        %v7603 = vpop.f32.mrf.mxu0
        %v7604 = vadd.f32 0.0, %v7603
        %v7605 = vpop.f32.mrf.mxu0
        %v7606 = vadd.f32 0.0, %v7605
        %7607 = vmatmul.bf16.gmra.mxu0 %v7404
        %v7608 = vpop.f32.mrf.mxu0
        %v7609 = vadd.f32 0.0, %v7608
        %v7610 = vpop.f32.mrf.mxu0
        %v7611 = vadd.f32 0.0, %v7610
        %7612 = vdwg.mxu0
        %7613 = vmatpush.bf16.msra.mxu0 %v5950
        %7614 = vmatpush.bf16.msra.mxu0 %v5948
        %7615 = vmatpush.bf16.msra.mxu0 %v5946
        %7616 = vmatpush.bf16.msra.mxu0 %v5944
        %7617 = vmatpush.bf16.msra.mxu0 %v5942
        %7618 = vmatpush.bf16.msra.mxu0 %v5940
        %7619 = vmatpush.bf16.msra.mxu0 %v5938
        %7620 = vmatpush.bf16.msra.mxu0 %v5936
        %7621 = vmatmul.bf16.gmra.mxu0 %v7383
        %v7622 = vpop.f32.mrf.mxu0
        %v7623 = vadd.f32 %v7554, %v7622
        %v7624 = vpop.f32.mrf.mxu0
        %v7625 = vadd.f32 %v7556, %v7624
        %7626 = vmatmul.bf16.gmra.mxu0 %v7385
        %v7627 = vpop.f32.mrf.mxu0
        %v7628 = vadd.f32 %v7559, %v7627
        %v7629 = vpop.f32.mrf.mxu0
        %v7630 = vadd.f32 %v7561, %v7629
        %7631 = vmatmul.bf16.gmra.mxu0 %v7387
        %v7632 = vpop.f32.mrf.mxu0
        %v7633 = vadd.f32 %v7564, %v7632
        %v7634 = vpop.f32.mrf.mxu0
        %v7635 = vadd.f32 %v7566, %v7634
        %7636 = vmatmul.bf16.gmra.mxu0 %v7389
        %v7637 = vpop.f32.mrf.mxu0
        %v7638 = vadd.f32 %v7569, %v7637
        %v7639 = vpop.f32.mrf.mxu0
        %v7640 = vadd.f32 %v7571, %v7639
        %7641 = vmatmul.bf16.gmra.mxu0 %v7391
        %v7642 = vpop.f32.mrf.mxu0
        %v7643 = vadd.f32 %v7574, %v7642
        %v7644 = vpop.f32.mrf.mxu0
        %v7645 = vadd.f32 %v7576, %v7644
        %7646 = vmatmul.bf16.gmra.mxu0 %v7393
        %v7647 = vpop.f32.mrf.mxu0
        %v7648 = vadd.f32 %v7579, %v7647
        %v7649 = vpop.f32.mrf.mxu0
        %v7650 = vadd.f32 %v7581, %v7649
        %7651 = vmatmul.bf16.gmra.mxu0 %v7395
        %v7652 = vpop.f32.mrf.mxu0
        %v7653 = vadd.f32 %v7584, %v7652
        %v7654 = vpop.f32.mrf.mxu0
        %v7655 = vadd.f32 %v7586, %v7654
        %7656 = vmatmul.bf16.gmra.mxu0 %v7397
        %v7657 = vpop.f32.mrf.mxu0
        %v7658 = vadd.f32 %v7589, %v7657
        %v7659 = vpop.f32.mrf.mxu0
        %v7660 = vadd.f32 %v7591, %v7659
        %7661 = vmatmul.bf16.gmra.mxu0 %v7399
        %v7662 = vpop.f32.mrf.mxu0
        %v7663 = vadd.f32 %v7594, %v7662
        %v7664 = vpop.f32.mrf.mxu0
        %v7665 = vadd.f32 %v7596, %v7664
        %7666 = vmatmul.bf16.gmra.mxu0 %v7401
        %v7667 = vpop.f32.mrf.mxu0
        %v7668 = vadd.f32 %v7599, %v7667
        %v7669 = vpop.f32.mrf.mxu0
        %v7670 = vadd.f32 %v7601, %v7669
        %7671 = vmatmul.bf16.gmra.mxu0 %v7403
        %v7672 = vpop.f32.mrf.mxu0
        %v7673 = vadd.f32 %v7604, %v7672
        %v7674 = vpop.f32.mrf.mxu0
        %v7675 = vadd.f32 %v7606, %v7674
        %7676 = vmatmul.bf16.gmra.mxu0 %v7405
        %v7677 = vpop.f32.mrf.mxu0
        %v7678 = vadd.f32 %v7609, %v7677
        %v7679 = vpop.f32.mrf.mxu0
        %v7680 = vadd.f32 %v7611, %v7679
        %7681 = vdwg.mxu0
        %v7706 = vunpack.c.l.b16 %v7262
        %v7707 = vunpack.c.h.b16 %v7262
        %v7708 = vunpack.c.l.b16 %v7263
        %v7709 = vunpack.c.h.b16 %v7263
        %v7710 = vunpack.c.l.b16 %v7264
        %v7711 = vunpack.c.h.b16 %v7264
        %v7712 = vunpack.c.l.b16 %v7265
        %v7713 = vunpack.c.h.b16 %v7265
        %v7714 = vunpack.c.l.b16 %v7266
        %v7715 = vunpack.c.h.b16 %v7266
        %v7716 = vunpack.c.l.b16 %v7267
        %v7717 = vunpack.c.h.b16 %v7267
        %v7718 = vunpack.c.l.b16 %v7268
        %v7719 = vunpack.c.h.b16 %v7268
        %v7720 = vunpack.c.l.b16 %v7269
        %v7721 = vunpack.c.h.b16 %v7269
        %v7722 = vunpack.c.l.b16 %v7270
        %v7723 = vunpack.c.h.b16 %v7270
        %v7724 = vunpack.c.l.b16 %v7271
        %v7725 = vunpack.c.h.b16 %v7271
        %v7726 = vunpack.c.l.b16 %v7272
        %v7727 = vunpack.c.h.b16 %v7272
        %v7728 = vunpack.c.l.b16 %v7273
        %v7729 = vunpack.c.h.b16 %v7273
        %v7730 = vunpack.c.l.b16 %v7274
        %v7731 = vunpack.c.h.b16 %v7274
        %v7732 = vunpack.c.l.b16 %v7275
        %v7733 = vunpack.c.h.b16 %v7275
        %v7734 = vunpack.c.l.b16 %v7276
        %v7735 = vunpack.c.h.b16 %v7276
        %v7736 = vunpack.c.l.b16 %v7277
        %v7737 = vunpack.c.h.b16 %v7277
        %v7738 = vunpack.c.l.b16 %v7278
        %v7739 = vunpack.c.h.b16 %v7278
        %v7740 = vunpack.c.l.b16 %v7279
        %v7741 = vunpack.c.h.b16 %v7279
        %v7742 = vunpack.c.l.b16 %v7280
        %v7743 = vunpack.c.h.b16 %v7280
        %v7744 = vunpack.c.l.b16 %v7281
        %v7745 = vunpack.c.h.b16 %v7281
        %v7746 = vunpack.c.l.b16 %v7282
        %v7747 = vunpack.c.h.b16 %v7282
        %v7748 = vunpack.c.l.b16 %v7283
        %v7749 = vunpack.c.h.b16 %v7283
        %v7750 = vunpack.c.l.b16 %v7284
        %v7751 = vunpack.c.h.b16 %v7284
        %v7752 = vunpack.c.l.b16 %v7285
        %v7753 = vunpack.c.h.b16 %v7285
        %v7754 = vpack.c.b16 %v7708, %v7706
        %v7755 = vpack.c.b16 %v7709, %v7707
        %v7756 = vpack.c.b16 %v7712, %v7710
        %v7757 = vpack.c.b16 %v7713, %v7711
        %v7758 = vpack.c.b16 %v7716, %v7714
        %v7759 = vpack.c.b16 %v7717, %v7715
        %v7760 = vpack.c.b16 %v7720, %v7718
        %v7761 = vpack.c.b16 %v7721, %v7719
        %v7762 = vpack.c.b16 %v7724, %v7722
        %v7763 = vpack.c.b16 %v7725, %v7723
        %v7764 = vpack.c.b16 %v7728, %v7726
        %v7765 = vpack.c.b16 %v7729, %v7727
        %v7766 = vpack.c.b16 %v7732, %v7730
        %v7767 = vpack.c.b16 %v7733, %v7731
        %v7768 = vpack.c.b16 %v7736, %v7734
        %v7769 = vpack.c.b16 %v7737, %v7735
        %v7770 = vpack.c.b16 %v7740, %v7738
        %v7771 = vpack.c.b16 %v7741, %v7739
        %v7772 = vpack.c.b16 %v7744, %v7742
        %v7773 = vpack.c.b16 %v7745, %v7743
        %v7774 = vpack.c.b16 %v7748, %v7746
        %v7775 = vpack.c.b16 %v7749, %v7747
        %v7776 = vpack.c.b16 %v7752, %v7750
        %v7777 = vpack.c.b16 %v7753, %v7751
        %7802 = vmatpush.bf16.msra.mxu0 %v5933
        %7803 = vmatpush.bf16.msra.mxu0 %v5931
        %7804 = vmatpush.bf16.msra.mxu0 %v5929
        %7805 = vmatpush.bf16.msra.mxu0 %v5927
        %7806 = vmatpush.bf16.msra.mxu0 %v5925
        %7807 = vmatpush.bf16.msra.mxu0 %v5923
        %7808 = vmatpush.bf16.msra.mxu0 %v5921
        %7809 = vmatpush.bf16.msra.mxu0 %v5919
        %7810 = vmatmul.bf16.gmra.mxu0 %v7754
        %v7811 = vpop.f32.mrf.mxu0
        %v7812 = vadd.f32 %v7485, %v7811
        %v7813 = vpop.f32.mrf.mxu0
        %v7814 = vadd.f32 %v7487, %v7813
        %7815 = vmatmul.bf16.gmra.mxu0 %v7756
        %v7816 = vpop.f32.mrf.mxu0
        %v7817 = vadd.f32 %v7490, %v7816
        %v7818 = vpop.f32.mrf.mxu0
        %v7819 = vadd.f32 %v7492, %v7818
        %7820 = vmatmul.bf16.gmra.mxu0 %v7758
        %v7821 = vpop.f32.mrf.mxu0
        %v7822 = vadd.f32 %v7495, %v7821
        %v7823 = vpop.f32.mrf.mxu0
        %v7824 = vadd.f32 %v7497, %v7823
        %7825 = vmatmul.bf16.gmra.mxu0 %v7760
        %v7826 = vpop.f32.mrf.mxu0
        %v7827 = vadd.f32 %v7500, %v7826
        %v7828 = vpop.f32.mrf.mxu0
        %v7829 = vadd.f32 %v7502, %v7828
        %7830 = vmatmul.bf16.gmra.mxu0 %v7762
        %v7831 = vpop.f32.mrf.mxu0
        %v7832 = vadd.f32 %v7505, %v7831
        %v7833 = vpop.f32.mrf.mxu0
        %v7834 = vadd.f32 %v7507, %v7833
        %7835 = vmatmul.bf16.gmra.mxu0 %v7764
        %v7836 = vpop.f32.mrf.mxu0
        %v7837 = vadd.f32 %v7510, %v7836
        %v7838 = vpop.f32.mrf.mxu0
        %v7839 = vadd.f32 %v7512, %v7838
        %7840 = vmatmul.bf16.gmra.mxu0 %v7766
        %v7841 = vpop.f32.mrf.mxu0
        %v7842 = vadd.f32 %v7515, %v7841
        %v7843 = vpop.f32.mrf.mxu0
        %v7844 = vadd.f32 %v7517, %v7843
        %7845 = vmatmul.bf16.gmra.mxu0 %v7768
        %v7846 = vpop.f32.mrf.mxu0
        %v7847 = vadd.f32 %v7520, %v7846
        %v7848 = vpop.f32.mrf.mxu0
        %v7849 = vadd.f32 %v7522, %v7848
        %7850 = vmatmul.bf16.gmra.mxu0 %v7770
        %v7851 = vpop.f32.mrf.mxu0
        %v7852 = vadd.f32 %v7525, %v7851
        %v7853 = vpop.f32.mrf.mxu0
        %v7854 = vadd.f32 %v7527, %v7853
        %7855 = vmatmul.bf16.gmra.mxu0 %v7772
        %v7856 = vpop.f32.mrf.mxu0
        %v7857 = vadd.f32 %v7530, %v7856
        %v7858 = vpop.f32.mrf.mxu0
        %v7859 = vadd.f32 %v7532, %v7858
        %7860 = vmatmul.bf16.gmra.mxu0 %v7774
        %v7861 = vpop.f32.mrf.mxu0
        %v7862 = vadd.f32 %v7535, %v7861
        %v7863 = vpop.f32.mrf.mxu0
        %v7864 = vadd.f32 %v7537, %v7863
        %7865 = vmatmul.bf16.gmra.mxu0 %v7776
        %v7866 = vpop.f32.mrf.mxu0
        %v7867 = vadd.f32 %v7540, %v7866
        %v7868 = vpop.f32.mrf.mxu0
        %v7869 = vadd.f32 %v7542, %v7868
        %7870 = vdwg.mxu0
        %7871 = vmatpush.bf16.msra.mxu0 %v5949
        %7872 = vmatpush.bf16.msra.mxu0 %v5947
        %7873 = vmatpush.bf16.msra.mxu0 %v5945
        %7874 = vmatpush.bf16.msra.mxu0 %v5943
        %7875 = vmatpush.bf16.msra.mxu0 %v5941
        %7876 = vmatpush.bf16.msra.mxu0 %v5939
        %7877 = vmatpush.bf16.msra.mxu0 %v5937
        %7878 = vmatpush.bf16.msra.mxu0 %v5935
        %7879 = vmatmul.bf16.gmra.mxu0 %v7755
        %v7880 = vpop.f32.mrf.mxu0
        %v7881 = vadd.f32 %v7812, %v7880
        %v7882 = vpop.f32.mrf.mxu0
        %v7883 = vadd.f32 %v7814, %v7882
        %7884 = vmatmul.bf16.gmra.mxu0 %v7757
        %v7885 = vpop.f32.mrf.mxu0
        %v7886 = vadd.f32 %v7817, %v7885
        %v7887 = vpop.f32.mrf.mxu0
        %v7888 = vadd.f32 %v7819, %v7887
        %7889 = vmatmul.bf16.gmra.mxu0 %v7759
        %v7890 = vpop.f32.mrf.mxu0
        %v7891 = vadd.f32 %v7822, %v7890
        %v7892 = vpop.f32.mrf.mxu0
        %v7893 = vadd.f32 %v7824, %v7892
        %7894 = vmatmul.bf16.gmra.mxu0 %v7761
        %v7895 = vpop.f32.mrf.mxu0
        %v7896 = vadd.f32 %v7827, %v7895
        %v7897 = vpop.f32.mrf.mxu0
        %v7898 = vadd.f32 %v7829, %v7897
        %7899 = vmatmul.bf16.gmra.mxu0 %v7763
        %v7900 = vpop.f32.mrf.mxu0
        %v7901 = vadd.f32 %v7832, %v7900
        %v7902 = vpop.f32.mrf.mxu0
        %v7903 = vadd.f32 %v7834, %v7902
        %7904 = vmatmul.bf16.gmra.mxu0 %v7765
        %v7905 = vpop.f32.mrf.mxu0
        %v7906 = vadd.f32 %v7837, %v7905
        %v7907 = vpop.f32.mrf.mxu0
        %v7908 = vadd.f32 %v7839, %v7907
        %7909 = vmatmul.bf16.gmra.mxu0 %v7767
        %v7910 = vpop.f32.mrf.mxu0
        %v7911 = vadd.f32 %v7842, %v7910
        %v7912 = vpop.f32.mrf.mxu0
        %v7913 = vadd.f32 %v7844, %v7912
        %7914 = vmatmul.bf16.gmra.mxu0 %v7769
        %v7915 = vpop.f32.mrf.mxu0
        %v7916 = vadd.f32 %v7847, %v7915
        %v7917 = vpop.f32.mrf.mxu0
        %v7918 = vadd.f32 %v7849, %v7917
        %7919 = vmatmul.bf16.gmra.mxu0 %v7771
        %v7920 = vpop.f32.mrf.mxu0
        %v7921 = vadd.f32 %v7852, %v7920
        %v7922 = vpop.f32.mrf.mxu0
        %v7923 = vadd.f32 %v7854, %v7922
        %7924 = vmatmul.bf16.gmra.mxu0 %v7773
        %v7925 = vpop.f32.mrf.mxu0
        %v7926 = vadd.f32 %v7857, %v7925
        %v7927 = vpop.f32.mrf.mxu0
        %v7928 = vadd.f32 %v7859, %v7927
        %7929 = vmatmul.bf16.gmra.mxu0 %v7775
        %v7930 = vpop.f32.mrf.mxu0
        %v7931 = vadd.f32 %v7862, %v7930
        %v7932 = vpop.f32.mrf.mxu0
        %v7933 = vadd.f32 %v7864, %v7932
        %7934 = vmatmul.bf16.gmra.mxu0 %v7777
        %v7935 = vpop.f32.mrf.mxu0
        %v7936 = vadd.f32 %v7867, %v7935
        %v7937 = vpop.f32.mrf.mxu0
        %v7938 = vadd.f32 %v7869, %v7937
        %7939 = vdwg.mxu0
        %7940 = vmatpush.bf16.msra.mxu0 %v5934
        %7941 = vmatpush.bf16.msra.mxu0 %v5932
        %7942 = vmatpush.bf16.msra.mxu0 %v5930
        %7943 = vmatpush.bf16.msra.mxu0 %v5928
        %7944 = vmatpush.bf16.msra.mxu0 %v5926
        %7945 = vmatpush.bf16.msra.mxu0 %v5924
        %7946 = vmatpush.bf16.msra.mxu0 %v5922
        %7947 = vmatpush.bf16.msra.mxu0 %v5920
        %7948 = vmatmul.bf16.gmra.mxu0 %v7754
        %v7949 = vpop.f32.mrf.mxu0
        %v7950 = vadd.f32 %v7623, %v7949
        %v7951 = vpop.f32.mrf.mxu0
        %v7952 = vadd.f32 %v7625, %v7951
        %7953 = vmatmul.bf16.gmra.mxu0 %v7756
        %v7954 = vpop.f32.mrf.mxu0
        %v7955 = vadd.f32 %v7628, %v7954
        %v7956 = vpop.f32.mrf.mxu0
        %v7957 = vadd.f32 %v7630, %v7956
        %7958 = vmatmul.bf16.gmra.mxu0 %v7758
        %v7959 = vpop.f32.mrf.mxu0
        %v7960 = vadd.f32 %v7633, %v7959
        %v7961 = vpop.f32.mrf.mxu0
        %v7962 = vadd.f32 %v7635, %v7961
        %7963 = vmatmul.bf16.gmra.mxu0 %v7760
        %v7964 = vpop.f32.mrf.mxu0
        %v7965 = vadd.f32 %v7638, %v7964
        %v7966 = vpop.f32.mrf.mxu0
        %v7967 = vadd.f32 %v7640, %v7966
        %7968 = vmatmul.bf16.gmra.mxu0 %v7762
        %v7969 = vpop.f32.mrf.mxu0
        %v7970 = vadd.f32 %v7643, %v7969
        %v7971 = vpop.f32.mrf.mxu0
        %v7972 = vadd.f32 %v7645, %v7971
        %7973 = vmatmul.bf16.gmra.mxu0 %v7764
        %v7974 = vpop.f32.mrf.mxu0
        %v7975 = vadd.f32 %v7648, %v7974
        %v7976 = vpop.f32.mrf.mxu0
        %v7977 = vadd.f32 %v7650, %v7976
        %7978 = vmatmul.bf16.gmra.mxu0 %v7766
        %v7979 = vpop.f32.mrf.mxu0
        %v7980 = vadd.f32 %v7653, %v7979
        %v7981 = vpop.f32.mrf.mxu0
        %v7982 = vadd.f32 %v7655, %v7981
        %7983 = vmatmul.bf16.gmra.mxu0 %v7768
        %v7984 = vpop.f32.mrf.mxu0
        %v7985 = vadd.f32 %v7658, %v7984
        %v7986 = vpop.f32.mrf.mxu0
        %v7987 = vadd.f32 %v7660, %v7986
        %7988 = vmatmul.bf16.gmra.mxu0 %v7770
        %v7989 = vpop.f32.mrf.mxu0
        %v7990 = vadd.f32 %v7663, %v7989
        %v7991 = vpop.f32.mrf.mxu0
        %v7992 = vadd.f32 %v7665, %v7991
        %7993 = vmatmul.bf16.gmra.mxu0 %v7772
        %v7994 = vpop.f32.mrf.mxu0
        %v7995 = vadd.f32 %v7668, %v7994
        %v7996 = vpop.f32.mrf.mxu0
        %v7997 = vadd.f32 %v7670, %v7996
        %7998 = vmatmul.bf16.gmra.mxu0 %v7774
        %v7999 = vpop.f32.mrf.mxu0
        %v8000 = vadd.f32 %v7673, %v7999
        %v8001 = vpop.f32.mrf.mxu0
        %v8002 = vadd.f32 %v7675, %v8001
        %8003 = vmatmul.bf16.gmra.mxu0 %v7776
        %v8004 = vpop.f32.mrf.mxu0
        %v8005 = vadd.f32 %v7678, %v8004
        %v8006 = vpop.f32.mrf.mxu0
        %v8007 = vadd.f32 %v7680, %v8006
        %8008 = vdwg.mxu0
        %8009 = vmatpush.bf16.msra.mxu0 %v5950
        %8010 = vmatpush.bf16.msra.mxu0 %v5948
        %8011 = vmatpush.bf16.msra.mxu0 %v5946
        %8012 = vmatpush.bf16.msra.mxu0 %v5944
        %8013 = vmatpush.bf16.msra.mxu0 %v5942
        %8014 = vmatpush.bf16.msra.mxu0 %v5940
        %8015 = vmatpush.bf16.msra.mxu0 %v5938
        %8016 = vmatpush.bf16.msra.mxu0 %v5936
        %8017 = vmatmul.bf16.gmra.mxu0 %v7755
        %v8018 = vpop.f32.mrf.mxu0
        %v8019 = vadd.f32 %v7950, %v8018
        %v8020 = vpop.f32.mrf.mxu0
        %v8021 = vadd.f32 %v7952, %v8020
        %8022 = vmatmul.bf16.gmra.mxu0 %v7757
        %v8023 = vpop.f32.mrf.mxu0
        %v8024 = vadd.f32 %v7955, %v8023
        %v8025 = vpop.f32.mrf.mxu0
        %v8026 = vadd.f32 %v7957, %v8025
        %8027 = vmatmul.bf16.gmra.mxu0 %v7759
        %v8028 = vpop.f32.mrf.mxu0
        %v8029 = vadd.f32 %v7960, %v8028
        %v8030 = vpop.f32.mrf.mxu0
        %v8031 = vadd.f32 %v7962, %v8030
        %8032 = vmatmul.bf16.gmra.mxu0 %v7761
        %v8033 = vpop.f32.mrf.mxu0
        %v8034 = vadd.f32 %v7965, %v8033
        %v8035 = vpop.f32.mrf.mxu0
        %v8036 = vadd.f32 %v7967, %v8035
        %8037 = vmatmul.bf16.gmra.mxu0 %v7763
        %v8038 = vpop.f32.mrf.mxu0
        %v8039 = vadd.f32 %v7970, %v8038
        %v8040 = vpop.f32.mrf.mxu0
        %v8041 = vadd.f32 %v7972, %v8040
        %8042 = vmatmul.bf16.gmra.mxu0 %v7765
        %v8043 = vpop.f32.mrf.mxu0
        %v8044 = vadd.f32 %v7975, %v8043
        %v8045 = vpop.f32.mrf.mxu0
        %v8046 = vadd.f32 %v7977, %v8045
        %8047 = vmatmul.bf16.gmra.mxu0 %v7767
        %v8048 = vpop.f32.mrf.mxu0
        %v8049 = vadd.f32 %v7980, %v8048
        %v8050 = vpop.f32.mrf.mxu0
        %v8051 = vadd.f32 %v7982, %v8050
        %8052 = vmatmul.bf16.gmra.mxu0 %v7769
        %v8053 = vpop.f32.mrf.mxu0
        %v8054 = vadd.f32 %v7985, %v8053
        %v8055 = vpop.f32.mrf.mxu0
        %v8056 = vadd.f32 %v7987, %v8055
        %8057 = vmatmul.bf16.gmra.mxu0 %v7771
        %v8058 = vpop.f32.mrf.mxu0
        %v8059 = vadd.f32 %v7990, %v8058
        %v8060 = vpop.f32.mrf.mxu0
        %v8061 = vadd.f32 %v7992, %v8060
        %8062 = vmatmul.bf16.gmra.mxu0 %v7773
        %v8063 = vpop.f32.mrf.mxu0
        %v8064 = vadd.f32 %v7995, %v8063
        %v8065 = vpop.f32.mrf.mxu0
        %v8066 = vadd.f32 %v7997, %v8065
        %8067 = vmatmul.bf16.gmra.mxu0 %v7775
        %v8068 = vpop.f32.mrf.mxu0
        %v8069 = vadd.f32 %v8000, %v8068
        %v8070 = vpop.f32.mrf.mxu0
        %v8071 = vadd.f32 %v8002, %v8070
        %8072 = vmatmul.bf16.gmra.mxu0 %v7777
        %v8073 = vpop.f32.mrf.mxu0
        %v8074 = vadd.f32 %v8005, %v8073
        %v8075 = vpop.f32.mrf.mxu0
        %v8076 = vadd.f32 %v8007, %v8075
        %8077 = vdwg.mxu0
        %v8078 = vld [vmem:[%s10] sm:$0xff]
        %v8079 = vld [vmem:[%s10 + $0x8] sm:$0xff]
        %v8080 = vld [vmem:[%s10 + $0x10] sm:$0xff]
        %v8081 = vld [vmem:[%s10 + $0x18] sm:$0xff]
        %v8082 = vld [vmem:[%s10 + $0x20] sm:$0xff]
        %v8083 = vld [vmem:[%s10 + $0x28] sm:$0xff]
        %v8084 = vld [vmem:[%s10 + $0x30] sm:$0xff]
        %v8085 = vld [vmem:[%s10 + $0x38] sm:$0xff]
        %v8086 = vld [vmem:[%s10 + $0x40] sm:$0xff]
        %v8087 = vld [vmem:[%s10 + $0x48] sm:$0xff]
        %v8088 = vld [vmem:[%s10 + $0x50] sm:$0xff]
        %v8089 = vld [vmem:[%s10 + $0x58] sm:$0xff]
        %v8090 = vld [vmem:[%s10 + $0x60] sm:$0xff]
        %v8091 = vld [vmem:[%s10 + $0x68] sm:$0xff]
        %v8092 = vld [vmem:[%s10 + $0x70] sm:$0xff]
        %v8093 = vld [vmem:[%s10 + $0x78] sm:$0xff]
        %v8094 = vld [vmem:[%s10 + $0x80] sm:$0xff]
        %v8095 = vld [vmem:[%s10 + $0x88] sm:$0xff]
        %v8096 = vld [vmem:[%s10 + $0x90] sm:$0xff]
        %v8097 = vld [vmem:[%s10 + $0x98] sm:$0xff]
        %v8098 = vld [vmem:[%s10 + $0xa0] sm:$0xff]
        %v8099 = vld [vmem:[%s10 + $0xa8] sm:$0xff]
        %v8100 = vld [vmem:[%s10 + $0xb0] sm:$0xff]
        %v8101 = vld [vmem:[%s10 + $0xb8] sm:$0xff]
        %v8102 = vld [vmem:[%s10 + $0xc0] sm:$0xff]
        %v8103 = vld [vmem:[%s10 + $0xc8] sm:$0xff]
        %v8104 = vld [vmem:[%s10 + $0xd0] sm:$0xff]
        %v8105 = vld [vmem:[%s10 + $0xd8] sm:$0xff]
        %v8106 = vld [vmem:[%s10 + $0xe0] sm:$0xff]
        %v8107 = vld [vmem:[%s10 + $0xe8] sm:$0xff]
        %v8108 = vld [vmem:[%s10 + $0xf0] sm:$0xff]
        %v8109 = vld [vmem:[%s10 + $0xf8] sm:$0xff]
        %v8110 = vld [vmem:[%s10 + $0x100] sm:$0xff]
        %v8111 = vld [vmem:[%s10 + $0x108] sm:$0xff]
        %v8112 = vld [vmem:[%s10 + $0x110] sm:$0xff]
        %v8113 = vld [vmem:[%s10 + $0x118] sm:$0xff]
        %v8114 = vld [vmem:[%s10 + $0x120] sm:$0xff]
        %v8115 = vld [vmem:[%s10 + $0x128] sm:$0xff]
        %v8116 = vld [vmem:[%s10 + $0x130] sm:$0xff]
        %v8117 = vld [vmem:[%s10 + $0x138] sm:$0xff]
        %v8118 = vld [vmem:[%s10 + $0x140] sm:$0xff]
        %v8119 = vld [vmem:[%s10 + $0x148] sm:$0xff]
        %v8120 = vld [vmem:[%s10 + $0x150] sm:$0xff]
        %v8121 = vld [vmem:[%s10 + $0x158] sm:$0xff]
        %v8122 = vld [vmem:[%s10 + $0x160] sm:$0xff]
        %v8123 = vld [vmem:[%s10 + $0x168] sm:$0xff]
        %v8124 = vld [vmem:[%s10 + $0x170] sm:$0xff]
        %v8125 = vld [vmem:[%s10 + $0x178] sm:$0xff]
        %v8126 = vmul.f32 %v7881, %v8078
        %v8127 = vmul.f32 %v8019, %v8079
        %v8128 = vmul.f32 %v7883, %v8080
        %v8129 = vmul.f32 %v8021, %v8081
        %v8130 = vmul.f32 %v7886, %v8082
        %v8131 = vmul.f32 %v8024, %v8083
        %v8132 = vmul.f32 %v7888, %v8084
        %v8133 = vmul.f32 %v8026, %v8085
        %v8134 = vmul.f32 %v7891, %v8086
        %v8135 = vmul.f32 %v8029, %v8087
        %v8136 = vmul.f32 %v7893, %v8088
        %v8137 = vmul.f32 %v8031, %v8089
        %v8138 = vmul.f32 %v7896, %v8090
        %v8139 = vmul.f32 %v8034, %v8091
        %v8140 = vmul.f32 %v7898, %v8092
        %v8141 = vmul.f32 %v8036, %v8093
        %v8142 = vmul.f32 %v7901, %v8094
        %v8143 = vmul.f32 %v8039, %v8095
        %v8144 = vmul.f32 %v7903, %v8096
        %v8145 = vmul.f32 %v8041, %v8097
        %v8146 = vmul.f32 %v7906, %v8098
        %v8147 = vmul.f32 %v8044, %v8099
        %v8148 = vmul.f32 %v7908, %v8100
        %v8149 = vmul.f32 %v8046, %v8101
        %v8150 = vmul.f32 %v7911, %v8102
        %v8151 = vmul.f32 %v8049, %v8103
        %v8152 = vmul.f32 %v7913, %v8104
        %v8153 = vmul.f32 %v8051, %v8105
        %v8154 = vmul.f32 %v7916, %v8106
        %v8155 = vmul.f32 %v8054, %v8107
        %v8156 = vmul.f32 %v7918, %v8108
        %v8157 = vmul.f32 %v8056, %v8109
        %v8158 = vmul.f32 %v7921, %v8110
        %v8159 = vmul.f32 %v8059, %v8111
        %v8160 = vmul.f32 %v7923, %v8112
        %v8161 = vmul.f32 %v8061, %v8113
        %v8162 = vmul.f32 %v7926, %v8114
        %v8163 = vmul.f32 %v8064, %v8115
        %v8164 = vmul.f32 %v7928, %v8116
        %v8165 = vmul.f32 %v8066, %v8117
        %v8166 = vmul.f32 %v7931, %v8118
        %v8167 = vmul.f32 %v8069, %v8119
        %v8168 = vmul.f32 %v7933, %v8120
        %v8169 = vmul.f32 %v8071, %v8121
        %v8170 = vmul.f32 %v7936, %v8122
        %v8171 = vmul.f32 %v8074, %v8123
        %v8172 = vmul.f32 %v7938, %v8124
        %v8173 = vmul.f32 %v8076, %v8125
        %v8174 = vpack.c.bf16 %v8127, %v8126
        %v8175 = vpack.c.bf16 %v8129, %v8128
        %v8176 = vpack.c.bf16 %v8131, %v8130
        %v8177 = vpack.c.bf16 %v8133, %v8132
        %v8178 = vpack.c.bf16 %v8135, %v8134
        %v8179 = vpack.c.bf16 %v8137, %v8136
        %v8180 = vpack.c.bf16 %v8139, %v8138
        %v8181 = vpack.c.bf16 %v8141, %v8140
        %v8182 = vpack.c.bf16 %v8143, %v8142
        %v8183 = vpack.c.bf16 %v8145, %v8144
        %v8184 = vpack.c.bf16 %v8147, %v8146
        %v8185 = vpack.c.bf16 %v8149, %v8148
        %v8186 = vpack.c.bf16 %v8151, %v8150
        %v8187 = vpack.c.bf16 %v8153, %v8152
        %v8188 = vpack.c.bf16 %v8155, %v8154
        %v8189 = vpack.c.bf16 %v8157, %v8156
        %v8190 = vpack.c.bf16 %v8159, %v8158
        %v8191 = vpack.c.bf16 %v8161, %v8160
        %v8192 = vpack.c.bf16 %v8163, %v8162
        %v8193 = vpack.c.bf16 %v8165, %v8164
        %v8194 = vpack.c.bf16 %v8167, %v8166
        %v8195 = vpack.c.bf16 %v8169, %v8168
        %v8196 = vpack.c.bf16 %v8171, %v8170
        %v8197 = vpack.c.bf16 %v8173, %v8172
        %v8198 = vunpack.c.l.bf16 %v8174
        %v8199 = vunpack.c.h.bf16 %v8174
        %v8200 = vunpack.c.l.bf16 %v8175
        %v8201 = vunpack.c.h.bf16 %v8175
        %v8202 = vunpack.c.l.bf16 %v8176
        %v8203 = vunpack.c.h.bf16 %v8176
        %v8204 = vunpack.c.l.bf16 %v8177
        %v8205 = vunpack.c.h.bf16 %v8177
        %v8206 = vunpack.c.l.bf16 %v8178
        %v8207 = vunpack.c.h.bf16 %v8178
        %v8208 = vunpack.c.l.bf16 %v8179
        %v8209 = vunpack.c.h.bf16 %v8179
        %v8210 = vunpack.c.l.bf16 %v8180
        %v8211 = vunpack.c.h.bf16 %v8180
        %v8212 = vunpack.c.l.bf16 %v8181
        %v8213 = vunpack.c.h.bf16 %v8181
        %v8214 = vunpack.c.l.bf16 %v8182
        %v8215 = vunpack.c.h.bf16 %v8182
        %v8216 = vunpack.c.l.bf16 %v8183
        %v8217 = vunpack.c.h.bf16 %v8183
        %v8218 = vunpack.c.l.bf16 %v8184
        %v8219 = vunpack.c.h.bf16 %v8184
        %v8220 = vunpack.c.l.bf16 %v8185
        %v8221 = vunpack.c.h.bf16 %v8185
        %v8222 = vunpack.c.l.bf16 %v8186
        %v8223 = vunpack.c.h.bf16 %v8186
        %v8224 = vunpack.c.l.bf16 %v8187
        %v8225 = vunpack.c.h.bf16 %v8187
        %v8226 = vunpack.c.l.bf16 %v8188
        %v8227 = vunpack.c.h.bf16 %v8188
        %v8228 = vunpack.c.l.bf16 %v8189
        %v8229 = vunpack.c.h.bf16 %v8189
        %v8230 = vunpack.c.l.bf16 %v8190
        %v8231 = vunpack.c.h.bf16 %v8190
        %v8232 = vunpack.c.l.bf16 %v8191
        %v8233 = vunpack.c.h.bf16 %v8191
        %v8234 = vunpack.c.l.bf16 %v8192
        %v8235 = vunpack.c.h.bf16 %v8192
        %v8236 = vunpack.c.l.bf16 %v8193
        %v8237 = vunpack.c.h.bf16 %v8193
        %v8238 = vunpack.c.l.bf16 %v8194
        %v8239 = vunpack.c.h.bf16 %v8194
        %v8240 = vunpack.c.l.bf16 %v8195
        %v8241 = vunpack.c.h.bf16 %v8195
        %v8242 = vunpack.c.l.bf16 %v8196
        %v8243 = vunpack.c.h.bf16 %v8196
        %v8244 = vunpack.c.l.bf16 %v8197
        %v8245 = vunpack.c.h.bf16 %v8197
        %v8246 = vsub.f32 %v8126, %v8198
        %v8247 = vsub.f32 %v8127, %v8199
        %v8248 = vsub.f32 %v8128, %v8200
        %v8249 = vsub.f32 %v8129, %v8201
        %v8250 = vsub.f32 %v8130, %v8202
        %v8251 = vsub.f32 %v8131, %v8203
        %v8252 = vsub.f32 %v8132, %v8204
        %v8253 = vsub.f32 %v8133, %v8205
        %v8254 = vsub.f32 %v8134, %v8206
        %v8255 = vsub.f32 %v8135, %v8207
        %v8256 = vsub.f32 %v8136, %v8208
        %v8257 = vsub.f32 %v8137, %v8209
        %v8258 = vsub.f32 %v8138, %v8210
        %v8259 = vsub.f32 %v8139, %v8211
        %v8260 = vsub.f32 %v8140, %v8212
        %v8261 = vsub.f32 %v8141, %v8213
        %v8262 = vsub.f32 %v8142, %v8214
        %v8263 = vsub.f32 %v8143, %v8215
        %v8264 = vsub.f32 %v8144, %v8216
        %v8265 = vsub.f32 %v8145, %v8217
        %v8266 = vsub.f32 %v8146, %v8218
        %v8267 = vsub.f32 %v8147, %v8219
        %v8268 = vsub.f32 %v8148, %v8220
        %v8269 = vsub.f32 %v8149, %v8221
        %v8270 = vsub.f32 %v8150, %v8222
        %v8271 = vsub.f32 %v8151, %v8223
        %v8272 = vsub.f32 %v8152, %v8224
        %v8273 = vsub.f32 %v8153, %v8225
        %v8274 = vsub.f32 %v8154, %v8226
        %v8275 = vsub.f32 %v8155, %v8227
        %v8276 = vsub.f32 %v8156, %v8228
        %v8277 = vsub.f32 %v8157, %v8229
        %v8278 = vsub.f32 %v8158, %v8230
        %v8279 = vsub.f32 %v8159, %v8231
        %v8280 = vsub.f32 %v8160, %v8232
        %v8281 = vsub.f32 %v8161, %v8233
        %v8282 = vsub.f32 %v8162, %v8234
        %v8283 = vsub.f32 %v8163, %v8235
        %v8284 = vsub.f32 %v8164, %v8236
        %v8285 = vsub.f32 %v8165, %v8237
        %v8286 = vsub.f32 %v8166, %v8238
        %v8287 = vsub.f32 %v8167, %v8239
        %v8288 = vsub.f32 %v8168, %v8240
        %v8289 = vsub.f32 %v8169, %v8241
        %v8290 = vsub.f32 %v8170, %v8242
        %v8291 = vsub.f32 %v8171, %v8243
        %v8292 = vsub.f32 %v8172, %v8244
        %v8293 = vsub.f32 %v8173, %v8245
        %v8294 = vpack.c.bf16 %v8248, %v8246
        %v8295 = vpack.c.bf16 %v8249, %v8247
        %v8296 = vpack.c.bf16 %v8252, %v8250
        %v8297 = vpack.c.bf16 %v8253, %v8251
        %v8298 = vpack.c.bf16 %v8256, %v8254
        %v8299 = vpack.c.bf16 %v8257, %v8255
        %v8300 = vpack.c.bf16 %v8260, %v8258
        %v8301 = vpack.c.bf16 %v8261, %v8259
        %v8302 = vpack.c.bf16 %v8264, %v8262
        %v8303 = vpack.c.bf16 %v8265, %v8263
        %v8304 = vpack.c.bf16 %v8268, %v8266
        %v8305 = vpack.c.bf16 %v8269, %v8267
        %v8306 = vpack.c.bf16 %v8272, %v8270
        %v8307 = vpack.c.bf16 %v8273, %v8271
        %v8308 = vpack.c.bf16 %v8276, %v8274
        %v8309 = vpack.c.bf16 %v8277, %v8275
        %v8310 = vpack.c.bf16 %v8280, %v8278
        %v8311 = vpack.c.bf16 %v8281, %v8279
        %v8312 = vpack.c.bf16 %v8284, %v8282
        %v8313 = vpack.c.bf16 %v8285, %v8283
        %v8314 = vpack.c.bf16 %v8288, %v8286
        %v8315 = vpack.c.bf16 %v8289, %v8287
        %v8316 = vpack.c.bf16 %v8292, %v8290
        %v8317 = vpack.c.bf16 %v8293, %v8291
        %8318 = vmatpush.bf16.msra.mxu0 %v8308
        %8319 = vmatpush.bf16.msra.mxu0 %v8306
        %8320 = vmatpush.bf16.msra.mxu0 %v8304
        %8321 = vmatpush.bf16.msra.mxu0 %v8302
        %8322 = vmatpush.bf16.msra.mxu0 %v8300
        %8323 = vmatpush.bf16.msra.mxu0 %v8298
        %8324 = vmatpush.bf16.msra.mxu0 %v8296
        %8325 = vmatpush.bf16.msra.mxu0 %v8294
        %8326 = vmatmul.bf16.gmra.mxu0 %v4672
        %v8327 = vpop.f32.mrf.mxu0
        %v8328 = vadd.f32 0.0, %v8327
        %v8329 = vpop.f32.mrf.mxu0
        %v8330 = vadd.f32 0.0, %v8329
        %8331 = vdwg.mxu0
        %8332 = vmatpush.bf16.msra.mxu0 0
        %8333 = vmatpush.bf16.msra.mxu0 0
        %8334 = vmatpush.bf16.msra.mxu0 0
        %8335 = vmatpush.bf16.msra.mxu0 0
        %8336 = vmatpush.bf16.msra.mxu0 %v8316
        %8337 = vmatpush.bf16.msra.mxu0 %v8314
        %8338 = vmatpush.bf16.msra.mxu0 %v8312
        %8339 = vmatpush.bf16.msra.mxu0 %v8310
        %8340 = vmatmul.bf16.gmra.mxu0 %v4677
        %v8341 = vpop.f32.mrf.mxu0
        %v8342 = vadd.f32 %v8328, %v8341
        %v8343 = vpop.f32.mrf.mxu0
        %v8344 = vadd.f32 %v8330, %v8343
        %8345 = vdwg.mxu0
        %8346 = vmatpush.bf16.msra.mxu0 %v8309
        %8347 = vmatpush.bf16.msra.mxu0 %v8307
        %8348 = vmatpush.bf16.msra.mxu0 %v8305
        %8349 = vmatpush.bf16.msra.mxu0 %v8303
        %8350 = vmatpush.bf16.msra.mxu0 %v8301
        %8351 = vmatpush.bf16.msra.mxu0 %v8299
        %8352 = vmatpush.bf16.msra.mxu0 %v8297
        %8353 = vmatpush.bf16.msra.mxu0 %v8295
        %8354 = vmatmul.bf16.gmra.mxu0 %v4672
        %v8355 = vpop.f32.mrf.mxu0
        %v8356 = vadd.f32 0.0, %v8355
        %v8357 = vpop.f32.mrf.mxu0
        %v8358 = vadd.f32 0.0, %v8357
        %8359 = vdwg.mxu0
        %8360 = vmatpush.bf16.msra.mxu0 0
        %8361 = vmatpush.bf16.msra.mxu0 0
        %8362 = vmatpush.bf16.msra.mxu0 0
        %8363 = vmatpush.bf16.msra.mxu0 0
        %8364 = vmatpush.bf16.msra.mxu0 %v8317
        %8365 = vmatpush.bf16.msra.mxu0 %v8315
        %8366 = vmatpush.bf16.msra.mxu0 %v8313
        %8367 = vmatpush.bf16.msra.mxu0 %v8311
        %8368 = vmatmul.bf16.gmra.mxu0 %v4677
        %v8369 = vpop.f32.mrf.mxu0
        %v8370 = vadd.f32 %v8356, %v8369
        %v8371 = vpop.f32.mrf.mxu0
        %v8372 = vadd.f32 %v8358, %v8371
        %8373 = vdwg.mxu0
        %v8398 = vunpack.c.l.b16 %v8174
        %v8399 = vunpack.c.h.b16 %v8174
        %v8400 = vunpack.c.l.b16 %v8175
        %v8401 = vunpack.c.h.b16 %v8175
        %v8402 = vunpack.c.l.b16 %v8176
        %v8403 = vunpack.c.h.b16 %v8176
        %v8404 = vunpack.c.l.b16 %v8177
        %v8405 = vunpack.c.h.b16 %v8177
        %v8406 = vunpack.c.l.b16 %v8178
        %v8407 = vunpack.c.h.b16 %v8178
        %v8408 = vunpack.c.l.b16 %v8179
        %v8409 = vunpack.c.h.b16 %v8179
        %v8410 = vunpack.c.l.b16 %v8180
        %v8411 = vunpack.c.h.b16 %v8180
        %v8412 = vunpack.c.l.b16 %v8181
        %v8413 = vunpack.c.h.b16 %v8181
        %v8414 = vunpack.c.l.b16 %v8182
        %v8415 = vunpack.c.h.b16 %v8182
        %v8416 = vunpack.c.l.b16 %v8183
        %v8417 = vunpack.c.h.b16 %v8183
        %v8418 = vunpack.c.l.b16 %v8184
        %v8419 = vunpack.c.h.b16 %v8184
        %v8420 = vunpack.c.l.b16 %v8185
        %v8421 = vunpack.c.h.b16 %v8185
        %v8422 = vunpack.c.l.b16 %v8186
        %v8423 = vunpack.c.h.b16 %v8186
        %v8424 = vunpack.c.l.b16 %v8187
        %v8425 = vunpack.c.h.b16 %v8187
        %v8426 = vunpack.c.l.b16 %v8188
        %v8427 = vunpack.c.h.b16 %v8188
        %v8428 = vunpack.c.l.b16 %v8189
        %v8429 = vunpack.c.h.b16 %v8189
        %v8430 = vunpack.c.l.b16 %v8190
        %v8431 = vunpack.c.h.b16 %v8190
        %v8432 = vunpack.c.l.b16 %v8191
        %v8433 = vunpack.c.h.b16 %v8191
        %v8434 = vunpack.c.l.b16 %v8192
        %v8435 = vunpack.c.h.b16 %v8192
        %v8436 = vunpack.c.l.b16 %v8193
        %v8437 = vunpack.c.h.b16 %v8193
        %v8438 = vunpack.c.l.b16 %v8194
        %v8439 = vunpack.c.h.b16 %v8194
        %v8440 = vunpack.c.l.b16 %v8195
        %v8441 = vunpack.c.h.b16 %v8195
        %v8442 = vunpack.c.l.b16 %v8196
        %v8443 = vunpack.c.h.b16 %v8196
        %v8444 = vunpack.c.l.b16 %v8197
        %v8445 = vunpack.c.h.b16 %v8197
        %v8446 = vpack.c.b16 %v8400, %v8398
        %v8447 = vpack.c.b16 %v8401, %v8399
        %v8448 = vpack.c.b16 %v8404, %v8402
        %v8449 = vpack.c.b16 %v8405, %v8403
        %v8450 = vpack.c.b16 %v8408, %v8406
        %v8451 = vpack.c.b16 %v8409, %v8407
        %v8452 = vpack.c.b16 %v8412, %v8410
        %v8453 = vpack.c.b16 %v8413, %v8411
        %v8454 = vpack.c.b16 %v8416, %v8414
        %v8455 = vpack.c.b16 %v8417, %v8415
        %v8456 = vpack.c.b16 %v8420, %v8418
        %v8457 = vpack.c.b16 %v8421, %v8419
        %v8458 = vpack.c.b16 %v8424, %v8422
        %v8459 = vpack.c.b16 %v8425, %v8423
        %v8460 = vpack.c.b16 %v8428, %v8426
        %v8461 = vpack.c.b16 %v8429, %v8427
        %v8462 = vpack.c.b16 %v8432, %v8430
        %v8463 = vpack.c.b16 %v8433, %v8431
        %v8464 = vpack.c.b16 %v8436, %v8434
        %v8465 = vpack.c.b16 %v8437, %v8435
        %v8466 = vpack.c.b16 %v8440, %v8438
        %v8467 = vpack.c.b16 %v8441, %v8439
        %v8468 = vpack.c.b16 %v8444, %v8442
        %v8469 = vpack.c.b16 %v8445, %v8443
        %8494 = vmatpush.bf16.msra.mxu0 %v8460
        %8495 = vmatpush.bf16.msra.mxu0 %v8458
        %8496 = vmatpush.bf16.msra.mxu0 %v8456
        %8497 = vmatpush.bf16.msra.mxu0 %v8454
        %8498 = vmatpush.bf16.msra.mxu0 %v8452
        %8499 = vmatpush.bf16.msra.mxu0 %v8450
        %8500 = vmatpush.bf16.msra.mxu0 %v8448
        %8501 = vmatpush.bf16.msra.mxu0 %v8446
        %8502 = vmatmul.bf16.gmra.mxu0 %v4672
        %v8503 = vpop.f32.mrf.mxu0
        %v8504 = vadd.f32 %v8342, %v8503
        %v8505 = vpop.f32.mrf.mxu0
        %v8506 = vadd.f32 %v8344, %v8505
        %8507 = vdwg.mxu0
        %8508 = vmatpush.bf16.msra.mxu0 0
        %8509 = vmatpush.bf16.msra.mxu0 0
        %8510 = vmatpush.bf16.msra.mxu0 0
        %8511 = vmatpush.bf16.msra.mxu0 0
        %8512 = vmatpush.bf16.msra.mxu0 %v8468
        %8513 = vmatpush.bf16.msra.mxu0 %v8466
        %8514 = vmatpush.bf16.msra.mxu0 %v8464
        %8515 = vmatpush.bf16.msra.mxu0 %v8462
        %8516 = vmatmul.bf16.gmra.mxu0 %v4677
        %v8517 = vpop.f32.mrf.mxu0
        %v8518 = vadd.f32 %v8504, %v8517
        %v8519 = vpop.f32.mrf.mxu0
        %v8520 = vadd.f32 %v8506, %v8519
        %8521 = vdwg.mxu0
        %8522 = vmatpush.bf16.msra.mxu0 %v8461
        %8523 = vmatpush.bf16.msra.mxu0 %v8459
        %8524 = vmatpush.bf16.msra.mxu0 %v8457
        %8525 = vmatpush.bf16.msra.mxu0 %v8455
        %8526 = vmatpush.bf16.msra.mxu0 %v8453
        %8527 = vmatpush.bf16.msra.mxu0 %v8451
        %8528 = vmatpush.bf16.msra.mxu0 %v8449
        %8529 = vmatpush.bf16.msra.mxu0 %v8447
        %8530 = vmatmul.bf16.gmra.mxu0 %v4672
        %v8531 = vpop.f32.mrf.mxu0
        %v8532 = vadd.f32 %v8370, %v8531
        %v8533 = vpop.f32.mrf.mxu0
        %v8534 = vadd.f32 %v8372, %v8533
        %8535 = vdwg.mxu0
        %8536 = vmatpush.bf16.msra.mxu0 0
        %8537 = vmatpush.bf16.msra.mxu0 0
        %8538 = vmatpush.bf16.msra.mxu0 0
        %8539 = vmatpush.bf16.msra.mxu0 0
        %8540 = vmatpush.bf16.msra.mxu0 %v8469
        %8541 = vmatpush.bf16.msra.mxu0 %v8467
        %8542 = vmatpush.bf16.msra.mxu0 %v8465
        %8543 = vmatpush.bf16.msra.mxu0 %v8463
        %8544 = vmatmul.bf16.gmra.mxu0 %v4677
        %v8545 = vpop.f32.mrf.mxu0
        %v8546 = vadd.f32 %v8532, %v8545
        %v8547 = vpop.f32.mrf.mxu0
        %v8548 = vadd.f32 %v8534, %v8547
        %8549 = vdwg.mxu0
        %v8550 = vld [vmem:[#allocation17] sm:$0xff]
        %v8551 = vld [vmem:[#allocation17 + $0x8] sm:$0xff]
        %8553 = vset.pattern.permute.xlu0 0
        %8554 = vperm.xlu0 %8553, %v8550
        %v8555 = vpop.permute.xlu0 %8554
        %8558 = vset.pattern.permute.xlu0 0
        %8559 = vperm.xlu0 %8558, %v8551
        %v8560 = vpop.permute.xlu0 %8559
        %v8562 = vadd.f32 %v8518, %v8555
        %v8563 = vadd.f32 %v8546, %v8555
        %v8564 = vadd.f32 %v8520, %v8560
        %v8565 = vadd.f32 %v8548, %v8560
        %8566 = vmatpush.msra.mxu0 0.0
        %8567 = vmatpush.msra.mxu0 0.0
        %8568 = vmatpush.msra.mxu0 0.0
        %8569 = vmatpush.msra.mxu0 0.0
        %8570 = vmatpush.msra.mxu0 0.0
        %8571 = vmatpush.msra.mxu0 0.0
        %8572 = vmatpush.msra.mxu0 0.0
        %8573 = vmatpush.msra.mxu0 0.0
        %8574 = vmatpush.msra.mxu0 0.0
        %8575 = vmatpush.msra.mxu0 0.0
        %8576 = vmatpush.msra.mxu0 0.0
        %8577 = vmatpush.msra.mxu0 0.0
        %8578 = vmatpush.msra.mxu0 0.0
        %8579 = vmatpush.msra.mxu0 0.0
        %v8580 = vand.u32 %v8564, 4294901760
        %8581 = vmatpush.msra.mxu0 %v8580
        %v8582 = vand.u32 %v8562, 4294901760
        %8583 = vmatpush.msra.mxu0 %v8582
        %v8584 = vand.u32 %v906, 4294901760
        %v8585 = vsub.f32 %v906, %v8584
        %v8586 = vand.u32 %v8585, 4294901760
        %v8587 = vsub.f32 %v8585, %v8586
        %v8588 = vand.u32 %v8587, 4294901760
        %8589 = vmatmul.f32.gmra.mxu0 %v8588
        %v8590 = vpop.f32.mrf.mxu0
        %v8591 = vadd.f32 %v1065, %v8590
        %8592 = vdwg.mxu0
        %8593 = vmatpush.msra.mxu0 0.0
        %8594 = vmatpush.msra.mxu0 0.0
        %8595 = vmatpush.msra.mxu0 0.0
        %8596 = vmatpush.msra.mxu0 0.0
        %8597 = vmatpush.msra.mxu0 0.0
        %8598 = vmatpush.msra.mxu0 0.0
        %8599 = vmatpush.msra.mxu0 0.0
        %8600 = vmatpush.msra.mxu0 0.0
        %8601 = vmatpush.msra.mxu0 0.0
        %8602 = vmatpush.msra.mxu0 0.0
        %8603 = vmatpush.msra.mxu0 0.0
        %8604 = vmatpush.msra.mxu0 0.0
        %8605 = vmatpush.msra.mxu0 0.0
        %8606 = vmatpush.msra.mxu0 0.0
        %v8607 = vand.u32 %v8564, 4294901760
        %v8608 = vsub.f32 %v8564, %v8607
        %v8609 = vand.u32 %v8608, 4294901760
        %v8610 = vsub.f32 %v8608, %v8609
        %v8611 = vand.u32 %v8610, 4294901760
        %8612 = vmatpush.msra.mxu0 %v8611
        %v8613 = vand.u32 %v8562, 4294901760
        %v8614 = vsub.f32 %v8562, %v8613
        %v8615 = vand.u32 %v8614, 4294901760
        %v8616 = vsub.f32 %v8614, %v8615
        %v8617 = vand.u32 %v8616, 4294901760
        %8618 = vmatpush.msra.mxu0 %v8617
        %v8619 = vand.u32 %v906, 4294901760
        %8620 = vmatmul.f32.gmra.mxu0 %v8619
        %v8621 = vpop.f32.mrf.mxu0
        %v8622 = vadd.f32 %v8591, %v8621
        %8623 = vdwg.mxu0
        %8624 = vmatpush.msra.mxu0 0.0
        %8625 = vmatpush.msra.mxu0 0.0
        %8626 = vmatpush.msra.mxu0 0.0
        %8627 = vmatpush.msra.mxu0 0.0
        %8628 = vmatpush.msra.mxu0 0.0
        %8629 = vmatpush.msra.mxu0 0.0
        %8630 = vmatpush.msra.mxu0 0.0
        %8631 = vmatpush.msra.mxu0 0.0
        %8632 = vmatpush.msra.mxu0 0.0
        %8633 = vmatpush.msra.mxu0 0.0
        %8634 = vmatpush.msra.mxu0 0.0
        %8635 = vmatpush.msra.mxu0 0.0
        %8636 = vmatpush.msra.mxu0 0.0
        %8637 = vmatpush.msra.mxu0 0.0
        %v8638 = vand.u32 %v8564, 4294901760
        %v8639 = vsub.f32 %v8564, %v8638
        %8640 = vmatpush.msra.mxu0 %v8639
        %v8641 = vand.u32 %v8562, 4294901760
        %v8642 = vsub.f32 %v8562, %v8641
        %8643 = vmatpush.msra.mxu0 %v8642
        %v8644 = vand.u32 %v906, 4294901760
        %v8645 = vsub.f32 %v906, %v8644
        %8646 = vmatmul.f32.gmra.mxu0 %v8645
        %v8647 = vpop.f32.mrf.mxu0
        %v8648 = vadd.f32 %v8622, %v8647
        %8649 = vdwg.mxu0
        %8650 = vmatpush.msra.mxu0 0.0
        %8651 = vmatpush.msra.mxu0 0.0
        %8652 = vmatpush.msra.mxu0 0.0
        %8653 = vmatpush.msra.mxu0 0.0
        %8654 = vmatpush.msra.mxu0 0.0
        %8655 = vmatpush.msra.mxu0 0.0
        %8656 = vmatpush.msra.mxu0 0.0
        %8657 = vmatpush.msra.mxu0 0.0
        %8658 = vmatpush.msra.mxu0 0.0
        %8659 = vmatpush.msra.mxu0 0.0
        %8660 = vmatpush.msra.mxu0 0.0
        %8661 = vmatpush.msra.mxu0 0.0
        %8662 = vmatpush.msra.mxu0 0.0
        %8663 = vmatpush.msra.mxu0 0.0
        %v8664 = vand.u32 %v8564, 4294901760
        %8665 = vmatpush.msra.mxu0 %v8664
        %v8666 = vand.u32 %v8562, 4294901760
        %8667 = vmatpush.msra.mxu0 %v8666
        %v8668 = vand.u32 %v906, 4294901760
        %v8669 = vsub.f32 %v906, %v8668
        %v8670 = vand.u32 %v8669, 4294901760
        %8671 = vmatmul.f32.gmra.mxu0 %v8670
        %v8672 = vpop.f32.mrf.mxu0
        %v8673 = vadd.f32 %v8648, %v8672
        %8674 = vdwg.mxu0
        %8675 = vmatpush.msra.mxu0 0.0
        %8676 = vmatpush.msra.mxu0 0.0
        %8677 = vmatpush.msra.mxu0 0.0
        %8678 = vmatpush.msra.mxu0 0.0
        %8679 = vmatpush.msra.mxu0 0.0
        %8680 = vmatpush.msra.mxu0 0.0
        %8681 = vmatpush.msra.mxu0 0.0
        %8682 = vmatpush.msra.mxu0 0.0
        %8683 = vmatpush.msra.mxu0 0.0
        %8684 = vmatpush.msra.mxu0 0.0
        %8685 = vmatpush.msra.mxu0 0.0
        %8686 = vmatpush.msra.mxu0 0.0
        %8687 = vmatpush.msra.mxu0 0.0
        %8688 = vmatpush.msra.mxu0 0.0
        %v8689 = vand.u32 %v8564, 4294901760
        %v8690 = vsub.f32 %v8564, %v8689
        %v8691 = vand.u32 %v8690, 4294901760
        %8692 = vmatpush.msra.mxu0 %v8691
        %v8693 = vand.u32 %v8562, 4294901760
        %v8694 = vsub.f32 %v8562, %v8693
        %v8695 = vand.u32 %v8694, 4294901760
        %8696 = vmatpush.msra.mxu0 %v8695
        %v8697 = vand.u32 %v906, 4294901760
        %8698 = vmatmul.f32.gmra.mxu0 %v8697
        %v8699 = vpop.f32.mrf.mxu0
        %v8700 = vadd.f32 %v8673, %v8699
        %8701 = vdwg.mxu0
        %8702 = vmatpush.msra.mxu0 0.0
        %8703 = vmatpush.msra.mxu0 0.0
        %8704 = vmatpush.msra.mxu0 0.0
        %8705 = vmatpush.msra.mxu0 0.0
        %8706 = vmatpush.msra.mxu0 0.0
        %8707 = vmatpush.msra.mxu0 0.0
        %8708 = vmatpush.msra.mxu0 0.0
        %8709 = vmatpush.msra.mxu0 0.0
        %8710 = vmatpush.msra.mxu0 0.0
        %8711 = vmatpush.msra.mxu0 0.0
        %8712 = vmatpush.msra.mxu0 0.0
        %8713 = vmatpush.msra.mxu0 0.0
        %8714 = vmatpush.msra.mxu0 0.0
        %8715 = vmatpush.msra.mxu0 0.0
        %v8716 = vand.u32 %v8564, 4294901760
        %8717 = vmatpush.msra.mxu0 %v8716
        %v8718 = vand.u32 %v8562, 4294901760
        %8719 = vmatpush.msra.mxu0 %v8718
        %v8720 = vand.u32 %v906, 4294901760
        %8721 = vmatmul.f32.gmra.mxu0 %v8720
        %v8722 = vpop.f32.mrf.mxu0
        %v8723 = vadd.f32 %v8700, %v8722
        %8724 = vdwg.mxu0
        %8725 = vmatpush.msra.mxu0 0.0
        %8726 = vmatpush.msra.mxu0 0.0
        %8727 = vmatpush.msra.mxu0 0.0
        %8728 = vmatpush.msra.mxu0 0.0
        %8729 = vmatpush.msra.mxu0 0.0
        %8730 = vmatpush.msra.mxu0 0.0
        %8731 = vmatpush.msra.mxu0 0.0
        %8732 = vmatpush.msra.mxu0 0.0
        %8733 = vmatpush.msra.mxu0 0.0
        %8734 = vmatpush.msra.mxu0 0.0
        %8735 = vmatpush.msra.mxu0 0.0
        %8736 = vmatpush.msra.mxu0 0.0
        %8737 = vmatpush.msra.mxu0 0.0
        %8738 = vmatpush.msra.mxu0 0.0
        %v8739 = vand.u32 %v8565, 4294901760
        %8740 = vmatpush.msra.mxu0 %v8739
        %v8741 = vand.u32 %v8563, 4294901760
        %8742 = vmatpush.msra.mxu0 %v8741
        %v8743 = vand.u32 %v906, 4294901760
        %v8744 = vsub.f32 %v906, %v8743
        %v8745 = vand.u32 %v8744, 4294901760
        %v8746 = vsub.f32 %v8744, %v8745
        %v8747 = vand.u32 %v8746, 4294901760
        %8748 = vmatmul.f32.gmra.mxu0 %v8747
        %v8749 = vpop.f32.mrf.mxu0
        %v8750 = vadd.f32 %v1224, %v8749
        %8751 = vdwg.mxu0
        %8752 = vmatpush.msra.mxu0 0.0
        %8753 = vmatpush.msra.mxu0 0.0
        %8754 = vmatpush.msra.mxu0 0.0
        %8755 = vmatpush.msra.mxu0 0.0
        %8756 = vmatpush.msra.mxu0 0.0
        %8757 = vmatpush.msra.mxu0 0.0
        %8758 = vmatpush.msra.mxu0 0.0
        %8759 = vmatpush.msra.mxu0 0.0
        %8760 = vmatpush.msra.mxu0 0.0
        %8761 = vmatpush.msra.mxu0 0.0
        %8762 = vmatpush.msra.mxu0 0.0
        %8763 = vmatpush.msra.mxu0 0.0
        %8764 = vmatpush.msra.mxu0 0.0
        %8765 = vmatpush.msra.mxu0 0.0
        %v8766 = vand.u32 %v8565, 4294901760
        %v8767 = vsub.f32 %v8565, %v8766
        %v8768 = vand.u32 %v8767, 4294901760
        %v8769 = vsub.f32 %v8767, %v8768
        %v8770 = vand.u32 %v8769, 4294901760
        %8771 = vmatpush.msra.mxu0 %v8770
        %v8772 = vand.u32 %v8563, 4294901760
        %v8773 = vsub.f32 %v8563, %v8772
        %v8774 = vand.u32 %v8773, 4294901760
        %v8775 = vsub.f32 %v8773, %v8774
        %v8776 = vand.u32 %v8775, 4294901760
        %8777 = vmatpush.msra.mxu0 %v8776
        %v8778 = vand.u32 %v906, 4294901760
        %8779 = vmatmul.f32.gmra.mxu0 %v8778
        %v8780 = vpop.f32.mrf.mxu0
        %v8781 = vadd.f32 %v8750, %v8780
        %8782 = vdwg.mxu0
        %8783 = vmatpush.msra.mxu0 0.0
        %8784 = vmatpush.msra.mxu0 0.0
        %8785 = vmatpush.msra.mxu0 0.0
        %8786 = vmatpush.msra.mxu0 0.0
        %8787 = vmatpush.msra.mxu0 0.0
        %8788 = vmatpush.msra.mxu0 0.0
        %8789 = vmatpush.msra.mxu0 0.0
        %8790 = vmatpush.msra.mxu0 0.0
        %8791 = vmatpush.msra.mxu0 0.0
        %8792 = vmatpush.msra.mxu0 0.0
        %8793 = vmatpush.msra.mxu0 0.0
        %8794 = vmatpush.msra.mxu0 0.0
        %8795 = vmatpush.msra.mxu0 0.0
        %8796 = vmatpush.msra.mxu0 0.0
        %v8797 = vand.u32 %v8565, 4294901760
        %v8798 = vsub.f32 %v8565, %v8797
        %8799 = vmatpush.msra.mxu0 %v8798
        %v8800 = vand.u32 %v8563, 4294901760
        %v8801 = vsub.f32 %v8563, %v8800
        %8802 = vmatpush.msra.mxu0 %v8801
        %v8803 = vand.u32 %v906, 4294901760
        %v8804 = vsub.f32 %v906, %v8803
        %8805 = vmatmul.f32.gmra.mxu0 %v8804
        %v8806 = vpop.f32.mrf.mxu0
        %v8807 = vadd.f32 %v8781, %v8806
        %8808 = vdwg.mxu0
        %8809 = vmatpush.msra.mxu0 0.0
        %8810 = vmatpush.msra.mxu0 0.0
        %8811 = vmatpush.msra.mxu0 0.0
        %8812 = vmatpush.msra.mxu0 0.0
        %8813 = vmatpush.msra.mxu0 0.0
        %8814 = vmatpush.msra.mxu0 0.0
        %8815 = vmatpush.msra.mxu0 0.0
        %8816 = vmatpush.msra.mxu0 0.0
        %8817 = vmatpush.msra.mxu0 0.0
        %8818 = vmatpush.msra.mxu0 0.0
        %8819 = vmatpush.msra.mxu0 0.0
        %8820 = vmatpush.msra.mxu0 0.0
        %8821 = vmatpush.msra.mxu0 0.0
        %8822 = vmatpush.msra.mxu0 0.0
        %v8823 = vand.u32 %v8565, 4294901760
        %8824 = vmatpush.msra.mxu0 %v8823
        %v8825 = vand.u32 %v8563, 4294901760
        %8826 = vmatpush.msra.mxu0 %v8825
        %v8827 = vand.u32 %v906, 4294901760
        %v8828 = vsub.f32 %v906, %v8827
        %v8829 = vand.u32 %v8828, 4294901760
        %8830 = vmatmul.f32.gmra.mxu0 %v8829
        %v8831 = vpop.f32.mrf.mxu0
        %v8832 = vadd.f32 %v8807, %v8831
        %8833 = vdwg.mxu0
        %8834 = vmatpush.msra.mxu0 0.0
        %8835 = vmatpush.msra.mxu0 0.0
        %8836 = vmatpush.msra.mxu0 0.0
        %8837 = vmatpush.msra.mxu0 0.0
        %8838 = vmatpush.msra.mxu0 0.0
        %8839 = vmatpush.msra.mxu0 0.0
        %8840 = vmatpush.msra.mxu0 0.0
        %8841 = vmatpush.msra.mxu0 0.0
        %8842 = vmatpush.msra.mxu0 0.0
        %8843 = vmatpush.msra.mxu0 0.0
        %8844 = vmatpush.msra.mxu0 0.0
        %8845 = vmatpush.msra.mxu0 0.0
        %8846 = vmatpush.msra.mxu0 0.0
        %8847 = vmatpush.msra.mxu0 0.0
        %v8848 = vand.u32 %v8565, 4294901760
        %v8849 = vsub.f32 %v8565, %v8848
        %v8850 = vand.u32 %v8849, 4294901760
        %8851 = vmatpush.msra.mxu0 %v8850
        %v8852 = vand.u32 %v8563, 4294901760
        %v8853 = vsub.f32 %v8563, %v8852
        %v8854 = vand.u32 %v8853, 4294901760
        %8855 = vmatpush.msra.mxu0 %v8854
        %v8856 = vand.u32 %v906, 4294901760
        %8857 = vmatmul.f32.gmra.mxu0 %v8856
        %v8858 = vpop.f32.mrf.mxu0
        %v8859 = vadd.f32 %v8832, %v8858
        %8860 = vdwg.mxu0
        %8861 = vmatpush.msra.mxu0 0.0
        %8862 = vmatpush.msra.mxu0 0.0
        %8863 = vmatpush.msra.mxu0 0.0
        %8864 = vmatpush.msra.mxu0 0.0
        %8865 = vmatpush.msra.mxu0 0.0
        %8866 = vmatpush.msra.mxu0 0.0
        %8867 = vmatpush.msra.mxu0 0.0
        %8868 = vmatpush.msra.mxu0 0.0
        %8869 = vmatpush.msra.mxu0 0.0
        %8870 = vmatpush.msra.mxu0 0.0
        %8871 = vmatpush.msra.mxu0 0.0
        %8872 = vmatpush.msra.mxu0 0.0
        %8873 = vmatpush.msra.mxu0 0.0
        %8874 = vmatpush.msra.mxu0 0.0
        %v8875 = vand.u32 %v8565, 4294901760
        %8876 = vmatpush.msra.mxu0 %v8875
        %v8877 = vand.u32 %v8563, 4294901760
        %8878 = vmatpush.msra.mxu0 %v8877
        %v8879 = vand.u32 %v906, 4294901760
        %8880 = vmatmul.f32.gmra.mxu0 %v8879
        %v8881 = vpop.f32.mrf.mxu0
        %v8882 = vadd.f32 %v8859, %v8881
        %8883 = vdwg.mxu0
        %8884 = vst [vmem:[%s877] sm:$0xff] %v8723
        %8885 = vst [vmem:[%s877 + $0x8] sm:$0xff] %v8882
        %p8886 = scmp.lt.s32.totalorder %s41, 1
        %s8887 = scalar_select %p8886, %s41, 1
        %s8888 = smul.addr %s8887, 2
        %s8889 = smul.addr %s8888, 8
        %s8890 = scalar_lea.vmem %s21, %s8889
        // Predicated region
        $region161: #{fwd.1} parent=103 // pred_check
          %p8891 = pneg %p505
        $region162: #{fwd.1} parent=103 // pred_check_branch
          %8893 = sbr.rel (%p8891) target = $region164
        $region163: #{fwd.1} parent=103 // pred_region
          _
        $region164: #{fwd.1} parent=103 // pred_fallthru
          _
      $region104: #{fwd.1} parent=5 // pred_fallthru
        _
      %p8894 = scmp.le.s32.totalorder 2, %s36
      // Predicated region
      $region165: #{fwd.1} parent=5 // pred_check
        %p8895 = pneg %p8894
      $region166: #{fwd.1} parent=5 // pred_check_branch
        %8897 = sbr.rel (%p8895) target = $region168
      $region167: #{fwd.1} parent=5 // pred_region
        %s8898 = ssub.s32 %s36, 2
        // Predicated region
        $region169: #{fwd.1} parent=167 // pred_check
          %p8899 = pneg %p511
        $region170: #{fwd.1} parent=167 // pred_check_branch
          %8901 = sbr.rel (%p8899) target = $region172
        $region171: #{fwd.1} parent=167 // pred_region
          %p8902 = scmp.lt.s32.totalorder %s42, 1
          %s8903 = scalar_select %p8902, %s42, 1
          %s8904 = smul.addr %s8903, 2
          %s8905 = smul.addr %s8904, 8
          %s8906 = scalar_lea.vmem %s21, %s8905
        $region172: #{fwd.1} parent=167 // pred_fallthru
          _
      $region168: #{fwd.1} parent=5 // pred_fallthru
        _
    $region6: #{fwd.1} parent=1 // loop_footer
      %s40 = sadd.s32 1, %s36
    $region7: #{fwd.1} parent=1 // loop_footer_branch
      %35 = sbr.rel target = $region3
    $region8: #{fwd.1} parent=1 // loop_exit
      _
    %8907 = vsyncpa [#allocation3], 1
    %s8908 = scalar_lea.sflag [#allocation3], 1
    %8909 = vsyncpa %s8908, 1
    %8910 = vsyncpa [#allocation7], 1
    %8911 = vsyncpa [#allocation10], 1
    %8912 = vsyncpa [#allocation13], 1
    %8913 = vsyncpa [#allocation16], 1
    %8914 = vsyncpa [#allocation19], 1
    %8915 = vsyncpa [#allocation4], 1
    %s8916 = scalar_lea.sflag [#allocation4], 1
    %8917 = vsyncpa %s8916, 1
    %8918 = vsyncpa [#allocation5], 1
    %s8919 = scalar_lea.sflag [#allocation5], 1
    %8920 = vsyncpa %s8919, 1
    %8921 = vsyncpa [#allocation23], 1

</llo_original>
